<compile_context>
chip_gen: v7x
topology: tpu7x:2x2x1
jax: 0.10.0
libtpu: 0.0.40
codegen_flags: <defaults>
</compile_context>

<pallas_src>
import jax
import jax.numpy as jnp
from jax.experimental import pallas as pl
from jax.experimental.pallas import tpu as pltpu


def _lrelu(v):
    # LeakyReLU(0.1): exact as max(v, 0.1*v) for a slope in (0, 1).
    return jnp.maximum(v, 0.1 * v)


def pnp_kernel(x_ref, w1_ref, b1_ref, w2_ref, b2_ref, w3_ref, b3_ref,
               wf1_ref, bf1_ref, wf2_ref, bf2_ref, wq_ref, bq_ref, out_ref):
    # x_ref: (1, Gp, Cin, 9*tile_b) in the compute dtype (bf16 or f32).
    _, gp, _cin, rb = x_ref.shape
    tb = rb // 9
    cdt = w1_ref.dtype

    w1 = w1_ref[...]; w2 = w2_ref[...]; w3 = w3_ref[...]
    b1 = b1_ref[...]; b2 = b2_ref[...]; b3 = b3_ref[...]

    # conv1/conv2/conv3 (1x1 Conv1d == W^T @ X per point-column), unrolled over
    # the Gp groups with the group-max folded in as an elementwise VPU max.
    m = None
    for g in range(gp):
        xg = x_ref[0, g]                                               # (Cin, 9*tb)
        h = jnp.dot(w1, xg, preferred_element_type=jnp.float32) + b1   # (128, 9*tb) f32
        h = _lrelu(h).astype(cdt)
        h = jnp.dot(w2, h, preferred_element_type=jnp.float32) + b2
        h = _lrelu(h).astype(cdt)
        h = jnp.dot(w3, h, preferred_element_type=jnp.float32) + b3    # (128, 9*tb) f32
        m = h if m is None else jnp.maximum(m, h)

    m = m.astype(cdt)                                                  # (128, 9*tb)

    # fc1 as an accumulated sum over the 9 point-slots: (512,128) @ (128, tb) each;
    # m[:, r*tb:(r+1)*tb] are the max-pooled features of point-slot r.
    f = jnp.zeros((wf1_ref.shape[1], tb), jnp.float32)                 # (512, tb)
    for r in range(9):
        f = f + jnp.dot(wf1_ref[r], m[:, r * tb:(r + 1) * tb],
                        preferred_element_type=jnp.float32)
    f = _lrelu(f + bf1_ref[...]).astype(cdt)                           # (512, tb)

    f = _lrelu(jnp.dot(wf2_ref[...], f, preferred_element_type=jnp.float32)
               + bf2_ref[...]).astype(cdt)                             # (256, tb)

    out_ref[0] = (jnp.dot(wq_ref[...], f, preferred_element_type=jnp.float32)
                  + bq_ref[...])                                       # (8, tb) f32


def _round_up(v, m):
    return ((v + m - 1) // m) * m


def simple_pnp_forward(x, params, *, tile_b=None, compute_dtype=jnp.bfloat16):
    """x: (B, Cin, N) in PyTorch Conv1d layout, N = 9*G.  Returns (B, 7) float32.

    tile_b: batch tile per grid step (default: 128 capped at the padded batch;
            use 256 on v6e).  compute_dtype: matmul input dtype (bf16 default,
            float32 for exact parity with the PyTorch module).
    """
    (w1, b1, w2, b2, w3, b3, wf1, bf1, wf2, bf2, wq, bq) = params
    B, Cin, N = x.shape
    assert N % 9 == 0, "number of points must be a multiple of 9"
    G = N // 9

    if tile_b is None:
        tile_b = 128 if B >= 128 else _round_up(B, 8)
    n_tiles = -(-B // tile_b)
    Bp = n_tiles * tile_b
    Gp = _round_up(G, 8)
    cdt = compute_dtype

    # ---- repack x: (B, Cin, 9*G) -> (n_tiles, Gp, Cin, 9*tile_b); lane axis = (r, b) ----
    xr = x.reshape(B, Cin, G, 9)                                      # [b, c, g, r]
    if Gp != G:   # pad groups by repeating the edge group (max-invariant)
        xr = jnp.pad(xr, ((0, 0), (0, 0), (0, Gp - G), (0, 0)), mode="edge")
    if Bp != B:   # zero batch padding, sliced away at the end
        xr = jnp.pad(xr, ((0, Bp - B), (0, 0), (0, 0), (0, 0)))
    xr = xr.reshape(n_tiles, tile_b, Cin, Gp, 9)
    xr = jnp.transpose(xr, (0, 3, 2, 4, 1))                           # [t, g, c, r, bi]
    xw = xr.reshape(n_tiles, Gp, Cin, 9 * tile_b).astype(cdt)

    # ---- transposed weights (W^T) in compute dtype; biases stay float32 columns ----
    OUTP = 8                                      # fc_qt 7 -> 8 rows (sublane pad)
    w1t = w1.T.astype(cdt)                        # (128, Cin)
    w2t = w2.T.astype(cdt)                        # (128, 128)
    w3t = w3.T.astype(cdt)                        # (128, 128)
    b1c = b1.reshape(-1, 1).astype(jnp.float32)
    b2c = b2.reshape(-1, 1).astype(jnp.float32)
    b3c = b3.reshape(-1, 1).astype(jnp.float32)
    wf1t = jnp.transpose(wf1.reshape(9, 128, 512), (0, 2, 1)).astype(cdt)   # (9, 512, 128)
    bf1c = bf1.reshape(-1, 1).astype(jnp.float32)
    wf2t = wf2.T.astype(cdt)                      # (256, 512)
    bf2c = bf2.reshape(-1, 1).astype(jnp.float32)
    wqt = jnp.zeros((OUTP, wq.shape[0]), cdt).at[:7, :].set(wq.T.astype(cdt))
    bqc = jnp.zeros((OUTP, 1), jnp.float32).at[:7, :].set(bq.reshape(-1, 1))

    weights = (w1t, b1c, w2t, b2c, w3t, b3c, wf1t, bf1c, wf2t, bf2c, wqt, bqc)

    # TODO(synk): pipeline_mode=pl.Buffered(1) on these constant weight blocks would drop
    # the ~1.5 MB second weight buffer; kept at the default pipeline for robustness.
    def const_spec(a):
        nd = a.ndim
        return pl.BlockSpec(a.shape, lambda t, _nd=nd: (0,) * _nd)

    in_specs = [pl.BlockSpec((1, Gp, Cin, 9 * tile_b), lambda t: (t, 0, 0, 0))]
    in_specs += [const_spec(w) for w in weights]

    out = pl.pallas_call(
        pnp_kernel,
        out_shape=jax.ShapeDtypeStruct((n_tiles, OUTP, tile_b), jnp.float32),
        grid=(n_tiles,),
        in_specs=in_specs,
        out_specs=pl.BlockSpec((1, OUTP, tile_b), lambda t: (t, 0, 0)),
        compiler_params=pltpu.CompilerParams(
            dimension_semantics=("parallel",),
            vmem_limit_bytes=48 * 1024 * 1024),
    )(xw, *weights)

    qt = jnp.transpose(out, (0, 2, 1)).reshape(Bp, OUTP)
    return qt[:B, :7]


def ref_forward(x, params, compute_dtype=jnp.float32):
    """Plain-JAX reference following the PyTorch forward (eval mode), with the same
    cast points as the kernel when compute_dtype=bfloat16."""
    (w1, b1, w2, b2, w3, b3, wf1, bf1, wf2, bf2, wq, bq) = params
    cdt = compute_dtype
    B, Cin, N = x.shape

    def lin(h, w, b):
        return jnp.dot(h.astype(cdt), w.astype(cdt),
                       preferred_element_type=jnp.float32) + b

    h = jnp.transpose(x, (0, 2, 1))                   # (B, N, Cin)
    h = _lrelu(lin(h, w1, b1))
    h = _lrelu(lin(h, w2, b2))
    h = lin(h, w3, b3)                                # (B, N, 128)
    h = h.reshape(B, N // 9, 9, 128)
    m = jnp.max(h, axis=1).reshape(B, 1152)
    f = _lrelu(lin(m, wf1, bf1))
    f = _lrelu(lin(f, wf2, bf2))
    return lin(f, wq, bq)


if __name__ == "__main__":
    key = jax.random.PRNGKey(0)
    Cin = 4
    keys = jax.random.split(key, 16)

    def init(k, shape, fan_in):
        bound = 1.0 / float(fan_in) ** 0.5
        return jax.random.uniform(k, shape, jnp.float32, -bound, bound)

    # Weights stored as (in, out) == PyTorch weight transposed; biases as (1, out).
    w1 = init(keys[0], (Cin, 128), Cin);     b1 = init(keys[1], (1, 128), Cin)
    w2 = init(keys[2], (128, 128), 128);     b2 = init(keys[3], (1, 128), 128)
    w3 = init(keys[4], (128, 128), 128);     b3 = init(keys[5], (1, 128), 128)
    wf1 = init(keys[6], (1152, 512), 1152);  bf1 = init(keys[7], (1, 512), 1152)
    wf2 = init(keys[8], (512, 256), 512);    bf2 = init(keys[9], (1, 256), 512)
    wq = init(keys[10], (256, 7), 256);      bq = init(keys[11], (1, 7), 256)
    params = (w1, b1, w2, b2, w3, b3, wf1, bf1, wf2, bf2, wq, bq)

    # config 1: B=2, G=8 (N=72), bf16 compute, single grid step (tile_b auto -> 8)
    B, G = 2, 8
    x = jax.random.normal(keys[12], (B, Cin, 9 * G), jnp.float32)
    qt = jax.block_until_ready(simple_pnp_forward(x, params))
    ref = ref_forward(x, params, compute_dtype=jnp.bfloat16)
    assert qt.shape == (B, 7), qt.shape
    assert jnp.allclose(qt, ref, atol=2e-2, rtol=2e-2), (qt, ref)

    # config 2: B=20 with explicit tile_b=8 -> 3 grid steps (batch tiling + zero pad)
    B2, G2 = 20, 8
    x2 = jax.random.normal(keys[13], (B2, Cin, 9 * G2), jnp.float32)
    qt2 = jax.block_until_ready(simple_pnp_forward(x2, params, tile_b=8))
    ref2 = ref_forward(x2, params, compute_dtype=jnp.bfloat16)
    assert qt2.shape == (B2, 7), qt2.shape
    assert jnp.allclose(qt2, ref2, atol=2e-2, rtol=2e-2), (qt2, ref2)

    # config 3: B=3, G=5 (N=45) -> exercises group-axis edge padding; float32 for parity
    B3, G3 = 3, 5
    x3 = jax.random.normal(keys[14], (B3, Cin, 9 * G3), jnp.float32)
    qt3 = jax.block_until_ready(
        simple_pnp_forward(x3, params, compute_dtype=jnp.float32))
    ref3 = ref_forward(x3, params, compute_dtype=jnp.float32)
    assert qt3.shape == (B3, 7), qt3.shape
    assert jnp.allclose(qt3, ref3, atol=1e-4, rtol=1e-4), (qt3, ref3)

    print("KERNEL_OK")
</pallas_src>

<mosaic_0001>
module attributes {stable_mosaic.version = 11 : i64} {
  func.func @pnp_kernel(%arg0: i32, %arg1: memref<1x8x4x72xbf16, #tpu.memory_space<vmem>>, %arg2: memref<128x4xbf16, #tpu.memory_space<vmem>>, %arg3: memref<128x1xf32, #tpu.memory_space<vmem>>, %arg4: memref<128x128xbf16, #tpu.memory_space<vmem>>, %arg5: memref<128x1xf32, #tpu.memory_space<vmem>>, %arg6: memref<128x128xbf16, #tpu.memory_space<vmem>>, %arg7: memref<128x1xf32, #tpu.memory_space<vmem>>, %arg8: memref<9x512x128xbf16, #tpu.memory_space<vmem>>, %arg9: memref<512x1xf32, #tpu.memory_space<vmem>>, %arg10: memref<256x512xbf16, #tpu.memory_space<vmem>>, %arg11: memref<256x1xf32, #tpu.memory_space<vmem>>, %arg12: memref<8x256xbf16, #tpu.memory_space<vmem>>, %arg13: memref<8x1xf32, #tpu.memory_space<vmem>>, %arg14: memref<1x8x8xf32, #tpu.memory_space<vmem>>) attributes {dimension_semantics = [#tpu.dimension_semantics<parallel>], iteration_bounds = array<i64: 1>, scalar_prefetch = 0 : i64, scratch_operands = 0 : i64, tpu.core_type = #tpu.core_type<tc>, window_params = [{transform_indices = @transform_0, window_bounds = array<i64: 1, 8, 4, 72>}, {pipeline_mode = #tpu.pipeline_mode<synchronous>, transform_indices = @transform_1, window_bounds = array<i64: 128, 4>}, {pipeline_mode = #tpu.pipeline_mode<synchronous>, transform_indices = @transform_2, window_bounds = array<i64: 128, 1>}, {pipeline_mode = #tpu.pipeline_mode<synchronous>, transform_indices = @transform_3, window_bounds = array<i64: 128, 128>}, {pipeline_mode = #tpu.pipeline_mode<synchronous>, transform_indices = @transform_4, window_bounds = array<i64: 128, 1>}, {pipeline_mode = #tpu.pipeline_mode<synchronous>, transform_indices = @transform_5, window_bounds = array<i64: 128, 128>}, {pipeline_mode = #tpu.pipeline_mode<synchronous>, transform_indices = @transform_6, window_bounds = array<i64: 128, 1>}, {pipeline_mode = #tpu.pipeline_mode<synchronous>, transform_indices = @transform_7, window_bounds = array<i64: 9, 512, 128>}, {pipeline_mode = #tpu.pipeline_mode<synchronous>, transform_indices = @transform_8, window_bounds = array<i64: 512, 1>}, {pipeline_mode = #tpu.pipeline_mode<synchronous>, transform_indices = @transform_9, window_bounds = array<i64: 256, 512>}, {pipeline_mode = #tpu.pipeline_mode<synchronous>, transform_indices = @transform_10, window_bounds = array<i64: 256, 1>}, {pipeline_mode = #tpu.pipeline_mode<synchronous>, transform_indices = @transform_11, window_bounds = array<i64: 8, 256>}, {pipeline_mode = #tpu.pipeline_mode<synchronous>, transform_indices = @transform_12, window_bounds = array<i64: 8, 1>}, {transform_indices = @transform_13, window_bounds = array<i64: 1, 8, 8>}]} {
    %c0 = arith.constant 0 : index
    %c0_0 = arith.constant 0 : index
    %0 = vector.load %arg2[%c0, %c0_0] : memref<128x4xbf16, #tpu.memory_space<vmem>>, vector<128x4xbf16>
    %c0_1 = arith.constant 0 : index
    %c0_2 = arith.constant 0 : index
    %1 = vector.load %arg4[%c0_1, %c0_2] : memref<128x128xbf16, #tpu.memory_space<vmem>>, vector<128x128xbf16>
    %c0_3 = arith.constant 0 : index
    %c0_4 = arith.constant 0 : index
    %2 = vector.load %arg6[%c0_3, %c0_4] : memref<128x128xbf16, #tpu.memory_space<vmem>>, vector<128x128xbf16>
    %c0_5 = arith.constant 0 : index
    %c0_6 = arith.constant 0 : index
    %3 = vector.load %arg3[%c0_5, %c0_6] : memref<128x1xf32, #tpu.memory_space<vmem>>, vector<128x1xf32>
    %c0_7 = arith.constant 0 : index
    %c0_8 = arith.constant 0 : index
    %4 = vector.load %arg5[%c0_7, %c0_8] : memref<128x1xf32, #tpu.memory_space<vmem>>, vector<128x1xf32>
    %c0_9 = arith.constant 0 : index
    %c0_10 = arith.constant 0 : index
    %5 = vector.load %arg7[%c0_9, %c0_10] : memref<128x1xf32, #tpu.memory_space<vmem>>, vector<128x1xf32>
    %c0_11 = arith.constant 0 : index
    %c0_12 = arith.constant 0 : index
    %c0_13 = arith.constant 0 : index
    %c0_14 = arith.constant 0 : index
    %6 = vector.load %arg1[%c0_11, %c0_12, %c0_13, %c0_14] : memref<1x8x4x72xbf16, #tpu.memory_space<vmem>>, vector<1x1x4x72xbf16>
    %7 = vector.shape_cast %6 : vector<1x1x4x72xbf16> to vector<4x72xbf16>
    %cst = arith.constant dense<0.000000e+00> : vector<128x72xf32>
    %8 = tpu.matmul %0, %7, %cst {dimension_numbers = #tpu.dot_dimension_numbers<[1], [0], [0], [1], [0, 0, 1, 1], [], []>} : vector<128x4xbf16>, vector<4x72xbf16>, vector<128x72xf32> -> vector<128x72xf32>
    %9 = vector.broadcast %3 : vector<128x1xf32> to vector<128x72xf32>
    %10 = arith.addf %8, %9 : vector<128x72xf32>
    %cst_15 = arith.constant 1.000000e-01 : f32
    %11 = vector.broadcast %cst_15 : f32 to vector<128x72xf32>
    %12 = arith.mulf %11, %10 : vector<128x72xf32>
    %13 = arith.maximumf %10, %12 : vector<128x72xf32>
    %14 = arith.truncf %13 : vector<128x72xf32> to vector<128x72xbf16>
    %cst_16 = arith.constant dense<0.000000e+00> : vector<128x72xf32>
    %15 = tpu.matmul %1, %14, %cst_16 {dimension_numbers = #tpu.dot_dimension_numbers<[1], [0], [0], [1], [0, 0, 1, 1], [], []>} : vector<128x128xbf16>, vector<128x72xbf16>, vector<128x72xf32> -> vector<128x72xf32>
    %16 = vector.broadcast %4 : vector<128x1xf32> to vector<128x72xf32>
    %17 = arith.addf %15, %16 : vector<128x72xf32>
    %cst_17 = arith.constant 1.000000e-01 : f32
    %18 = vector.broadcast %cst_17 : f32 to vector<128x72xf32>
    %19 = arith.mulf %18, %17 : vector<128x72xf32>
    %20 = arith.maximumf %17, %19 : vector<128x72xf32>
    %21 = arith.truncf %20 : vector<128x72xf32> to vector<128x72xbf16>
    %cst_18 = arith.constant dense<0.000000e+00> : vector<128x72xf32>
    %22 = tpu.matmul %2, %21, %cst_18 {dimension_numbers = #tpu.dot_dimension_numbers<[1], [0], [0], [1], [0, 0, 1, 1], [], []>} : vector<128x128xbf16>, vector<128x72xbf16>, vector<128x72xf32> -> vector<128x72xf32>
    %23 = vector.broadcast %5 : vector<128x1xf32> to vector<128x72xf32>
    %24 = arith.addf %22, %23 : vector<128x72xf32>
    %c0_19 = arith.constant 0 : index
    %c1 = arith.constant 1 : index
    %c0_20 = arith.constant 0 : index
    %c0_21 = arith.constant 0 : index
    %25 = vector.load %arg1[%c0_19, %c1, %c0_20, %c0_21] : memref<1x8x4x72xbf16, #tpu.memory_space<vmem>>, vector<1x1x4x72xbf16>
    %26 = vector.shape_cast %25 : vector<1x1x4x72xbf16> to vector<4x72xbf16>
    %cst_22 = arith.constant dense<0.000000e+00> : vector<128x72xf32>
    %27 = tpu.matmul %0, %26, %cst_22 {dimension_numbers = #tpu.dot_dimension_numbers<[1], [0], [0], [1], [0, 0, 1, 1], [], []>} : vector<128x4xbf16>, vector<4x72xbf16>, vector<128x72xf32> -> vector<128x72xf32>
    %28 = vector.broadcast %3 : vector<128x1xf32> to vector<128x72xf32>
    %29 = arith.addf %27, %28 : vector<128x72xf32>
    %cst_23 = arith.constant 1.000000e-01 : f32
    %30 = vector.broadcast %cst_23 : f32 to vector<128x72xf32>
    %31 = arith.mulf %30, %29 : vector<128x72xf32>
    %32 = arith.maximumf %29, %31 : vector<128x72xf32>
    %33 = arith.truncf %32 : vector<128x72xf32> to vector<128x72xbf16>
    %cst_24 = arith.constant dense<0.000000e+00> : vector<128x72xf32>
    %34 = tpu.matmul %1, %33, %cst_24 {dimension_numbers = #tpu.dot_dimension_numbers<[1], [0], [0], [1], [0, 0, 1, 1], [], []>} : vector<128x128xbf16>, vector<128x72xbf16>, vector<128x72xf32> -> vector<128x72xf32>
    %35 = vector.broadcast %4 : vector<128x1xf32> to vector<128x72xf32>
    %36 = arith.addf %34, %35 : vector<128x72xf32>
    %cst_25 = arith.constant 1.000000e-01 : f32
    %37 = vector.broadcast %cst_25 : f32 to vector<128x72xf32>
    %38 = arith.mulf %37, %36 : vector<128x72xf32>
    %39 = arith.maximumf %36, %38 : vector<128x72xf32>
    %40 = arith.truncf %39 : vector<128x72xf32> to vector<128x72xbf16>
    %cst_26 = arith.constant dense<0.000000e+00> : vector<128x72xf32>
    %41 = tpu.matmul %2, %40, %cst_26 {dimension_numbers = #tpu.dot_dimension_numbers<[1], [0], [0], [1], [0, 0, 1, 1], [], []>} : vector<128x128xbf16>, vector<128x72xbf16>, vector<128x72xf32> -> vector<128x72xf32>
    %42 = vector.broadcast %5 : vector<128x1xf32> to vector<128x72xf32>
    %43 = arith.addf %41, %42 : vector<128x72xf32>
    %44 = arith.maximumf %24, %43 : vector<128x72xf32>
    %c0_27 = arith.constant 0 : index
    %c2 = arith.constant 2 : index
    %c0_28 = arith.constant 0 : index
    %c0_29 = arith.constant 0 : index
    %45 = vector.load %arg1[%c0_27, %c2, %c0_28, %c0_29] : memref<1x8x4x72xbf16, #tpu.memory_space<vmem>>, vector<1x1x4x72xbf16>
    %46 = vector.shape_cast %45 : vector<1x1x4x72xbf16> to vector<4x72xbf16>
    %cst_30 = arith.constant dense<0.000000e+00> : vector<128x72xf32>
    %47 = tpu.matmul %0, %46, %cst_30 {dimension_numbers = #tpu.dot_dimension_numbers<[1], [0], [0], [1], [0, 0, 1, 1], [], []>} : vector<128x4xbf16>, vector<4x72xbf16>, vector<128x72xf32> -> vector<128x72xf32>
    %48 = vector.broadcast %3 : vector<128x1xf32> to vector<128x72xf32>
    %49 = arith.addf %47, %48 : vector<128x72xf32>
    %cst_31 = arith.constant 1.000000e-01 : f32
    %50 = vector.broadcast %cst_31 : f32 to vector<128x72xf32>
    %51 = arith.mulf %50, %49 : vector<128x72xf32>
    %52 = arith.maximumf %49, %51 : vector<128x72xf32>
    %53 = arith.truncf %52 : vector<128x72xf32> to vector<128x72xbf16>
    %cst_32 = arith.constant dense<0.000000e+00> : vector<128x72xf32>
    %54 = tpu.matmul %1, %53, %cst_32 {dimension_numbers = #tpu.dot_dimension_numbers<[1], [0], [0], [1], [0, 0, 1, 1], [], []>} : vector<128x128xbf16>, vector<128x72xbf16>, vector<128x72xf32> -> vector<128x72xf32>
    %55 = vector.broadcast %4 : vector<128x1xf32> to vector<128x72xf32>
    %56 = arith.addf %54, %55 : vector<128x72xf32>
    %cst_33 = arith.constant 1.000000e-01 : f32
    %57 = vector.broadcast %cst_33 : f32 to vector<128x72xf32>
    %58 = arith.mulf %57, %56 : vector<128x72xf32>
    %59 = arith.maximumf %56, %58 : vector<128x72xf32>
    %60 = arith.truncf %59 : vector<128x72xf32> to vector<128x72xbf16>
    %cst_34 = arith.constant dense<0.000000e+00> : vector<128x72xf32>
    %61 = tpu.matmul %2, %60, %cst_34 {dimension_numbers = #tpu.dot_dimension_numbers<[1], [0], [0], [1], [0, 0, 1, 1], [], []>} : vector<128x128xbf16>, vector<128x72xbf16>, vector<128x72xf32> -> vector<128x72xf32>
    %62 = vector.broadcast %5 : vector<128x1xf32> to vector<128x72xf32>
    %63 = arith.addf %61, %62 : vector<128x72xf32>
    %64 = arith.maximumf %44, %63 : vector<128x72xf32>
    %c0_35 = arith.constant 0 : index
    %c3 = arith.constant 3 : index
    %c0_36 = arith.constant 0 : index
    %c0_37 = arith.constant 0 : index
    %65 = vector.load %arg1[%c0_35, %c3, %c0_36, %c0_37] : memref<1x8x4x72xbf16, #tpu.memory_space<vmem>>, vector<1x1x4x72xbf16>
    %66 = vector.shape_cast %65 : vector<1x1x4x72xbf16> to vector<4x72xbf16>
    %cst_38 = arith.constant dense<0.000000e+00> : vector<128x72xf32>
    %67 = tpu.matmul %0, %66, %cst_38 {dimension_numbers = #tpu.dot_dimension_numbers<[1], [0], [0], [1], [0, 0, 1, 1], [], []>} : vector<128x4xbf16>, vector<4x72xbf16>, vector<128x72xf32> -> vector<128x72xf32>
    %68 = vector.broadcast %3 : vector<128x1xf32> to vector<128x72xf32>
    %69 = arith.addf %67, %68 : vector<128x72xf32>
    %cst_39 = arith.constant 1.000000e-01 : f32
    %70 = vector.broadcast %cst_39 : f32 to vector<128x72xf32>
    %71 = arith.mulf %70, %69 : vector<128x72xf32>
    %72 = arith.maximumf %69, %71 : vector<128x72xf32>
    %73 = arith.truncf %72 : vector<128x72xf32> to vector<128x72xbf16>
    %cst_40 = arith.constant dense<0.000000e+00> : vector<128x72xf32>
    %74 = tpu.matmul %1, %73, %cst_40 {dimension_numbers = #tpu.dot_dimension_numbers<[1], [0], [0], [1], [0, 0, 1, 1], [], []>} : vector<128x128xbf16>, vector<128x72xbf16>, vector<128x72xf32> -> vector<128x72xf32>
    %75 = vector.broadcast %4 : vector<128x1xf32> to vector<128x72xf32>
    %76 = arith.addf %74, %75 : vector<128x72xf32>
    %cst_41 = arith.constant 1.000000e-01 : f32
    %77 = vector.broadcast %cst_41 : f32 to vector<128x72xf32>
    %78 = arith.mulf %77, %76 : vector<128x72xf32>
    %79 = arith.maximumf %76, %78 : vector<128x72xf32>
    %80 = arith.truncf %79 : vector<128x72xf32> to vector<128x72xbf16>
    %cst_42 = arith.constant dense<0.000000e+00> : vector<128x72xf32>
    %81 = tpu.matmul %2, %80, %cst_42 {dimension_numbers = #tpu.dot_dimension_numbers<[1], [0], [0], [1], [0, 0, 1, 1], [], []>} : vector<128x128xbf16>, vector<128x72xbf16>, vector<128x72xf32> -> vector<128x72xf32>
    %82 = vector.broadcast %5 : vector<128x1xf32> to vector<128x72xf32>
    %83 = arith.addf %81, %82 : vector<128x72xf32>
    %84 = arith.maximumf %64, %83 : vector<128x72xf32>
    %c0_43 = arith.constant 0 : index
    %c4 = arith.constant 4 : index
    %c0_44 = arith.constant 0 : index
    %c0_45 = arith.constant 0 : index
    %85 = vector.load %arg1[%c0_43, %c4, %c0_44, %c0_45] : memref<1x8x4x72xbf16, #tpu.memory_space<vmem>>, vector<1x1x4x72xbf16>
    %86 = vector.shape_cast %85 : vector<1x1x4x72xbf16> to vector<4x72xbf16>
    %cst_46 = arith.constant dense<0.000000e+00> : vector<128x72xf32>
    %87 = tpu.matmul %0, %86, %cst_46 {dimension_numbers = #tpu.dot_dimension_numbers<[1], [0], [0], [1], [0, 0, 1, 1], [], []>} : vector<128x4xbf16>, vector<4x72xbf16>, vector<128x72xf32> -> vector<128x72xf32>
    %88 = vector.broadcast %3 : vector<128x1xf32> to vector<128x72xf32>
    %89 = arith.addf %87, %88 : vector<128x72xf32>
    %cst_47 = arith.constant 1.000000e-01 : f32
    %90 = vector.broadcast %cst_47 : f32 to vector<128x72xf32>
    %91 = arith.mulf %90, %89 : vector<128x72xf32>
    %92 = arith.maximumf %89, %91 : vector<128x72xf32>
    %93 = arith.truncf %92 : vector<128x72xf32> to vector<128x72xbf16>
    %cst_48 = arith.constant dense<0.000000e+00> : vector<128x72xf32>
    %94 = tpu.matmul %1, %93, %cst_48 {dimension_numbers = #tpu.dot_dimension_numbers<[1], [0], [0], [1], [0, 0, 1, 1], [], []>} : vector<128x128xbf16>, vector<128x72xbf16>, vector<128x72xf32> -> vector<128x72xf32>
    %95 = vector.broadcast %4 : vector<128x1xf32> to vector<128x72xf32>
    %96 = arith.addf %94, %95 : vector<128x72xf32>
    %cst_49 = arith.constant 1.000000e-01 : f32
    %97 = vector.broadcast %cst_49 : f32 to vector<128x72xf32>
    %98 = arith.mulf %97, %96 : vector<128x72xf32>
    %99 = arith.maximumf %96, %98 : vector<128x72xf32>
    %100 = arith.truncf %99 : vector<128x72xf32> to vector<128x72xbf16>
    %cst_50 = arith.constant dense<0.000000e+00> : vector<128x72xf32>
    %101 = tpu.matmul %2, %100, %cst_50 {dimension_numbers = #tpu.dot_dimension_numbers<[1], [0], [0], [1], [0, 0, 1, 1], [], []>} : vector<128x128xbf16>, vector<128x72xbf16>, vector<128x72xf32> -> vector<128x72xf32>
    %102 = vector.broadcast %5 : vector<128x1xf32> to vector<128x72xf32>
    %103 = arith.addf %101, %102 : vector<128x72xf32>
    %104 = arith.maximumf %84, %103 : vector<128x72xf32>
    %c0_51 = arith.constant 0 : index
    %c5 = arith.constant 5 : index
    %c0_52 = arith.constant 0 : index
    %c0_53 = arith.constant 0 : index
    %105 = vector.load %arg1[%c0_51, %c5, %c0_52, %c0_53] : memref<1x8x4x72xbf16, #tpu.memory_space<vmem>>, vector<1x1x4x72xbf16>
    %106 = vector.shape_cast %105 : vector<1x1x4x72xbf16> to vector<4x72xbf16>
    %cst_54 = arith.constant dense<0.000000e+00> : vector<128x72xf32>
    %107 = tpu.matmul %0, %106, %cst_54 {dimension_numbers = #tpu.dot_dimension_numbers<[1], [0], [0], [1], [0, 0, 1, 1], [], []>} : vector<128x4xbf16>, vector<4x72xbf16>, vector<128x72xf32> -> vector<128x72xf32>
    %108 = vector.broadcast %3 : vector<128x1xf32> to vector<128x72xf32>
    %109 = arith.addf %107, %108 : vector<128x72xf32>
    %cst_55 = arith.constant 1.000000e-01 : f32
    %110 = vector.broadcast %cst_55 : f32 to vector<128x72xf32>
    %111 = arith.mulf %110, %109 : vector<128x72xf32>
    %112 = arith.maximumf %109, %111 : vector<128x72xf32>
    %113 = arith.truncf %112 : vector<128x72xf32> to vector<128x72xbf16>
    %cst_56 = arith.constant dense<0.000000e+00> : vector<128x72xf32>
    %114 = tpu.matmul %1, %113, %cst_56 {dimension_numbers = #tpu.dot_dimension_numbers<[1], [0], [0], [1], [0, 0, 1, 1], [], []>} : vector<128x128xbf16>, vector<128x72xbf16>, vector<128x72xf32> -> vector<128x72xf32>
    %115 = vector.broadcast %4 : vector<128x1xf32> to vector<128x72xf32>
    %116 = arith.addf %114, %115 : vector<128x72xf32>
    %cst_57 = arith.constant 1.000000e-01 : f32
    %117 = vector.broadcast %cst_57 : f32 to vector<128x72xf32>
    %118 = arith.mulf %117, %116 : vector<128x72xf32>
    %119 = arith.maximumf %116, %118 : vector<128x72xf32>
    %120 = arith.truncf %119 : vector<128x72xf32> to vector<128x72xbf16>
    %cst_58 = arith.constant dense<0.000000e+00> : vector<128x72xf32>
    %121 = tpu.matmul %2, %120, %cst_58 {dimension_numbers = #tpu.dot_dimension_numbers<[1], [0], [0], [1], [0, 0, 1, 1], [], []>} : vector<128x128xbf16>, vector<128x72xbf16>, vector<128x72xf32> -> vector<128x72xf32>
    %122 = vector.broadcast %5 : vector<128x1xf32> to vector<128x72xf32>
    %123 = arith.addf %121, %122 : vector<128x72xf32>
    %124 = arith.maximumf %104, %123 : vector<128x72xf32>
    %c0_59 = arith.constant 0 : index
    %c6 = arith.constant 6 : index
    %c0_60 = arith.constant 0 : index
    %c0_61 = arith.constant 0 : index
    %125 = vector.load %arg1[%c0_59, %c6, %c0_60, %c0_61] : memref<1x8x4x72xbf16, #tpu.memory_space<vmem>>, vector<1x1x4x72xbf16>
    %126 = vector.shape_cast %125 : vector<1x1x4x72xbf16> to vector<4x72xbf16>
    %cst_62 = arith.constant dense<0.000000e+00> : vector<128x72xf32>
    %127 = tpu.matmul %0, %126, %cst_62 {dimension_numbers = #tpu.dot_dimension_numbers<[1], [0], [0], [1], [0, 0, 1, 1], [], []>} : vector<128x4xbf16>, vector<4x72xbf16>, vector<128x72xf32> -> vector<128x72xf32>
    %128 = vector.broadcast %3 : vector<128x1xf32> to vector<128x72xf32>
    %129 = arith.addf %127, %128 : vector<128x72xf32>
    %cst_63 = arith.constant 1.000000e-01 : f32
    %130 = vector.broadcast %cst_63 : f32 to vector<128x72xf32>
    %131 = arith.mulf %130, %129 : vector<128x72xf32>
    %132 = arith.maximumf %129, %131 : vector<128x72xf32>
    %133 = arith.truncf %132 : vector<128x72xf32> to vector<128x72xbf16>
    %cst_64 = arith.constant dense<0.000000e+00> : vector<128x72xf32>
    %134 = tpu.matmul %1, %133, %cst_64 {dimension_numbers = #tpu.dot_dimension_numbers<[1], [0], [0], [1], [0, 0, 1, 1], [], []>} : vector<128x128xbf16>, vector<128x72xbf16>, vector<128x72xf32> -> vector<128x72xf32>
    %135 = vector.broadcast %4 : vector<128x1xf32> to vector<128x72xf32>
    %136 = arith.addf %134, %135 : vector<128x72xf32>
    %cst_65 = arith.constant 1.000000e-01 : f32
    %137 = vector.broadcast %cst_65 : f32 to vector<128x72xf32>
    %138 = arith.mulf %137, %136 : vector<128x72xf32>
    %139 = arith.maximumf %136, %138 : vector<128x72xf32>
    %140 = arith.truncf %139 : vector<128x72xf32> to vector<128x72xbf16>
    %cst_66 = arith.constant dense<0.000000e+00> : vector<128x72xf32>
    %141 = tpu.matmul %2, %140, %cst_66 {dimension_numbers = #tpu.dot_dimension_numbers<[1], [0], [0], [1], [0, 0, 1, 1], [], []>} : vector<128x128xbf16>, vector<128x72xbf16>, vector<128x72xf32> -> vector<128x72xf32>
    %142 = vector.broadcast %5 : vector<128x1xf32> to vector<128x72xf32>
    %143 = arith.addf %141, %142 : vector<128x72xf32>
    %144 = arith.maximumf %124, %143 : vector<128x72xf32>
    %c0_67 = arith.constant 0 : index
    %c7 = arith.constant 7 : index
    %c0_68 = arith.constant 0 : index
    %c0_69 = arith.constant 0 : index
    %145 = vector.load %arg1[%c0_67, %c7, %c0_68, %c0_69] : memref<1x8x4x72xbf16, #tpu.memory_space<vmem>>, vector<1x1x4x72xbf16>
    %146 = vector.shape_cast %145 : vector<1x1x4x72xbf16> to vector<4x72xbf16>
    %cst_70 = arith.constant dense<0.000000e+00> : vector<128x72xf32>
    %147 = tpu.matmul %0, %146, %cst_70 {dimension_numbers = #tpu.dot_dimension_numbers<[1], [0], [0], [1], [0, 0, 1, 1], [], []>} : vector<128x4xbf16>, vector<4x72xbf16>, vector<128x72xf32> -> vector<128x72xf32>
    %148 = vector.broadcast %3 : vector<128x1xf32> to vector<128x72xf32>
    %149 = arith.addf %147, %148 : vector<128x72xf32>
    %cst_71 = arith.constant 1.000000e-01 : f32
    %150 = vector.broadcast %cst_71 : f32 to vector<128x72xf32>
    %151 = arith.mulf %150, %149 : vector<128x72xf32>
    %152 = arith.maximumf %149, %151 : vector<128x72xf32>
    %153 = arith.truncf %152 : vector<128x72xf32> to vector<128x72xbf16>
    %cst_72 = arith.constant dense<0.000000e+00> : vector<128x72xf32>
    %154 = tpu.matmul %1, %153, %cst_72 {dimension_numbers = #tpu.dot_dimension_numbers<[1], [0], [0], [1], [0, 0, 1, 1], [], []>} : vector<128x128xbf16>, vector<128x72xbf16>, vector<128x72xf32> -> vector<128x72xf32>
    %155 = vector.broadcast %4 : vector<128x1xf32> to vector<128x72xf32>
    %156 = arith.addf %154, %155 : vector<128x72xf32>
    %cst_73 = arith.constant 1.000000e-01 : f32
    %157 = vector.broadcast %cst_73 : f32 to vector<128x72xf32>
    %158 = arith.mulf %157, %156 : vector<128x72xf32>
    %159 = arith.maximumf %156, %158 : vector<128x72xf32>
    %160 = arith.truncf %159 : vector<128x72xf32> to vector<128x72xbf16>
    %cst_74 = arith.constant dense<0.000000e+00> : vector<128x72xf32>
    %161 = tpu.matmul %2, %160, %cst_74 {dimension_numbers = #tpu.dot_dimension_numbers<[1], [0], [0], [1], [0, 0, 1, 1], [], []>} : vector<128x128xbf16>, vector<128x72xbf16>, vector<128x72xf32> -> vector<128x72xf32>
    %162 = vector.broadcast %5 : vector<128x1xf32> to vector<128x72xf32>
    %163 = arith.addf %161, %162 : vector<128x72xf32>
    %164 = arith.maximumf %144, %163 : vector<128x72xf32>
    %165 = arith.truncf %164 : vector<128x72xf32> to vector<128x72xbf16>
    %cst_75 = arith.constant 0.000000e+00 : f32
    %166 = vector.broadcast %cst_75 : f32 to vector<512x8xf32>
    %c0_76 = arith.constant 0 : index
    %c0_77 = arith.constant 0 : index
    %c0_78 = arith.constant 0 : index
    %167 = vector.load %arg8[%c0_76, %c0_77, %c0_78] : memref<9x512x128xbf16, #tpu.memory_space<vmem>>, vector<1x512x128xbf16>
    %168 = vector.shape_cast %167 : vector<1x512x128xbf16> to vector<512x128xbf16>
    %169 = vector.extract_strided_slice %165 {offsets = [0, 0], sizes = [128, 8], strides = [1, 1]} : vector<128x72xbf16> to vector<128x8xbf16>
    %cst_79 = arith.constant dense<0.000000e+00> : vector<512x8xf32>
    %170 = tpu.matmul %168, %169, %cst_79 {dimension_numbers = #tpu.dot_dimension_numbers<[1], [0], [0], [1], [0, 0, 1, 1], [], []>} : vector<512x128xbf16>, vector<128x8xbf16>, vector<512x8xf32> -> vector<512x8xf32>
    %171 = arith.addf %166, %170 : vector<512x8xf32>
    %c1_80 = arith.constant 1 : index
    %c0_81 = arith.constant 0 : index
    %c0_82 = arith.constant 0 : index
    %172 = vector.load %arg8[%c1_80, %c0_81, %c0_82] : memref<9x512x128xbf16, #tpu.memory_space<vmem>>, vector<1x512x128xbf16>
    %173 = vector.shape_cast %172 : vector<1x512x128xbf16> to vector<512x128xbf16>
    %174 = vector.extract_strided_slice %165 {offsets = [0, 8], sizes = [128, 8], strides = [1, 1]} : vector<128x72xbf16> to vector<128x8xbf16>
    %cst_83 = arith.constant dense<0.000000e+00> : vector<512x8xf32>
    %175 = tpu.matmul %173, %174, %cst_83 {dimension_numbers = #tpu.dot_dimension_numbers<[1], [0], [0], [1], [0, 0, 1, 1], [], []>} : vector<512x128xbf16>, vector<128x8xbf16>, vector<512x8xf32> -> vector<512x8xf32>
    %176 = arith.addf %171, %175 : vector<512x8xf32>
    %c2_84 = arith.constant 2 : index
    %c0_85 = arith.constant 0 : index
    %c0_86 = arith.constant 0 : index
    %177 = vector.load %arg8[%c2_84, %c0_85, %c0_86] : memref<9x512x128xbf16, #tpu.memory_space<vmem>>, vector<1x512x128xbf16>
    %178 = vector.shape_cast %177 : vector<1x512x128xbf16> to vector<512x128xbf16>
    %179 = vector.extract_strided_slice %165 {offsets = [0, 16], sizes = [128, 8], strides = [1, 1]} : vector<128x72xbf16> to vector<128x8xbf16>
    %cst_87 = arith.constant dense<0.000000e+00> : vector<512x8xf32>
    %180 = tpu.matmul %178, %179, %cst_87 {dimension_numbers = #tpu.dot_dimension_numbers<[1], [0], [0], [1], [0, 0, 1, 1], [], []>} : vector<512x128xbf16>, vector<128x8xbf16>, vector<512x8xf32> -> vector<512x8xf32>
    %181 = arith.addf %176, %180 : vector<512x8xf32>
    %c3_88 = arith.constant 3 : index
    %c0_89 = arith.constant 0 : index
    %c0_90 = arith.constant 0 : index
    %182 = vector.load %arg8[%c3_88, %c0_89, %c0_90] : memref<9x512x128xbf16, #tpu.memory_space<vmem>>, vector<1x512x128xbf16>
    %183 = vector.shape_cast %182 : vector<1x512x128xbf16> to vector<512x128xbf16>
    %184 = vector.extract_strided_slice %165 {offsets = [0, 24], sizes = [128, 8], strides = [1, 1]} : vector<128x72xbf16> to vector<128x8xbf16>
    %cst_91 = arith.constant dense<0.000000e+00> : vector<512x8xf32>
    %185 = tpu.matmul %183, %184, %cst_91 {dimension_numbers = #tpu.dot_dimension_numbers<[1], [0], [0], [1], [0, 0, 1, 1], [], []>} : vector<512x128xbf16>, vector<128x8xbf16>, vector<512x8xf32> -> vector<512x8xf32>
    %186 = arith.addf %181, %185 : vector<512x8xf32>
    %c4_92 = arith.constant 4 : index
    %c0_93 = arith.constant 0 : index
    %c0_94 = arith.constant 0 : index
    %187 = vector.load %arg8[%c4_92, %c0_93, %c0_94] : memref<9x512x128xbf16, #tpu.memory_space<vmem>>, vector<1x512x128xbf16>
    %188 = vector.shape_cast %187 : vector<1x512x128xbf16> to vector<512x128xbf16>
    %189 = vector.extract_strided_slice %165 {offsets = [0, 32], sizes = [128, 8], strides = [1, 1]} : vector<128x72xbf16> to vector<128x8xbf16>
    %cst_95 = arith.constant dense<0.000000e+00> : vector<512x8xf32>
    %190 = tpu.matmul %188, %189, %cst_95 {dimension_numbers = #tpu.dot_dimension_numbers<[1], [0], [0], [1], [0, 0, 1, 1], [], []>} : vector<512x128xbf16>, vector<128x8xbf16>, vector<512x8xf32> -> vector<512x8xf32>
    %191 = arith.addf %186, %190 : vector<512x8xf32>
    %c5_96 = arith.constant 5 : index
    %c0_97 = arith.constant 0 : index
    %c0_98 = arith.constant 0 : index
    %192 = vector.load %arg8[%c5_96, %c0_97, %c0_98] : memref<9x512x128xbf16, #tpu.memory_space<vmem>>, vector<1x512x128xbf16>
    %193 = vector.shape_cast %192 : vector<1x512x128xbf16> to vector<512x128xbf16>
    %194 = vector.extract_strided_slice %165 {offsets = [0, 40], sizes = [128, 8], strides = [1, 1]} : vector<128x72xbf16> to vector<128x8xbf16>
    %cst_99 = arith.constant dense<0.000000e+00> : vector<512x8xf32>
    %195 = tpu.matmul %193, %194, %cst_99 {dimension_numbers = #tpu.dot_dimension_numbers<[1], [0], [0], [1], [0, 0, 1, 1], [], []>} : vector<512x128xbf16>, vector<128x8xbf16>, vector<512x8xf32> -> vector<512x8xf32>
    %196 = arith.addf %191, %195 : vector<512x8xf32>
    %c6_100 = arith.constant 6 : index
    %c0_101 = arith.constant 0 : index
    %c0_102 = arith.constant 0 : index
    %197 = vector.load %arg8[%c6_100, %c0_101, %c0_102] : memref<9x512x128xbf16, #tpu.memory_space<vmem>>, vector<1x512x128xbf16>
    %198 = vector.shape_cast %197 : vector<1x512x128xbf16> to vector<512x128xbf16>
    %199 = vector.extract_strided_slice %165 {offsets = [0, 48], sizes = [128, 8], strides = [1, 1]} : vector<128x72xbf16> to vector<128x8xbf16>
    %cst_103 = arith.constant dense<0.000000e+00> : vector<512x8xf32>
    %200 = tpu.matmul %198, %199, %cst_103 {dimension_numbers = #tpu.dot_dimension_numbers<[1], [0], [0], [1], [0, 0, 1, 1], [], []>} : vector<512x128xbf16>, vector<128x8xbf16>, vector<512x8xf32> -> vector<512x8xf32>
    %201 = arith.addf %196, %200 : vector<512x8xf32>
    %c7_104 = arith.constant 7 : index
    %c0_105 = arith.constant 0 : index
    %c0_106 = arith.constant 0 : index
    %202 = vector.load %arg8[%c7_104, %c0_105, %c0_106] : memref<9x512x128xbf16, #tpu.memory_space<vmem>>, vector<1x512x128xbf16>
    %203 = vector.shape_cast %202 : vector<1x512x128xbf16> to vector<512x128xbf16>
    %204 = vector.extract_strided_slice %165 {offsets = [0, 56], sizes = [128, 8], strides = [1, 1]} : vector<128x72xbf16> to vector<128x8xbf16>
    %cst_107 = arith.constant dense<0.000000e+00> : vector<512x8xf32>
    %205 = tpu.matmul %203, %204, %cst_107 {dimension_numbers = #tpu.dot_dimension_numbers<[1], [0], [0], [1], [0, 0, 1, 1], [], []>} : vector<512x128xbf16>, vector<128x8xbf16>, vector<512x8xf32> -> vector<512x8xf32>
    %206 = arith.addf %201, %205 : vector<512x8xf32>
    %c8 = arith.constant 8 : index
    %c0_108 = arith.constant 0 : index
    %c0_109 = arith.constant 0 : index
    %207 = vector.load %arg8[%c8, %c0_108, %c0_109] : memref<9x512x128xbf16, #tpu.memory_space<vmem>>, vector<1x512x128xbf16>
    %208 = vector.shape_cast %207 : vector<1x512x128xbf16> to vector<512x128xbf16>
    %209 = vector.extract_strided_slice %165 {offsets = [0, 64], sizes = [128, 8], strides = [1, 1]} : vector<128x72xbf16> to vector<128x8xbf16>
    %cst_110 = arith.constant dense<0.000000e+00> : vector<512x8xf32>
    %210 = tpu.matmul %208, %209, %cst_110 {dimension_numbers = #tpu.dot_dimension_numbers<[1], [0], [0], [1], [0, 0, 1, 1], [], []>} : vector<512x128xbf16>, vector<128x8xbf16>, vector<512x8xf32> -> vector<512x8xf32>
    %211 = arith.addf %206, %210 : vector<512x8xf32>
    %c0_111 = arith.constant 0 : index
    %c0_112 = arith.constant 0 : index
    %212 = vector.load %arg9[%c0_111, %c0_112] : memref<512x1xf32, #tpu.memory_space<vmem>>, vector<512x1xf32>
    %213 = vector.broadcast %212 : vector<512x1xf32> to vector<512x8xf32>
    %214 = arith.addf %211, %213 : vector<512x8xf32>
    %cst_113 = arith.constant 1.000000e-01 : f32
    %215 = vector.broadcast %cst_113 : f32 to vector<512x8xf32>
    %216 = arith.mulf %215, %214 : vector<512x8xf32>
    %217 = arith.maximumf %214, %216 : vector<512x8xf32>
    %218 = arith.truncf %217 : vector<512x8xf32> to vector<512x8xbf16>
    %c0_114 = arith.constant 0 : index
    %c0_115 = arith.constant 0 : index
    %219 = vector.load %arg10[%c0_114, %c0_115] : memref<256x512xbf16, #tpu.memory_space<vmem>>, vector<256x512xbf16>
    %cst_116 = arith.constant dense<0.000000e+00> : vector<256x8xf32>
    %220 = tpu.matmul %219, %218, %cst_116 {dimension_numbers = #tpu.dot_dimension_numbers<[1], [0], [0], [1], [0, 0, 1, 1], [], []>} : vector<256x512xbf16>, vector<512x8xbf16>, vector<256x8xf32> -> vector<256x8xf32>
    %c0_117 = arith.constant 0 : index
    %c0_118 = arith.constant 0 : index
    %221 = vector.load %arg11[%c0_117, %c0_118] : memref<256x1xf32, #tpu.memory_space<vmem>>, vector<256x1xf32>
    %222 = vector.broadcast %221 : vector<256x1xf32> to vector<256x8xf32>
    %223 = arith.addf %220, %222 : vector<256x8xf32>
    %cst_119 = arith.constant 1.000000e-01 : f32
    %224 = vector.broadcast %cst_119 : f32 to vector<256x8xf32>
    %225 = arith.mulf %224, %223 : vector<256x8xf32>
    %226 = arith.maximumf %223, %225 : vector<256x8xf32>
    %227 = arith.truncf %226 : vector<256x8xf32> to vector<256x8xbf16>
    %c0_120 = arith.constant 0 : index
    %c0_121 = arith.constant 0 : index
    %228 = vector.load %arg12[%c0_120, %c0_121] : memref<8x256xbf16, #tpu.memory_space<vmem>>, vector<8x256xbf16>
    %cst_122 = arith.constant dense<0.000000e+00> : vector<8x8xf32>
    %229 = tpu.matmul %228, %227, %cst_122 {dimension_numbers = #tpu.dot_dimension_numbers<[1], [0], [0], [1], [0, 0, 1, 1], [], []>} : vector<8x256xbf16>, vector<256x8xbf16>, vector<8x8xf32> -> vector<8x8xf32>
    %c0_123 = arith.constant 0 : index
    %c0_124 = arith.constant 0 : index
    %230 = vector.load %arg13[%c0_123, %c0_124] : memref<8x1xf32, #tpu.memory_space<vmem>>, vector<8x1xf32>
    %231 = vector.broadcast %230 : vector<8x1xf32> to vector<8x8xf32>
    %232 = arith.addf %229, %231 : vector<8x8xf32>
    %c0_125 = arith.constant 0 : index
    %c0_126 = arith.constant 0 : index
    %c0_127 = arith.constant 0 : index
    %233 = vector.load %arg14[%c0_125, %c0_126, %c0_127] : memref<1x8x8xf32, #tpu.memory_space<vmem>>, vector<1x8x8xf32>
    %234 = vector.shape_cast %233 : vector<1x8x8xf32> to vector<8x8xf32>
    %235 = vector.shape_cast %232 : vector<8x8xf32> to vector<1x8x8xf32>
    tpu.vector_store %arg14[%c0_125, %c0_126, %c0_127], %235 {strides = array<i32>} : memref<1x8x8xf32, #tpu.memory_space<vmem>>, vector<1x8x8xf32>,
    return
  }
  func.func @transform_0(%arg0: i32) -> (i32, i32, i32, i32) {
    %c0_i32 = arith.constant 0 : i32
    %c0_i32_0 = arith.constant 0 : i32
    %c0_i32_1 = arith.constant 0 : i32
    %c0_i32_2 = arith.constant 0 : i32
    return %arg0, %c0_i32, %c0_i32_0, %c0_i32_1 : i32, i32, i32, i32
  }
  func.func @transform_1(%arg0: i32) -> (i32, i32) {
    %c0_i32 = arith.constant 0 : i32
    %c0_i32_0 = arith.constant 0 : i32
    %c0_i32_1 = arith.constant 0 : i32
    return %c0_i32, %c0_i32_0 : i32, i32
  }
  func.func @transform_2(%arg0: i32) -> (i32, i32) {
    %c0_i32 = arith.constant 0 : i32
    %c0_i32_0 = arith.constant 0 : i32
    %c0_i32_1 = arith.constant 0 : i32
    return %c0_i32, %c0_i32_0 : i32, i32
  }
  func.func @transform_3(%arg0: i32) -> (i32, i32) {
    %c0_i32 = arith.constant 0 : i32
    %c0_i32_0 = arith.constant 0 : i32
    %c0_i32_1 = arith.constant 0 : i32
    return %c0_i32, %c0_i32_0 : i32, i32
  }
  func.func @transform_4(%arg0: i32) -> (i32, i32) {
    %c0_i32 = arith.constant 0 : i32
    %c0_i32_0 = arith.constant 0 : i32
    %c0_i32_1 = arith.constant 0 : i32
    return %c0_i32, %c0_i32_0 : i32, i32
  }
  func.func @transform_5(%arg0: i32) -> (i32, i32) {
    %c0_i32 = arith.constant 0 : i32
    %c0_i32_0 = arith.constant 0 : i32
    %c0_i32_1 = arith.constant 0 : i32
    return %c0_i32, %c0_i32_0 : i32, i32
  }
  func.func @transform_6(%arg0: i32) -> (i32, i32) {
    %c0_i32 = arith.constant 0 : i32
    %c0_i32_0 = arith.constant 0 : i32
    %c0_i32_1 = arith.constant 0 : i32
    return %c0_i32, %c0_i32_0 : i32, i32
  }
  func.func @transform_7(%arg0: i32) -> (i32, i32, i32) {
    %c0_i32 = arith.constant 0 : i32
    %c0_i32_0 = arith.constant 0 : i32
    %c0_i32_1 = arith.constant 0 : i32
    %c0_i32_2 = arith.constant 0 : i32
    return %c0_i32, %c0_i32_0, %c0_i32_1 : i32, i32, i32
  }
  func.func @transform_8(%arg0: i32) -> (i32, i32) {
    %c0_i32 = arith.constant 0 : i32
    %c0_i32_0 = arith.constant 0 : i32
    %c0_i32_1 = arith.constant 0 : i32
    return %c0_i32, %c0_i32_0 : i32, i32
  }
  func.func @transform_9(%arg0: i32) -> (i32, i32) {
    %c0_i32 = arith.constant 0 : i32
    %c0_i32_0 = arith.constant 0 : i32
    %c0_i32_1 = arith.constant 0 : i32
    return %c0_i32, %c0_i32_0 : i32, i32
  }
  func.func @transform_10(%arg0: i32) -> (i32, i32) {
    %c0_i32 = arith.constant 0 : i32
    %c0_i32_0 = arith.constant 0 : i32
    %c0_i32_1 = arith.constant 0 : i32
    return %c0_i32, %c0_i32_0 : i32, i32
  }
  func.func @transform_11(%arg0: i32) -> (i32, i32) {
    %c0_i32 = arith.constant 0 : i32
    %c0_i32_0 = arith.constant 0 : i32
    %c0_i32_1 = arith.constant 0 : i32
    return %c0_i32, %c0_i32_0 : i32, i32
  }
  func.func @transform_12(%arg0: i32) -> (i32, i32) {
    %c0_i32 = arith.constant 0 : i32
    %c0_i32_0 = arith.constant 0 : i32
    %c0_i32_1 = arith.constant 0 : i32
    return %c0_i32, %c0_i32_0 : i32, i32
  }
  func.func @transform_13(%arg0: i32) -> (i32, i32, i32) {
    %c0_i32 = arith.constant 0 : i32
    %c0_i32_0 = arith.constant 0 : i32
    %c0_i32_1 = arith.constant 0 : i32
    return %arg0, %c0_i32, %c0_i32_0 : i32, i32, i32
  }
}

</mosaic_0001>

<llo_original>
// kernel: tpu_custom_call.1
$region0: #{tpu_custom_call.1}
  #allocation0 [shape = 'u32[]', space=smem, size = 0x4, offset = 0x4, fixed_abs, tag = 'smem constant byte address 0x4 - core index']
  #allocation1 [shape = 'u32[144,128]{1,0:T(1,128)}', space=vmem, size = 0x12000, scoped, tag = 'internal scratch']
  %s0 = inlined_call_operand.hbm [shape: bf16[1,8,4,72], index: 0, kind: input, shape index: {}]
  %s1 = inlined_call_operand.vmem [shape: bf16[128,4], index: 1, kind: input, shape index: {}]
  %s2 = inlined_call_operand.vmem [shape: f32[128,1], index: 2, kind: input, shape index: {}]
  %s3 = inlined_call_operand.hbm [shape: bf16[128,128], index: 3, kind: input, shape index: {}]
  %s4 = inlined_call_operand.vmem [shape: f32[128,1], index: 4, kind: input, shape index: {}]
  %s5 = inlined_call_operand.hbm [shape: bf16[128,128], index: 5, kind: input, shape index: {}]
  %s6 = inlined_call_operand.vmem [shape: f32[128,1], index: 6, kind: input, shape index: {}]
  %s7 = inlined_call_operand.hbm [shape: bf16[9,512,128], index: 7, kind: input, shape index: {}]
  %s8 = inlined_call_operand.vmem [shape: f32[512,1], index: 8, kind: input, shape index: {}]
  %s9 = inlined_call_operand.hbm [shape: bf16[256,512], index: 9, kind: input, shape index: {}]
  %s10 = inlined_call_operand.vmem [shape: f32[256,1], index: 10, kind: input, shape index: {}]
  %s11 = inlined_call_operand.hbm [shape: bf16[8,256], index: 11, kind: input, shape index: {}]
  %s12 = inlined_call_operand.vmem [shape: f32[8,1], index: 12, kind: input, shape index: {}]
  %s13 = inlined_call_operand.hbm [shape: f32[1,8,8], index: 13, kind: output, shape index: {}]
  %s14 = sld [smem:[#allocation0]]
  $region86: #{tpu_custom_call.1} parent=0
    _
  %s16 = ssub.s32 1, %s14
  %s17 = scalar_select 0, %s16, %s14
  $region1: #{tpu_custom_call.1} parent=0
    #allocation2 [shape = 'u8[8192]{0}', space=vmem, size = 0x2000, scoped, tag = 'input window, operand 0, single buffered']
    #allocation3 [shape = 's32[1]{0}', space=sflag, size = 0x4, scoped, tag = 'scoped memory for tpu_custom_call.1']
    #allocation4 [shape = 's32[1]{0}', space=sflag, size = 0x4, scoped, tag = 'scoped memory for tpu_custom_call.1']
    #allocation5 [shape = 'u8[32768]{0}', space=vmem, size = 0x8000, scoped, tag = 'input window, operand 3, single buffered']
    #allocation6 [shape = 's32[1]{0}', space=sflag, size = 0x4, scoped, tag = 'scoped memory for tpu_custom_call.1']
    #allocation7 [shape = 'u8[32768]{0}', space=vmem, size = 0x8000, scoped, tag = 'input window, operand 5, single buffered']
    #allocation8 [shape = 'u8[1179648]{0}', space=vmem, size = 0x120000, scoped, tag = 'input window, operand 7, single buffered']
    #allocation9 [shape = 's32[1]{0}', space=sflag, size = 0x4, scoped, tag = 'scoped memory for tpu_custom_call.1']
    #allocation10 [shape = 'u8[262144]{0}', space=vmem, size = 0x40000, scoped, tag = 'input window, operand 9, single buffered']
    #allocation11 [shape = 'u8[4096]{0}', space=vmem, size = 0x1000, scoped, tag = 'input window, operand 11, single buffered']
    #allocation12 [shape = 's32[1]{0}', space=sflag, size = 0x4, scoped, tag = 'scoped memory for tpu_custom_call.1']
    #allocation13 [shape = 'u8[4096]{0}', space=vmem, size = 0x1000, scoped, tag = 'output window, operand 0, single buffered']
    %18 = vsyncpa [#allocation3], 0
    %19 = vsyncpa [#allocation6], 0
    %20 = vsyncpa [#allocation9], 0
    %21 = vsyncpa [#allocation12], 0
    %22 = vsyncpa [#allocation4], 0
    // Predicated region
    $region2: #{tpu_custom_call.1} parent=1 // pred_check
      _
    $region3: #{tpu_custom_call.1} parent=1 // pred_check_branch
      %24 = sbr.rel (0) target = $region5
    $region4: #{tpu_custom_call.1} parent=1 // pred_region
      %s26 = ssub.s32 256, 256
      %27 = vsyncadd [#allocation3], %s26
      %s28 = sshll.u32 [#allocation2], 4
      %s29 = int_to_ptr.vmem [resolvable:$true] %s28
      %34 = dma.hbm_to_vmem [thread:$0]  %s0, 256, %s29, [#allocation3], 32, 32, 2
    $region5: #{tpu_custom_call.1} parent=1 // pred_fallthru
      _
    // Predicated region
    $region6: #{tpu_custom_call.1} parent=1 // pred_check
      _
    $region7: #{tpu_custom_call.1} parent=1 // pred_check_branch
      %36 = sbr.rel (0) target = $region9
    $region8: #{tpu_custom_call.1} parent=1 // pred_region
      _
    $region9: #{tpu_custom_call.1} parent=1 // pred_fallthru
      _
    // Predicated region
    $region10: #{tpu_custom_call.1} parent=1 // pred_check
      _
    $region11: #{tpu_custom_call.1} parent=1 // pred_check_branch
      %38 = sbr.rel (0) target = $region13
    $region12: #{tpu_custom_call.1} parent=1 // pred_region
      _
    $region13: #{tpu_custom_call.1} parent=1 // pred_fallthru
      _
    // Predicated region
    $region14: #{tpu_custom_call.1} parent=1 // pred_check
      _
    $region15: #{tpu_custom_call.1} parent=1 // pred_check_branch
      %40 = sbr.rel (0) target = $region17
    $region16: #{tpu_custom_call.1} parent=1 // pred_region
      %s42 = ssub.s32 1024, 1024
      %43 = vsyncadd [#allocation6], %s42
      %s44 = sshll.u32 [#allocation5], 4
      %s45 = int_to_ptr.vmem [resolvable:$true] %s44
      %50 = dma.hbm_to_vmem [thread:$0]  %s3, 1024, %s45, [#allocation6], 64, 64, 4
    $region17: #{tpu_custom_call.1} parent=1 // pred_fallthru
      _
    // Predicated region
    $region18: #{tpu_custom_call.1} parent=1 // pred_check
      _
    $region19: #{tpu_custom_call.1} parent=1 // pred_check_branch
      %52 = sbr.rel (0) target = $region21
    $region20: #{tpu_custom_call.1} parent=1 // pred_region
      _
    $region21: #{tpu_custom_call.1} parent=1 // pred_fallthru
      _
    // Predicated region
    $region22: #{tpu_custom_call.1} parent=1 // pred_check
      _
    $region23: #{tpu_custom_call.1} parent=1 // pred_check_branch
      %54 = sbr.rel (0) target = $region25
    $region24: #{tpu_custom_call.1} parent=1 // pred_region
      %s56 = ssub.s32 1024, 1024
      %57 = vsyncadd [#allocation6], %s56
      %s58 = sshll.u32 [#allocation7], 4
      %s59 = int_to_ptr.vmem [resolvable:$true] %s58
      %64 = dma.hbm_to_vmem [thread:$0]  %s5, 1024, %s59, [#allocation6], 64, 64, 4
    $region25: #{tpu_custom_call.1} parent=1 // pred_fallthru
      _
    // Predicated region
    $region26: #{tpu_custom_call.1} parent=1 // pred_check
      _
    $region27: #{tpu_custom_call.1} parent=1 // pred_check_branch
      %66 = sbr.rel (0) target = $region29
    $region28: #{tpu_custom_call.1} parent=1 // pred_region
      _
    $region29: #{tpu_custom_call.1} parent=1 // pred_fallthru
      _
    // Predicated region
    $region30: #{tpu_custom_call.1} parent=1 // pred_check
      _
    $region31: #{tpu_custom_call.1} parent=1 // pred_check_branch
      %68 = sbr.rel (0) target = $region33
    $region32: #{tpu_custom_call.1} parent=1 // pred_region
      %s70 = ssub.s32 36864, 36864
      %71 = vsyncadd [#allocation9], %s70
      %s72 = sshll.u32 [#allocation8], 4
      %s73 = int_to_ptr.vmem [resolvable:$true] %s72
      %78 = dma.hbm_to_vmem [thread:$0]  %s7, 36864, %s73, [#allocation9], 64, 64, 4
    $region33: #{tpu_custom_call.1} parent=1 // pred_fallthru
      _
    // Predicated region
    $region34: #{tpu_custom_call.1} parent=1 // pred_check
      _
    $region35: #{tpu_custom_call.1} parent=1 // pred_check_branch
      %80 = sbr.rel (0) target = $region37
    $region36: #{tpu_custom_call.1} parent=1 // pred_region
      _
    $region37: #{tpu_custom_call.1} parent=1 // pred_fallthru
      _
    // Predicated region
    $region38: #{tpu_custom_call.1} parent=1 // pred_check
      _
    $region39: #{tpu_custom_call.1} parent=1 // pred_check_branch
      %82 = sbr.rel (0) target = $region41
    $region40: #{tpu_custom_call.1} parent=1 // pred_region
      %s84 = ssub.s32 8192, 8192
      %85 = vsyncadd [#allocation9], %s84
      %s86 = sshll.u32 [#allocation10], 4
      %s87 = int_to_ptr.vmem [resolvable:$true] %s86
      %92 = dma.hbm_to_vmem [thread:$0]  %s9, 8192, %s87, [#allocation9], 256, 256, 16
    $region41: #{tpu_custom_call.1} parent=1 // pred_fallthru
      _
    // Predicated region
    $region42: #{tpu_custom_call.1} parent=1 // pred_check
      _
    $region43: #{tpu_custom_call.1} parent=1 // pred_check_branch
      %94 = sbr.rel (0) target = $region45
    $region44: #{tpu_custom_call.1} parent=1 // pred_region
      _
    $region45: #{tpu_custom_call.1} parent=1 // pred_fallthru
      _
    // Predicated region
    $region46: #{tpu_custom_call.1} parent=1 // pred_check
      _
    $region47: #{tpu_custom_call.1} parent=1 // pred_check_branch
      %96 = sbr.rel (0) target = $region49
    $region48: #{tpu_custom_call.1} parent=1 // pred_region
      %s98 = ssub.s32 128, 128
      %99 = vsyncadd [#allocation12], %s98
      %s101 = sshll.u32 [#allocation11], 4
      %s102 = int_to_ptr.vmem [resolvable:$true] %s101
      %104 = dma.hbm_to_vmem [thread:$0]  %s11, 128, %s102, [#allocation12]
    $region49: #{tpu_custom_call.1} parent=1 // pred_fallthru
      _
    // Predicated region
    $region50: #{tpu_custom_call.1} parent=1 // pred_check
      _
    $region51: #{tpu_custom_call.1} parent=1 // pred_check_branch
      %106 = sbr.rel (0) target = $region53
    $region52: #{tpu_custom_call.1} parent=1 // pred_region
      _
    $region53: #{tpu_custom_call.1} parent=1 // pred_fallthru
      _
    // Predicated region
    $region54: #{tpu_custom_call.1} parent=1 // pred_check
      _
    $region55: #{tpu_custom_call.1} parent=1 // pred_check_branch
      %108 = sbr.rel (0) target = $region57
    $region56: #{tpu_custom_call.1} parent=1 // pred_region
      %109 = dma.done [#allocation3], 256
    $region57: #{tpu_custom_call.1} parent=1 // pred_fallthru
      _
    // Predicated region
    $region58: #{tpu_custom_call.1} parent=1 // pred_check
      _
    $region59: #{tpu_custom_call.1} parent=1 // pred_check_branch
      %111 = sbr.rel (0) target = $region61
    $region60: #{tpu_custom_call.1} parent=1 // pred_region
      %112 = dma.done [#allocation6], 1024
    $region61: #{tpu_custom_call.1} parent=1 // pred_fallthru
      _
    // Predicated region
    $region62: #{tpu_custom_call.1} parent=1 // pred_check
      _
    $region63: #{tpu_custom_call.1} parent=1 // pred_check_branch
      %114 = sbr.rel (0) target = $region65
    $region64: #{tpu_custom_call.1} parent=1 // pred_region
      %115 = dma.done [#allocation6], 1024
    $region65: #{tpu_custom_call.1} parent=1 // pred_fallthru
      _
    // Predicated region
    $region66: #{tpu_custom_call.1} parent=1 // pred_check
      _
    $region67: #{tpu_custom_call.1} parent=1 // pred_check_branch
      %117 = sbr.rel (0) target = $region69
    $region68: #{tpu_custom_call.1} parent=1 // pred_region
      %118 = dma.done [#allocation9], 36864
    $region69: #{tpu_custom_call.1} parent=1 // pred_fallthru
      _
    // Predicated region
    $region70: #{tpu_custom_call.1} parent=1 // pred_check
      _
    $region71: #{tpu_custom_call.1} parent=1 // pred_check_branch
      %120 = sbr.rel (0) target = $region73
    $region72: #{tpu_custom_call.1} parent=1 // pred_region
      %121 = dma.done [#allocation9], 8192
    $region73: #{tpu_custom_call.1} parent=1 // pred_fallthru
      _
    // Predicated region
    $region74: #{tpu_custom_call.1} parent=1 // pred_check
      _
    $region75: #{tpu_custom_call.1} parent=1 // pred_check_branch
      %123 = sbr.rel (0) target = $region77
    $region76: #{tpu_custom_call.1} parent=1 // pred_region
      %124 = dma.done [#allocation12], 128
    $region77: #{tpu_custom_call.1} parent=1 // pred_fallthru
      _
    %v126 = vld [vmem:[%s1] sm:$0xf]
    %v127 = vld [vmem:[%s1 + $0x4] sm:$0xf]
    %v128 = vld [vmem:[%s1 + $0x8] sm:$0xf]
    %v129 = vld [vmem:[%s1 + $0xc] sm:$0xf]
    %v130 = vld [vmem:[%s1 + $0x10] sm:$0xf]
    %v131 = vld [vmem:[%s1 + $0x14] sm:$0xf]
    %v132 = vld [vmem:[%s1 + $0x18] sm:$0xf]
    %v133 = vld [vmem:[%s1 + $0x1c] sm:$0xf]
    %v134 = vld [vmem:[%s1 + $0x20] sm:$0xf]
    %v135 = vld [vmem:[%s1 + $0x24] sm:$0xf]
    %v136 = vld [vmem:[%s1 + $0x28] sm:$0xf]
    %v137 = vld [vmem:[%s1 + $0x2c] sm:$0xf]
    %v138 = vld [vmem:[%s1 + $0x30] sm:$0xf]
    %v139 = vld [vmem:[%s1 + $0x34] sm:$0xf]
    %v140 = vld [vmem:[%s1 + $0x38] sm:$0xf]
    %v141 = vld [vmem:[%s1 + $0x3c] sm:$0xf]
    %v142 = vld [vmem:[#allocation5] sm:$0xf]
    %v143 = vld [vmem:[#allocation5 + $0x4] sm:$0xf]
    %v144 = vld [vmem:[#allocation5 + $0x8] sm:$0xf]
    %v145 = vld [vmem:[#allocation5 + $0xc] sm:$0xf]
    %v146 = vld [vmem:[#allocation5 + $0x10] sm:$0xf]
    %v147 = vld [vmem:[#allocation5 + $0x14] sm:$0xf]
    %v148 = vld [vmem:[#allocation5 + $0x18] sm:$0xf]
    %v149 = vld [vmem:[#allocation5 + $0x1c] sm:$0xf]
    %v150 = vld [vmem:[#allocation5 + $0x20] sm:$0xf]
    %v151 = vld [vmem:[#allocation5 + $0x24] sm:$0xf]
    %v152 = vld [vmem:[#allocation5 + $0x28] sm:$0xf]
    %v153 = vld [vmem:[#allocation5 + $0x2c] sm:$0xf]
    %v154 = vld [vmem:[#allocation5 + $0x30] sm:$0xf]
    %v155 = vld [vmem:[#allocation5 + $0x34] sm:$0xf]
    %v156 = vld [vmem:[#allocation5 + $0x38] sm:$0xf]
    %v157 = vld [vmem:[#allocation5 + $0x3c] sm:$0xf]
    %v158 = vld [vmem:[#allocation7] sm:$0xf]
    %v159 = vld [vmem:[#allocation7 + $0x4] sm:$0xf]
    %v160 = vld [vmem:[#allocation7 + $0x8] sm:$0xf]
    %v161 = vld [vmem:[#allocation7 + $0xc] sm:$0xf]
    %v162 = vld [vmem:[#allocation7 + $0x10] sm:$0xf]
    %v163 = vld [vmem:[#allocation7 + $0x14] sm:$0xf]
    %v164 = vld [vmem:[#allocation7 + $0x18] sm:$0xf]
    %v165 = vld [vmem:[#allocation7 + $0x1c] sm:$0xf]
    %v166 = vld [vmem:[#allocation7 + $0x20] sm:$0xf]
    %v167 = vld [vmem:[#allocation7 + $0x24] sm:$0xf]
    %v168 = vld [vmem:[#allocation7 + $0x28] sm:$0xf]
    %v169 = vld [vmem:[#allocation7 + $0x2c] sm:$0xf]
    %v170 = vld [vmem:[#allocation7 + $0x30] sm:$0xf]
    %v171 = vld [vmem:[#allocation7 + $0x34] sm:$0xf]
    %v172 = vld [vmem:[#allocation7 + $0x38] sm:$0xf]
    %v173 = vld [vmem:[#allocation7 + $0x3c] sm:$0xf]
    %v174 = vld [vmem:[%s2] sm:$0xff]
    %v175 = vld [vmem:[%s2 + $0x8] sm:$0xff]
    %v176 = vld [vmem:[%s2 + $0x10] sm:$0xff]
    %v177 = vld [vmem:[%s2 + $0x18] sm:$0xff]
    %v178 = vld [vmem:[%s2 + $0x20] sm:$0xff]
    %v179 = vld [vmem:[%s2 + $0x28] sm:$0xff]
    %v180 = vld [vmem:[%s2 + $0x30] sm:$0xff]
    %v181 = vld [vmem:[%s2 + $0x38] sm:$0xff]
    %v182 = vld [vmem:[%s2 + $0x40] sm:$0xff]
    %v183 = vld [vmem:[%s2 + $0x48] sm:$0xff]
    %v184 = vld [vmem:[%s2 + $0x50] sm:$0xff]
    %v185 = vld [vmem:[%s2 + $0x58] sm:$0xff]
    %v186 = vld [vmem:[%s2 + $0x60] sm:$0xff]
    %v187 = vld [vmem:[%s2 + $0x68] sm:$0xff]
    %v188 = vld [vmem:[%s2 + $0x70] sm:$0xff]
    %v189 = vld [vmem:[%s2 + $0x78] sm:$0xff]
    %v190 = vld [vmem:[%s4] sm:$0xff]
    %v191 = vld [vmem:[%s4 + $0x8] sm:$0xff]
    %v192 = vld [vmem:[%s4 + $0x10] sm:$0xff]
    %v193 = vld [vmem:[%s4 + $0x18] sm:$0xff]
    %v194 = vld [vmem:[%s4 + $0x20] sm:$0xff]
    %v195 = vld [vmem:[%s4 + $0x28] sm:$0xff]
    %v196 = vld [vmem:[%s4 + $0x30] sm:$0xff]
    %v197 = vld [vmem:[%s4 + $0x38] sm:$0xff]
    %v198 = vld [vmem:[%s4 + $0x40] sm:$0xff]
    %v199 = vld [vmem:[%s4 + $0x48] sm:$0xff]
    %v200 = vld [vmem:[%s4 + $0x50] sm:$0xff]
    %v201 = vld [vmem:[%s4 + $0x58] sm:$0xff]
    %v202 = vld [vmem:[%s4 + $0x60] sm:$0xff]
    %v203 = vld [vmem:[%s4 + $0x68] sm:$0xff]
    %v204 = vld [vmem:[%s4 + $0x70] sm:$0xff]
    %v205 = vld [vmem:[%s4 + $0x78] sm:$0xff]
    %v206 = vld [vmem:[%s6] sm:$0xff]
    %v207 = vld [vmem:[%s6 + $0x8] sm:$0xff]
    %v208 = vld [vmem:[%s6 + $0x10] sm:$0xff]
    %v209 = vld [vmem:[%s6 + $0x18] sm:$0xff]
    %v210 = vld [vmem:[%s6 + $0x20] sm:$0xff]
    %v211 = vld [vmem:[%s6 + $0x28] sm:$0xff]
    %v212 = vld [vmem:[%s6 + $0x30] sm:$0xff]
    %v213 = vld [vmem:[%s6 + $0x38] sm:$0xff]
    %v214 = vld [vmem:[%s6 + $0x40] sm:$0xff]
    %v215 = vld [vmem:[%s6 + $0x48] sm:$0xff]
    %v216 = vld [vmem:[%s6 + $0x50] sm:$0xff]
    %v217 = vld [vmem:[%s6 + $0x58] sm:$0xff]
    %v218 = vld [vmem:[%s6 + $0x60] sm:$0xff]
    %v219 = vld [vmem:[%s6 + $0x68] sm:$0xff]
    %v220 = vld [vmem:[%s6 + $0x70] sm:$0xff]
    %v221 = vld [vmem:[%s6 + $0x78] sm:$0xff]
    %v222 = vld [vmem:[#allocation2] sm:$0x3]
    %224 = vset.pattern.permute.xlu0 0
    %225 = vperm.xlu0 %224, %v174
    %v226 = vpop.permute.xlu0 %225
    %229 = vset.pattern.permute.xlu0 0
    %230 = vperm.xlu0 %229, %v175
    %v231 = vpop.permute.xlu0 %230
    %234 = vset.pattern.permute.xlu0 0
    %235 = vperm.xlu0 %234, %v176
    %v236 = vpop.permute.xlu0 %235
    %239 = vset.pattern.permute.xlu0 0
    %240 = vperm.xlu0 %239, %v177
    %v241 = vpop.permute.xlu0 %240
    %244 = vset.pattern.permute.xlu0 0
    %245 = vperm.xlu0 %244, %v178
    %v246 = vpop.permute.xlu0 %245
    %249 = vset.pattern.permute.xlu0 0
    %250 = vperm.xlu0 %249, %v179
    %v251 = vpop.permute.xlu0 %250
    %254 = vset.pattern.permute.xlu0 0
    %255 = vperm.xlu0 %254, %v180
    %v256 = vpop.permute.xlu0 %255
    %259 = vset.pattern.permute.xlu0 0
    %260 = vperm.xlu0 %259, %v181
    %v261 = vpop.permute.xlu0 %260
    %264 = vset.pattern.permute.xlu0 0
    %265 = vperm.xlu0 %264, %v182
    %v266 = vpop.permute.xlu0 %265
    %269 = vset.pattern.permute.xlu0 0
    %270 = vperm.xlu0 %269, %v183
    %v271 = vpop.permute.xlu0 %270
    %274 = vset.pattern.permute.xlu0 0
    %275 = vperm.xlu0 %274, %v184
    %v276 = vpop.permute.xlu0 %275
    %279 = vset.pattern.permute.xlu0 0
    %280 = vperm.xlu0 %279, %v185
    %v281 = vpop.permute.xlu0 %280
    %284 = vset.pattern.permute.xlu0 0
    %285 = vperm.xlu0 %284, %v186
    %v286 = vpop.permute.xlu0 %285
    %289 = vset.pattern.permute.xlu0 0
    %290 = vperm.xlu0 %289, %v187
    %v291 = vpop.permute.xlu0 %290
    %294 = vset.pattern.permute.xlu0 0
    %295 = vperm.xlu0 %294, %v188
    %v296 = vpop.permute.xlu0 %295
    %299 = vset.pattern.permute.xlu0 0
    %300 = vperm.xlu0 %299, %v189
    %v301 = vpop.permute.xlu0 %300
    %v319 = vunpack.c.l.b16 %v126
    %v320 = vunpack.c.l.b16 %v127
    %v321 = vunpack.c.l.b16 %v128
    %v322 = vunpack.c.l.b16 %v129
    %v323 = vunpack.c.l.b16 %v130
    %v324 = vunpack.c.l.b16 %v131
    %v325 = vunpack.c.l.b16 %v132
    %v326 = vunpack.c.l.b16 %v133
    %v327 = vunpack.c.l.b16 %v134
    %v328 = vunpack.c.l.b16 %v135
    %v329 = vunpack.c.l.b16 %v136
    %v330 = vunpack.c.l.b16 %v137
    %v331 = vunpack.c.l.b16 %v138
    %v332 = vunpack.c.l.b16 %v139
    %v333 = vunpack.c.l.b16 %v140
    %v334 = vunpack.c.l.b16 %v141
    %v335 = vpack.c.b16 %v320, %v319
    %v336 = vpack.c.b16 %v322, %v321
    %v337 = vpack.c.b16 %v324, %v323
    %v338 = vpack.c.b16 %v326, %v325
    %v339 = vpack.c.b16 %v328, %v327
    %v340 = vpack.c.b16 %v330, %v329
    %v341 = vpack.c.b16 %v332, %v331
    %v342 = vpack.c.b16 %v334, %v333
    %vm343 = vcmask 31744
    %v345 = vsel %vm343, %v335, 0
    %v348 = vsel %vm343, %v336, 0
    %v351 = vsel %vm343, %v337, 0
    %v354 = vsel %vm343, %v338, 0
    %v357 = vsel %vm343, %v339, 0
    %v360 = vsel %vm343, %v340, 0
    %v363 = vsel %vm343, %v341, 0
    %v366 = vsel %vm343, %v342, 0
    %vm368 = vcmask 1041408
    %v370 = vsel %vm368, %v222, 0
    %372 = vmatprep.subr.bf16.mxu0 0
    %373 = vmatpush1.bf16.msra.mxu0 %v370
    %374 = vmatprep.subr.bf16.mxu0 0
    %375 = vmatpush1.bf16.msra.mxu0 0
    %376 = vmatprep.subr.bf16.mxu0 0
    %377 = vmatpush1.bf16.msra.mxu0 0
    %378 = vmatprep.subr.bf16.mxu0 0
    %379 = vmatpush1.bf16.msra.mxu0 0
    %380 = vmatprep.subr.bf16.mxu0 0
    %381 = vmatpush1.bf16.msra.mxu0 0
    %382 = vmatprep.subr.bf16.mxu0 0
    %383 = vmatpush1.bf16.msra.mxu0 0
    %384 = vmatprep.subr.bf16.mxu0 0
    %385 = vmatpush1.bf16.msra.mxu0 0
    %386 = vmatprep.subr.bf16.mxu0 0
    %387 = vmatpush1.bf16.msra.mxu0 0
    %388 = vmatprep.subr.bf16.mxu0 0
    %389 = vmatpush1.bf16.msra.mxu0 0
    %390 = vmatprep.subr.bf16.mxu0 0
    %391 = vmatpush1.bf16.msra.mxu0 0
    %392 = vmatprep.subr.bf16.mxu0 0
    %393 = vmatpush1.bf16.msra.mxu0 0
    %394 = vmatprep.subr.bf16.mxu0 0
    %395 = vmatpush1.bf16.msra.mxu0 0
    %396 = vmatprep.subr.bf16.mxu0 0
    %397 = vmatpush1.bf16.msra.mxu0 0
    %398 = vmatprep.subr.bf16.mxu0 0
    %399 = vmatpush1.bf16.msra.mxu0 0
    %400 = vmatprep.subr.bf16.mxu0 0
    %401 = vmatpush1.bf16.msra.mxu0 0
    %402 = vmatprep.subr.bf16.mxu0 0
    %403 = vmatpush1.bf16.msra.mxu0 0
    %404 = vmatprep.mubr.bf16.mxu0 0
    %405 = vmatmul.mubr.bf16.gmra.mrb[0].mxu0 %v345
    %v406 = vpop.f32.mrb[0].mxu0
    %v407 = vadd.f32 %v226, %v406
    %v408 = vpop.f32.mrb[0].mxu0
    %v409 = vpop.f32.mrb[0].mxu0
    %v410 = vadd.f32 %v231, %v409
    %v411 = vpop.f32.mrb[0].mxu0
    %412 = vmatprep.mubr.bf16.mxu0 0
    %413 = vmatmul.mubr.bf16.gmra.mrb[0].mxu0 %v348
    %v414 = vpop.f32.mrb[0].mxu0
    %v415 = vadd.f32 %v236, %v414
    %v416 = vpop.f32.mrb[0].mxu0
    %v417 = vpop.f32.mrb[0].mxu0
    %v418 = vadd.f32 %v241, %v417
    %v419 = vpop.f32.mrb[0].mxu0
    %420 = vmatprep.mubr.bf16.mxu0 0
    %421 = vmatmul.mubr.bf16.gmra.mrb[0].mxu0 %v351
    %v422 = vpop.f32.mrb[0].mxu0
    %v423 = vadd.f32 %v246, %v422
    %v424 = vpop.f32.mrb[0].mxu0
    %v425 = vpop.f32.mrb[0].mxu0
    %v426 = vadd.f32 %v251, %v425
    %v427 = vpop.f32.mrb[0].mxu0
    %428 = vmatprep.mubr.bf16.mxu0 0
    %429 = vmatmul.mubr.bf16.gmra.mrb[0].mxu0 %v354
    %v430 = vpop.f32.mrb[0].mxu0
    %v431 = vadd.f32 %v256, %v430
    %v432 = vpop.f32.mrb[0].mxu0
    %v433 = vpop.f32.mrb[0].mxu0
    %v434 = vadd.f32 %v261, %v433
    %v435 = vpop.f32.mrb[0].mxu0
    %436 = vmatprep.mubr.bf16.mxu0 0
    %437 = vmatmul.mubr.bf16.gmra.mrb[0].mxu0 %v357
    %v438 = vpop.f32.mrb[0].mxu0
    %v439 = vadd.f32 %v266, %v438
    %v440 = vpop.f32.mrb[0].mxu0
    %v441 = vpop.f32.mrb[0].mxu0
    %v442 = vadd.f32 %v271, %v441
    %v443 = vpop.f32.mrb[0].mxu0
    %444 = vmatprep.mubr.bf16.mxu0 0
    %445 = vmatmul.mubr.bf16.gmra.mrb[0].mxu0 %v360
    %v446 = vpop.f32.mrb[0].mxu0
    %v447 = vadd.f32 %v276, %v446
    %v448 = vpop.f32.mrb[0].mxu0
    %v449 = vpop.f32.mrb[0].mxu0
    %v450 = vadd.f32 %v281, %v449
    %v451 = vpop.f32.mrb[0].mxu0
    %452 = vmatprep.mubr.bf16.mxu0 0
    %453 = vmatmul.mubr.bf16.gmra.mrb[0].mxu0 %v363
    %v454 = vpop.f32.mrb[0].mxu0
    %v455 = vadd.f32 %v286, %v454
    %v456 = vpop.f32.mrb[0].mxu0
    %v457 = vpop.f32.mrb[0].mxu0
    %v458 = vadd.f32 %v291, %v457
    %v459 = vpop.f32.mrb[0].mxu0
    %460 = vmatprep.mubr.bf16.mxu0 0
    %461 = vmatmul.mubr.bf16.gmra.mrb[0].mxu0 %v366
    %v462 = vpop.f32.mrb[0].mxu0
    %v463 = vadd.f32 %v296, %v462
    %v464 = vpop.f32.mrb[0].mxu0
    %v465 = vpop.f32.mrb[0].mxu0
    %v466 = vadd.f32 %v301, %v465
    %v467 = vpop.f32.mrb[0].mxu0
    %468 = vdwg.mxu0
    %v469 = vmul.f32 %v407, 0.1
    %v470 = vmul.f32 %v410, 0.1
    %v471 = vmul.f32 %v415, 0.1
    %v472 = vmul.f32 %v418, 0.1
    %v473 = vmul.f32 %v423, 0.1
    %v474 = vmul.f32 %v426, 0.1
    %v475 = vmul.f32 %v431, 0.1
    %v476 = vmul.f32 %v434, 0.1
    %v477 = vmul.f32 %v439, 0.1
    %v478 = vmul.f32 %v442, 0.1
    %v479 = vmul.f32 %v447, 0.1
    %v480 = vmul.f32 %v450, 0.1
    %v481 = vmul.f32 %v455, 0.1
    %v482 = vmul.f32 %v458, 0.1
    %v483 = vmul.f32 %v463, 0.1
    %v484 = vmul.f32 %v466, 0.1
    %v485 = vmax.f32 %v407, %v469
    %v486 = vmax.f32 %v410, %v470
    %v487 = vmax.f32 %v415, %v471
    %v488 = vmax.f32 %v418, %v472
    %v489 = vmax.f32 %v423, %v473
    %v490 = vmax.f32 %v426, %v474
    %v491 = vmax.f32 %v431, %v475
    %v492 = vmax.f32 %v434, %v476
    %v493 = vmax.f32 %v439, %v477
    %v494 = vmax.f32 %v442, %v478
    %v495 = vmax.f32 %v447, %v479
    %v496 = vmax.f32 %v450, %v480
    %v497 = vmax.f32 %v455, %v481
    %v498 = vmax.f32 %v458, %v482
    %v499 = vmax.f32 %v463, %v483
    %v500 = vmax.f32 %v466, %v484
    %v501 = vpack.c.bf16 %v486, %v485
    %v502 = vpack.c.bf16 %v488, %v487
    %v503 = vpack.c.bf16 %v490, %v489
    %v504 = vpack.c.bf16 %v492, %v491
    %v505 = vpack.c.bf16 %v494, %v493
    %v506 = vpack.c.bf16 %v496, %v495
    %v507 = vpack.c.bf16 %v498, %v497
    %v508 = vpack.c.bf16 %v500, %v499
    %510 = vset.pattern.permute.xlu0 0
    %511 = vperm.xlu0 %510, %v190
    %v512 = vpop.permute.xlu0 %511
    %515 = vset.pattern.permute.xlu0 0
    %516 = vperm.xlu0 %515, %v191
    %v517 = vpop.permute.xlu0 %516
    %520 = vset.pattern.permute.xlu0 0
    %521 = vperm.xlu0 %520, %v192
    %v522 = vpop.permute.xlu0 %521
    %525 = vset.pattern.permute.xlu0 0
    %526 = vperm.xlu0 %525, %v193
    %v527 = vpop.permute.xlu0 %526
    %530 = vset.pattern.permute.xlu0 0
    %531 = vperm.xlu0 %530, %v194
    %v532 = vpop.permute.xlu0 %531
    %535 = vset.pattern.permute.xlu0 0
    %536 = vperm.xlu0 %535, %v195
    %v537 = vpop.permute.xlu0 %536
    %540 = vset.pattern.permute.xlu0 0
    %541 = vperm.xlu0 %540, %v196
    %v542 = vpop.permute.xlu0 %541
    %545 = vset.pattern.permute.xlu0 0
    %546 = vperm.xlu0 %545, %v197
    %v547 = vpop.permute.xlu0 %546
    %550 = vset.pattern.permute.xlu0 0
    %551 = vperm.xlu0 %550, %v198
    %v552 = vpop.permute.xlu0 %551
    %555 = vset.pattern.permute.xlu0 0
    %556 = vperm.xlu0 %555, %v199
    %v557 = vpop.permute.xlu0 %556
    %560 = vset.pattern.permute.xlu0 0
    %561 = vperm.xlu0 %560, %v200
    %v562 = vpop.permute.xlu0 %561
    %565 = vset.pattern.permute.xlu0 0
    %566 = vperm.xlu0 %565, %v201
    %v567 = vpop.permute.xlu0 %566
    %570 = vset.pattern.permute.xlu0 0
    %571 = vperm.xlu0 %570, %v202
    %v572 = vpop.permute.xlu0 %571
    %575 = vset.pattern.permute.xlu0 0
    %576 = vperm.xlu0 %575, %v203
    %v577 = vpop.permute.xlu0 %576
    %580 = vset.pattern.permute.xlu0 0
    %581 = vperm.xlu0 %580, %v204
    %v582 = vpop.permute.xlu0 %581
    %585 = vset.pattern.permute.xlu0 0
    %586 = vperm.xlu0 %585, %v205
    %v587 = vpop.permute.xlu0 %586
    %v605 = vunpack.c.l.b16 %v142
    %v606 = vunpack.c.l.b16 %v143
    %v607 = vunpack.c.l.b16 %v144
    %v608 = vunpack.c.l.b16 %v145
    %v609 = vunpack.c.l.b16 %v146
    %v610 = vunpack.c.l.b16 %v147
    %v611 = vunpack.c.l.b16 %v148
    %v612 = vunpack.c.l.b16 %v149
    %v613 = vunpack.c.l.b16 %v150
    %v614 = vunpack.c.l.b16 %v151
    %v615 = vunpack.c.l.b16 %v152
    %v616 = vunpack.c.l.b16 %v153
    %v617 = vunpack.c.l.b16 %v154
    %v618 = vunpack.c.l.b16 %v155
    %v619 = vunpack.c.l.b16 %v156
    %v620 = vunpack.c.l.b16 %v157
    %v621 = vpack.c.b16 %v606, %v605
    %v622 = vpack.c.b16 %v608, %v607
    %v623 = vpack.c.b16 %v610, %v609
    %v624 = vpack.c.b16 %v612, %v611
    %v625 = vpack.c.b16 %v614, %v613
    %v626 = vpack.c.b16 %v616, %v615
    %v627 = vpack.c.b16 %v618, %v617
    %v628 = vpack.c.b16 %v620, %v619
    %637 = vmatprep.subr.bf16.mxu0 0
    %638 = vmatpush1.bf16.msra.mxu0 %v501
    %639 = vmatprep.subr.bf16.mxu0 0
    %640 = vmatpush1.bf16.msra.mxu0 %v502
    %641 = vmatprep.subr.bf16.mxu0 0
    %642 = vmatpush1.bf16.msra.mxu0 %v503
    %643 = vmatprep.subr.bf16.mxu0 0
    %644 = vmatpush1.bf16.msra.mxu0 %v504
    %645 = vmatprep.subr.bf16.mxu0 0
    %646 = vmatpush1.bf16.msra.mxu0 %v505
    %647 = vmatprep.subr.bf16.mxu0 0
    %648 = vmatpush1.bf16.msra.mxu0 %v506
    %649 = vmatprep.subr.bf16.mxu0 0
    %650 = vmatpush1.bf16.msra.mxu0 %v507
    %651 = vmatprep.subr.bf16.mxu0 0
    %652 = vmatpush1.bf16.msra.mxu0 %v508
    %653 = vmatprep.subr.bf16.mxu0 0
    %654 = vmatpush1.bf16.msra.mxu0 0
    %655 = vmatprep.subr.bf16.mxu0 0
    %656 = vmatpush1.bf16.msra.mxu0 0
    %657 = vmatprep.subr.bf16.mxu0 0
    %658 = vmatpush1.bf16.msra.mxu0 0
    %659 = vmatprep.subr.bf16.mxu0 0
    %660 = vmatpush1.bf16.msra.mxu0 0
    %661 = vmatprep.subr.bf16.mxu0 0
    %662 = vmatpush1.bf16.msra.mxu0 0
    %663 = vmatprep.subr.bf16.mxu0 0
    %664 = vmatpush1.bf16.msra.mxu0 0
    %665 = vmatprep.subr.bf16.mxu0 0
    %666 = vmatpush1.bf16.msra.mxu0 0
    %667 = vmatprep.subr.bf16.mxu0 0
    %668 = vmatpush1.bf16.msra.mxu0 0
    %669 = vmatprep.mubr.bf16.mxu0 0
    %670 = vmatmul.mubr.bf16.gmra.mrb[0].mxu0 %v621
    %v671 = vpop.f32.mrb[0].mxu0
    %v672 = vadd.f32 %v512, %v671
    %v673 = vpop.f32.mrb[0].mxu0
    %v674 = vpop.f32.mrb[0].mxu0
    %v675 = vadd.f32 %v517, %v674
    %v676 = vpop.f32.mrb[0].mxu0
    %677 = vmatprep.mubr.bf16.mxu0 0
    %678 = vmatmul.mubr.bf16.gmra.mrb[0].mxu0 %v622
    %v679 = vpop.f32.mrb[0].mxu0
    %v680 = vadd.f32 %v522, %v679
    %v681 = vpop.f32.mrb[0].mxu0
    %v682 = vpop.f32.mrb[0].mxu0
    %v683 = vadd.f32 %v527, %v682
    %v684 = vpop.f32.mrb[0].mxu0
    %685 = vmatprep.mubr.bf16.mxu0 0
    %686 = vmatmul.mubr.bf16.gmra.mrb[0].mxu0 %v623
    %v687 = vpop.f32.mrb[0].mxu0
    %v688 = vadd.f32 %v532, %v687
    %v689 = vpop.f32.mrb[0].mxu0
    %v690 = vpop.f32.mrb[0].mxu0
    %v691 = vadd.f32 %v537, %v690
    %v692 = vpop.f32.mrb[0].mxu0
    %693 = vmatprep.mubr.bf16.mxu0 0
    %694 = vmatmul.mubr.bf16.gmra.mrb[0].mxu0 %v624
    %v695 = vpop.f32.mrb[0].mxu0
    %v696 = vadd.f32 %v542, %v695
    %v697 = vpop.f32.mrb[0].mxu0
    %v698 = vpop.f32.mrb[0].mxu0
    %v699 = vadd.f32 %v547, %v698
    %v700 = vpop.f32.mrb[0].mxu0
    %701 = vmatprep.mubr.bf16.mxu0 0
    %702 = vmatmul.mubr.bf16.gmra.mrb[0].mxu0 %v625
    %v703 = vpop.f32.mrb[0].mxu0
    %v704 = vadd.f32 %v552, %v703
    %v705 = vpop.f32.mrb[0].mxu0
    %v706 = vpop.f32.mrb[0].mxu0
    %v707 = vadd.f32 %v557, %v706
    %v708 = vpop.f32.mrb[0].mxu0
    %709 = vmatprep.mubr.bf16.mxu0 0
    %710 = vmatmul.mubr.bf16.gmra.mrb[0].mxu0 %v626
    %v711 = vpop.f32.mrb[0].mxu0
    %v712 = vadd.f32 %v562, %v711
    %v713 = vpop.f32.mrb[0].mxu0
    %v714 = vpop.f32.mrb[0].mxu0
    %v715 = vadd.f32 %v567, %v714
    %v716 = vpop.f32.mrb[0].mxu0
    %717 = vmatprep.mubr.bf16.mxu0 0
    %718 = vmatmul.mubr.bf16.gmra.mrb[0].mxu0 %v627
    %v719 = vpop.f32.mrb[0].mxu0
    %v720 = vadd.f32 %v572, %v719
    %v721 = vpop.f32.mrb[0].mxu0
    %v722 = vpop.f32.mrb[0].mxu0
    %v723 = vadd.f32 %v577, %v722
    %v724 = vpop.f32.mrb[0].mxu0
    %725 = vmatprep.mubr.bf16.mxu0 0
    %726 = vmatmul.mubr.bf16.gmra.mrb[0].mxu0 %v628
    %v727 = vpop.f32.mrb[0].mxu0
    %v728 = vadd.f32 %v582, %v727
    %v729 = vpop.f32.mrb[0].mxu0
    %v730 = vpop.f32.mrb[0].mxu0
    %v731 = vadd.f32 %v587, %v730
    %v732 = vpop.f32.mrb[0].mxu0
    %733 = vdwg.mxu0
    %v734 = vmul.f32 %v672, 0.1
    %v735 = vmul.f32 %v675, 0.1
    %v736 = vmul.f32 %v680, 0.1
    %v737 = vmul.f32 %v683, 0.1
    %v738 = vmul.f32 %v688, 0.1
    %v739 = vmul.f32 %v691, 0.1
    %v740 = vmul.f32 %v696, 0.1
    %v741 = vmul.f32 %v699, 0.1
    %v742 = vmul.f32 %v704, 0.1
    %v743 = vmul.f32 %v707, 0.1
    %v744 = vmul.f32 %v712, 0.1
    %v745 = vmul.f32 %v715, 0.1
    %v746 = vmul.f32 %v720, 0.1
    %v747 = vmul.f32 %v723, 0.1
    %v748 = vmul.f32 %v728, 0.1
    %v749 = vmul.f32 %v731, 0.1
    %v750 = vmax.f32 %v672, %v734
    %v751 = vmax.f32 %v675, %v735
    %v752 = vmax.f32 %v680, %v736
    %v753 = vmax.f32 %v683, %v737
    %v754 = vmax.f32 %v688, %v738
    %v755 = vmax.f32 %v691, %v739
    %v756 = vmax.f32 %v696, %v740
    %v757 = vmax.f32 %v699, %v741
    %v758 = vmax.f32 %v704, %v742
    %v759 = vmax.f32 %v707, %v743
    %v760 = vmax.f32 %v712, %v744
    %v761 = vmax.f32 %v715, %v745
    %v762 = vmax.f32 %v720, %v746
    %v763 = vmax.f32 %v723, %v747
    %v764 = vmax.f32 %v728, %v748
    %v765 = vmax.f32 %v731, %v749
    %v766 = vpack.c.bf16 %v751, %v750
    %v767 = vpack.c.bf16 %v753, %v752
    %v768 = vpack.c.bf16 %v755, %v754
    %v769 = vpack.c.bf16 %v757, %v756
    %v770 = vpack.c.bf16 %v759, %v758
    %v771 = vpack.c.bf16 %v761, %v760
    %v772 = vpack.c.bf16 %v763, %v762
    %v773 = vpack.c.bf16 %v765, %v764
    %775 = vset.pattern.permute.xlu0 0
    %776 = vperm.xlu0 %775, %v206
    %v777 = vpop.permute.xlu0 %776
    %780 = vset.pattern.permute.xlu0 0
    %781 = vperm.xlu0 %780, %v207
    %v782 = vpop.permute.xlu0 %781
    %785 = vset.pattern.permute.xlu0 0
    %786 = vperm.xlu0 %785, %v208
    %v787 = vpop.permute.xlu0 %786
    %790 = vset.pattern.permute.xlu0 0
    %791 = vperm.xlu0 %790, %v209
    %v792 = vpop.permute.xlu0 %791
    %795 = vset.pattern.permute.xlu0 0
    %796 = vperm.xlu0 %795, %v210
    %v797 = vpop.permute.xlu0 %796
    %800 = vset.pattern.permute.xlu0 0
    %801 = vperm.xlu0 %800, %v211
    %v802 = vpop.permute.xlu0 %801
    %805 = vset.pattern.permute.xlu0 0
    %806 = vperm.xlu0 %805, %v212
    %v807 = vpop.permute.xlu0 %806
    %810 = vset.pattern.permute.xlu0 0
    %811 = vperm.xlu0 %810, %v213
    %v812 = vpop.permute.xlu0 %811
    %815 = vset.pattern.permute.xlu0 0
    %816 = vperm.xlu0 %815, %v214
    %v817 = vpop.permute.xlu0 %816
    %820 = vset.pattern.permute.xlu0 0
    %821 = vperm.xlu0 %820, %v215
    %v822 = vpop.permute.xlu0 %821
    %825 = vset.pattern.permute.xlu0 0
    %826 = vperm.xlu0 %825, %v216
    %v827 = vpop.permute.xlu0 %826
    %830 = vset.pattern.permute.xlu0 0
    %831 = vperm.xlu0 %830, %v217
    %v832 = vpop.permute.xlu0 %831
    %835 = vset.pattern.permute.xlu0 0
    %836 = vperm.xlu0 %835, %v218
    %v837 = vpop.permute.xlu0 %836
    %840 = vset.pattern.permute.xlu0 0
    %841 = vperm.xlu0 %840, %v219
    %v842 = vpop.permute.xlu0 %841
    %845 = vset.pattern.permute.xlu0 0
    %846 = vperm.xlu0 %845, %v220
    %v847 = vpop.permute.xlu0 %846
    %850 = vset.pattern.permute.xlu0 0
    %851 = vperm.xlu0 %850, %v221
    %v852 = vpop.permute.xlu0 %851
    %v870 = vunpack.c.l.b16 %v158
    %v871 = vunpack.c.l.b16 %v159
    %v872 = vunpack.c.l.b16 %v160
    %v873 = vunpack.c.l.b16 %v161
    %v874 = vunpack.c.l.b16 %v162
    %v875 = vunpack.c.l.b16 %v163
    %v876 = vunpack.c.l.b16 %v164
    %v877 = vunpack.c.l.b16 %v165
    %v878 = vunpack.c.l.b16 %v166
    %v879 = vunpack.c.l.b16 %v167
    %v880 = vunpack.c.l.b16 %v168
    %v881 = vunpack.c.l.b16 %v169
    %v882 = vunpack.c.l.b16 %v170
    %v883 = vunpack.c.l.b16 %v171
    %v884 = vunpack.c.l.b16 %v172
    %v885 = vunpack.c.l.b16 %v173
    %v886 = vpack.c.b16 %v871, %v870
    %v887 = vpack.c.b16 %v873, %v872
    %v888 = vpack.c.b16 %v875, %v874
    %v889 = vpack.c.b16 %v877, %v876
    %v890 = vpack.c.b16 %v879, %v878
    %v891 = vpack.c.b16 %v881, %v880
    %v892 = vpack.c.b16 %v883, %v882
    %v893 = vpack.c.b16 %v885, %v884
    %902 = vmatprep.subr.bf16.mxu0 0
    %903 = vmatpush1.bf16.msra.mxu0 %v766
    %904 = vmatprep.subr.bf16.mxu0 0
    %905 = vmatpush1.bf16.msra.mxu0 %v767
    %906 = vmatprep.subr.bf16.mxu0 0
    %907 = vmatpush1.bf16.msra.mxu0 %v768
    %908 = vmatprep.subr.bf16.mxu0 0
    %909 = vmatpush1.bf16.msra.mxu0 %v769
    %910 = vmatprep.subr.bf16.mxu0 0
    %911 = vmatpush1.bf16.msra.mxu0 %v770
    %912 = vmatprep.subr.bf16.mxu0 0
    %913 = vmatpush1.bf16.msra.mxu0 %v771
    %914 = vmatprep.subr.bf16.mxu0 0
    %915 = vmatpush1.bf16.msra.mxu0 %v772
    %916 = vmatprep.subr.bf16.mxu0 0
    %917 = vmatpush1.bf16.msra.mxu0 %v773
    %918 = vmatprep.subr.bf16.mxu0 0
    %919 = vmatpush1.bf16.msra.mxu0 0
    %920 = vmatprep.subr.bf16.mxu0 0
    %921 = vmatpush1.bf16.msra.mxu0 0
    %922 = vmatprep.subr.bf16.mxu0 0
    %923 = vmatpush1.bf16.msra.mxu0 0
    %924 = vmatprep.subr.bf16.mxu0 0
    %925 = vmatpush1.bf16.msra.mxu0 0
    %926 = vmatprep.subr.bf16.mxu0 0
    %927 = vmatpush1.bf16.msra.mxu0 0
    %928 = vmatprep.subr.bf16.mxu0 0
    %929 = vmatpush1.bf16.msra.mxu0 0
    %930 = vmatprep.subr.bf16.mxu0 0
    %931 = vmatpush1.bf16.msra.mxu0 0
    %932 = vmatprep.subr.bf16.mxu0 0
    %933 = vmatpush1.bf16.msra.mxu0 0
    %934 = vmatprep.mubr.bf16.mxu0 0
    %935 = vmatmul.mubr.bf16.gmra.mrb[0].mxu0 %v886
    %v936 = vpop.f32.mrb[0].mxu0
    %v937 = vadd.f32 %v777, %v936
    %v938 = vpop.f32.mrb[0].mxu0
    %v939 = vpop.f32.mrb[0].mxu0
    %v940 = vadd.f32 %v782, %v939
    %v941 = vpop.f32.mrb[0].mxu0
    %942 = vmatprep.mubr.bf16.mxu0 0
    %943 = vmatmul.mubr.bf16.gmra.mrb[0].mxu0 %v887
    %v944 = vpop.f32.mrb[0].mxu0
    %v945 = vadd.f32 %v787, %v944
    %v946 = vpop.f32.mrb[0].mxu0
    %v947 = vpop.f32.mrb[0].mxu0
    %v948 = vadd.f32 %v792, %v947
    %v949 = vpop.f32.mrb[0].mxu0
    %950 = vmatprep.mubr.bf16.mxu0 0
    %951 = vmatmul.mubr.bf16.gmra.mrb[0].mxu0 %v888
    %v952 = vpop.f32.mrb[0].mxu0
    %v953 = vadd.f32 %v797, %v952
    %v954 = vpop.f32.mrb[0].mxu0
    %v955 = vpop.f32.mrb[0].mxu0
    %v956 = vadd.f32 %v802, %v955
    %v957 = vpop.f32.mrb[0].mxu0
    %958 = vmatprep.mubr.bf16.mxu0 0
    %959 = vmatmul.mubr.bf16.gmra.mrb[0].mxu0 %v889
    %v960 = vpop.f32.mrb[0].mxu0
    %v961 = vadd.f32 %v807, %v960
    %v962 = vpop.f32.mrb[0].mxu0
    %v963 = vpop.f32.mrb[0].mxu0
    %v964 = vadd.f32 %v812, %v963
    %v965 = vpop.f32.mrb[0].mxu0
    %966 = vmatprep.mubr.bf16.mxu0 0
    %967 = vmatmul.mubr.bf16.gmra.mrb[0].mxu0 %v890
    %v968 = vpop.f32.mrb[0].mxu0
    %v969 = vadd.f32 %v817, %v968
    %v970 = vpop.f32.mrb[0].mxu0
    %v971 = vpop.f32.mrb[0].mxu0
    %v972 = vadd.f32 %v822, %v971
    %v973 = vpop.f32.mrb[0].mxu0
    %974 = vmatprep.mubr.bf16.mxu0 0
    %975 = vmatmul.mubr.bf16.gmra.mrb[0].mxu0 %v891
    %v976 = vpop.f32.mrb[0].mxu0
    %v977 = vadd.f32 %v827, %v976
    %v978 = vpop.f32.mrb[0].mxu0
    %v979 = vpop.f32.mrb[0].mxu0
    %v980 = vadd.f32 %v832, %v979
    %v981 = vpop.f32.mrb[0].mxu0
    %982 = vmatprep.mubr.bf16.mxu0 0
    %983 = vmatmul.mubr.bf16.gmra.mrb[0].mxu0 %v892
    %v984 = vpop.f32.mrb[0].mxu0
    %v985 = vadd.f32 %v837, %v984
    %v986 = vpop.f32.mrb[0].mxu0
    %v987 = vpop.f32.mrb[0].mxu0
    %v988 = vadd.f32 %v842, %v987
    %v989 = vpop.f32.mrb[0].mxu0
    %990 = vmatprep.mubr.bf16.mxu0 0
    %991 = vmatmul.mubr.bf16.gmra.mrb[0].mxu0 %v893
    %v992 = vpop.f32.mrb[0].mxu0
    %v993 = vadd.f32 %v847, %v992
    %v994 = vpop.f32.mrb[0].mxu0
    %v995 = vpop.f32.mrb[0].mxu0
    %v996 = vadd.f32 %v852, %v995
    %v997 = vpop.f32.mrb[0].mxu0
    %998 = vdwg.mxu0
    %s999 = scalar_lea.vmem [#allocation2], 2
    %v1000 = vld [vmem:[%s999] sm:$0x3]
    %v1002 = vsel %vm368, %v1000, 0
    %1004 = vmatprep.subr.bf16.mxu0 0
    %1005 = vmatpush1.bf16.msra.mxu0 %v1002
    %1006 = vmatprep.subr.bf16.mxu0 0
    %1007 = vmatpush1.bf16.msra.mxu0 0
    %1008 = vmatprep.subr.bf16.mxu0 0
    %1009 = vmatpush1.bf16.msra.mxu0 0
    %1010 = vmatprep.subr.bf16.mxu0 0
    %1011 = vmatpush1.bf16.msra.mxu0 0
    %1012 = vmatprep.subr.bf16.mxu0 0
    %1013 = vmatpush1.bf16.msra.mxu0 0
    %1014 = vmatprep.subr.bf16.mxu0 0
    %1015 = vmatpush1.bf16.msra.mxu0 0
    %1016 = vmatprep.subr.bf16.mxu0 0
    %1017 = vmatpush1.bf16.msra.mxu0 0
    %1018 = vmatprep.subr.bf16.mxu0 0
    %1019 = vmatpush1.bf16.msra.mxu0 0
    %1020 = vmatprep.subr.bf16.mxu0 0
    %1021 = vmatpush1.bf16.msra.mxu0 0
    %1022 = vmatprep.subr.bf16.mxu0 0
    %1023 = vmatpush1.bf16.msra.mxu0 0
    %1024 = vmatprep.subr.bf16.mxu0 0
    %1025 = vmatpush1.bf16.msra.mxu0 0
    %1026 = vmatprep.subr.bf16.mxu0 0
    %1027 = vmatpush1.bf16.msra.mxu0 0
    %1028 = vmatprep.subr.bf16.mxu0 0
    %1029 = vmatpush1.bf16.msra.mxu0 0
    %1030 = vmatprep.subr.bf16.mxu0 0
    %1031 = vmatpush1.bf16.msra.mxu0 0
    %1032 = vmatprep.subr.bf16.mxu0 0
    %1033 = vmatpush1.bf16.msra.mxu0 0
    %1034 = vmatprep.subr.bf16.mxu0 0
    %1035 = vmatpush1.bf16.msra.mxu0 0
    %1036 = vmatprep.mubr.bf16.mxu0 0
    %1037 = vmatmul.mubr.bf16.gmra.mrb[0].mxu0 %v345
    %v1038 = vpop.f32.mrb[0].mxu0
    %v1039 = vadd.f32 %v226, %v1038
    %v1040 = vpop.f32.mrb[0].mxu0
    %v1041 = vpop.f32.mrb[0].mxu0
    %v1042 = vadd.f32 %v231, %v1041
    %v1043 = vpop.f32.mrb[0].mxu0
    %1044 = vmatprep.mubr.bf16.mxu0 0
    %1045 = vmatmul.mubr.bf16.gmra.mrb[0].mxu0 %v348
    %v1046 = vpop.f32.mrb[0].mxu0
    %v1047 = vadd.f32 %v236, %v1046
    %v1048 = vpop.f32.mrb[0].mxu0
    %v1049 = vpop.f32.mrb[0].mxu0
    %v1050 = vadd.f32 %v241, %v1049
    %v1051 = vpop.f32.mrb[0].mxu0
    %1052 = vmatprep.mubr.bf16.mxu0 0
    %1053 = vmatmul.mubr.bf16.gmra.mrb[0].mxu0 %v351
    %v1054 = vpop.f32.mrb[0].mxu0
    %v1055 = vadd.f32 %v246, %v1054
    %v1056 = vpop.f32.mrb[0].mxu0
    %v1057 = vpop.f32.mrb[0].mxu0
    %v1058 = vadd.f32 %v251, %v1057
    %v1059 = vpop.f32.mrb[0].mxu0
    %1060 = vmatprep.mubr.bf16.mxu0 0
    %1061 = vmatmul.mubr.bf16.gmra.mrb[0].mxu0 %v354
    %v1062 = vpop.f32.mrb[0].mxu0
    %v1063 = vadd.f32 %v256, %v1062
    %v1064 = vpop.f32.mrb[0].mxu0
    %v1065 = vpop.f32.mrb[0].mxu0
    %v1066 = vadd.f32 %v261, %v1065
    %v1067 = vpop.f32.mrb[0].mxu0
    %1068 = vmatprep.mubr.bf16.mxu0 0
    %1069 = vmatmul.mubr.bf16.gmra.mrb[0].mxu0 %v357
    %v1070 = vpop.f32.mrb[0].mxu0
    %v1071 = vadd.f32 %v266, %v1070
    %v1072 = vpop.f32.mrb[0].mxu0
    %v1073 = vpop.f32.mrb[0].mxu0
    %v1074 = vadd.f32 %v271, %v1073
    %v1075 = vpop.f32.mrb[0].mxu0
    %1076 = vmatprep.mubr.bf16.mxu0 0
    %1077 = vmatmul.mubr.bf16.gmra.mrb[0].mxu0 %v360
    %v1078 = vpop.f32.mrb[0].mxu0
    %v1079 = vadd.f32 %v276, %v1078
    %v1080 = vpop.f32.mrb[0].mxu0
    %v1081 = vpop.f32.mrb[0].mxu0
    %v1082 = vadd.f32 %v281, %v1081
    %v1083 = vpop.f32.mrb[0].mxu0
    %1084 = vmatprep.mubr.bf16.mxu0 0
    %1085 = vmatmul.mubr.bf16.gmra.mrb[0].mxu0 %v363
    %v1086 = vpop.f32.mrb[0].mxu0
    %v1087 = vadd.f32 %v286, %v1086
    %v1088 = vpop.f32.mrb[0].mxu0
    %v1089 = vpop.f32.mrb[0].mxu0
    %v1090 = vadd.f32 %v291, %v1089
    %v1091 = vpop.f32.mrb[0].mxu0
    %1092 = vmatprep.mubr.bf16.mxu0 0
    %1093 = vmatmul.mubr.bf16.gmra.mrb[0].mxu0 %v366
    %v1094 = vpop.f32.mrb[0].mxu0
    %v1095 = vadd.f32 %v296, %v1094
    %v1096 = vpop.f32.mrb[0].mxu0
    %v1097 = vpop.f32.mrb[0].mxu0
    %v1098 = vadd.f32 %v301, %v1097
    %v1099 = vpop.f32.mrb[0].mxu0
    %1100 = vdwg.mxu0
    %v1101 = vmul.f32 %v1039, 0.1
    %v1102 = vmul.f32 %v1042, 0.1
    %v1103 = vmul.f32 %v1047, 0.1
    %v1104 = vmul.f32 %v1050, 0.1
    %v1105 = vmul.f32 %v1055, 0.1
    %v1106 = vmul.f32 %v1058, 0.1
    %v1107 = vmul.f32 %v1063, 0.1
    %v1108 = vmul.f32 %v1066, 0.1
    %v1109 = vmul.f32 %v1071, 0.1
    %v1110 = vmul.f32 %v1074, 0.1
    %v1111 = vmul.f32 %v1079, 0.1
    %v1112 = vmul.f32 %v1082, 0.1
    %v1113 = vmul.f32 %v1087, 0.1
    %v1114 = vmul.f32 %v1090, 0.1
    %v1115 = vmul.f32 %v1095, 0.1
    %v1116 = vmul.f32 %v1098, 0.1
    %v1117 = vmax.f32 %v1039, %v1101
    %v1118 = vmax.f32 %v1042, %v1102
    %v1119 = vmax.f32 %v1047, %v1103
    %v1120 = vmax.f32 %v1050, %v1104
    %v1121 = vmax.f32 %v1055, %v1105
    %v1122 = vmax.f32 %v1058, %v1106
    %v1123 = vmax.f32 %v1063, %v1107
    %v1124 = vmax.f32 %v1066, %v1108
    %v1125 = vmax.f32 %v1071, %v1109
    %v1126 = vmax.f32 %v1074, %v1110
    %v1127 = vmax.f32 %v1079, %v1111
    %v1128 = vmax.f32 %v1082, %v1112
    %v1129 = vmax.f32 %v1087, %v1113
    %v1130 = vmax.f32 %v1090, %v1114
    %v1131 = vmax.f32 %v1095, %v1115
    %v1132 = vmax.f32 %v1098, %v1116
    %v1133 = vpack.c.bf16 %v1118, %v1117
    %v1134 = vpack.c.bf16 %v1120, %v1119
    %v1135 = vpack.c.bf16 %v1122, %v1121
    %v1136 = vpack.c.bf16 %v1124, %v1123
    %v1137 = vpack.c.bf16 %v1126, %v1125
    %v1138 = vpack.c.bf16 %v1128, %v1127
    %v1139 = vpack.c.bf16 %v1130, %v1129
    %v1140 = vpack.c.bf16 %v1132, %v1131
    %1141 = vmatprep.subr.bf16.mxu0 0
    %1142 = vmatpush1.bf16.msra.mxu0 %v1133
    %1143 = vmatprep.subr.bf16.mxu0 0
    %1144 = vmatpush1.bf16.msra.mxu0 %v1134
    %1145 = vmatprep.subr.bf16.mxu0 0
    %1146 = vmatpush1.bf16.msra.mxu0 %v1135
    %1147 = vmatprep.subr.bf16.mxu0 0
    %1148 = vmatpush1.bf16.msra.mxu0 %v1136
    %1149 = vmatprep.subr.bf16.mxu0 0
    %1150 = vmatpush1.bf16.msra.mxu0 %v1137
    %1151 = vmatprep.subr.bf16.mxu0 0
    %1152 = vmatpush1.bf16.msra.mxu0 %v1138
    %1153 = vmatprep.subr.bf16.mxu0 0
    %1154 = vmatpush1.bf16.msra.mxu0 %v1139
    %1155 = vmatprep.subr.bf16.mxu0 0
    %1156 = vmatpush1.bf16.msra.mxu0 %v1140
    %1157 = vmatprep.subr.bf16.mxu0 0
    %1158 = vmatpush1.bf16.msra.mxu0 0
    %1159 = vmatprep.subr.bf16.mxu0 0
    %1160 = vmatpush1.bf16.msra.mxu0 0
    %1161 = vmatprep.subr.bf16.mxu0 0
    %1162 = vmatpush1.bf16.msra.mxu0 0
    %1163 = vmatprep.subr.bf16.mxu0 0
    %1164 = vmatpush1.bf16.msra.mxu0 0
    %1165 = vmatprep.subr.bf16.mxu0 0
    %1166 = vmatpush1.bf16.msra.mxu0 0
    %1167 = vmatprep.subr.bf16.mxu0 0
    %1168 = vmatpush1.bf16.msra.mxu0 0
    %1169 = vmatprep.subr.bf16.mxu0 0
    %1170 = vmatpush1.bf16.msra.mxu0 0
    %1171 = vmatprep.subr.bf16.mxu0 0
    %1172 = vmatpush1.bf16.msra.mxu0 0
    %1173 = vmatprep.mubr.bf16.mxu0 0
    %1174 = vmatmul.mubr.bf16.gmra.mrb[0].mxu0 %v621
    %v1175 = vpop.f32.mrb[0].mxu0
    %v1176 = vadd.f32 %v512, %v1175
    %v1177 = vpop.f32.mrb[0].mxu0
    %v1178 = vpop.f32.mrb[0].mxu0
    %v1179 = vadd.f32 %v517, %v1178
    %v1180 = vpop.f32.mrb[0].mxu0
    %1181 = vmatprep.mubr.bf16.mxu0 0
    %1182 = vmatmul.mubr.bf16.gmra.mrb[0].mxu0 %v622
    %v1183 = vpop.f32.mrb[0].mxu0
    %v1184 = vadd.f32 %v522, %v1183
    %v1185 = vpop.f32.mrb[0].mxu0
    %v1186 = vpop.f32.mrb[0].mxu0
    %v1187 = vadd.f32 %v527, %v1186
    %v1188 = vpop.f32.mrb[0].mxu0
    %1189 = vmatprep.mubr.bf16.mxu0 0
    %1190 = vmatmul.mubr.bf16.gmra.mrb[0].mxu0 %v623
    %v1191 = vpop.f32.mrb[0].mxu0
    %v1192 = vadd.f32 %v532, %v1191
    %v1193 = vpop.f32.mrb[0].mxu0
    %v1194 = vpop.f32.mrb[0].mxu0
    %v1195 = vadd.f32 %v537, %v1194
    %v1196 = vpop.f32.mrb[0].mxu0
    %1197 = vmatprep.mubr.bf16.mxu0 0
    %1198 = vmatmul.mubr.bf16.gmra.mrb[0].mxu0 %v624
    %v1199 = vpop.f32.mrb[0].mxu0
    %v1200 = vadd.f32 %v542, %v1199
    %v1201 = vpop.f32.mrb[0].mxu0
    %v1202 = vpop.f32.mrb[0].mxu0
    %v1203 = vadd.f32 %v547, %v1202
    %v1204 = vpop.f32.mrb[0].mxu0
    %1205 = vmatprep.mubr.bf16.mxu0 0
    %1206 = vmatmul.mubr.bf16.gmra.mrb[0].mxu0 %v625
    %v1207 = vpop.f32.mrb[0].mxu0
    %v1208 = vadd.f32 %v552, %v1207
    %v1209 = vpop.f32.mrb[0].mxu0
    %v1210 = vpop.f32.mrb[0].mxu0
    %v1211 = vadd.f32 %v557, %v1210
    %v1212 = vpop.f32.mrb[0].mxu0
    %1213 = vmatprep.mubr.bf16.mxu0 0
    %1214 = vmatmul.mubr.bf16.gmra.mrb[0].mxu0 %v626
    %v1215 = vpop.f32.mrb[0].mxu0
    %v1216 = vadd.f32 %v562, %v1215
    %v1217 = vpop.f32.mrb[0].mxu0
    %v1218 = vpop.f32.mrb[0].mxu0
    %v1219 = vadd.f32 %v567, %v1218
    %v1220 = vpop.f32.mrb[0].mxu0
    %1221 = vmatprep.mubr.bf16.mxu0 0
    %1222 = vmatmul.mubr.bf16.gmra.mrb[0].mxu0 %v627
    %v1223 = vpop.f32.mrb[0].mxu0
    %v1224 = vadd.f32 %v572, %v1223
    %v1225 = vpop.f32.mrb[0].mxu0
    %v1226 = vpop.f32.mrb[0].mxu0
    %v1227 = vadd.f32 %v577, %v1226
    %v1228 = vpop.f32.mrb[0].mxu0
    %1229 = vmatprep.mubr.bf16.mxu0 0
    %1230 = vmatmul.mubr.bf16.gmra.mrb[0].mxu0 %v628
    %v1231 = vpop.f32.mrb[0].mxu0
    %v1232 = vadd.f32 %v582, %v1231
    %v1233 = vpop.f32.mrb[0].mxu0
    %v1234 = vpop.f32.mrb[0].mxu0
    %v1235 = vadd.f32 %v587, %v1234
    %v1236 = vpop.f32.mrb[0].mxu0
    %1237 = vdwg.mxu0
    %v1238 = vmul.f32 %v1176, 0.1
    %v1239 = vmul.f32 %v1179, 0.1
    %v1240 = vmul.f32 %v1184, 0.1
    %v1241 = vmul.f32 %v1187, 0.1
    %v1242 = vmul.f32 %v1192, 0.1
    %v1243 = vmul.f32 %v1195, 0.1
    %v1244 = vmul.f32 %v1200, 0.1
    %v1245 = vmul.f32 %v1203, 0.1
    %v1246 = vmul.f32 %v1208, 0.1
    %v1247 = vmul.f32 %v1211, 0.1
    %v1248 = vmul.f32 %v1216, 0.1
    %v1249 = vmul.f32 %v1219, 0.1
    %v1250 = vmul.f32 %v1224, 0.1
    %v1251 = vmul.f32 %v1227, 0.1
    %v1252 = vmul.f32 %v1232, 0.1
    %v1253 = vmul.f32 %v1235, 0.1
    %v1254 = vmax.f32 %v1176, %v1238
    %v1255 = vmax.f32 %v1179, %v1239
    %v1256 = vmax.f32 %v1184, %v1240
    %v1257 = vmax.f32 %v1187, %v1241
    %v1258 = vmax.f32 %v1192, %v1242
    %v1259 = vmax.f32 %v1195, %v1243
    %v1260 = vmax.f32 %v1200, %v1244
    %v1261 = vmax.f32 %v1203, %v1245
    %v1262 = vmax.f32 %v1208, %v1246
    %v1263 = vmax.f32 %v1211, %v1247
    %v1264 = vmax.f32 %v1216, %v1248
    %v1265 = vmax.f32 %v1219, %v1249
    %v1266 = vmax.f32 %v1224, %v1250
    %v1267 = vmax.f32 %v1227, %v1251
    %v1268 = vmax.f32 %v1232, %v1252
    %v1269 = vmax.f32 %v1235, %v1253
    %v1270 = vpack.c.bf16 %v1255, %v1254
    %v1271 = vpack.c.bf16 %v1257, %v1256
    %v1272 = vpack.c.bf16 %v1259, %v1258
    %v1273 = vpack.c.bf16 %v1261, %v1260
    %v1274 = vpack.c.bf16 %v1263, %v1262
    %v1275 = vpack.c.bf16 %v1265, %v1264
    %v1276 = vpack.c.bf16 %v1267, %v1266
    %v1277 = vpack.c.bf16 %v1269, %v1268
    %1278 = vmatprep.subr.bf16.mxu0 0
    %1279 = vmatpush1.bf16.msra.mxu0 %v1270
    %1280 = vmatprep.subr.bf16.mxu0 0
    %1281 = vmatpush1.bf16.msra.mxu0 %v1271
    %1282 = vmatprep.subr.bf16.mxu0 0
    %1283 = vmatpush1.bf16.msra.mxu0 %v1272
    %1284 = vmatprep.subr.bf16.mxu0 0
    %1285 = vmatpush1.bf16.msra.mxu0 %v1273
    %1286 = vmatprep.subr.bf16.mxu0 0
    %1287 = vmatpush1.bf16.msra.mxu0 %v1274
    %1288 = vmatprep.subr.bf16.mxu0 0
    %1289 = vmatpush1.bf16.msra.mxu0 %v1275
    %1290 = vmatprep.subr.bf16.mxu0 0
    %1291 = vmatpush1.bf16.msra.mxu0 %v1276
    %1292 = vmatprep.subr.bf16.mxu0 0
    %1293 = vmatpush1.bf16.msra.mxu0 %v1277
    %1294 = vmatprep.subr.bf16.mxu0 0
    %1295 = vmatpush1.bf16.msra.mxu0 0
    %1296 = vmatprep.subr.bf16.mxu0 0
    %1297 = vmatpush1.bf16.msra.mxu0 0
    %1298 = vmatprep.subr.bf16.mxu0 0
    %1299 = vmatpush1.bf16.msra.mxu0 0
    %1300 = vmatprep.subr.bf16.mxu0 0
    %1301 = vmatpush1.bf16.msra.mxu0 0
    %1302 = vmatprep.subr.bf16.mxu0 0
    %1303 = vmatpush1.bf16.msra.mxu0 0
    %1304 = vmatprep.subr.bf16.mxu0 0
    %1305 = vmatpush1.bf16.msra.mxu0 0
    %1306 = vmatprep.subr.bf16.mxu0 0
    %1307 = vmatpush1.bf16.msra.mxu0 0
    %1308 = vmatprep.subr.bf16.mxu0 0
    %1309 = vmatpush1.bf16.msra.mxu0 0
    %1310 = vmatprep.mubr.bf16.mxu0 0
    %1311 = vmatmul.mubr.bf16.gmra.mrb[0].mxu0 %v886
    %v1312 = vpop.f32.mrb[0].mxu0
    %v1313 = vadd.f32 %v777, %v1312
    %v1314 = vpop.f32.mrb[0].mxu0
    %v1315 = vpop.f32.mrb[0].mxu0
    %v1316 = vadd.f32 %v782, %v1315
    %v1317 = vpop.f32.mrb[0].mxu0
    %1318 = vmatprep.mubr.bf16.mxu0 0
    %1319 = vmatmul.mubr.bf16.gmra.mrb[0].mxu0 %v887
    %v1320 = vpop.f32.mrb[0].mxu0
    %v1321 = vadd.f32 %v787, %v1320
    %v1322 = vpop.f32.mrb[0].mxu0
    %v1323 = vpop.f32.mrb[0].mxu0
    %v1324 = vadd.f32 %v792, %v1323
    %v1325 = vpop.f32.mrb[0].mxu0
    %1326 = vmatprep.mubr.bf16.mxu0 0
    %1327 = vmatmul.mubr.bf16.gmra.mrb[0].mxu0 %v888
    %v1328 = vpop.f32.mrb[0].mxu0
    %v1329 = vadd.f32 %v797, %v1328
    %v1330 = vpop.f32.mrb[0].mxu0
    %v1331 = vpop.f32.mrb[0].mxu0
    %v1332 = vadd.f32 %v802, %v1331
    %v1333 = vpop.f32.mrb[0].mxu0
    %1334 = vmatprep.mubr.bf16.mxu0 0
    %1335 = vmatmul.mubr.bf16.gmra.mrb[0].mxu0 %v889
    %v1336 = vpop.f32.mrb[0].mxu0
    %v1337 = vadd.f32 %v807, %v1336
    %v1338 = vpop.f32.mrb[0].mxu0
    %v1339 = vpop.f32.mrb[0].mxu0
    %v1340 = vadd.f32 %v812, %v1339
    %v1341 = vpop.f32.mrb[0].mxu0
    %1342 = vmatprep.mubr.bf16.mxu0 0
    %1343 = vmatmul.mubr.bf16.gmra.mrb[0].mxu0 %v890
    %v1344 = vpop.f32.mrb[0].mxu0
    %v1345 = vadd.f32 %v817, %v1344
    %v1346 = vpop.f32.mrb[0].mxu0
    %v1347 = vpop.f32.mrb[0].mxu0
    %v1348 = vadd.f32 %v822, %v1347
    %v1349 = vpop.f32.mrb[0].mxu0
    %1350 = vmatprep.mubr.bf16.mxu0 0
    %1351 = vmatmul.mubr.bf16.gmra.mrb[0].mxu0 %v891
    %v1352 = vpop.f32.mrb[0].mxu0
    %v1353 = vadd.f32 %v827, %v1352
    %v1354 = vpop.f32.mrb[0].mxu0
    %v1355 = vpop.f32.mrb[0].mxu0
    %v1356 = vadd.f32 %v832, %v1355
    %v1357 = vpop.f32.mrb[0].mxu0
    %1358 = vmatprep.mubr.bf16.mxu0 0
    %1359 = vmatmul.mubr.bf16.gmra.mrb[0].mxu0 %v892
    %v1360 = vpop.f32.mrb[0].mxu0
    %v1361 = vadd.f32 %v837, %v1360
    %v1362 = vpop.f32.mrb[0].mxu0
    %v1363 = vpop.f32.mrb[0].mxu0
    %v1364 = vadd.f32 %v842, %v1363
    %v1365 = vpop.f32.mrb[0].mxu0
    %1366 = vmatprep.mubr.bf16.mxu0 0
    %1367 = vmatmul.mubr.bf16.gmra.mrb[0].mxu0 %v893
    %v1368 = vpop.f32.mrb[0].mxu0
    %v1369 = vadd.f32 %v847, %v1368
    %v1370 = vpop.f32.mrb[0].mxu0
    %v1371 = vpop.f32.mrb[0].mxu0
    %v1372 = vadd.f32 %v852, %v1371
    %v1373 = vpop.f32.mrb[0].mxu0
    %1374 = vdwg.mxu0
    %v1375 = vmax.f32 %v937, %v1313
    %v1376 = vmax.f32 %v940, %v1316
    %v1377 = vmax.f32 %v945, %v1321
    %v1378 = vmax.f32 %v948, %v1324
    %v1379 = vmax.f32 %v953, %v1329
    %v1380 = vmax.f32 %v956, %v1332
    %v1381 = vmax.f32 %v961, %v1337
    %v1382 = vmax.f32 %v964, %v1340
    %v1383 = vmax.f32 %v969, %v1345
    %v1384 = vmax.f32 %v972, %v1348
    %v1385 = vmax.f32 %v977, %v1353
    %v1386 = vmax.f32 %v980, %v1356
    %v1387 = vmax.f32 %v985, %v1361
    %v1388 = vmax.f32 %v988, %v1364
    %v1389 = vmax.f32 %v993, %v1369
    %v1390 = vmax.f32 %v996, %v1372
    %s1391 = scalar_lea.vmem [#allocation2], 4
    %v1392 = vld [vmem:[%s1391] sm:$0x3]
    %v1394 = vsel %vm368, %v1392, 0
    %1396 = vmatprep.subr.bf16.mxu0 0
    %1397 = vmatpush1.bf16.msra.mxu0 %v1394
    %1398 = vmatprep.subr.bf16.mxu0 0
    %1399 = vmatpush1.bf16.msra.mxu0 0
    %1400 = vmatprep.subr.bf16.mxu0 0
    %1401 = vmatpush1.bf16.msra.mxu0 0
    %1402 = vmatprep.subr.bf16.mxu0 0
    %1403 = vmatpush1.bf16.msra.mxu0 0
    %1404 = vmatprep.subr.bf16.mxu0 0
    %1405 = vmatpush1.bf16.msra.mxu0 0
    %1406 = vmatprep.subr.bf16.mxu0 0
    %1407 = vmatpush1.bf16.msra.mxu0 0
    %1408 = vmatprep.subr.bf16.mxu0 0
    %1409 = vmatpush1.bf16.msra.mxu0 0
    %1410 = vmatprep.subr.bf16.mxu0 0
    %1411 = vmatpush1.bf16.msra.mxu0 0
    %1412 = vmatprep.subr.bf16.mxu0 0
    %1413 = vmatpush1.bf16.msra.mxu0 0
    %1414 = vmatprep.subr.bf16.mxu0 0
    %1415 = vmatpush1.bf16.msra.mxu0 0
    %1416 = vmatprep.subr.bf16.mxu0 0
    %1417 = vmatpush1.bf16.msra.mxu0 0
    %1418 = vmatprep.subr.bf16.mxu0 0
    %1419 = vmatpush1.bf16.msra.mxu0 0
    %1420 = vmatprep.subr.bf16.mxu0 0
    %1421 = vmatpush1.bf16.msra.mxu0 0
    %1422 = vmatprep.subr.bf16.mxu0 0
    %1423 = vmatpush1.bf16.msra.mxu0 0
    %1424 = vmatprep.subr.bf16.mxu0 0
    %1425 = vmatpush1.bf16.msra.mxu0 0
    %1426 = vmatprep.subr.bf16.mxu0 0
    %1427 = vmatpush1.bf16.msra.mxu0 0
    %1428 = vmatprep.mubr.bf16.mxu0 0
    %1429 = vmatmul.mubr.bf16.gmra.mrb[0].mxu0 %v345
    %v1430 = vpop.f32.mrb[0].mxu0
    %v1431 = vadd.f32 %v226, %v1430
    %v1432 = vpop.f32.mrb[0].mxu0
    %v1433 = vpop.f32.mrb[0].mxu0
    %v1434 = vadd.f32 %v231, %v1433
    %v1435 = vpop.f32.mrb[0].mxu0
    %1436 = vmatprep.mubr.bf16.mxu0 0
    %1437 = vmatmul.mubr.bf16.gmra.mrb[0].mxu0 %v348
    %v1438 = vpop.f32.mrb[0].mxu0
    %v1439 = vadd.f32 %v236, %v1438
    %v1440 = vpop.f32.mrb[0].mxu0
    %v1441 = vpop.f32.mrb[0].mxu0
    %v1442 = vadd.f32 %v241, %v1441
    %v1443 = vpop.f32.mrb[0].mxu0
    %1444 = vmatprep.mubr.bf16.mxu0 0
    %1445 = vmatmul.mubr.bf16.gmra.mrb[0].mxu0 %v351
    %v1446 = vpop.f32.mrb[0].mxu0
    %v1447 = vadd.f32 %v246, %v1446
    %v1448 = vpop.f32.mrb[0].mxu0
    %v1449 = vpop.f32.mrb[0].mxu0
    %v1450 = vadd.f32 %v251, %v1449
    %v1451 = vpop.f32.mrb[0].mxu0
    %1452 = vmatprep.mubr.bf16.mxu0 0
    %1453 = vmatmul.mubr.bf16.gmra.mrb[0].mxu0 %v354
    %v1454 = vpop.f32.mrb[0].mxu0
    %v1455 = vadd.f32 %v256, %v1454
    %v1456 = vpop.f32.mrb[0].mxu0
    %v1457 = vpop.f32.mrb[0].mxu0
    %v1458 = vadd.f32 %v261, %v1457
    %v1459 = vpop.f32.mrb[0].mxu0
    %1460 = vmatprep.mubr.bf16.mxu0 0
    %1461 = vmatmul.mubr.bf16.gmra.mrb[0].mxu0 %v357
    %v1462 = vpop.f32.mrb[0].mxu0
    %v1463 = vadd.f32 %v266, %v1462
    %v1464 = vpop.f32.mrb[0].mxu0
    %v1465 = vpop.f32.mrb[0].mxu0
    %v1466 = vadd.f32 %v271, %v1465
    %v1467 = vpop.f32.mrb[0].mxu0
    %1468 = vmatprep.mubr.bf16.mxu0 0
    %1469 = vmatmul.mubr.bf16.gmra.mrb[0].mxu0 %v360
    %v1470 = vpop.f32.mrb[0].mxu0
    %v1471 = vadd.f32 %v276, %v1470
    %v1472 = vpop.f32.mrb[0].mxu0
    %v1473 = vpop.f32.mrb[0].mxu0
    %v1474 = vadd.f32 %v281, %v1473
    %v1475 = vpop.f32.mrb[0].mxu0
    %1476 = vmatprep.mubr.bf16.mxu0 0
    %1477 = vmatmul.mubr.bf16.gmra.mrb[0].mxu0 %v363
    %v1478 = vpop.f32.mrb[0].mxu0
    %v1479 = vadd.f32 %v286, %v1478
    %v1480 = vpop.f32.mrb[0].mxu0
    %v1481 = vpop.f32.mrb[0].mxu0
    %v1482 = vadd.f32 %v291, %v1481
    %v1483 = vpop.f32.mrb[0].mxu0
    %1484 = vmatprep.mubr.bf16.mxu0 0
    %1485 = vmatmul.mubr.bf16.gmra.mrb[0].mxu0 %v366
    %v1486 = vpop.f32.mrb[0].mxu0
    %v1487 = vadd.f32 %v296, %v1486
    %v1488 = vpop.f32.mrb[0].mxu0
    %v1489 = vpop.f32.mrb[0].mxu0
    %v1490 = vadd.f32 %v301, %v1489
    %v1491 = vpop.f32.mrb[0].mxu0
    %1492 = vdwg.mxu0
    %v1493 = vmul.f32 %v1431, 0.1
    %v1494 = vmul.f32 %v1434, 0.1
    %v1495 = vmul.f32 %v1439, 0.1
    %v1496 = vmul.f32 %v1442, 0.1
    %v1497 = vmul.f32 %v1447, 0.1
    %v1498 = vmul.f32 %v1450, 0.1
    %v1499 = vmul.f32 %v1455, 0.1
    %v1500 = vmul.f32 %v1458, 0.1
    %v1501 = vmul.f32 %v1463, 0.1
    %v1502 = vmul.f32 %v1466, 0.1
    %v1503 = vmul.f32 %v1471, 0.1
    %v1504 = vmul.f32 %v1474, 0.1
    %v1505 = vmul.f32 %v1479, 0.1
    %v1506 = vmul.f32 %v1482, 0.1
    %v1507 = vmul.f32 %v1487, 0.1
    %v1508 = vmul.f32 %v1490, 0.1
    %v1509 = vmax.f32 %v1431, %v1493
    %v1510 = vmax.f32 %v1434, %v1494
    %v1511 = vmax.f32 %v1439, %v1495
    %v1512 = vmax.f32 %v1442, %v1496
    %v1513 = vmax.f32 %v1447, %v1497
    %v1514 = vmax.f32 %v1450, %v1498
    %v1515 = vmax.f32 %v1455, %v1499
    %v1516 = vmax.f32 %v1458, %v1500
    %v1517 = vmax.f32 %v1463, %v1501
    %v1518 = vmax.f32 %v1466, %v1502
    %v1519 = vmax.f32 %v1471, %v1503
    %v1520 = vmax.f32 %v1474, %v1504
    %v1521 = vmax.f32 %v1479, %v1505
    %v1522 = vmax.f32 %v1482, %v1506
    %v1523 = vmax.f32 %v1487, %v1507
    %v1524 = vmax.f32 %v1490, %v1508
    %v1525 = vpack.c.bf16 %v1510, %v1509
    %v1526 = vpack.c.bf16 %v1512, %v1511
    %v1527 = vpack.c.bf16 %v1514, %v1513
    %v1528 = vpack.c.bf16 %v1516, %v1515
    %v1529 = vpack.c.bf16 %v1518, %v1517
    %v1530 = vpack.c.bf16 %v1520, %v1519
    %v1531 = vpack.c.bf16 %v1522, %v1521
    %v1532 = vpack.c.bf16 %v1524, %v1523
    %1533 = vmatprep.subr.bf16.mxu0 0
    %1534 = vmatpush1.bf16.msra.mxu0 %v1525
    %1535 = vmatprep.subr.bf16.mxu0 0
    %1536 = vmatpush1.bf16.msra.mxu0 %v1526
    %1537 = vmatprep.subr.bf16.mxu0 0
    %1538 = vmatpush1.bf16.msra.mxu0 %v1527
    %1539 = vmatprep.subr.bf16.mxu0 0
    %1540 = vmatpush1.bf16.msra.mxu0 %v1528
    %1541 = vmatprep.subr.bf16.mxu0 0
    %1542 = vmatpush1.bf16.msra.mxu0 %v1529
    %1543 = vmatprep.subr.bf16.mxu0 0
    %1544 = vmatpush1.bf16.msra.mxu0 %v1530
    %1545 = vmatprep.subr.bf16.mxu0 0
    %1546 = vmatpush1.bf16.msra.mxu0 %v1531
    %1547 = vmatprep.subr.bf16.mxu0 0
    %1548 = vmatpush1.bf16.msra.mxu0 %v1532
    %1549 = vmatprep.subr.bf16.mxu0 0
    %1550 = vmatpush1.bf16.msra.mxu0 0
    %1551 = vmatprep.subr.bf16.mxu0 0
    %1552 = vmatpush1.bf16.msra.mxu0 0
    %1553 = vmatprep.subr.bf16.mxu0 0
    %1554 = vmatpush1.bf16.msra.mxu0 0
    %1555 = vmatprep.subr.bf16.mxu0 0
    %1556 = vmatpush1.bf16.msra.mxu0 0
    %1557 = vmatprep.subr.bf16.mxu0 0
    %1558 = vmatpush1.bf16.msra.mxu0 0
    %1559 = vmatprep.subr.bf16.mxu0 0
    %1560 = vmatpush1.bf16.msra.mxu0 0
    %1561 = vmatprep.subr.bf16.mxu0 0
    %1562 = vmatpush1.bf16.msra.mxu0 0
    %1563 = vmatprep.subr.bf16.mxu0 0
    %1564 = vmatpush1.bf16.msra.mxu0 0
    %1565 = vmatprep.mubr.bf16.mxu0 0
    %1566 = vmatmul.mubr.bf16.gmra.mrb[0].mxu0 %v621
    %v1567 = vpop.f32.mrb[0].mxu0
    %v1568 = vadd.f32 %v512, %v1567
    %v1569 = vpop.f32.mrb[0].mxu0
    %v1570 = vpop.f32.mrb[0].mxu0
    %v1571 = vadd.f32 %v517, %v1570
    %v1572 = vpop.f32.mrb[0].mxu0
    %1573 = vmatprep.mubr.bf16.mxu0 0
    %1574 = vmatmul.mubr.bf16.gmra.mrb[0].mxu0 %v622
    %v1575 = vpop.f32.mrb[0].mxu0
    %v1576 = vadd.f32 %v522, %v1575
    %v1577 = vpop.f32.mrb[0].mxu0
    %v1578 = vpop.f32.mrb[0].mxu0
    %v1579 = vadd.f32 %v527, %v1578
    %v1580 = vpop.f32.mrb[0].mxu0
    %1581 = vmatprep.mubr.bf16.mxu0 0
    %1582 = vmatmul.mubr.bf16.gmra.mrb[0].mxu0 %v623
    %v1583 = vpop.f32.mrb[0].mxu0
    %v1584 = vadd.f32 %v532, %v1583
    %v1585 = vpop.f32.mrb[0].mxu0
    %v1586 = vpop.f32.mrb[0].mxu0
    %v1587 = vadd.f32 %v537, %v1586
    %v1588 = vpop.f32.mrb[0].mxu0
    %1589 = vmatprep.mubr.bf16.mxu0 0
    %1590 = vmatmul.mubr.bf16.gmra.mrb[0].mxu0 %v624
    %v1591 = vpop.f32.mrb[0].mxu0
    %v1592 = vadd.f32 %v542, %v1591
    %v1593 = vpop.f32.mrb[0].mxu0
    %v1594 = vpop.f32.mrb[0].mxu0
    %v1595 = vadd.f32 %v547, %v1594
    %v1596 = vpop.f32.mrb[0].mxu0
    %1597 = vmatprep.mubr.bf16.mxu0 0
    %1598 = vmatmul.mubr.bf16.gmra.mrb[0].mxu0 %v625
    %v1599 = vpop.f32.mrb[0].mxu0
    %v1600 = vadd.f32 %v552, %v1599
    %v1601 = vpop.f32.mrb[0].mxu0
    %v1602 = vpop.f32.mrb[0].mxu0
    %v1603 = vadd.f32 %v557, %v1602
    %v1604 = vpop.f32.mrb[0].mxu0
    %1605 = vmatprep.mubr.bf16.mxu0 0
    %1606 = vmatmul.mubr.bf16.gmra.mrb[0].mxu0 %v626
    %v1607 = vpop.f32.mrb[0].mxu0
    %v1608 = vadd.f32 %v562, %v1607
    %v1609 = vpop.f32.mrb[0].mxu0
    %v1610 = vpop.f32.mrb[0].mxu0
    %v1611 = vadd.f32 %v567, %v1610
    %v1612 = vpop.f32.mrb[0].mxu0
    %1613 = vmatprep.mubr.bf16.mxu0 0
    %1614 = vmatmul.mubr.bf16.gmra.mrb[0].mxu0 %v627
    %v1615 = vpop.f32.mrb[0].mxu0
    %v1616 = vadd.f32 %v572, %v1615
    %v1617 = vpop.f32.mrb[0].mxu0
    %v1618 = vpop.f32.mrb[0].mxu0
    %v1619 = vadd.f32 %v577, %v1618
    %v1620 = vpop.f32.mrb[0].mxu0
    %1621 = vmatprep.mubr.bf16.mxu0 0
    %1622 = vmatmul.mubr.bf16.gmra.mrb[0].mxu0 %v628
    %v1623 = vpop.f32.mrb[0].mxu0
    %v1624 = vadd.f32 %v582, %v1623
    %v1625 = vpop.f32.mrb[0].mxu0
    %v1626 = vpop.f32.mrb[0].mxu0
    %v1627 = vadd.f32 %v587, %v1626
    %v1628 = vpop.f32.mrb[0].mxu0
    %1629 = vdwg.mxu0
    %v1630 = vmul.f32 %v1568, 0.1
    %v1631 = vmul.f32 %v1571, 0.1
    %v1632 = vmul.f32 %v1576, 0.1
    %v1633 = vmul.f32 %v1579, 0.1
    %v1634 = vmul.f32 %v1584, 0.1
    %v1635 = vmul.f32 %v1587, 0.1
    %v1636 = vmul.f32 %v1592, 0.1
    %v1637 = vmul.f32 %v1595, 0.1
    %v1638 = vmul.f32 %v1600, 0.1
    %v1639 = vmul.f32 %v1603, 0.1
    %v1640 = vmul.f32 %v1608, 0.1
    %v1641 = vmul.f32 %v1611, 0.1
    %v1642 = vmul.f32 %v1616, 0.1
    %v1643 = vmul.f32 %v1619, 0.1
    %v1644 = vmul.f32 %v1624, 0.1
    %v1645 = vmul.f32 %v1627, 0.1
    %v1646 = vmax.f32 %v1568, %v1630
    %v1647 = vmax.f32 %v1571, %v1631
    %v1648 = vmax.f32 %v1576, %v1632
    %v1649 = vmax.f32 %v1579, %v1633
    %v1650 = vmax.f32 %v1584, %v1634
    %v1651 = vmax.f32 %v1587, %v1635
    %v1652 = vmax.f32 %v1592, %v1636
    %v1653 = vmax.f32 %v1595, %v1637
    %v1654 = vmax.f32 %v1600, %v1638
    %v1655 = vmax.f32 %v1603, %v1639
    %v1656 = vmax.f32 %v1608, %v1640
    %v1657 = vmax.f32 %v1611, %v1641
    %v1658 = vmax.f32 %v1616, %v1642
    %v1659 = vmax.f32 %v1619, %v1643
    %v1660 = vmax.f32 %v1624, %v1644
    %v1661 = vmax.f32 %v1627, %v1645
    %v1662 = vpack.c.bf16 %v1647, %v1646
    %v1663 = vpack.c.bf16 %v1649, %v1648
    %v1664 = vpack.c.bf16 %v1651, %v1650
    %v1665 = vpack.c.bf16 %v1653, %v1652
    %v1666 = vpack.c.bf16 %v1655, %v1654
    %v1667 = vpack.c.bf16 %v1657, %v1656
    %v1668 = vpack.c.bf16 %v1659, %v1658
    %v1669 = vpack.c.bf16 %v1661, %v1660
    %1670 = vmatprep.subr.bf16.mxu0 0
    %1671 = vmatpush1.bf16.msra.mxu0 %v1662
    %1672 = vmatprep.subr.bf16.mxu0 0
    %1673 = vmatpush1.bf16.msra.mxu0 %v1663
    %1674 = vmatprep.subr.bf16.mxu0 0
    %1675 = vmatpush1.bf16.msra.mxu0 %v1664
    %1676 = vmatprep.subr.bf16.mxu0 0
    %1677 = vmatpush1.bf16.msra.mxu0 %v1665
    %1678 = vmatprep.subr.bf16.mxu0 0
    %1679 = vmatpush1.bf16.msra.mxu0 %v1666
    %1680 = vmatprep.subr.bf16.mxu0 0
    %1681 = vmatpush1.bf16.msra.mxu0 %v1667
    %1682 = vmatprep.subr.bf16.mxu0 0
    %1683 = vmatpush1.bf16.msra.mxu0 %v1668
    %1684 = vmatprep.subr.bf16.mxu0 0
    %1685 = vmatpush1.bf16.msra.mxu0 %v1669
    %1686 = vmatprep.subr.bf16.mxu0 0
    %1687 = vmatpush1.bf16.msra.mxu0 0
    %1688 = vmatprep.subr.bf16.mxu0 0
    %1689 = vmatpush1.bf16.msra.mxu0 0
    %1690 = vmatprep.subr.bf16.mxu0 0
    %1691 = vmatpush1.bf16.msra.mxu0 0
    %1692 = vmatprep.subr.bf16.mxu0 0
    %1693 = vmatpush1.bf16.msra.mxu0 0
    %1694 = vmatprep.subr.bf16.mxu0 0
    %1695 = vmatpush1.bf16.msra.mxu0 0
    %1696 = vmatprep.subr.bf16.mxu0 0
    %1697 = vmatpush1.bf16.msra.mxu0 0
    %1698 = vmatprep.subr.bf16.mxu0 0
    %1699 = vmatpush1.bf16.msra.mxu0 0
    %1700 = vmatprep.subr.bf16.mxu0 0
    %1701 = vmatpush1.bf16.msra.mxu0 0
    %1702 = vmatprep.mubr.bf16.mxu0 0
    %1703 = vmatmul.mubr.bf16.gmra.mrb[0].mxu0 %v886
    %v1704 = vpop.f32.mrb[0].mxu0
    %v1705 = vadd.f32 %v777, %v1704
    %v1706 = vpop.f32.mrb[0].mxu0
    %v1707 = vpop.f32.mrb[0].mxu0
    %v1708 = vadd.f32 %v782, %v1707
    %v1709 = vpop.f32.mrb[0].mxu0
    %1710 = vmatprep.mubr.bf16.mxu0 0
    %1711 = vmatmul.mubr.bf16.gmra.mrb[0].mxu0 %v887
    %v1712 = vpop.f32.mrb[0].mxu0
    %v1713 = vadd.f32 %v787, %v1712
    %v1714 = vpop.f32.mrb[0].mxu0
    %v1715 = vpop.f32.mrb[0].mxu0
    %v1716 = vadd.f32 %v792, %v1715
    %v1717 = vpop.f32.mrb[0].mxu0
    %1718 = vmatprep.mubr.bf16.mxu0 0
    %1719 = vmatmul.mubr.bf16.gmra.mrb[0].mxu0 %v888
    %v1720 = vpop.f32.mrb[0].mxu0
    %v1721 = vadd.f32 %v797, %v1720
    %v1722 = vpop.f32.mrb[0].mxu0
    %v1723 = vpop.f32.mrb[0].mxu0
    %v1724 = vadd.f32 %v802, %v1723
    %v1725 = vpop.f32.mrb[0].mxu0
    %1726 = vmatprep.mubr.bf16.mxu0 0
    %1727 = vmatmul.mubr.bf16.gmra.mrb[0].mxu0 %v889
    %v1728 = vpop.f32.mrb[0].mxu0
    %v1729 = vadd.f32 %v807, %v1728
    %v1730 = vpop.f32.mrb[0].mxu0
    %v1731 = vpop.f32.mrb[0].mxu0
    %v1732 = vadd.f32 %v812, %v1731
    %v1733 = vpop.f32.mrb[0].mxu0
    %1734 = vmatprep.mubr.bf16.mxu0 0
    %1735 = vmatmul.mubr.bf16.gmra.mrb[0].mxu0 %v890
    %v1736 = vpop.f32.mrb[0].mxu0
    %v1737 = vadd.f32 %v817, %v1736
    %v1738 = vpop.f32.mrb[0].mxu0
    %v1739 = vpop.f32.mrb[0].mxu0
    %v1740 = vadd.f32 %v822, %v1739
    %v1741 = vpop.f32.mrb[0].mxu0
    %1742 = vmatprep.mubr.bf16.mxu0 0
    %1743 = vmatmul.mubr.bf16.gmra.mrb[0].mxu0 %v891
    %v1744 = vpop.f32.mrb[0].mxu0
    %v1745 = vadd.f32 %v827, %v1744
    %v1746 = vpop.f32.mrb[0].mxu0
    %v1747 = vpop.f32.mrb[0].mxu0
    %v1748 = vadd.f32 %v832, %v1747
    %v1749 = vpop.f32.mrb[0].mxu0
    %1750 = vmatprep.mubr.bf16.mxu0 0
    %1751 = vmatmul.mubr.bf16.gmra.mrb[0].mxu0 %v892
    %v1752 = vpop.f32.mrb[0].mxu0
    %v1753 = vadd.f32 %v837, %v1752
    %v1754 = vpop.f32.mrb[0].mxu0
    %v1755 = vpop.f32.mrb[0].mxu0
    %v1756 = vadd.f32 %v842, %v1755
    %v1757 = vpop.f32.mrb[0].mxu0
    %1758 = vmatprep.mubr.bf16.mxu0 0
    %1759 = vmatmul.mubr.bf16.gmra.mrb[0].mxu0 %v893
    %v1760 = vpop.f32.mrb[0].mxu0
    %v1761 = vadd.f32 %v847, %v1760
    %v1762 = vpop.f32.mrb[0].mxu0
    %v1763 = vpop.f32.mrb[0].mxu0
    %v1764 = vadd.f32 %v852, %v1763
    %v1765 = vpop.f32.mrb[0].mxu0
    %1766 = vdwg.mxu0
    %v1767 = vmax.f32 %v1375, %v1705
    %v1768 = vmax.f32 %v1376, %v1708
    %v1769 = vmax.f32 %v1377, %v1713
    %v1770 = vmax.f32 %v1378, %v1716
    %v1771 = vmax.f32 %v1379, %v1721
    %v1772 = vmax.f32 %v1380, %v1724
    %v1773 = vmax.f32 %v1381, %v1729
    %v1774 = vmax.f32 %v1382, %v1732
    %v1775 = vmax.f32 %v1383, %v1737
    %v1776 = vmax.f32 %v1384, %v1740
    %v1777 = vmax.f32 %v1385, %v1745
    %v1778 = vmax.f32 %v1386, %v1748
    %v1779 = vmax.f32 %v1387, %v1753
    %v1780 = vmax.f32 %v1388, %v1756
    %v1781 = vmax.f32 %v1389, %v1761
    %v1782 = vmax.f32 %v1390, %v1764
    %s1783 = scalar_lea.vmem [#allocation2], 6
    %v1784 = vld [vmem:[%s1783] sm:$0x3]
    %v1786 = vsel %vm368, %v1784, 0
    %1788 = vmatprep.subr.bf16.mxu0 0
    %1789 = vmatpush1.bf16.msra.mxu0 %v1786
    %1790 = vmatprep.subr.bf16.mxu0 0
    %1791 = vmatpush1.bf16.msra.mxu0 0
    %1792 = vmatprep.subr.bf16.mxu0 0
    %1793 = vmatpush1.bf16.msra.mxu0 0
    %1794 = vmatprep.subr.bf16.mxu0 0
    %1795 = vmatpush1.bf16.msra.mxu0 0
    %1796 = vmatprep.subr.bf16.mxu0 0
    %1797 = vmatpush1.bf16.msra.mxu0 0
    %1798 = vmatprep.subr.bf16.mxu0 0
    %1799 = vmatpush1.bf16.msra.mxu0 0
    %1800 = vmatprep.subr.bf16.mxu0 0
    %1801 = vmatpush1.bf16.msra.mxu0 0
    %1802 = vmatprep.subr.bf16.mxu0 0
    %1803 = vmatpush1.bf16.msra.mxu0 0
    %1804 = vmatprep.subr.bf16.mxu0 0
    %1805 = vmatpush1.bf16.msra.mxu0 0
    %1806 = vmatprep.subr.bf16.mxu0 0
    %1807 = vmatpush1.bf16.msra.mxu0 0
    %1808 = vmatprep.subr.bf16.mxu0 0
    %1809 = vmatpush1.bf16.msra.mxu0 0
    %1810 = vmatprep.subr.bf16.mxu0 0
    %1811 = vmatpush1.bf16.msra.mxu0 0
    %1812 = vmatprep.subr.bf16.mxu0 0
    %1813 = vmatpush1.bf16.msra.mxu0 0
    %1814 = vmatprep.subr.bf16.mxu0 0
    %1815 = vmatpush1.bf16.msra.mxu0 0
    %1816 = vmatprep.subr.bf16.mxu0 0
    %1817 = vmatpush1.bf16.msra.mxu0 0
    %1818 = vmatprep.subr.bf16.mxu0 0
    %1819 = vmatpush1.bf16.msra.mxu0 0
    %1820 = vmatprep.mubr.bf16.mxu0 0
    %1821 = vmatmul.mubr.bf16.gmra.mrb[0].mxu0 %v345
    %v1822 = vpop.f32.mrb[0].mxu0
    %v1823 = vadd.f32 %v226, %v1822
    %v1824 = vpop.f32.mrb[0].mxu0
    %v1825 = vpop.f32.mrb[0].mxu0
    %v1826 = vadd.f32 %v231, %v1825
    %v1827 = vpop.f32.mrb[0].mxu0
    %1828 = vmatprep.mubr.bf16.mxu0 0
    %1829 = vmatmul.mubr.bf16.gmra.mrb[0].mxu0 %v348
    %v1830 = vpop.f32.mrb[0].mxu0
    %v1831 = vadd.f32 %v236, %v1830
    %v1832 = vpop.f32.mrb[0].mxu0
    %v1833 = vpop.f32.mrb[0].mxu0
    %v1834 = vadd.f32 %v241, %v1833
    %v1835 = vpop.f32.mrb[0].mxu0
    %1836 = vmatprep.mubr.bf16.mxu0 0
    %1837 = vmatmul.mubr.bf16.gmra.mrb[0].mxu0 %v351
    %v1838 = vpop.f32.mrb[0].mxu0
    %v1839 = vadd.f32 %v246, %v1838
    %v1840 = vpop.f32.mrb[0].mxu0
    %v1841 = vpop.f32.mrb[0].mxu0
    %v1842 = vadd.f32 %v251, %v1841
    %v1843 = vpop.f32.mrb[0].mxu0
    %1844 = vmatprep.mubr.bf16.mxu0 0
    %1845 = vmatmul.mubr.bf16.gmra.mrb[0].mxu0 %v354
    %v1846 = vpop.f32.mrb[0].mxu0
    %v1847 = vadd.f32 %v256, %v1846
    %v1848 = vpop.f32.mrb[0].mxu0
    %v1849 = vpop.f32.mrb[0].mxu0
    %v1850 = vadd.f32 %v261, %v1849
    %v1851 = vpop.f32.mrb[0].mxu0
    %1852 = vmatprep.mubr.bf16.mxu0 0
    %1853 = vmatmul.mubr.bf16.gmra.mrb[0].mxu0 %v357
    %v1854 = vpop.f32.mrb[0].mxu0
    %v1855 = vadd.f32 %v266, %v1854
    %v1856 = vpop.f32.mrb[0].mxu0
    %v1857 = vpop.f32.mrb[0].mxu0
    %v1858 = vadd.f32 %v271, %v1857
    %v1859 = vpop.f32.mrb[0].mxu0
    %1860 = vmatprep.mubr.bf16.mxu0 0
    %1861 = vmatmul.mubr.bf16.gmra.mrb[0].mxu0 %v360
    %v1862 = vpop.f32.mrb[0].mxu0
    %v1863 = vadd.f32 %v276, %v1862
    %v1864 = vpop.f32.mrb[0].mxu0
    %v1865 = vpop.f32.mrb[0].mxu0
    %v1866 = vadd.f32 %v281, %v1865
    %v1867 = vpop.f32.mrb[0].mxu0
    %1868 = vmatprep.mubr.bf16.mxu0 0
    %1869 = vmatmul.mubr.bf16.gmra.mrb[0].mxu0 %v363
    %v1870 = vpop.f32.mrb[0].mxu0
    %v1871 = vadd.f32 %v286, %v1870
    %v1872 = vpop.f32.mrb[0].mxu0
    %v1873 = vpop.f32.mrb[0].mxu0
    %v1874 = vadd.f32 %v291, %v1873
    %v1875 = vpop.f32.mrb[0].mxu0
    %1876 = vmatprep.mubr.bf16.mxu0 0
    %1877 = vmatmul.mubr.bf16.gmra.mrb[0].mxu0 %v366
    %v1878 = vpop.f32.mrb[0].mxu0
    %v1879 = vadd.f32 %v296, %v1878
    %v1880 = vpop.f32.mrb[0].mxu0
    %v1881 = vpop.f32.mrb[0].mxu0
    %v1882 = vadd.f32 %v301, %v1881
    %v1883 = vpop.f32.mrb[0].mxu0
    %1884 = vdwg.mxu0
    %v1885 = vmul.f32 %v1823, 0.1
    %v1886 = vmul.f32 %v1826, 0.1
    %v1887 = vmul.f32 %v1831, 0.1
    %v1888 = vmul.f32 %v1834, 0.1
    %v1889 = vmul.f32 %v1839, 0.1
    %v1890 = vmul.f32 %v1842, 0.1
    %v1891 = vmul.f32 %v1847, 0.1
    %v1892 = vmul.f32 %v1850, 0.1
    %v1893 = vmul.f32 %v1855, 0.1
    %v1894 = vmul.f32 %v1858, 0.1
    %v1895 = vmul.f32 %v1863, 0.1
    %v1896 = vmul.f32 %v1866, 0.1
    %v1897 = vmul.f32 %v1871, 0.1
    %v1898 = vmul.f32 %v1874, 0.1
    %v1899 = vmul.f32 %v1879, 0.1
    %v1900 = vmul.f32 %v1882, 0.1
    %v1901 = vmax.f32 %v1823, %v1885
    %v1902 = vmax.f32 %v1826, %v1886
    %v1903 = vmax.f32 %v1831, %v1887
    %v1904 = vmax.f32 %v1834, %v1888
    %v1905 = vmax.f32 %v1839, %v1889
    %v1906 = vmax.f32 %v1842, %v1890
    %v1907 = vmax.f32 %v1847, %v1891
    %v1908 = vmax.f32 %v1850, %v1892
    %v1909 = vmax.f32 %v1855, %v1893
    %v1910 = vmax.f32 %v1858, %v1894
    %v1911 = vmax.f32 %v1863, %v1895
    %v1912 = vmax.f32 %v1866, %v1896
    %v1913 = vmax.f32 %v1871, %v1897
    %v1914 = vmax.f32 %v1874, %v1898
    %v1915 = vmax.f32 %v1879, %v1899
    %v1916 = vmax.f32 %v1882, %v1900
    %v1917 = vpack.c.bf16 %v1902, %v1901
    %v1918 = vpack.c.bf16 %v1904, %v1903
    %v1919 = vpack.c.bf16 %v1906, %v1905
    %v1920 = vpack.c.bf16 %v1908, %v1907
    %v1921 = vpack.c.bf16 %v1910, %v1909
    %v1922 = vpack.c.bf16 %v1912, %v1911
    %v1923 = vpack.c.bf16 %v1914, %v1913
    %v1924 = vpack.c.bf16 %v1916, %v1915
    %1925 = vmatprep.subr.bf16.mxu0 0
    %1926 = vmatpush1.bf16.msra.mxu0 %v1917
    %1927 = vmatprep.subr.bf16.mxu0 0
    %1928 = vmatpush1.bf16.msra.mxu0 %v1918
    %1929 = vmatprep.subr.bf16.mxu0 0
    %1930 = vmatpush1.bf16.msra.mxu0 %v1919
    %1931 = vmatprep.subr.bf16.mxu0 0
    %1932 = vmatpush1.bf16.msra.mxu0 %v1920
    %1933 = vmatprep.subr.bf16.mxu0 0
    %1934 = vmatpush1.bf16.msra.mxu0 %v1921
    %1935 = vmatprep.subr.bf16.mxu0 0
    %1936 = vmatpush1.bf16.msra.mxu0 %v1922
    %1937 = vmatprep.subr.bf16.mxu0 0
    %1938 = vmatpush1.bf16.msra.mxu0 %v1923
    %1939 = vmatprep.subr.bf16.mxu0 0
    %1940 = vmatpush1.bf16.msra.mxu0 %v1924
    %1941 = vmatprep.subr.bf16.mxu0 0
    %1942 = vmatpush1.bf16.msra.mxu0 0
    %1943 = vmatprep.subr.bf16.mxu0 0
    %1944 = vmatpush1.bf16.msra.mxu0 0
    %1945 = vmatprep.subr.bf16.mxu0 0
    %1946 = vmatpush1.bf16.msra.mxu0 0
    %1947 = vmatprep.subr.bf16.mxu0 0
    %1948 = vmatpush1.bf16.msra.mxu0 0
    %1949 = vmatprep.subr.bf16.mxu0 0
    %1950 = vmatpush1.bf16.msra.mxu0 0
    %1951 = vmatprep.subr.bf16.mxu0 0
    %1952 = vmatpush1.bf16.msra.mxu0 0
    %1953 = vmatprep.subr.bf16.mxu0 0
    %1954 = vmatpush1.bf16.msra.mxu0 0
    %1955 = vmatprep.subr.bf16.mxu0 0
    %1956 = vmatpush1.bf16.msra.mxu0 0
    %1957 = vmatprep.mubr.bf16.mxu0 0
    %1958 = vmatmul.mubr.bf16.gmra.mrb[0].mxu0 %v621
    %v1959 = vpop.f32.mrb[0].mxu0
    %v1960 = vadd.f32 %v512, %v1959
    %v1961 = vpop.f32.mrb[0].mxu0
    %v1962 = vpop.f32.mrb[0].mxu0
    %v1963 = vadd.f32 %v517, %v1962
    %v1964 = vpop.f32.mrb[0].mxu0
    %1965 = vmatprep.mubr.bf16.mxu0 0
    %1966 = vmatmul.mubr.bf16.gmra.mrb[0].mxu0 %v622
    %v1967 = vpop.f32.mrb[0].mxu0
    %v1968 = vadd.f32 %v522, %v1967
    %v1969 = vpop.f32.mrb[0].mxu0
    %v1970 = vpop.f32.mrb[0].mxu0
    %v1971 = vadd.f32 %v527, %v1970
    %v1972 = vpop.f32.mrb[0].mxu0
    %1973 = vmatprep.mubr.bf16.mxu0 0
    %1974 = vmatmul.mubr.bf16.gmra.mrb[0].mxu0 %v623
    %v1975 = vpop.f32.mrb[0].mxu0
    %v1976 = vadd.f32 %v532, %v1975
    %v1977 = vpop.f32.mrb[0].mxu0
    %v1978 = vpop.f32.mrb[0].mxu0
    %v1979 = vadd.f32 %v537, %v1978
    %v1980 = vpop.f32.mrb[0].mxu0
    %1981 = vmatprep.mubr.bf16.mxu0 0
    %1982 = vmatmul.mubr.bf16.gmra.mrb[0].mxu0 %v624
    %v1983 = vpop.f32.mrb[0].mxu0
    %v1984 = vadd.f32 %v542, %v1983
    %v1985 = vpop.f32.mrb[0].mxu0
    %v1986 = vpop.f32.mrb[0].mxu0
    %v1987 = vadd.f32 %v547, %v1986
    %v1988 = vpop.f32.mrb[0].mxu0
    %1989 = vmatprep.mubr.bf16.mxu0 0
    %1990 = vmatmul.mubr.bf16.gmra.mrb[0].mxu0 %v625
    %v1991 = vpop.f32.mrb[0].mxu0
    %v1992 = vadd.f32 %v552, %v1991
    %v1993 = vpop.f32.mrb[0].mxu0
    %v1994 = vpop.f32.mrb[0].mxu0
    %v1995 = vadd.f32 %v557, %v1994
    %v1996 = vpop.f32.mrb[0].mxu0
    %1997 = vmatprep.mubr.bf16.mxu0 0
    %1998 = vmatmul.mubr.bf16.gmra.mrb[0].mxu0 %v626
    %v1999 = vpop.f32.mrb[0].mxu0
    %v2000 = vadd.f32 %v562, %v1999
    %v2001 = vpop.f32.mrb[0].mxu0
    %v2002 = vpop.f32.mrb[0].mxu0
    %v2003 = vadd.f32 %v567, %v2002
    %v2004 = vpop.f32.mrb[0].mxu0
    %2005 = vmatprep.mubr.bf16.mxu0 0
    %2006 = vmatmul.mubr.bf16.gmra.mrb[0].mxu0 %v627
    %v2007 = vpop.f32.mrb[0].mxu0
    %v2008 = vadd.f32 %v572, %v2007
    %v2009 = vpop.f32.mrb[0].mxu0
    %v2010 = vpop.f32.mrb[0].mxu0
    %v2011 = vadd.f32 %v577, %v2010
    %v2012 = vpop.f32.mrb[0].mxu0
    %2013 = vmatprep.mubr.bf16.mxu0 0
    %2014 = vmatmul.mubr.bf16.gmra.mrb[0].mxu0 %v628
    %v2015 = vpop.f32.mrb[0].mxu0
    %v2016 = vadd.f32 %v582, %v2015
    %v2017 = vpop.f32.mrb[0].mxu0
    %v2018 = vpop.f32.mrb[0].mxu0
    %v2019 = vadd.f32 %v587, %v2018
    %v2020 = vpop.f32.mrb[0].mxu0
    %2021 = vdwg.mxu0
    %v2022 = vmul.f32 %v1960, 0.1
    %v2023 = vmul.f32 %v1963, 0.1
    %v2024 = vmul.f32 %v1968, 0.1
    %v2025 = vmul.f32 %v1971, 0.1
    %v2026 = vmul.f32 %v1976, 0.1
    %v2027 = vmul.f32 %v1979, 0.1
    %v2028 = vmul.f32 %v1984, 0.1
    %v2029 = vmul.f32 %v1987, 0.1
    %v2030 = vmul.f32 %v1992, 0.1
    %v2031 = vmul.f32 %v1995, 0.1
    %v2032 = vmul.f32 %v2000, 0.1
    %v2033 = vmul.f32 %v2003, 0.1
    %v2034 = vmul.f32 %v2008, 0.1
    %v2035 = vmul.f32 %v2011, 0.1
    %v2036 = vmul.f32 %v2016, 0.1
    %v2037 = vmul.f32 %v2019, 0.1
    %v2038 = vmax.f32 %v1960, %v2022
    %v2039 = vmax.f32 %v1963, %v2023
    %v2040 = vmax.f32 %v1968, %v2024
    %v2041 = vmax.f32 %v1971, %v2025
    %v2042 = vmax.f32 %v1976, %v2026
    %v2043 = vmax.f32 %v1979, %v2027
    %v2044 = vmax.f32 %v1984, %v2028
    %v2045 = vmax.f32 %v1987, %v2029
    %v2046 = vmax.f32 %v1992, %v2030
    %v2047 = vmax.f32 %v1995, %v2031
    %v2048 = vmax.f32 %v2000, %v2032
    %v2049 = vmax.f32 %v2003, %v2033
    %v2050 = vmax.f32 %v2008, %v2034
    %v2051 = vmax.f32 %v2011, %v2035
    %v2052 = vmax.f32 %v2016, %v2036
    %v2053 = vmax.f32 %v2019, %v2037
    %v2054 = vpack.c.bf16 %v2039, %v2038
    %v2055 = vpack.c.bf16 %v2041, %v2040
    %v2056 = vpack.c.bf16 %v2043, %v2042
    %v2057 = vpack.c.bf16 %v2045, %v2044
    %v2058 = vpack.c.bf16 %v2047, %v2046
    %v2059 = vpack.c.bf16 %v2049, %v2048
    %v2060 = vpack.c.bf16 %v2051, %v2050
    %v2061 = vpack.c.bf16 %v2053, %v2052
    %2062 = vmatprep.subr.bf16.mxu0 0
    %2063 = vmatpush1.bf16.msra.mxu0 %v2054
    %2064 = vmatprep.subr.bf16.mxu0 0
    %2065 = vmatpush1.bf16.msra.mxu0 %v2055
    %2066 = vmatprep.subr.bf16.mxu0 0
    %2067 = vmatpush1.bf16.msra.mxu0 %v2056
    %2068 = vmatprep.subr.bf16.mxu0 0
    %2069 = vmatpush1.bf16.msra.mxu0 %v2057
    %2070 = vmatprep.subr.bf16.mxu0 0
    %2071 = vmatpush1.bf16.msra.mxu0 %v2058
    %2072 = vmatprep.subr.bf16.mxu0 0
    %2073 = vmatpush1.bf16.msra.mxu0 %v2059
    %2074 = vmatprep.subr.bf16.mxu0 0
    %2075 = vmatpush1.bf16.msra.mxu0 %v2060
    %2076 = vmatprep.subr.bf16.mxu0 0
    %2077 = vmatpush1.bf16.msra.mxu0 %v2061
    %2078 = vmatprep.subr.bf16.mxu0 0
    %2079 = vmatpush1.bf16.msra.mxu0 0
    %2080 = vmatprep.subr.bf16.mxu0 0
    %2081 = vmatpush1.bf16.msra.mxu0 0
    %2082 = vmatprep.subr.bf16.mxu0 0
    %2083 = vmatpush1.bf16.msra.mxu0 0
    %2084 = vmatprep.subr.bf16.mxu0 0
    %2085 = vmatpush1.bf16.msra.mxu0 0
    %2086 = vmatprep.subr.bf16.mxu0 0
    %2087 = vmatpush1.bf16.msra.mxu0 0
    %2088 = vmatprep.subr.bf16.mxu0 0
    %2089 = vmatpush1.bf16.msra.mxu0 0
    %2090 = vmatprep.subr.bf16.mxu0 0
    %2091 = vmatpush1.bf16.msra.mxu0 0
    %2092 = vmatprep.subr.bf16.mxu0 0
    %2093 = vmatpush1.bf16.msra.mxu0 0
    %2094 = vmatprep.mubr.bf16.mxu0 0
    %2095 = vmatmul.mubr.bf16.gmra.mrb[0].mxu0 %v886
    %v2096 = vpop.f32.mrb[0].mxu0
    %v2097 = vadd.f32 %v777, %v2096
    %v2098 = vpop.f32.mrb[0].mxu0
    %v2099 = vpop.f32.mrb[0].mxu0
    %v2100 = vadd.f32 %v782, %v2099
    %v2101 = vpop.f32.mrb[0].mxu0
    %2102 = vmatprep.mubr.bf16.mxu0 0
    %2103 = vmatmul.mubr.bf16.gmra.mrb[0].mxu0 %v887
    %v2104 = vpop.f32.mrb[0].mxu0
    %v2105 = vadd.f32 %v787, %v2104
    %v2106 = vpop.f32.mrb[0].mxu0
    %v2107 = vpop.f32.mrb[0].mxu0
    %v2108 = vadd.f32 %v792, %v2107
    %v2109 = vpop.f32.mrb[0].mxu0
    %2110 = vmatprep.mubr.bf16.mxu0 0
    %2111 = vmatmul.mubr.bf16.gmra.mrb[0].mxu0 %v888
    %v2112 = vpop.f32.mrb[0].mxu0
    %v2113 = vadd.f32 %v797, %v2112
    %v2114 = vpop.f32.mrb[0].mxu0
    %v2115 = vpop.f32.mrb[0].mxu0
    %v2116 = vadd.f32 %v802, %v2115
    %v2117 = vpop.f32.mrb[0].mxu0
    %2118 = vmatprep.mubr.bf16.mxu0 0
    %2119 = vmatmul.mubr.bf16.gmra.mrb[0].mxu0 %v889
    %v2120 = vpop.f32.mrb[0].mxu0
    %v2121 = vadd.f32 %v807, %v2120
    %v2122 = vpop.f32.mrb[0].mxu0
    %v2123 = vpop.f32.mrb[0].mxu0
    %v2124 = vadd.f32 %v812, %v2123
    %v2125 = vpop.f32.mrb[0].mxu0
    %2126 = vmatprep.mubr.bf16.mxu0 0
    %2127 = vmatmul.mubr.bf16.gmra.mrb[0].mxu0 %v890
    %v2128 = vpop.f32.mrb[0].mxu0
    %v2129 = vadd.f32 %v817, %v2128
    %v2130 = vpop.f32.mrb[0].mxu0
    %v2131 = vpop.f32.mrb[0].mxu0
    %v2132 = vadd.f32 %v822, %v2131
    %v2133 = vpop.f32.mrb[0].mxu0
    %2134 = vmatprep.mubr.bf16.mxu0 0
    %2135 = vmatmul.mubr.bf16.gmra.mrb[0].mxu0 %v891
    %v2136 = vpop.f32.mrb[0].mxu0
    %v2137 = vadd.f32 %v827, %v2136
    %v2138 = vpop.f32.mrb[0].mxu0
    %v2139 = vpop.f32.mrb[0].mxu0
    %v2140 = vadd.f32 %v832, %v2139
    %v2141 = vpop.f32.mrb[0].mxu0
    %2142 = vmatprep.mubr.bf16.mxu0 0
    %2143 = vmatmul.mubr.bf16.gmra.mrb[0].mxu0 %v892
    %v2144 = vpop.f32.mrb[0].mxu0
    %v2145 = vadd.f32 %v837, %v2144
    %v2146 = vpop.f32.mrb[0].mxu0
    %v2147 = vpop.f32.mrb[0].mxu0
    %v2148 = vadd.f32 %v842, %v2147
    %v2149 = vpop.f32.mrb[0].mxu0
    %2150 = vmatprep.mubr.bf16.mxu0 0
    %2151 = vmatmul.mubr.bf16.gmra.mrb[0].mxu0 %v893
    %v2152 = vpop.f32.mrb[0].mxu0
    %v2153 = vadd.f32 %v847, %v2152
    %v2154 = vpop.f32.mrb[0].mxu0
    %v2155 = vpop.f32.mrb[0].mxu0
    %v2156 = vadd.f32 %v852, %v2155
    %v2157 = vpop.f32.mrb[0].mxu0
    %2158 = vdwg.mxu0
    %v2159 = vmax.f32 %v1767, %v2097
    %v2160 = vmax.f32 %v1768, %v2100
    %v2161 = vmax.f32 %v1769, %v2105
    %v2162 = vmax.f32 %v1770, %v2108
    %v2163 = vmax.f32 %v1771, %v2113
    %v2164 = vmax.f32 %v1772, %v2116
    %v2165 = vmax.f32 %v1773, %v2121
    %v2166 = vmax.f32 %v1774, %v2124
    %v2167 = vmax.f32 %v1775, %v2129
    %v2168 = vmax.f32 %v1776, %v2132
    %v2169 = vmax.f32 %v1777, %v2137
    %v2170 = vmax.f32 %v1778, %v2140
    %v2171 = vmax.f32 %v1779, %v2145
    %v2172 = vmax.f32 %v1780, %v2148
    %v2173 = vmax.f32 %v1781, %v2153
    %v2174 = vmax.f32 %v1782, %v2156
    %s2175 = scalar_lea.vmem [#allocation2], 8
    %v2176 = vld [vmem:[%s2175] sm:$0x3]
    %v2178 = vsel %vm368, %v2176, 0
    %2180 = vmatprep.subr.bf16.mxu0 0
    %2181 = vmatpush1.bf16.msra.mxu0 %v2178
    %2182 = vmatprep.subr.bf16.mxu0 0
    %2183 = vmatpush1.bf16.msra.mxu0 0
    %2184 = vmatprep.subr.bf16.mxu0 0
    %2185 = vmatpush1.bf16.msra.mxu0 0
    %2186 = vmatprep.subr.bf16.mxu0 0
    %2187 = vmatpush1.bf16.msra.mxu0 0
    %2188 = vmatprep.subr.bf16.mxu0 0
    %2189 = vmatpush1.bf16.msra.mxu0 0
    %2190 = vmatprep.subr.bf16.mxu0 0
    %2191 = vmatpush1.bf16.msra.mxu0 0
    %2192 = vmatprep.subr.bf16.mxu0 0
    %2193 = vmatpush1.bf16.msra.mxu0 0
    %2194 = vmatprep.subr.bf16.mxu0 0
    %2195 = vmatpush1.bf16.msra.mxu0 0
    %2196 = vmatprep.subr.bf16.mxu0 0
    %2197 = vmatpush1.bf16.msra.mxu0 0
    %2198 = vmatprep.subr.bf16.mxu0 0
    %2199 = vmatpush1.bf16.msra.mxu0 0
    %2200 = vmatprep.subr.bf16.mxu0 0
    %2201 = vmatpush1.bf16.msra.mxu0 0
    %2202 = vmatprep.subr.bf16.mxu0 0
    %2203 = vmatpush1.bf16.msra.mxu0 0
    %2204 = vmatprep.subr.bf16.mxu0 0
    %2205 = vmatpush1.bf16.msra.mxu0 0
    %2206 = vmatprep.subr.bf16.mxu0 0
    %2207 = vmatpush1.bf16.msra.mxu0 0
    %2208 = vmatprep.subr.bf16.mxu0 0
    %2209 = vmatpush1.bf16.msra.mxu0 0
    %2210 = vmatprep.subr.bf16.mxu0 0
    %2211 = vmatpush1.bf16.msra.mxu0 0
    %2212 = vmatprep.mubr.bf16.mxu0 0
    %2213 = vmatmul.mubr.bf16.gmra.mrb[0].mxu0 %v345
    %v2214 = vpop.f32.mrb[0].mxu0
    %v2215 = vadd.f32 %v226, %v2214
    %v2216 = vpop.f32.mrb[0].mxu0
    %v2217 = vpop.f32.mrb[0].mxu0
    %v2218 = vadd.f32 %v231, %v2217
    %v2219 = vpop.f32.mrb[0].mxu0
    %2220 = vmatprep.mubr.bf16.mxu0 0
    %2221 = vmatmul.mubr.bf16.gmra.mrb[0].mxu0 %v348
    %v2222 = vpop.f32.mrb[0].mxu0
    %v2223 = vadd.f32 %v236, %v2222
    %v2224 = vpop.f32.mrb[0].mxu0
    %v2225 = vpop.f32.mrb[0].mxu0
    %v2226 = vadd.f32 %v241, %v2225
    %v2227 = vpop.f32.mrb[0].mxu0
    %2228 = vmatprep.mubr.bf16.mxu0 0
    %2229 = vmatmul.mubr.bf16.gmra.mrb[0].mxu0 %v351
    %v2230 = vpop.f32.mrb[0].mxu0
    %v2231 = vadd.f32 %v246, %v2230
    %v2232 = vpop.f32.mrb[0].mxu0
    %v2233 = vpop.f32.mrb[0].mxu0
    %v2234 = vadd.f32 %v251, %v2233
    %v2235 = vpop.f32.mrb[0].mxu0
    %2236 = vmatprep.mubr.bf16.mxu0 0
    %2237 = vmatmul.mubr.bf16.gmra.mrb[0].mxu0 %v354
    %v2238 = vpop.f32.mrb[0].mxu0
    %v2239 = vadd.f32 %v256, %v2238
    %v2240 = vpop.f32.mrb[0].mxu0
    %v2241 = vpop.f32.mrb[0].mxu0
    %v2242 = vadd.f32 %v261, %v2241
    %v2243 = vpop.f32.mrb[0].mxu0
    %2244 = vmatprep.mubr.bf16.mxu0 0
    %2245 = vmatmul.mubr.bf16.gmra.mrb[0].mxu0 %v357
    %v2246 = vpop.f32.mrb[0].mxu0
    %v2247 = vadd.f32 %v266, %v2246
    %v2248 = vpop.f32.mrb[0].mxu0
    %v2249 = vpop.f32.mrb[0].mxu0
    %v2250 = vadd.f32 %v271, %v2249
    %v2251 = vpop.f32.mrb[0].mxu0
    %2252 = vmatprep.mubr.bf16.mxu0 0
    %2253 = vmatmul.mubr.bf16.gmra.mrb[0].mxu0 %v360
    %v2254 = vpop.f32.mrb[0].mxu0
    %v2255 = vadd.f32 %v276, %v2254
    %v2256 = vpop.f32.mrb[0].mxu0
    %v2257 = vpop.f32.mrb[0].mxu0
    %v2258 = vadd.f32 %v281, %v2257
    %v2259 = vpop.f32.mrb[0].mxu0
    %2260 = vmatprep.mubr.bf16.mxu0 0
    %2261 = vmatmul.mubr.bf16.gmra.mrb[0].mxu0 %v363
    %v2262 = vpop.f32.mrb[0].mxu0
    %v2263 = vadd.f32 %v286, %v2262
    %v2264 = vpop.f32.mrb[0].mxu0
    %v2265 = vpop.f32.mrb[0].mxu0
    %v2266 = vadd.f32 %v291, %v2265
    %v2267 = vpop.f32.mrb[0].mxu0
    %2268 = vmatprep.mubr.bf16.mxu0 0
    %2269 = vmatmul.mubr.bf16.gmra.mrb[0].mxu0 %v366
    %v2270 = vpop.f32.mrb[0].mxu0
    %v2271 = vadd.f32 %v296, %v2270
    %v2272 = vpop.f32.mrb[0].mxu0
    %v2273 = vpop.f32.mrb[0].mxu0
    %v2274 = vadd.f32 %v301, %v2273
    %v2275 = vpop.f32.mrb[0].mxu0
    %2276 = vdwg.mxu0
    %v2277 = vmul.f32 %v2215, 0.1
    %v2278 = vmul.f32 %v2218, 0.1
    %v2279 = vmul.f32 %v2223, 0.1
    %v2280 = vmul.f32 %v2226, 0.1
    %v2281 = vmul.f32 %v2231, 0.1
    %v2282 = vmul.f32 %v2234, 0.1
    %v2283 = vmul.f32 %v2239, 0.1
    %v2284 = vmul.f32 %v2242, 0.1
    %v2285 = vmul.f32 %v2247, 0.1
    %v2286 = vmul.f32 %v2250, 0.1
    %v2287 = vmul.f32 %v2255, 0.1
    %v2288 = vmul.f32 %v2258, 0.1
    %v2289 = vmul.f32 %v2263, 0.1
    %v2290 = vmul.f32 %v2266, 0.1
    %v2291 = vmul.f32 %v2271, 0.1
    %v2292 = vmul.f32 %v2274, 0.1
    %v2293 = vmax.f32 %v2215, %v2277
    %v2294 = vmax.f32 %v2218, %v2278
    %v2295 = vmax.f32 %v2223, %v2279
    %v2296 = vmax.f32 %v2226, %v2280
    %v2297 = vmax.f32 %v2231, %v2281
    %v2298 = vmax.f32 %v2234, %v2282
    %v2299 = vmax.f32 %v2239, %v2283
    %v2300 = vmax.f32 %v2242, %v2284
    %v2301 = vmax.f32 %v2247, %v2285
    %v2302 = vmax.f32 %v2250, %v2286
    %v2303 = vmax.f32 %v2255, %v2287
    %v2304 = vmax.f32 %v2258, %v2288
    %v2305 = vmax.f32 %v2263, %v2289
    %v2306 = vmax.f32 %v2266, %v2290
    %v2307 = vmax.f32 %v2271, %v2291
    %v2308 = vmax.f32 %v2274, %v2292
    %v2309 = vpack.c.bf16 %v2294, %v2293
    %v2310 = vpack.c.bf16 %v2296, %v2295
    %v2311 = vpack.c.bf16 %v2298, %v2297
    %v2312 = vpack.c.bf16 %v2300, %v2299
    %v2313 = vpack.c.bf16 %v2302, %v2301
    %v2314 = vpack.c.bf16 %v2304, %v2303
    %v2315 = vpack.c.bf16 %v2306, %v2305
    %v2316 = vpack.c.bf16 %v2308, %v2307
    %2317 = vmatprep.subr.bf16.mxu0 0
    %2318 = vmatpush1.bf16.msra.mxu0 %v2309
    %2319 = vmatprep.subr.bf16.mxu0 0
    %2320 = vmatpush1.bf16.msra.mxu0 %v2310
    %2321 = vmatprep.subr.bf16.mxu0 0
    %2322 = vmatpush1.bf16.msra.mxu0 %v2311
    %2323 = vmatprep.subr.bf16.mxu0 0
    %2324 = vmatpush1.bf16.msra.mxu0 %v2312
    %2325 = vmatprep.subr.bf16.mxu0 0
    %2326 = vmatpush1.bf16.msra.mxu0 %v2313
    %2327 = vmatprep.subr.bf16.mxu0 0
    %2328 = vmatpush1.bf16.msra.mxu0 %v2314
    %2329 = vmatprep.subr.bf16.mxu0 0
    %2330 = vmatpush1.bf16.msra.mxu0 %v2315
    %2331 = vmatprep.subr.bf16.mxu0 0
    %2332 = vmatpush1.bf16.msra.mxu0 %v2316
    %2333 = vmatprep.subr.bf16.mxu0 0
    %2334 = vmatpush1.bf16.msra.mxu0 0
    %2335 = vmatprep.subr.bf16.mxu0 0
    %2336 = vmatpush1.bf16.msra.mxu0 0
    %2337 = vmatprep.subr.bf16.mxu0 0
    %2338 = vmatpush1.bf16.msra.mxu0 0
    %2339 = vmatprep.subr.bf16.mxu0 0
    %2340 = vmatpush1.bf16.msra.mxu0 0
    %2341 = vmatprep.subr.bf16.mxu0 0
    %2342 = vmatpush1.bf16.msra.mxu0 0
    %2343 = vmatprep.subr.bf16.mxu0 0
    %2344 = vmatpush1.bf16.msra.mxu0 0
    %2345 = vmatprep.subr.bf16.mxu0 0
    %2346 = vmatpush1.bf16.msra.mxu0 0
    %2347 = vmatprep.subr.bf16.mxu0 0
    %2348 = vmatpush1.bf16.msra.mxu0 0
    %2349 = vmatprep.mubr.bf16.mxu0 0
    %2350 = vmatmul.mubr.bf16.gmra.mrb[0].mxu0 %v621
    %v2351 = vpop.f32.mrb[0].mxu0
    %v2352 = vadd.f32 %v512, %v2351
    %v2353 = vpop.f32.mrb[0].mxu0
    %v2354 = vpop.f32.mrb[0].mxu0
    %v2355 = vadd.f32 %v517, %v2354
    %v2356 = vpop.f32.mrb[0].mxu0
    %2357 = vmatprep.mubr.bf16.mxu0 0
    %2358 = vmatmul.mubr.bf16.gmra.mrb[0].mxu0 %v622
    %v2359 = vpop.f32.mrb[0].mxu0
    %v2360 = vadd.f32 %v522, %v2359
    %v2361 = vpop.f32.mrb[0].mxu0
    %v2362 = vpop.f32.mrb[0].mxu0
    %v2363 = vadd.f32 %v527, %v2362
    %v2364 = vpop.f32.mrb[0].mxu0
    %2365 = vmatprep.mubr.bf16.mxu0 0
    %2366 = vmatmul.mubr.bf16.gmra.mrb[0].mxu0 %v623
    %v2367 = vpop.f32.mrb[0].mxu0
    %v2368 = vadd.f32 %v532, %v2367
    %v2369 = vpop.f32.mrb[0].mxu0
    %v2370 = vpop.f32.mrb[0].mxu0
    %v2371 = vadd.f32 %v537, %v2370
    %v2372 = vpop.f32.mrb[0].mxu0
    %2373 = vmatprep.mubr.bf16.mxu0 0
    %2374 = vmatmul.mubr.bf16.gmra.mrb[0].mxu0 %v624
    %v2375 = vpop.f32.mrb[0].mxu0
    %v2376 = vadd.f32 %v542, %v2375
    %v2377 = vpop.f32.mrb[0].mxu0
    %v2378 = vpop.f32.mrb[0].mxu0
    %v2379 = vadd.f32 %v547, %v2378
    %v2380 = vpop.f32.mrb[0].mxu0
    %2381 = vmatprep.mubr.bf16.mxu0 0
    %2382 = vmatmul.mubr.bf16.gmra.mrb[0].mxu0 %v625
    %v2383 = vpop.f32.mrb[0].mxu0
    %v2384 = vadd.f32 %v552, %v2383
    %v2385 = vpop.f32.mrb[0].mxu0
    %v2386 = vpop.f32.mrb[0].mxu0
    %v2387 = vadd.f32 %v557, %v2386
    %v2388 = vpop.f32.mrb[0].mxu0
    %2389 = vmatprep.mubr.bf16.mxu0 0
    %2390 = vmatmul.mubr.bf16.gmra.mrb[0].mxu0 %v626
    %v2391 = vpop.f32.mrb[0].mxu0
    %v2392 = vadd.f32 %v562, %v2391
    %v2393 = vpop.f32.mrb[0].mxu0
    %v2394 = vpop.f32.mrb[0].mxu0
    %v2395 = vadd.f32 %v567, %v2394
    %v2396 = vpop.f32.mrb[0].mxu0
    %2397 = vmatprep.mubr.bf16.mxu0 0
    %2398 = vmatmul.mubr.bf16.gmra.mrb[0].mxu0 %v627
    %v2399 = vpop.f32.mrb[0].mxu0
    %v2400 = vadd.f32 %v572, %v2399
    %v2401 = vpop.f32.mrb[0].mxu0
    %v2402 = vpop.f32.mrb[0].mxu0
    %v2403 = vadd.f32 %v577, %v2402
    %v2404 = vpop.f32.mrb[0].mxu0
    %2405 = vmatprep.mubr.bf16.mxu0 0
    %2406 = vmatmul.mubr.bf16.gmra.mrb[0].mxu0 %v628
    %v2407 = vpop.f32.mrb[0].mxu0
    %v2408 = vadd.f32 %v582, %v2407
    %v2409 = vpop.f32.mrb[0].mxu0
    %v2410 = vpop.f32.mrb[0].mxu0
    %v2411 = vadd.f32 %v587, %v2410
    %v2412 = vpop.f32.mrb[0].mxu0
    %2413 = vdwg.mxu0
    %v2414 = vmul.f32 %v2352, 0.1
    %v2415 = vmul.f32 %v2355, 0.1
    %v2416 = vmul.f32 %v2360, 0.1
    %v2417 = vmul.f32 %v2363, 0.1
    %v2418 = vmul.f32 %v2368, 0.1
    %v2419 = vmul.f32 %v2371, 0.1
    %v2420 = vmul.f32 %v2376, 0.1
    %v2421 = vmul.f32 %v2379, 0.1
    %v2422 = vmul.f32 %v2384, 0.1
    %v2423 = vmul.f32 %v2387, 0.1
    %v2424 = vmul.f32 %v2392, 0.1
    %v2425 = vmul.f32 %v2395, 0.1
    %v2426 = vmul.f32 %v2400, 0.1
    %v2427 = vmul.f32 %v2403, 0.1
    %v2428 = vmul.f32 %v2408, 0.1
    %v2429 = vmul.f32 %v2411, 0.1
    %v2430 = vmax.f32 %v2352, %v2414
    %v2431 = vmax.f32 %v2355, %v2415
    %v2432 = vmax.f32 %v2360, %v2416
    %v2433 = vmax.f32 %v2363, %v2417
    %v2434 = vmax.f32 %v2368, %v2418
    %v2435 = vmax.f32 %v2371, %v2419
    %v2436 = vmax.f32 %v2376, %v2420
    %v2437 = vmax.f32 %v2379, %v2421
    %v2438 = vmax.f32 %v2384, %v2422
    %v2439 = vmax.f32 %v2387, %v2423
    %v2440 = vmax.f32 %v2392, %v2424
    %v2441 = vmax.f32 %v2395, %v2425
    %v2442 = vmax.f32 %v2400, %v2426
    %v2443 = vmax.f32 %v2403, %v2427
    %v2444 = vmax.f32 %v2408, %v2428
    %v2445 = vmax.f32 %v2411, %v2429
    %v2446 = vpack.c.bf16 %v2431, %v2430
    %v2447 = vpack.c.bf16 %v2433, %v2432
    %v2448 = vpack.c.bf16 %v2435, %v2434
    %v2449 = vpack.c.bf16 %v2437, %v2436
    %v2450 = vpack.c.bf16 %v2439, %v2438
    %v2451 = vpack.c.bf16 %v2441, %v2440
    %v2452 = vpack.c.bf16 %v2443, %v2442
    %v2453 = vpack.c.bf16 %v2445, %v2444
    %2454 = vmatprep.subr.bf16.mxu0 0
    %2455 = vmatpush1.bf16.msra.mxu0 %v2446
    %2456 = vmatprep.subr.bf16.mxu0 0
    %2457 = vmatpush1.bf16.msra.mxu0 %v2447
    %2458 = vmatprep.subr.bf16.mxu0 0
    %2459 = vmatpush1.bf16.msra.mxu0 %v2448
    %2460 = vmatprep.subr.bf16.mxu0 0
    %2461 = vmatpush1.bf16.msra.mxu0 %v2449
    %2462 = vmatprep.subr.bf16.mxu0 0
    %2463 = vmatpush1.bf16.msra.mxu0 %v2450
    %2464 = vmatprep.subr.bf16.mxu0 0
    %2465 = vmatpush1.bf16.msra.mxu0 %v2451
    %2466 = vmatprep.subr.bf16.mxu0 0
    %2467 = vmatpush1.bf16.msra.mxu0 %v2452
    %2468 = vmatprep.subr.bf16.mxu0 0
    %2469 = vmatpush1.bf16.msra.mxu0 %v2453
    %2470 = vmatprep.subr.bf16.mxu0 0
    %2471 = vmatpush1.bf16.msra.mxu0 0
    %2472 = vmatprep.subr.bf16.mxu0 0
    %2473 = vmatpush1.bf16.msra.mxu0 0
    %2474 = vmatprep.subr.bf16.mxu0 0
    %2475 = vmatpush1.bf16.msra.mxu0 0
    %2476 = vmatprep.subr.bf16.mxu0 0
    %2477 = vmatpush1.bf16.msra.mxu0 0
    %2478 = vmatprep.subr.bf16.mxu0 0
    %2479 = vmatpush1.bf16.msra.mxu0 0
    %2480 = vmatprep.subr.bf16.mxu0 0
    %2481 = vmatpush1.bf16.msra.mxu0 0
    %2482 = vmatprep.subr.bf16.mxu0 0
    %2483 = vmatpush1.bf16.msra.mxu0 0
    %2484 = vmatprep.subr.bf16.mxu0 0
    %2485 = vmatpush1.bf16.msra.mxu0 0
    %2486 = vmatprep.mubr.bf16.mxu0 0
    %2487 = vmatmul.mubr.bf16.gmra.mrb[0].mxu0 %v886
    %v2488 = vpop.f32.mrb[0].mxu0
    %v2489 = vadd.f32 %v777, %v2488
    %v2490 = vpop.f32.mrb[0].mxu0
    %v2491 = vpop.f32.mrb[0].mxu0
    %v2492 = vadd.f32 %v782, %v2491
    %v2493 = vpop.f32.mrb[0].mxu0
    %2494 = vmatprep.mubr.bf16.mxu0 0
    %2495 = vmatmul.mubr.bf16.gmra.mrb[0].mxu0 %v887
    %v2496 = vpop.f32.mrb[0].mxu0
    %v2497 = vadd.f32 %v787, %v2496
    %v2498 = vpop.f32.mrb[0].mxu0
    %v2499 = vpop.f32.mrb[0].mxu0
    %v2500 = vadd.f32 %v792, %v2499
    %v2501 = vpop.f32.mrb[0].mxu0
    %2502 = vmatprep.mubr.bf16.mxu0 0
    %2503 = vmatmul.mubr.bf16.gmra.mrb[0].mxu0 %v888
    %v2504 = vpop.f32.mrb[0].mxu0
    %v2505 = vadd.f32 %v797, %v2504
    %v2506 = vpop.f32.mrb[0].mxu0
    %v2507 = vpop.f32.mrb[0].mxu0
    %v2508 = vadd.f32 %v802, %v2507
    %v2509 = vpop.f32.mrb[0].mxu0
    %2510 = vmatprep.mubr.bf16.mxu0 0
    %2511 = vmatmul.mubr.bf16.gmra.mrb[0].mxu0 %v889
    %v2512 = vpop.f32.mrb[0].mxu0
    %v2513 = vadd.f32 %v807, %v2512
    %v2514 = vpop.f32.mrb[0].mxu0
    %v2515 = vpop.f32.mrb[0].mxu0
    %v2516 = vadd.f32 %v812, %v2515
    %v2517 = vpop.f32.mrb[0].mxu0
    %2518 = vmatprep.mubr.bf16.mxu0 0
    %2519 = vmatmul.mubr.bf16.gmra.mrb[0].mxu0 %v890
    %v2520 = vpop.f32.mrb[0].mxu0
    %v2521 = vadd.f32 %v817, %v2520
    %v2522 = vpop.f32.mrb[0].mxu0
    %v2523 = vpop.f32.mrb[0].mxu0
    %v2524 = vadd.f32 %v822, %v2523
    %v2525 = vpop.f32.mrb[0].mxu0
    %2526 = vmatprep.mubr.bf16.mxu0 0
    %2527 = vmatmul.mubr.bf16.gmra.mrb[0].mxu0 %v891
    %v2528 = vpop.f32.mrb[0].mxu0
    %v2529 = vadd.f32 %v827, %v2528
    %v2530 = vpop.f32.mrb[0].mxu0
    %v2531 = vpop.f32.mrb[0].mxu0
    %v2532 = vadd.f32 %v832, %v2531
    %v2533 = vpop.f32.mrb[0].mxu0
    %2534 = vmatprep.mubr.bf16.mxu0 0
    %2535 = vmatmul.mubr.bf16.gmra.mrb[0].mxu0 %v892
    %v2536 = vpop.f32.mrb[0].mxu0
    %v2537 = vadd.f32 %v837, %v2536
    %v2538 = vpop.f32.mrb[0].mxu0
    %v2539 = vpop.f32.mrb[0].mxu0
    %v2540 = vadd.f32 %v842, %v2539
    %v2541 = vpop.f32.mrb[0].mxu0
    %2542 = vmatprep.mubr.bf16.mxu0 0
    %2543 = vmatmul.mubr.bf16.gmra.mrb[0].mxu0 %v893
    %v2544 = vpop.f32.mrb[0].mxu0
    %v2545 = vadd.f32 %v847, %v2544
    %v2546 = vpop.f32.mrb[0].mxu0
    %v2547 = vpop.f32.mrb[0].mxu0
    %v2548 = vadd.f32 %v852, %v2547
    %v2549 = vpop.f32.mrb[0].mxu0
    %2550 = vdwg.mxu0
    %v2551 = vmax.f32 %v2159, %v2489
    %v2552 = vmax.f32 %v2160, %v2492
    %v2553 = vmax.f32 %v2161, %v2497
    %v2554 = vmax.f32 %v2162, %v2500
    %v2555 = vmax.f32 %v2163, %v2505
    %v2556 = vmax.f32 %v2164, %v2508
    %v2557 = vmax.f32 %v2165, %v2513
    %v2558 = vmax.f32 %v2166, %v2516
    %v2559 = vmax.f32 %v2167, %v2521
    %v2560 = vmax.f32 %v2168, %v2524
    %v2561 = vmax.f32 %v2169, %v2529
    %v2562 = vmax.f32 %v2170, %v2532
    %v2563 = vmax.f32 %v2171, %v2537
    %v2564 = vmax.f32 %v2172, %v2540
    %v2565 = vmax.f32 %v2173, %v2545
    %v2566 = vmax.f32 %v2174, %v2548
    %s2567 = scalar_lea.vmem [#allocation2], 10
    %v2568 = vld [vmem:[%s2567] sm:$0x3]
    %v2570 = vsel %vm368, %v2568, 0
    %2572 = vmatprep.subr.bf16.mxu0 0
    %2573 = vmatpush1.bf16.msra.mxu0 %v2570
    %2574 = vmatprep.subr.bf16.mxu0 0
    %2575 = vmatpush1.bf16.msra.mxu0 0
    %2576 = vmatprep.subr.bf16.mxu0 0
    %2577 = vmatpush1.bf16.msra.mxu0 0
    %2578 = vmatprep.subr.bf16.mxu0 0
    %2579 = vmatpush1.bf16.msra.mxu0 0
    %2580 = vmatprep.subr.bf16.mxu0 0
    %2581 = vmatpush1.bf16.msra.mxu0 0
    %2582 = vmatprep.subr.bf16.mxu0 0
    %2583 = vmatpush1.bf16.msra.mxu0 0
    %2584 = vmatprep.subr.bf16.mxu0 0
    %2585 = vmatpush1.bf16.msra.mxu0 0
    %2586 = vmatprep.subr.bf16.mxu0 0
    %2587 = vmatpush1.bf16.msra.mxu0 0
    %2588 = vmatprep.subr.bf16.mxu0 0
    %2589 = vmatpush1.bf16.msra.mxu0 0
    %2590 = vmatprep.subr.bf16.mxu0 0
    %2591 = vmatpush1.bf16.msra.mxu0 0
    %2592 = vmatprep.subr.bf16.mxu0 0
    %2593 = vmatpush1.bf16.msra.mxu0 0
    %2594 = vmatprep.subr.bf16.mxu0 0
    %2595 = vmatpush1.bf16.msra.mxu0 0
    %2596 = vmatprep.subr.bf16.mxu0 0
    %2597 = vmatpush1.bf16.msra.mxu0 0
    %2598 = vmatprep.subr.bf16.mxu0 0
    %2599 = vmatpush1.bf16.msra.mxu0 0
    %2600 = vmatprep.subr.bf16.mxu0 0
    %2601 = vmatpush1.bf16.msra.mxu0 0
    %2602 = vmatprep.subr.bf16.mxu0 0
    %2603 = vmatpush1.bf16.msra.mxu0 0
    %2604 = vmatprep.mubr.bf16.mxu0 0
    %2605 = vmatmul.mubr.bf16.gmra.mrb[0].mxu0 %v345
    %v2606 = vpop.f32.mrb[0].mxu0
    %v2607 = vadd.f32 %v226, %v2606
    %v2608 = vpop.f32.mrb[0].mxu0
    %v2609 = vpop.f32.mrb[0].mxu0
    %v2610 = vadd.f32 %v231, %v2609
    %v2611 = vpop.f32.mrb[0].mxu0
    %2612 = vmatprep.mubr.bf16.mxu0 0
    %2613 = vmatmul.mubr.bf16.gmra.mrb[0].mxu0 %v348
    %v2614 = vpop.f32.mrb[0].mxu0
    %v2615 = vadd.f32 %v236, %v2614
    %v2616 = vpop.f32.mrb[0].mxu0
    %v2617 = vpop.f32.mrb[0].mxu0
    %v2618 = vadd.f32 %v241, %v2617
    %v2619 = vpop.f32.mrb[0].mxu0
    %2620 = vmatprep.mubr.bf16.mxu0 0
    %2621 = vmatmul.mubr.bf16.gmra.mrb[0].mxu0 %v351
    %v2622 = vpop.f32.mrb[0].mxu0
    %v2623 = vadd.f32 %v246, %v2622
    %v2624 = vpop.f32.mrb[0].mxu0
    %v2625 = vpop.f32.mrb[0].mxu0
    %v2626 = vadd.f32 %v251, %v2625
    %v2627 = vpop.f32.mrb[0].mxu0
    %2628 = vmatprep.mubr.bf16.mxu0 0
    %2629 = vmatmul.mubr.bf16.gmra.mrb[0].mxu0 %v354
    %v2630 = vpop.f32.mrb[0].mxu0
    %v2631 = vadd.f32 %v256, %v2630
    %v2632 = vpop.f32.mrb[0].mxu0
    %v2633 = vpop.f32.mrb[0].mxu0
    %v2634 = vadd.f32 %v261, %v2633
    %v2635 = vpop.f32.mrb[0].mxu0
    %2636 = vmatprep.mubr.bf16.mxu0 0
    %2637 = vmatmul.mubr.bf16.gmra.mrb[0].mxu0 %v357
    %v2638 = vpop.f32.mrb[0].mxu0
    %v2639 = vadd.f32 %v266, %v2638
    %v2640 = vpop.f32.mrb[0].mxu0
    %v2641 = vpop.f32.mrb[0].mxu0
    %v2642 = vadd.f32 %v271, %v2641
    %v2643 = vpop.f32.mrb[0].mxu0
    %2644 = vmatprep.mubr.bf16.mxu0 0
    %2645 = vmatmul.mubr.bf16.gmra.mrb[0].mxu0 %v360
    %v2646 = vpop.f32.mrb[0].mxu0
    %v2647 = vadd.f32 %v276, %v2646
    %v2648 = vpop.f32.mrb[0].mxu0
    %v2649 = vpop.f32.mrb[0].mxu0
    %v2650 = vadd.f32 %v281, %v2649
    %v2651 = vpop.f32.mrb[0].mxu0
    %2652 = vmatprep.mubr.bf16.mxu0 0
    %2653 = vmatmul.mubr.bf16.gmra.mrb[0].mxu0 %v363
    %v2654 = vpop.f32.mrb[0].mxu0
    %v2655 = vadd.f32 %v286, %v2654
    %v2656 = vpop.f32.mrb[0].mxu0
    %v2657 = vpop.f32.mrb[0].mxu0
    %v2658 = vadd.f32 %v291, %v2657
    %v2659 = vpop.f32.mrb[0].mxu0
    %2660 = vmatprep.mubr.bf16.mxu0 0
    %2661 = vmatmul.mubr.bf16.gmra.mrb[0].mxu0 %v366
    %v2662 = vpop.f32.mrb[0].mxu0
    %v2663 = vadd.f32 %v296, %v2662
    %v2664 = vpop.f32.mrb[0].mxu0
    %v2665 = vpop.f32.mrb[0].mxu0
    %v2666 = vadd.f32 %v301, %v2665
    %v2667 = vpop.f32.mrb[0].mxu0
    %2668 = vdwg.mxu0
    %v2669 = vmul.f32 %v2607, 0.1
    %v2670 = vmul.f32 %v2610, 0.1
    %v2671 = vmul.f32 %v2615, 0.1
    %v2672 = vmul.f32 %v2618, 0.1
    %v2673 = vmul.f32 %v2623, 0.1
    %v2674 = vmul.f32 %v2626, 0.1
    %v2675 = vmul.f32 %v2631, 0.1
    %v2676 = vmul.f32 %v2634, 0.1
    %v2677 = vmul.f32 %v2639, 0.1
    %v2678 = vmul.f32 %v2642, 0.1
    %v2679 = vmul.f32 %v2647, 0.1
    %v2680 = vmul.f32 %v2650, 0.1
    %v2681 = vmul.f32 %v2655, 0.1
    %v2682 = vmul.f32 %v2658, 0.1
    %v2683 = vmul.f32 %v2663, 0.1
    %v2684 = vmul.f32 %v2666, 0.1
    %v2685 = vmax.f32 %v2607, %v2669
    %v2686 = vmax.f32 %v2610, %v2670
    %v2687 = vmax.f32 %v2615, %v2671
    %v2688 = vmax.f32 %v2618, %v2672
    %v2689 = vmax.f32 %v2623, %v2673
    %v2690 = vmax.f32 %v2626, %v2674
    %v2691 = vmax.f32 %v2631, %v2675
    %v2692 = vmax.f32 %v2634, %v2676
    %v2693 = vmax.f32 %v2639, %v2677
    %v2694 = vmax.f32 %v2642, %v2678
    %v2695 = vmax.f32 %v2647, %v2679
    %v2696 = vmax.f32 %v2650, %v2680
    %v2697 = vmax.f32 %v2655, %v2681
    %v2698 = vmax.f32 %v2658, %v2682
    %v2699 = vmax.f32 %v2663, %v2683
    %v2700 = vmax.f32 %v2666, %v2684
    %v2701 = vpack.c.bf16 %v2686, %v2685
    %v2702 = vpack.c.bf16 %v2688, %v2687
    %v2703 = vpack.c.bf16 %v2690, %v2689
    %v2704 = vpack.c.bf16 %v2692, %v2691
    %v2705 = vpack.c.bf16 %v2694, %v2693
    %v2706 = vpack.c.bf16 %v2696, %v2695
    %v2707 = vpack.c.bf16 %v2698, %v2697
    %v2708 = vpack.c.bf16 %v2700, %v2699
    %2709 = vmatprep.subr.bf16.mxu0 0
    %2710 = vmatpush1.bf16.msra.mxu0 %v2701
    %2711 = vmatprep.subr.bf16.mxu0 0
    %2712 = vmatpush1.bf16.msra.mxu0 %v2702
    %2713 = vmatprep.subr.bf16.mxu0 0
    %2714 = vmatpush1.bf16.msra.mxu0 %v2703
    %2715 = vmatprep.subr.bf16.mxu0 0
    %2716 = vmatpush1.bf16.msra.mxu0 %v2704
    %2717 = vmatprep.subr.bf16.mxu0 0
    %2718 = vmatpush1.bf16.msra.mxu0 %v2705
    %2719 = vmatprep.subr.bf16.mxu0 0
    %2720 = vmatpush1.bf16.msra.mxu0 %v2706
    %2721 = vmatprep.subr.bf16.mxu0 0
    %2722 = vmatpush1.bf16.msra.mxu0 %v2707
    %2723 = vmatprep.subr.bf16.mxu0 0
    %2724 = vmatpush1.bf16.msra.mxu0 %v2708
    %2725 = vmatprep.subr.bf16.mxu0 0
    %2726 = vmatpush1.bf16.msra.mxu0 0
    %2727 = vmatprep.subr.bf16.mxu0 0
    %2728 = vmatpush1.bf16.msra.mxu0 0
    %2729 = vmatprep.subr.bf16.mxu0 0
    %2730 = vmatpush1.bf16.msra.mxu0 0
    %2731 = vmatprep.subr.bf16.mxu0 0
    %2732 = vmatpush1.bf16.msra.mxu0 0
    %2733 = vmatprep.subr.bf16.mxu0 0
    %2734 = vmatpush1.bf16.msra.mxu0 0
    %2735 = vmatprep.subr.bf16.mxu0 0
    %2736 = vmatpush1.bf16.msra.mxu0 0
    %2737 = vmatprep.subr.bf16.mxu0 0
    %2738 = vmatpush1.bf16.msra.mxu0 0
    %2739 = vmatprep.subr.bf16.mxu0 0
    %2740 = vmatpush1.bf16.msra.mxu0 0
    %2741 = vmatprep.mubr.bf16.mxu0 0
    %2742 = vmatmul.mubr.bf16.gmra.mrb[0].mxu0 %v621
    %v2743 = vpop.f32.mrb[0].mxu0
    %v2744 = vadd.f32 %v512, %v2743
    %v2745 = vpop.f32.mrb[0].mxu0
    %v2746 = vpop.f32.mrb[0].mxu0
    %v2747 = vadd.f32 %v517, %v2746
    %v2748 = vpop.f32.mrb[0].mxu0
    %2749 = vmatprep.mubr.bf16.mxu0 0
    %2750 = vmatmul.mubr.bf16.gmra.mrb[0].mxu0 %v622
    %v2751 = vpop.f32.mrb[0].mxu0
    %v2752 = vadd.f32 %v522, %v2751
    %v2753 = vpop.f32.mrb[0].mxu0
    %v2754 = vpop.f32.mrb[0].mxu0
    %v2755 = vadd.f32 %v527, %v2754
    %v2756 = vpop.f32.mrb[0].mxu0
    %2757 = vmatprep.mubr.bf16.mxu0 0
    %2758 = vmatmul.mubr.bf16.gmra.mrb[0].mxu0 %v623
    %v2759 = vpop.f32.mrb[0].mxu0
    %v2760 = vadd.f32 %v532, %v2759
    %v2761 = vpop.f32.mrb[0].mxu0
    %v2762 = vpop.f32.mrb[0].mxu0
    %v2763 = vadd.f32 %v537, %v2762
    %v2764 = vpop.f32.mrb[0].mxu0
    %2765 = vmatprep.mubr.bf16.mxu0 0
    %2766 = vmatmul.mubr.bf16.gmra.mrb[0].mxu0 %v624
    %v2767 = vpop.f32.mrb[0].mxu0
    %v2768 = vadd.f32 %v542, %v2767
    %v2769 = vpop.f32.mrb[0].mxu0
    %v2770 = vpop.f32.mrb[0].mxu0
    %v2771 = vadd.f32 %v547, %v2770
    %v2772 = vpop.f32.mrb[0].mxu0
    %2773 = vmatprep.mubr.bf16.mxu0 0
    %2774 = vmatmul.mubr.bf16.gmra.mrb[0].mxu0 %v625
    %v2775 = vpop.f32.mrb[0].mxu0
    %v2776 = vadd.f32 %v552, %v2775
    %v2777 = vpop.f32.mrb[0].mxu0
    %v2778 = vpop.f32.mrb[0].mxu0
    %v2779 = vadd.f32 %v557, %v2778
    %v2780 = vpop.f32.mrb[0].mxu0
    %2781 = vmatprep.mubr.bf16.mxu0 0
    %2782 = vmatmul.mubr.bf16.gmra.mrb[0].mxu0 %v626
    %v2783 = vpop.f32.mrb[0].mxu0
    %v2784 = vadd.f32 %v562, %v2783
    %v2785 = vpop.f32.mrb[0].mxu0
    %v2786 = vpop.f32.mrb[0].mxu0
    %v2787 = vadd.f32 %v567, %v2786
    %v2788 = vpop.f32.mrb[0].mxu0
    %2789 = vmatprep.mubr.bf16.mxu0 0
    %2790 = vmatmul.mubr.bf16.gmra.mrb[0].mxu0 %v627
    %v2791 = vpop.f32.mrb[0].mxu0
    %v2792 = vadd.f32 %v572, %v2791
    %v2793 = vpop.f32.mrb[0].mxu0
    %v2794 = vpop.f32.mrb[0].mxu0
    %v2795 = vadd.f32 %v577, %v2794
    %v2796 = vpop.f32.mrb[0].mxu0
    %2797 = vmatprep.mubr.bf16.mxu0 0
    %2798 = vmatmul.mubr.bf16.gmra.mrb[0].mxu0 %v628
    %v2799 = vpop.f32.mrb[0].mxu0
    %v2800 = vadd.f32 %v582, %v2799
    %v2801 = vpop.f32.mrb[0].mxu0
    %v2802 = vpop.f32.mrb[0].mxu0
    %v2803 = vadd.f32 %v587, %v2802
    %v2804 = vpop.f32.mrb[0].mxu0
    %2805 = vdwg.mxu0
    %v2806 = vmul.f32 %v2744, 0.1
    %v2807 = vmul.f32 %v2747, 0.1
    %v2808 = vmul.f32 %v2752, 0.1
    %v2809 = vmul.f32 %v2755, 0.1
    %v2810 = vmul.f32 %v2760, 0.1
    %v2811 = vmul.f32 %v2763, 0.1
    %v2812 = vmul.f32 %v2768, 0.1
    %v2813 = vmul.f32 %v2771, 0.1
    %v2814 = vmul.f32 %v2776, 0.1
    %v2815 = vmul.f32 %v2779, 0.1
    %v2816 = vmul.f32 %v2784, 0.1
    %v2817 = vmul.f32 %v2787, 0.1
    %v2818 = vmul.f32 %v2792, 0.1
    %v2819 = vmul.f32 %v2795, 0.1
    %v2820 = vmul.f32 %v2800, 0.1
    %v2821 = vmul.f32 %v2803, 0.1
    %v2822 = vmax.f32 %v2744, %v2806
    %v2823 = vmax.f32 %v2747, %v2807
    %v2824 = vmax.f32 %v2752, %v2808
    %v2825 = vmax.f32 %v2755, %v2809
    %v2826 = vmax.f32 %v2760, %v2810
    %v2827 = vmax.f32 %v2763, %v2811
    %v2828 = vmax.f32 %v2768, %v2812
    %v2829 = vmax.f32 %v2771, %v2813
    %v2830 = vmax.f32 %v2776, %v2814
    %v2831 = vmax.f32 %v2779, %v2815
    %v2832 = vmax.f32 %v2784, %v2816
    %v2833 = vmax.f32 %v2787, %v2817
    %v2834 = vmax.f32 %v2792, %v2818
    %v2835 = vmax.f32 %v2795, %v2819
    %v2836 = vmax.f32 %v2800, %v2820
    %v2837 = vmax.f32 %v2803, %v2821
    %v2838 = vpack.c.bf16 %v2823, %v2822
    %v2839 = vpack.c.bf16 %v2825, %v2824
    %v2840 = vpack.c.bf16 %v2827, %v2826
    %v2841 = vpack.c.bf16 %v2829, %v2828
    %v2842 = vpack.c.bf16 %v2831, %v2830
    %v2843 = vpack.c.bf16 %v2833, %v2832
    %v2844 = vpack.c.bf16 %v2835, %v2834
    %v2845 = vpack.c.bf16 %v2837, %v2836
    %2846 = vmatprep.subr.bf16.mxu0 0
    %2847 = vmatpush1.bf16.msra.mxu0 %v2838
    %2848 = vmatprep.subr.bf16.mxu0 0
    %2849 = vmatpush1.bf16.msra.mxu0 %v2839
    %2850 = vmatprep.subr.bf16.mxu0 0
    %2851 = vmatpush1.bf16.msra.mxu0 %v2840
    %2852 = vmatprep.subr.bf16.mxu0 0
    %2853 = vmatpush1.bf16.msra.mxu0 %v2841
    %2854 = vmatprep.subr.bf16.mxu0 0
    %2855 = vmatpush1.bf16.msra.mxu0 %v2842
    %2856 = vmatprep.subr.bf16.mxu0 0
    %2857 = vmatpush1.bf16.msra.mxu0 %v2843
    %2858 = vmatprep.subr.bf16.mxu0 0
    %2859 = vmatpush1.bf16.msra.mxu0 %v2844
    %2860 = vmatprep.subr.bf16.mxu0 0
    %2861 = vmatpush1.bf16.msra.mxu0 %v2845
    %2862 = vmatprep.subr.bf16.mxu0 0
    %2863 = vmatpush1.bf16.msra.mxu0 0
    %2864 = vmatprep.subr.bf16.mxu0 0
    %2865 = vmatpush1.bf16.msra.mxu0 0
    %2866 = vmatprep.subr.bf16.mxu0 0
    %2867 = vmatpush1.bf16.msra.mxu0 0
    %2868 = vmatprep.subr.bf16.mxu0 0
    %2869 = vmatpush1.bf16.msra.mxu0 0
    %2870 = vmatprep.subr.bf16.mxu0 0
    %2871 = vmatpush1.bf16.msra.mxu0 0
    %2872 = vmatprep.subr.bf16.mxu0 0
    %2873 = vmatpush1.bf16.msra.mxu0 0
    %2874 = vmatprep.subr.bf16.mxu0 0
    %2875 = vmatpush1.bf16.msra.mxu0 0
    %2876 = vmatprep.subr.bf16.mxu0 0
    %2877 = vmatpush1.bf16.msra.mxu0 0
    %2878 = vmatprep.mubr.bf16.mxu0 0
    %2879 = vmatmul.mubr.bf16.gmra.mrb[0].mxu0 %v886
    %v2880 = vpop.f32.mrb[0].mxu0
    %v2881 = vadd.f32 %v777, %v2880
    %v2882 = vpop.f32.mrb[0].mxu0
    %v2883 = vpop.f32.mrb[0].mxu0
    %v2884 = vadd.f32 %v782, %v2883
    %v2885 = vpop.f32.mrb[0].mxu0
    %2886 = vmatprep.mubr.bf16.mxu0 0
    %2887 = vmatmul.mubr.bf16.gmra.mrb[0].mxu0 %v887
    %v2888 = vpop.f32.mrb[0].mxu0
    %v2889 = vadd.f32 %v787, %v2888
    %v2890 = vpop.f32.mrb[0].mxu0
    %v2891 = vpop.f32.mrb[0].mxu0
    %v2892 = vadd.f32 %v792, %v2891
    %v2893 = vpop.f32.mrb[0].mxu0
    %2894 = vmatprep.mubr.bf16.mxu0 0
    %2895 = vmatmul.mubr.bf16.gmra.mrb[0].mxu0 %v888
    %v2896 = vpop.f32.mrb[0].mxu0
    %v2897 = vadd.f32 %v797, %v2896
    %v2898 = vpop.f32.mrb[0].mxu0
    %v2899 = vpop.f32.mrb[0].mxu0
    %v2900 = vadd.f32 %v802, %v2899
    %v2901 = vpop.f32.mrb[0].mxu0
    %2902 = vmatprep.mubr.bf16.mxu0 0
    %2903 = vmatmul.mubr.bf16.gmra.mrb[0].mxu0 %v889
    %v2904 = vpop.f32.mrb[0].mxu0
    %v2905 = vadd.f32 %v807, %v2904
    %v2906 = vpop.f32.mrb[0].mxu0
    %v2907 = vpop.f32.mrb[0].mxu0
    %v2908 = vadd.f32 %v812, %v2907
    %v2909 = vpop.f32.mrb[0].mxu0
    %2910 = vmatprep.mubr.bf16.mxu0 0
    %2911 = vmatmul.mubr.bf16.gmra.mrb[0].mxu0 %v890
    %v2912 = vpop.f32.mrb[0].mxu0
    %v2913 = vadd.f32 %v817, %v2912
    %v2914 = vpop.f32.mrb[0].mxu0
    %v2915 = vpop.f32.mrb[0].mxu0
    %v2916 = vadd.f32 %v822, %v2915
    %v2917 = vpop.f32.mrb[0].mxu0
    %2918 = vmatprep.mubr.bf16.mxu0 0
    %2919 = vmatmul.mubr.bf16.gmra.mrb[0].mxu0 %v891
    %v2920 = vpop.f32.mrb[0].mxu0
    %v2921 = vadd.f32 %v827, %v2920
    %v2922 = vpop.f32.mrb[0].mxu0
    %v2923 = vpop.f32.mrb[0].mxu0
    %v2924 = vadd.f32 %v832, %v2923
    %v2925 = vpop.f32.mrb[0].mxu0
    %2926 = vmatprep.mubr.bf16.mxu0 0
    %2927 = vmatmul.mubr.bf16.gmra.mrb[0].mxu0 %v892
    %v2928 = vpop.f32.mrb[0].mxu0
    %v2929 = vadd.f32 %v837, %v2928
    %v2930 = vpop.f32.mrb[0].mxu0
    %v2931 = vpop.f32.mrb[0].mxu0
    %v2932 = vadd.f32 %v842, %v2931
    %v2933 = vpop.f32.mrb[0].mxu0
    %2934 = vmatprep.mubr.bf16.mxu0 0
    %2935 = vmatmul.mubr.bf16.gmra.mrb[0].mxu0 %v893
    %v2936 = vpop.f32.mrb[0].mxu0
    %v2937 = vadd.f32 %v847, %v2936
    %v2938 = vpop.f32.mrb[0].mxu0
    %v2939 = vpop.f32.mrb[0].mxu0
    %v2940 = vadd.f32 %v852, %v2939
    %v2941 = vpop.f32.mrb[0].mxu0
    %2942 = vdwg.mxu0
    %v2943 = vmax.f32 %v2551, %v2881
    %v2944 = vmax.f32 %v2552, %v2884
    %v2945 = vmax.f32 %v2553, %v2889
    %v2946 = vmax.f32 %v2554, %v2892
    %v2947 = vmax.f32 %v2555, %v2897
    %v2948 = vmax.f32 %v2556, %v2900
    %v2949 = vmax.f32 %v2557, %v2905
    %v2950 = vmax.f32 %v2558, %v2908
    %v2951 = vmax.f32 %v2559, %v2913
    %v2952 = vmax.f32 %v2560, %v2916
    %v2953 = vmax.f32 %v2561, %v2921
    %v2954 = vmax.f32 %v2562, %v2924
    %v2955 = vmax.f32 %v2563, %v2929
    %v2956 = vmax.f32 %v2564, %v2932
    %v2957 = vmax.f32 %v2565, %v2937
    %v2958 = vmax.f32 %v2566, %v2940
    %s2959 = scalar_lea.vmem [#allocation2], 12
    %v2960 = vld [vmem:[%s2959] sm:$0x3]
    %v2962 = vsel %vm368, %v2960, 0
    %2964 = vmatprep.subr.bf16.mxu0 0
    %2965 = vmatpush1.bf16.msra.mxu0 %v2962
    %2966 = vmatprep.subr.bf16.mxu0 0
    %2967 = vmatpush1.bf16.msra.mxu0 0
    %2968 = vmatprep.subr.bf16.mxu0 0
    %2969 = vmatpush1.bf16.msra.mxu0 0
    %2970 = vmatprep.subr.bf16.mxu0 0
    %2971 = vmatpush1.bf16.msra.mxu0 0
    %2972 = vmatprep.subr.bf16.mxu0 0
    %2973 = vmatpush1.bf16.msra.mxu0 0
    %2974 = vmatprep.subr.bf16.mxu0 0
    %2975 = vmatpush1.bf16.msra.mxu0 0
    %2976 = vmatprep.subr.bf16.mxu0 0
    %2977 = vmatpush1.bf16.msra.mxu0 0
    %2978 = vmatprep.subr.bf16.mxu0 0
    %2979 = vmatpush1.bf16.msra.mxu0 0
    %2980 = vmatprep.subr.bf16.mxu0 0
    %2981 = vmatpush1.bf16.msra.mxu0 0
    %2982 = vmatprep.subr.bf16.mxu0 0
    %2983 = vmatpush1.bf16.msra.mxu0 0
    %2984 = vmatprep.subr.bf16.mxu0 0
    %2985 = vmatpush1.bf16.msra.mxu0 0
    %2986 = vmatprep.subr.bf16.mxu0 0
    %2987 = vmatpush1.bf16.msra.mxu0 0
    %2988 = vmatprep.subr.bf16.mxu0 0
    %2989 = vmatpush1.bf16.msra.mxu0 0
    %2990 = vmatprep.subr.bf16.mxu0 0
    %2991 = vmatpush1.bf16.msra.mxu0 0
    %2992 = vmatprep.subr.bf16.mxu0 0
    %2993 = vmatpush1.bf16.msra.mxu0 0
    %2994 = vmatprep.subr.bf16.mxu0 0
    %2995 = vmatpush1.bf16.msra.mxu0 0
    %2996 = vmatprep.mubr.bf16.mxu0 0
    %2997 = vmatmul.mubr.bf16.gmra.mrb[0].mxu0 %v345
    %v2998 = vpop.f32.mrb[0].mxu0
    %v2999 = vadd.f32 %v226, %v2998
    %v3000 = vpop.f32.mrb[0].mxu0
    %v3001 = vpop.f32.mrb[0].mxu0
    %v3002 = vadd.f32 %v231, %v3001
    %v3003 = vpop.f32.mrb[0].mxu0
    %3004 = vmatprep.mubr.bf16.mxu0 0
    %3005 = vmatmul.mubr.bf16.gmra.mrb[0].mxu0 %v348
    %v3006 = vpop.f32.mrb[0].mxu0
    %v3007 = vadd.f32 %v236, %v3006
    %v3008 = vpop.f32.mrb[0].mxu0
    %v3009 = vpop.f32.mrb[0].mxu0
    %v3010 = vadd.f32 %v241, %v3009
    %v3011 = vpop.f32.mrb[0].mxu0
    %3012 = vmatprep.mubr.bf16.mxu0 0
    %3013 = vmatmul.mubr.bf16.gmra.mrb[0].mxu0 %v351
    %v3014 = vpop.f32.mrb[0].mxu0
    %v3015 = vadd.f32 %v246, %v3014
    %v3016 = vpop.f32.mrb[0].mxu0
    %v3017 = vpop.f32.mrb[0].mxu0
    %v3018 = vadd.f32 %v251, %v3017
    %v3019 = vpop.f32.mrb[0].mxu0
    %3020 = vmatprep.mubr.bf16.mxu0 0
    %3021 = vmatmul.mubr.bf16.gmra.mrb[0].mxu0 %v354
    %v3022 = vpop.f32.mrb[0].mxu0
    %v3023 = vadd.f32 %v256, %v3022
    %v3024 = vpop.f32.mrb[0].mxu0
    %v3025 = vpop.f32.mrb[0].mxu0
    %v3026 = vadd.f32 %v261, %v3025
    %v3027 = vpop.f32.mrb[0].mxu0
    %3028 = vmatprep.mubr.bf16.mxu0 0
    %3029 = vmatmul.mubr.bf16.gmra.mrb[0].mxu0 %v357
    %v3030 = vpop.f32.mrb[0].mxu0
    %v3031 = vadd.f32 %v266, %v3030
    %v3032 = vpop.f32.mrb[0].mxu0
    %v3033 = vpop.f32.mrb[0].mxu0
    %v3034 = vadd.f32 %v271, %v3033
    %v3035 = vpop.f32.mrb[0].mxu0
    %3036 = vmatprep.mubr.bf16.mxu0 0
    %3037 = vmatmul.mubr.bf16.gmra.mrb[0].mxu0 %v360
    %v3038 = vpop.f32.mrb[0].mxu0
    %v3039 = vadd.f32 %v276, %v3038
    %v3040 = vpop.f32.mrb[0].mxu0
    %v3041 = vpop.f32.mrb[0].mxu0
    %v3042 = vadd.f32 %v281, %v3041
    %v3043 = vpop.f32.mrb[0].mxu0
    %3044 = vmatprep.mubr.bf16.mxu0 0
    %3045 = vmatmul.mubr.bf16.gmra.mrb[0].mxu0 %v363
    %v3046 = vpop.f32.mrb[0].mxu0
    %v3047 = vadd.f32 %v286, %v3046
    %v3048 = vpop.f32.mrb[0].mxu0
    %v3049 = vpop.f32.mrb[0].mxu0
    %v3050 = vadd.f32 %v291, %v3049
    %v3051 = vpop.f32.mrb[0].mxu0
    %3052 = vmatprep.mubr.bf16.mxu0 0
    %3053 = vmatmul.mubr.bf16.gmra.mrb[0].mxu0 %v366
    %v3054 = vpop.f32.mrb[0].mxu0
    %v3055 = vadd.f32 %v296, %v3054
    %v3056 = vpop.f32.mrb[0].mxu0
    %v3057 = vpop.f32.mrb[0].mxu0
    %v3058 = vadd.f32 %v301, %v3057
    %v3059 = vpop.f32.mrb[0].mxu0
    %3060 = vdwg.mxu0
    %v3061 = vmul.f32 %v2999, 0.1
    %v3062 = vmul.f32 %v3002, 0.1
    %v3063 = vmul.f32 %v3007, 0.1
    %v3064 = vmul.f32 %v3010, 0.1
    %v3065 = vmul.f32 %v3015, 0.1
    %v3066 = vmul.f32 %v3018, 0.1
    %v3067 = vmul.f32 %v3023, 0.1
    %v3068 = vmul.f32 %v3026, 0.1
    %v3069 = vmul.f32 %v3031, 0.1
    %v3070 = vmul.f32 %v3034, 0.1
    %v3071 = vmul.f32 %v3039, 0.1
    %v3072 = vmul.f32 %v3042, 0.1
    %v3073 = vmul.f32 %v3047, 0.1
    %v3074 = vmul.f32 %v3050, 0.1
    %v3075 = vmul.f32 %v3055, 0.1
    %v3076 = vmul.f32 %v3058, 0.1
    %v3077 = vmax.f32 %v2999, %v3061
    %v3078 = vmax.f32 %v3002, %v3062
    %v3079 = vmax.f32 %v3007, %v3063
    %v3080 = vmax.f32 %v3010, %v3064
    %v3081 = vmax.f32 %v3015, %v3065
    %v3082 = vmax.f32 %v3018, %v3066
    %v3083 = vmax.f32 %v3023, %v3067
    %v3084 = vmax.f32 %v3026, %v3068
    %v3085 = vmax.f32 %v3031, %v3069
    %v3086 = vmax.f32 %v3034, %v3070
    %v3087 = vmax.f32 %v3039, %v3071
    %v3088 = vmax.f32 %v3042, %v3072
    %v3089 = vmax.f32 %v3047, %v3073
    %v3090 = vmax.f32 %v3050, %v3074
    %v3091 = vmax.f32 %v3055, %v3075
    %v3092 = vmax.f32 %v3058, %v3076
    %v3093 = vpack.c.bf16 %v3078, %v3077
    %v3094 = vpack.c.bf16 %v3080, %v3079
    %v3095 = vpack.c.bf16 %v3082, %v3081
    %v3096 = vpack.c.bf16 %v3084, %v3083
    %v3097 = vpack.c.bf16 %v3086, %v3085
    %v3098 = vpack.c.bf16 %v3088, %v3087
    %v3099 = vpack.c.bf16 %v3090, %v3089
    %v3100 = vpack.c.bf16 %v3092, %v3091
    %3101 = vmatprep.subr.bf16.mxu0 0
    %3102 = vmatpush1.bf16.msra.mxu0 %v3093
    %3103 = vmatprep.subr.bf16.mxu0 0
    %3104 = vmatpush1.bf16.msra.mxu0 %v3094
    %3105 = vmatprep.subr.bf16.mxu0 0
    %3106 = vmatpush1.bf16.msra.mxu0 %v3095
    %3107 = vmatprep.subr.bf16.mxu0 0
    %3108 = vmatpush1.bf16.msra.mxu0 %v3096
    %3109 = vmatprep.subr.bf16.mxu0 0
    %3110 = vmatpush1.bf16.msra.mxu0 %v3097
    %3111 = vmatprep.subr.bf16.mxu0 0
    %3112 = vmatpush1.bf16.msra.mxu0 %v3098
    %3113 = vmatprep.subr.bf16.mxu0 0
    %3114 = vmatpush1.bf16.msra.mxu0 %v3099
    %3115 = vmatprep.subr.bf16.mxu0 0
    %3116 = vmatpush1.bf16.msra.mxu0 %v3100
    %3117 = vmatprep.subr.bf16.mxu0 0
    %3118 = vmatpush1.bf16.msra.mxu0 0
    %3119 = vmatprep.subr.bf16.mxu0 0
    %3120 = vmatpush1.bf16.msra.mxu0 0
    %3121 = vmatprep.subr.bf16.mxu0 0
    %3122 = vmatpush1.bf16.msra.mxu0 0
    %3123 = vmatprep.subr.bf16.mxu0 0
    %3124 = vmatpush1.bf16.msra.mxu0 0
    %3125 = vmatprep.subr.bf16.mxu0 0
    %3126 = vmatpush1.bf16.msra.mxu0 0
    %3127 = vmatprep.subr.bf16.mxu0 0
    %3128 = vmatpush1.bf16.msra.mxu0 0
    %3129 = vmatprep.subr.bf16.mxu0 0
    %3130 = vmatpush1.bf16.msra.mxu0 0
    %3131 = vmatprep.subr.bf16.mxu0 0
    %3132 = vmatpush1.bf16.msra.mxu0 0
    %3133 = vmatprep.mubr.bf16.mxu0 0
    %3134 = vmatmul.mubr.bf16.gmra.mrb[0].mxu0 %v621
    %v3135 = vpop.f32.mrb[0].mxu0
    %v3136 = vadd.f32 %v512, %v3135
    %v3137 = vpop.f32.mrb[0].mxu0
    %v3138 = vpop.f32.mrb[0].mxu0
    %v3139 = vadd.f32 %v517, %v3138
    %v3140 = vpop.f32.mrb[0].mxu0
    %3141 = vmatprep.mubr.bf16.mxu0 0
    %3142 = vmatmul.mubr.bf16.gmra.mrb[0].mxu0 %v622
    %v3143 = vpop.f32.mrb[0].mxu0
    %v3144 = vadd.f32 %v522, %v3143
    %v3145 = vpop.f32.mrb[0].mxu0
    %v3146 = vpop.f32.mrb[0].mxu0
    %v3147 = vadd.f32 %v527, %v3146
    %v3148 = vpop.f32.mrb[0].mxu0
    %3149 = vmatprep.mubr.bf16.mxu0 0
    %3150 = vmatmul.mubr.bf16.gmra.mrb[0].mxu0 %v623
    %v3151 = vpop.f32.mrb[0].mxu0
    %v3152 = vadd.f32 %v532, %v3151
    %v3153 = vpop.f32.mrb[0].mxu0
    %v3154 = vpop.f32.mrb[0].mxu0
    %v3155 = vadd.f32 %v537, %v3154
    %v3156 = vpop.f32.mrb[0].mxu0
    %3157 = vmatprep.mubr.bf16.mxu0 0
    %3158 = vmatmul.mubr.bf16.gmra.mrb[0].mxu0 %v624
    %v3159 = vpop.f32.mrb[0].mxu0
    %v3160 = vadd.f32 %v542, %v3159
    %v3161 = vpop.f32.mrb[0].mxu0
    %v3162 = vpop.f32.mrb[0].mxu0
    %v3163 = vadd.f32 %v547, %v3162
    %v3164 = vpop.f32.mrb[0].mxu0
    %3165 = vmatprep.mubr.bf16.mxu0 0
    %3166 = vmatmul.mubr.bf16.gmra.mrb[0].mxu0 %v625
    %v3167 = vpop.f32.mrb[0].mxu0
    %v3168 = vadd.f32 %v552, %v3167
    %v3169 = vpop.f32.mrb[0].mxu0
    %v3170 = vpop.f32.mrb[0].mxu0
    %v3171 = vadd.f32 %v557, %v3170
    %v3172 = vpop.f32.mrb[0].mxu0
    %3173 = vmatprep.mubr.bf16.mxu0 0
    %3174 = vmatmul.mubr.bf16.gmra.mrb[0].mxu0 %v626
    %v3175 = vpop.f32.mrb[0].mxu0
    %v3176 = vadd.f32 %v562, %v3175
    %v3177 = vpop.f32.mrb[0].mxu0
    %v3178 = vpop.f32.mrb[0].mxu0
    %v3179 = vadd.f32 %v567, %v3178
    %v3180 = vpop.f32.mrb[0].mxu0
    %3181 = vmatprep.mubr.bf16.mxu0 0
    %3182 = vmatmul.mubr.bf16.gmra.mrb[0].mxu0 %v627
    %v3183 = vpop.f32.mrb[0].mxu0
    %v3184 = vadd.f32 %v572, %v3183
    %v3185 = vpop.f32.mrb[0].mxu0
    %v3186 = vpop.f32.mrb[0].mxu0
    %v3187 = vadd.f32 %v577, %v3186
    %v3188 = vpop.f32.mrb[0].mxu0
    %3189 = vmatprep.mubr.bf16.mxu0 0
    %3190 = vmatmul.mubr.bf16.gmra.mrb[0].mxu0 %v628
    %v3191 = vpop.f32.mrb[0].mxu0
    %v3192 = vadd.f32 %v582, %v3191
    %v3193 = vpop.f32.mrb[0].mxu0
    %v3194 = vpop.f32.mrb[0].mxu0
    %v3195 = vadd.f32 %v587, %v3194
    %v3196 = vpop.f32.mrb[0].mxu0
    %3197 = vdwg.mxu0
    %v3198 = vmul.f32 %v3136, 0.1
    %v3199 = vmul.f32 %v3139, 0.1
    %v3200 = vmul.f32 %v3144, 0.1
    %v3201 = vmul.f32 %v3147, 0.1
    %v3202 = vmul.f32 %v3152, 0.1
    %v3203 = vmul.f32 %v3155, 0.1
    %v3204 = vmul.f32 %v3160, 0.1
    %v3205 = vmul.f32 %v3163, 0.1
    %v3206 = vmul.f32 %v3168, 0.1
    %v3207 = vmul.f32 %v3171, 0.1
    %v3208 = vmul.f32 %v3176, 0.1
    %v3209 = vmul.f32 %v3179, 0.1
    %v3210 = vmul.f32 %v3184, 0.1
    %v3211 = vmul.f32 %v3187, 0.1
    %v3212 = vmul.f32 %v3192, 0.1
    %v3213 = vmul.f32 %v3195, 0.1
    %v3214 = vmax.f32 %v3136, %v3198
    %v3215 = vmax.f32 %v3139, %v3199
    %v3216 = vmax.f32 %v3144, %v3200
    %v3217 = vmax.f32 %v3147, %v3201
    %v3218 = vmax.f32 %v3152, %v3202
    %v3219 = vmax.f32 %v3155, %v3203
    %v3220 = vmax.f32 %v3160, %v3204
    %v3221 = vmax.f32 %v3163, %v3205
    %v3222 = vmax.f32 %v3168, %v3206
    %v3223 = vmax.f32 %v3171, %v3207
    %v3224 = vmax.f32 %v3176, %v3208
    %v3225 = vmax.f32 %v3179, %v3209
    %v3226 = vmax.f32 %v3184, %v3210
    %v3227 = vmax.f32 %v3187, %v3211
    %v3228 = vmax.f32 %v3192, %v3212
    %v3229 = vmax.f32 %v3195, %v3213
    %v3230 = vpack.c.bf16 %v3215, %v3214
    %v3231 = vpack.c.bf16 %v3217, %v3216
    %v3232 = vpack.c.bf16 %v3219, %v3218
    %v3233 = vpack.c.bf16 %v3221, %v3220
    %v3234 = vpack.c.bf16 %v3223, %v3222
    %v3235 = vpack.c.bf16 %v3225, %v3224
    %v3236 = vpack.c.bf16 %v3227, %v3226
    %v3237 = vpack.c.bf16 %v3229, %v3228
    %3238 = vmatprep.subr.bf16.mxu0 0
    %3239 = vmatpush1.bf16.msra.mxu0 %v3230
    %3240 = vmatprep.subr.bf16.mxu0 0
    %3241 = vmatpush1.bf16.msra.mxu0 %v3231
    %3242 = vmatprep.subr.bf16.mxu0 0
    %3243 = vmatpush1.bf16.msra.mxu0 %v3232
    %3244 = vmatprep.subr.bf16.mxu0 0
    %3245 = vmatpush1.bf16.msra.mxu0 %v3233
    %3246 = vmatprep.subr.bf16.mxu0 0
    %3247 = vmatpush1.bf16.msra.mxu0 %v3234
    %3248 = vmatprep.subr.bf16.mxu0 0
    %3249 = vmatpush1.bf16.msra.mxu0 %v3235
    %3250 = vmatprep.subr.bf16.mxu0 0
    %3251 = vmatpush1.bf16.msra.mxu0 %v3236
    %3252 = vmatprep.subr.bf16.mxu0 0
    %3253 = vmatpush1.bf16.msra.mxu0 %v3237
    %3254 = vmatprep.subr.bf16.mxu0 0
    %3255 = vmatpush1.bf16.msra.mxu0 0
    %3256 = vmatprep.subr.bf16.mxu0 0
    %3257 = vmatpush1.bf16.msra.mxu0 0
    %3258 = vmatprep.subr.bf16.mxu0 0
    %3259 = vmatpush1.bf16.msra.mxu0 0
    %3260 = vmatprep.subr.bf16.mxu0 0
    %3261 = vmatpush1.bf16.msra.mxu0 0
    %3262 = vmatprep.subr.bf16.mxu0 0
    %3263 = vmatpush1.bf16.msra.mxu0 0
    %3264 = vmatprep.subr.bf16.mxu0 0
    %3265 = vmatpush1.bf16.msra.mxu0 0
    %3266 = vmatprep.subr.bf16.mxu0 0
    %3267 = vmatpush1.bf16.msra.mxu0 0
    %3268 = vmatprep.subr.bf16.mxu0 0
    %3269 = vmatpush1.bf16.msra.mxu0 0
    %3270 = vmatprep.mubr.bf16.mxu0 0
    %3271 = vmatmul.mubr.bf16.gmra.mrb[0].mxu0 %v886
    %v3272 = vpop.f32.mrb[0].mxu0
    %v3273 = vadd.f32 %v777, %v3272
    %v3274 = vpop.f32.mrb[0].mxu0
    %v3275 = vpop.f32.mrb[0].mxu0
    %v3276 = vadd.f32 %v782, %v3275
    %v3277 = vpop.f32.mrb[0].mxu0
    %3278 = vmatprep.mubr.bf16.mxu0 0
    %3279 = vmatmul.mubr.bf16.gmra.mrb[0].mxu0 %v887
    %v3280 = vpop.f32.mrb[0].mxu0
    %v3281 = vadd.f32 %v787, %v3280
    %v3282 = vpop.f32.mrb[0].mxu0
    %v3283 = vpop.f32.mrb[0].mxu0
    %v3284 = vadd.f32 %v792, %v3283
    %v3285 = vpop.f32.mrb[0].mxu0
    %3286 = vmatprep.mubr.bf16.mxu0 0
    %3287 = vmatmul.mubr.bf16.gmra.mrb[0].mxu0 %v888
    %v3288 = vpop.f32.mrb[0].mxu0
    %v3289 = vadd.f32 %v797, %v3288
    %v3290 = vpop.f32.mrb[0].mxu0
    %v3291 = vpop.f32.mrb[0].mxu0
    %v3292 = vadd.f32 %v802, %v3291
    %v3293 = vpop.f32.mrb[0].mxu0
    %3294 = vmatprep.mubr.bf16.mxu0 0
    %3295 = vmatmul.mubr.bf16.gmra.mrb[0].mxu0 %v889
    %v3296 = vpop.f32.mrb[0].mxu0
    %v3297 = vadd.f32 %v807, %v3296
    %v3298 = vpop.f32.mrb[0].mxu0
    %v3299 = vpop.f32.mrb[0].mxu0
    %v3300 = vadd.f32 %v812, %v3299
    %v3301 = vpop.f32.mrb[0].mxu0
    %3302 = vmatprep.mubr.bf16.mxu0 0
    %3303 = vmatmul.mubr.bf16.gmra.mrb[0].mxu0 %v890
    %v3304 = vpop.f32.mrb[0].mxu0
    %v3305 = vadd.f32 %v817, %v3304
    %v3306 = vpop.f32.mrb[0].mxu0
    %v3307 = vpop.f32.mrb[0].mxu0
    %v3308 = vadd.f32 %v822, %v3307
    %v3309 = vpop.f32.mrb[0].mxu0
    %3310 = vmatprep.mubr.bf16.mxu0 0
    %3311 = vmatmul.mubr.bf16.gmra.mrb[0].mxu0 %v891
    %v3312 = vpop.f32.mrb[0].mxu0
    %v3313 = vadd.f32 %v827, %v3312
    %v3314 = vpop.f32.mrb[0].mxu0
    %v3315 = vpop.f32.mrb[0].mxu0
    %v3316 = vadd.f32 %v832, %v3315
    %v3317 = vpop.f32.mrb[0].mxu0
    %3318 = vmatprep.mubr.bf16.mxu0 0
    %3319 = vmatmul.mubr.bf16.gmra.mrb[0].mxu0 %v892
    %v3320 = vpop.f32.mrb[0].mxu0
    %v3321 = vadd.f32 %v837, %v3320
    %v3322 = vpop.f32.mrb[0].mxu0
    %v3323 = vpop.f32.mrb[0].mxu0
    %v3324 = vadd.f32 %v842, %v3323
    %v3325 = vpop.f32.mrb[0].mxu0
    %3326 = vmatprep.mubr.bf16.mxu0 0
    %3327 = vmatmul.mubr.bf16.gmra.mrb[0].mxu0 %v893
    %v3328 = vpop.f32.mrb[0].mxu0
    %v3329 = vadd.f32 %v847, %v3328
    %v3330 = vpop.f32.mrb[0].mxu0
    %v3331 = vpop.f32.mrb[0].mxu0
    %v3332 = vadd.f32 %v852, %v3331
    %v3333 = vpop.f32.mrb[0].mxu0
    %3334 = vdwg.mxu0
    %v3335 = vmax.f32 %v2943, %v3273
    %v3336 = vmax.f32 %v2944, %v3276
    %v3337 = vmax.f32 %v2945, %v3281
    %v3338 = vmax.f32 %v2946, %v3284
    %v3339 = vmax.f32 %v2947, %v3289
    %v3340 = vmax.f32 %v2948, %v3292
    %v3341 = vmax.f32 %v2949, %v3297
    %v3342 = vmax.f32 %v2950, %v3300
    %v3343 = vmax.f32 %v2951, %v3305
    %v3344 = vmax.f32 %v2952, %v3308
    %v3345 = vmax.f32 %v2953, %v3313
    %v3346 = vmax.f32 %v2954, %v3316
    %v3347 = vmax.f32 %v2955, %v3321
    %v3348 = vmax.f32 %v2956, %v3324
    %v3349 = vmax.f32 %v2957, %v3329
    %v3350 = vmax.f32 %v2958, %v3332
    %s3351 = scalar_lea.vmem [#allocation2], 14
    %v3352 = vld [vmem:[%s3351] sm:$0x3]
    %v3354 = vsel %vm368, %v3352, 0
    %3356 = vmatprep.subr.bf16.mxu0 0
    %3357 = vmatpush1.bf16.msra.mxu0 %v3354
    %3358 = vmatprep.subr.bf16.mxu0 0
    %3359 = vmatpush1.bf16.msra.mxu0 0
    %3360 = vmatprep.subr.bf16.mxu0 0
    %3361 = vmatpush1.bf16.msra.mxu0 0
    %3362 = vmatprep.subr.bf16.mxu0 0
    %3363 = vmatpush1.bf16.msra.mxu0 0
    %3364 = vmatprep.subr.bf16.mxu0 0
    %3365 = vmatpush1.bf16.msra.mxu0 0
    %3366 = vmatprep.subr.bf16.mxu0 0
    %3367 = vmatpush1.bf16.msra.mxu0 0
    %3368 = vmatprep.subr.bf16.mxu0 0
    %3369 = vmatpush1.bf16.msra.mxu0 0
    %3370 = vmatprep.subr.bf16.mxu0 0
    %3371 = vmatpush1.bf16.msra.mxu0 0
    %3372 = vmatprep.subr.bf16.mxu0 0
    %3373 = vmatpush1.bf16.msra.mxu0 0
    %3374 = vmatprep.subr.bf16.mxu0 0
    %3375 = vmatpush1.bf16.msra.mxu0 0
    %3376 = vmatprep.subr.bf16.mxu0 0
    %3377 = vmatpush1.bf16.msra.mxu0 0
    %3378 = vmatprep.subr.bf16.mxu0 0
    %3379 = vmatpush1.bf16.msra.mxu0 0
    %3380 = vmatprep.subr.bf16.mxu0 0
    %3381 = vmatpush1.bf16.msra.mxu0 0
    %3382 = vmatprep.subr.bf16.mxu0 0
    %3383 = vmatpush1.bf16.msra.mxu0 0
    %3384 = vmatprep.subr.bf16.mxu0 0
    %3385 = vmatpush1.bf16.msra.mxu0 0
    %3386 = vmatprep.subr.bf16.mxu0 0
    %3387 = vmatpush1.bf16.msra.mxu0 0
    %3388 = vmatprep.mubr.bf16.mxu0 0
    %3389 = vmatmul.mubr.bf16.gmra.mrb[0].mxu0 %v345
    %v3390 = vpop.f32.mrb[0].mxu0
    %v3391 = vadd.f32 %v226, %v3390
    %v3392 = vpop.f32.mrb[0].mxu0
    %v3393 = vpop.f32.mrb[0].mxu0
    %v3394 = vadd.f32 %v231, %v3393
    %v3395 = vpop.f32.mrb[0].mxu0
    %3396 = vmatprep.mubr.bf16.mxu0 0
    %3397 = vmatmul.mubr.bf16.gmra.mrb[0].mxu0 %v348
    %v3398 = vpop.f32.mrb[0].mxu0
    %v3399 = vadd.f32 %v236, %v3398
    %v3400 = vpop.f32.mrb[0].mxu0
    %v3401 = vpop.f32.mrb[0].mxu0
    %v3402 = vadd.f32 %v241, %v3401
    %v3403 = vpop.f32.mrb[0].mxu0
    %3404 = vmatprep.mubr.bf16.mxu0 0
    %3405 = vmatmul.mubr.bf16.gmra.mrb[0].mxu0 %v351
    %v3406 = vpop.f32.mrb[0].mxu0
    %v3407 = vadd.f32 %v246, %v3406
    %v3408 = vpop.f32.mrb[0].mxu0
    %v3409 = vpop.f32.mrb[0].mxu0
    %v3410 = vadd.f32 %v251, %v3409
    %v3411 = vpop.f32.mrb[0].mxu0
    %3412 = vmatprep.mubr.bf16.mxu0 0
    %3413 = vmatmul.mubr.bf16.gmra.mrb[0].mxu0 %v354
    %v3414 = vpop.f32.mrb[0].mxu0
    %v3415 = vadd.f32 %v256, %v3414
    %v3416 = vpop.f32.mrb[0].mxu0
    %v3417 = vpop.f32.mrb[0].mxu0
    %v3418 = vadd.f32 %v261, %v3417
    %v3419 = vpop.f32.mrb[0].mxu0
    %3420 = vmatprep.mubr.bf16.mxu0 0
    %3421 = vmatmul.mubr.bf16.gmra.mrb[0].mxu0 %v357
    %v3422 = vpop.f32.mrb[0].mxu0
    %v3423 = vadd.f32 %v266, %v3422
    %v3424 = vpop.f32.mrb[0].mxu0
    %v3425 = vpop.f32.mrb[0].mxu0
    %v3426 = vadd.f32 %v271, %v3425
    %v3427 = vpop.f32.mrb[0].mxu0
    %3428 = vmatprep.mubr.bf16.mxu0 0
    %3429 = vmatmul.mubr.bf16.gmra.mrb[0].mxu0 %v360
    %v3430 = vpop.f32.mrb[0].mxu0
    %v3431 = vadd.f32 %v276, %v3430
    %v3432 = vpop.f32.mrb[0].mxu0
    %v3433 = vpop.f32.mrb[0].mxu0
    %v3434 = vadd.f32 %v281, %v3433
    %v3435 = vpop.f32.mrb[0].mxu0
    %3436 = vmatprep.mubr.bf16.mxu0 0
    %3437 = vmatmul.mubr.bf16.gmra.mrb[0].mxu0 %v363
    %v3438 = vpop.f32.mrb[0].mxu0
    %v3439 = vadd.f32 %v286, %v3438
    %v3440 = vpop.f32.mrb[0].mxu0
    %v3441 = vpop.f32.mrb[0].mxu0
    %v3442 = vadd.f32 %v291, %v3441
    %v3443 = vpop.f32.mrb[0].mxu0
    %3444 = vmatprep.mubr.bf16.mxu0 0
    %3445 = vmatmul.mubr.bf16.gmra.mrb[0].mxu0 %v366
    %v3446 = vpop.f32.mrb[0].mxu0
    %v3447 = vadd.f32 %v296, %v3446
    %v3448 = vpop.f32.mrb[0].mxu0
    %v3449 = vpop.f32.mrb[0].mxu0
    %v3450 = vadd.f32 %v301, %v3449
    %v3451 = vpop.f32.mrb[0].mxu0
    %3452 = vdwg.mxu0
    %v3453 = vmul.f32 %v3391, 0.1
    %v3454 = vmul.f32 %v3394, 0.1
    %v3455 = vmul.f32 %v3399, 0.1
    %v3456 = vmul.f32 %v3402, 0.1
    %v3457 = vmul.f32 %v3407, 0.1
    %v3458 = vmul.f32 %v3410, 0.1
    %v3459 = vmul.f32 %v3415, 0.1
    %v3460 = vmul.f32 %v3418, 0.1
    %v3461 = vmul.f32 %v3423, 0.1
    %v3462 = vmul.f32 %v3426, 0.1
    %v3463 = vmul.f32 %v3431, 0.1
    %v3464 = vmul.f32 %v3434, 0.1
    %v3465 = vmul.f32 %v3439, 0.1
    %v3466 = vmul.f32 %v3442, 0.1
    %v3467 = vmul.f32 %v3447, 0.1
    %v3468 = vmul.f32 %v3450, 0.1
    %v3469 = vmax.f32 %v3391, %v3453
    %v3470 = vmax.f32 %v3394, %v3454
    %v3471 = vmax.f32 %v3399, %v3455
    %v3472 = vmax.f32 %v3402, %v3456
    %v3473 = vmax.f32 %v3407, %v3457
    %v3474 = vmax.f32 %v3410, %v3458
    %v3475 = vmax.f32 %v3415, %v3459
    %v3476 = vmax.f32 %v3418, %v3460
    %v3477 = vmax.f32 %v3423, %v3461
    %v3478 = vmax.f32 %v3426, %v3462
    %v3479 = vmax.f32 %v3431, %v3463
    %v3480 = vmax.f32 %v3434, %v3464
    %v3481 = vmax.f32 %v3439, %v3465
    %v3482 = vmax.f32 %v3442, %v3466
    %v3483 = vmax.f32 %v3447, %v3467
    %v3484 = vmax.f32 %v3450, %v3468
    %v3485 = vpack.c.bf16 %v3470, %v3469
    %v3486 = vpack.c.bf16 %v3472, %v3471
    %v3487 = vpack.c.bf16 %v3474, %v3473
    %v3488 = vpack.c.bf16 %v3476, %v3475
    %v3489 = vpack.c.bf16 %v3478, %v3477
    %v3490 = vpack.c.bf16 %v3480, %v3479
    %v3491 = vpack.c.bf16 %v3482, %v3481
    %v3492 = vpack.c.bf16 %v3484, %v3483
    %3493 = vmatprep.subr.bf16.mxu0 0
    %3494 = vmatpush1.bf16.msra.mxu0 %v3485
    %3495 = vmatprep.subr.bf16.mxu0 0
    %3496 = vmatpush1.bf16.msra.mxu0 %v3486
    %3497 = vmatprep.subr.bf16.mxu0 0
    %3498 = vmatpush1.bf16.msra.mxu0 %v3487
    %3499 = vmatprep.subr.bf16.mxu0 0
    %3500 = vmatpush1.bf16.msra.mxu0 %v3488
    %3501 = vmatprep.subr.bf16.mxu0 0
    %3502 = vmatpush1.bf16.msra.mxu0 %v3489
    %3503 = vmatprep.subr.bf16.mxu0 0
    %3504 = vmatpush1.bf16.msra.mxu0 %v3490
    %3505 = vmatprep.subr.bf16.mxu0 0
    %3506 = vmatpush1.bf16.msra.mxu0 %v3491
    %3507 = vmatprep.subr.bf16.mxu0 0
    %3508 = vmatpush1.bf16.msra.mxu0 %v3492
    %3509 = vmatprep.subr.bf16.mxu0 0
    %3510 = vmatpush1.bf16.msra.mxu0 0
    %3511 = vmatprep.subr.bf16.mxu0 0
    %3512 = vmatpush1.bf16.msra.mxu0 0
    %3513 = vmatprep.subr.bf16.mxu0 0
    %3514 = vmatpush1.bf16.msra.mxu0 0
    %3515 = vmatprep.subr.bf16.mxu0 0
    %3516 = vmatpush1.bf16.msra.mxu0 0
    %3517 = vmatprep.subr.bf16.mxu0 0
    %3518 = vmatpush1.bf16.msra.mxu0 0
    %3519 = vmatprep.subr.bf16.mxu0 0
    %3520 = vmatpush1.bf16.msra.mxu0 0
    %3521 = vmatprep.subr.bf16.mxu0 0
    %3522 = vmatpush1.bf16.msra.mxu0 0
    %3523 = vmatprep.subr.bf16.mxu0 0
    %3524 = vmatpush1.bf16.msra.mxu0 0
    %3525 = vmatprep.mubr.bf16.mxu0 0
    %3526 = vmatmul.mubr.bf16.gmra.mrb[0].mxu0 %v621
    %v3527 = vpop.f32.mrb[0].mxu0
    %v3528 = vadd.f32 %v512, %v3527
    %v3529 = vpop.f32.mrb[0].mxu0
    %v3530 = vpop.f32.mrb[0].mxu0
    %v3531 = vadd.f32 %v517, %v3530
    %v3532 = vpop.f32.mrb[0].mxu0
    %3533 = vmatprep.mubr.bf16.mxu0 0
    %3534 = vmatmul.mubr.bf16.gmra.mrb[0].mxu0 %v622
    %v3535 = vpop.f32.mrb[0].mxu0
    %v3536 = vadd.f32 %v522, %v3535
    %v3537 = vpop.f32.mrb[0].mxu0
    %v3538 = vpop.f32.mrb[0].mxu0
    %v3539 = vadd.f32 %v527, %v3538
    %v3540 = vpop.f32.mrb[0].mxu0
    %3541 = vmatprep.mubr.bf16.mxu0 0
    %3542 = vmatmul.mubr.bf16.gmra.mrb[0].mxu0 %v623
    %v3543 = vpop.f32.mrb[0].mxu0
    %v3544 = vadd.f32 %v532, %v3543
    %v3545 = vpop.f32.mrb[0].mxu0
    %v3546 = vpop.f32.mrb[0].mxu0
    %v3547 = vadd.f32 %v537, %v3546
    %v3548 = vpop.f32.mrb[0].mxu0
    %3549 = vmatprep.mubr.bf16.mxu0 0
    %3550 = vmatmul.mubr.bf16.gmra.mrb[0].mxu0 %v624
    %v3551 = vpop.f32.mrb[0].mxu0
    %v3552 = vadd.f32 %v542, %v3551
    %v3553 = vpop.f32.mrb[0].mxu0
    %v3554 = vpop.f32.mrb[0].mxu0
    %v3555 = vadd.f32 %v547, %v3554
    %v3556 = vpop.f32.mrb[0].mxu0
    %3557 = vmatprep.mubr.bf16.mxu0 0
    %3558 = vmatmul.mubr.bf16.gmra.mrb[0].mxu0 %v625
    %v3559 = vpop.f32.mrb[0].mxu0
    %v3560 = vadd.f32 %v552, %v3559
    %v3561 = vpop.f32.mrb[0].mxu0
    %v3562 = vpop.f32.mrb[0].mxu0
    %v3563 = vadd.f32 %v557, %v3562
    %v3564 = vpop.f32.mrb[0].mxu0
    %3565 = vmatprep.mubr.bf16.mxu0 0
    %3566 = vmatmul.mubr.bf16.gmra.mrb[0].mxu0 %v626
    %v3567 = vpop.f32.mrb[0].mxu0
    %v3568 = vadd.f32 %v562, %v3567
    %v3569 = vpop.f32.mrb[0].mxu0
    %v3570 = vpop.f32.mrb[0].mxu0
    %v3571 = vadd.f32 %v567, %v3570
    %v3572 = vpop.f32.mrb[0].mxu0
    %3573 = vmatprep.mubr.bf16.mxu0 0
    %3574 = vmatmul.mubr.bf16.gmra.mrb[0].mxu0 %v627
    %v3575 = vpop.f32.mrb[0].mxu0
    %v3576 = vadd.f32 %v572, %v3575
    %v3577 = vpop.f32.mrb[0].mxu0
    %v3578 = vpop.f32.mrb[0].mxu0
    %v3579 = vadd.f32 %v577, %v3578
    %v3580 = vpop.f32.mrb[0].mxu0
    %3581 = vmatprep.mubr.bf16.mxu0 0
    %3582 = vmatmul.mubr.bf16.gmra.mrb[0].mxu0 %v628
    %v3583 = vpop.f32.mrb[0].mxu0
    %v3584 = vadd.f32 %v582, %v3583
    %v3585 = vpop.f32.mrb[0].mxu0
    %v3586 = vpop.f32.mrb[0].mxu0
    %v3587 = vadd.f32 %v587, %v3586
    %v3588 = vpop.f32.mrb[0].mxu0
    %3589 = vdwg.mxu0
    %v3590 = vmul.f32 %v3528, 0.1
    %v3591 = vmul.f32 %v3531, 0.1
    %v3592 = vmul.f32 %v3536, 0.1
    %v3593 = vmul.f32 %v3539, 0.1
    %v3594 = vmul.f32 %v3544, 0.1
    %v3595 = vmul.f32 %v3547, 0.1
    %v3596 = vmul.f32 %v3552, 0.1
    %v3597 = vmul.f32 %v3555, 0.1
    %v3598 = vmul.f32 %v3560, 0.1
    %v3599 = vmul.f32 %v3563, 0.1
    %v3600 = vmul.f32 %v3568, 0.1
    %v3601 = vmul.f32 %v3571, 0.1
    %v3602 = vmul.f32 %v3576, 0.1
    %v3603 = vmul.f32 %v3579, 0.1
    %v3604 = vmul.f32 %v3584, 0.1
    %v3605 = vmul.f32 %v3587, 0.1
    %v3606 = vmax.f32 %v3528, %v3590
    %v3607 = vmax.f32 %v3531, %v3591
    %v3608 = vmax.f32 %v3536, %v3592
    %v3609 = vmax.f32 %v3539, %v3593
    %v3610 = vmax.f32 %v3544, %v3594
    %v3611 = vmax.f32 %v3547, %v3595
    %v3612 = vmax.f32 %v3552, %v3596
    %v3613 = vmax.f32 %v3555, %v3597
    %v3614 = vmax.f32 %v3560, %v3598
    %v3615 = vmax.f32 %v3563, %v3599
    %v3616 = vmax.f32 %v3568, %v3600
    %v3617 = vmax.f32 %v3571, %v3601
    %v3618 = vmax.f32 %v3576, %v3602
    %v3619 = vmax.f32 %v3579, %v3603
    %v3620 = vmax.f32 %v3584, %v3604
    %v3621 = vmax.f32 %v3587, %v3605
    %v3622 = vpack.c.bf16 %v3607, %v3606
    %v3623 = vpack.c.bf16 %v3609, %v3608
    %v3624 = vpack.c.bf16 %v3611, %v3610
    %v3625 = vpack.c.bf16 %v3613, %v3612
    %v3626 = vpack.c.bf16 %v3615, %v3614
    %v3627 = vpack.c.bf16 %v3617, %v3616
    %v3628 = vpack.c.bf16 %v3619, %v3618
    %v3629 = vpack.c.bf16 %v3621, %v3620
    %3630 = vmatprep.subr.bf16.mxu0 0
    %3631 = vmatpush1.bf16.msra.mxu0 %v3622
    %3632 = vmatprep.subr.bf16.mxu0 0
    %3633 = vmatpush1.bf16.msra.mxu0 %v3623
    %3634 = vmatprep.subr.bf16.mxu0 0
    %3635 = vmatpush1.bf16.msra.mxu0 %v3624
    %3636 = vmatprep.subr.bf16.mxu0 0
    %3637 = vmatpush1.bf16.msra.mxu0 %v3625
    %3638 = vmatprep.subr.bf16.mxu0 0
    %3639 = vmatpush1.bf16.msra.mxu0 %v3626
    %3640 = vmatprep.subr.bf16.mxu0 0
    %3641 = vmatpush1.bf16.msra.mxu0 %v3627
    %3642 = vmatprep.subr.bf16.mxu0 0
    %3643 = vmatpush1.bf16.msra.mxu0 %v3628
    %3644 = vmatprep.subr.bf16.mxu0 0
    %3645 = vmatpush1.bf16.msra.mxu0 %v3629
    %3646 = vmatprep.subr.bf16.mxu0 0
    %3647 = vmatpush1.bf16.msra.mxu0 0
    %3648 = vmatprep.subr.bf16.mxu0 0
    %3649 = vmatpush1.bf16.msra.mxu0 0
    %3650 = vmatprep.subr.bf16.mxu0 0
    %3651 = vmatpush1.bf16.msra.mxu0 0
    %3652 = vmatprep.subr.bf16.mxu0 0
    %3653 = vmatpush1.bf16.msra.mxu0 0
    %3654 = vmatprep.subr.bf16.mxu0 0
    %3655 = vmatpush1.bf16.msra.mxu0 0
    %3656 = vmatprep.subr.bf16.mxu0 0
    %3657 = vmatpush1.bf16.msra.mxu0 0
    %3658 = vmatprep.subr.bf16.mxu0 0
    %3659 = vmatpush1.bf16.msra.mxu0 0
    %3660 = vmatprep.subr.bf16.mxu0 0
    %3661 = vmatpush1.bf16.msra.mxu0 0
    %3662 = vmatprep.mubr.bf16.mxu0 0
    %3663 = vmatmul.mubr.bf16.gmra.mrb[0].mxu0 %v886
    %v3664 = vpop.f32.mrb[0].mxu0
    %v3665 = vadd.f32 %v777, %v3664
    %v3666 = vpop.f32.mrb[0].mxu0
    %v3667 = vpop.f32.mrb[0].mxu0
    %v3668 = vadd.f32 %v782, %v3667
    %v3669 = vpop.f32.mrb[0].mxu0
    %3670 = vmatprep.mubr.bf16.mxu0 0
    %3671 = vmatmul.mubr.bf16.gmra.mrb[0].mxu0 %v887
    %v3672 = vpop.f32.mrb[0].mxu0
    %v3673 = vadd.f32 %v787, %v3672
    %v3674 = vpop.f32.mrb[0].mxu0
    %v3675 = vpop.f32.mrb[0].mxu0
    %v3676 = vadd.f32 %v792, %v3675
    %v3677 = vpop.f32.mrb[0].mxu0
    %3678 = vmatprep.mubr.bf16.mxu0 0
    %3679 = vmatmul.mubr.bf16.gmra.mrb[0].mxu0 %v888
    %v3680 = vpop.f32.mrb[0].mxu0
    %v3681 = vadd.f32 %v797, %v3680
    %v3682 = vpop.f32.mrb[0].mxu0
    %v3683 = vpop.f32.mrb[0].mxu0
    %v3684 = vadd.f32 %v802, %v3683
    %v3685 = vpop.f32.mrb[0].mxu0
    %3686 = vmatprep.mubr.bf16.mxu0 0
    %3687 = vmatmul.mubr.bf16.gmra.mrb[0].mxu0 %v889
    %v3688 = vpop.f32.mrb[0].mxu0
    %v3689 = vadd.f32 %v807, %v3688
    %v3690 = vpop.f32.mrb[0].mxu0
    %v3691 = vpop.f32.mrb[0].mxu0
    %v3692 = vadd.f32 %v812, %v3691
    %v3693 = vpop.f32.mrb[0].mxu0
    %3694 = vmatprep.mubr.bf16.mxu0 0
    %3695 = vmatmul.mubr.bf16.gmra.mrb[0].mxu0 %v890
    %v3696 = vpop.f32.mrb[0].mxu0
    %v3697 = vadd.f32 %v817, %v3696
    %v3698 = vpop.f32.mrb[0].mxu0
    %v3699 = vpop.f32.mrb[0].mxu0
    %v3700 = vadd.f32 %v822, %v3699
    %v3701 = vpop.f32.mrb[0].mxu0
    %3702 = vmatprep.mubr.bf16.mxu0 0
    %3703 = vmatmul.mubr.bf16.gmra.mrb[0].mxu0 %v891
    %v3704 = vpop.f32.mrb[0].mxu0
    %v3705 = vadd.f32 %v827, %v3704
    %v3706 = vpop.f32.mrb[0].mxu0
    %v3707 = vpop.f32.mrb[0].mxu0
    %v3708 = vadd.f32 %v832, %v3707
    %v3709 = vpop.f32.mrb[0].mxu0
    %3710 = vmatprep.mubr.bf16.mxu0 0
    %3711 = vmatmul.mubr.bf16.gmra.mrb[0].mxu0 %v892
    %v3712 = vpop.f32.mrb[0].mxu0
    %v3713 = vadd.f32 %v837, %v3712
    %v3714 = vpop.f32.mrb[0].mxu0
    %v3715 = vpop.f32.mrb[0].mxu0
    %v3716 = vadd.f32 %v842, %v3715
    %v3717 = vpop.f32.mrb[0].mxu0
    %3718 = vmatprep.mubr.bf16.mxu0 0
    %3719 = vmatmul.mubr.bf16.gmra.mrb[0].mxu0 %v893
    %v3720 = vpop.f32.mrb[0].mxu0
    %v3721 = vadd.f32 %v847, %v3720
    %v3722 = vpop.f32.mrb[0].mxu0
    %v3723 = vpop.f32.mrb[0].mxu0
    %v3724 = vadd.f32 %v852, %v3723
    %v3725 = vpop.f32.mrb[0].mxu0
    %3726 = vdwg.mxu0
    %v3727 = vmax.f32 %v3335, %v3665
    %v3728 = vmax.f32 %v3336, %v3668
    %v3729 = vmax.f32 %v3337, %v3673
    %v3730 = vmax.f32 %v3338, %v3676
    %v3731 = vmax.f32 %v3339, %v3681
    %v3732 = vmax.f32 %v3340, %v3684
    %v3733 = vmax.f32 %v3341, %v3689
    %v3734 = vmax.f32 %v3342, %v3692
    %v3735 = vmax.f32 %v3343, %v3697
    %v3736 = vmax.f32 %v3344, %v3700
    %v3737 = vmax.f32 %v3345, %v3705
    %v3738 = vmax.f32 %v3346, %v3708
    %v3739 = vmax.f32 %v3347, %v3713
    %v3740 = vmax.f32 %v3348, %v3716
    %v3741 = vmax.f32 %v3349, %v3721
    %v3742 = vmax.f32 %v3350, %v3724
    %v3743 = vpack.c.bf16 %v3728, %v3727
    %v3744 = vpack.c.bf16 %v3730, %v3729
    %v3745 = vpack.c.bf16 %v3732, %v3731
    %v3746 = vpack.c.bf16 %v3734, %v3733
    %v3747 = vpack.c.bf16 %v3736, %v3735
    %v3748 = vpack.c.bf16 %v3738, %v3737
    %v3749 = vpack.c.bf16 %v3740, %v3739
    %v3750 = vpack.c.bf16 %v3742, %v3741
    %v3751 = vld [vmem:[#allocation8] sm:$0xf]
    %v3752 = vld [vmem:[#allocation8 + $0x4] sm:$0xf]
    %v3753 = vld [vmem:[#allocation8 + $0x8] sm:$0xf]
    %v3754 = vld [vmem:[#allocation8 + $0xc] sm:$0xf]
    %v3755 = vld [vmem:[#allocation8 + $0x10] sm:$0xf]
    %v3756 = vld [vmem:[#allocation8 + $0x14] sm:$0xf]
    %v3757 = vld [vmem:[#allocation8 + $0x18] sm:$0xf]
    %v3758 = vld [vmem:[#allocation8 + $0x1c] sm:$0xf]
    %v3759 = vld [vmem:[#allocation8 + $0x20] sm:$0xf]
    %v3760 = vld [vmem:[#allocation8 + $0x24] sm:$0xf]
    %v3761 = vld [vmem:[#allocation8 + $0x28] sm:$0xf]
    %v3762 = vld [vmem:[#allocation8 + $0x2c] sm:$0xf]
    %v3763 = vld [vmem:[#allocation8 + $0x30] sm:$0xf]
    %v3764 = vld [vmem:[#allocation8 + $0x34] sm:$0xf]
    %v3765 = vld [vmem:[#allocation8 + $0x38] sm:$0xf]
    %v3766 = vld [vmem:[#allocation8 + $0x3c] sm:$0xf]
    %v3767 = vld [vmem:[#allocation8 + $0x40] sm:$0xf]
    %v3768 = vld [vmem:[#allocation8 + $0x44] sm:$0xf]
    %v3769 = vld [vmem:[#allocation8 + $0x48] sm:$0xf]
    %v3770 = vld [vmem:[#allocation8 + $0x4c] sm:$0xf]
    %v3771 = vld [vmem:[#allocation8 + $0x50] sm:$0xf]
    %v3772 = vld [vmem:[#allocation8 + $0x54] sm:$0xf]
    %v3773 = vld [vmem:[#allocation8 + $0x58] sm:$0xf]
    %v3774 = vld [vmem:[#allocation8 + $0x5c] sm:$0xf]
    %v3775 = vld [vmem:[#allocation8 + $0x60] sm:$0xf]
    %v3776 = vld [vmem:[#allocation8 + $0x64] sm:$0xf]
    %v3777 = vld [vmem:[#allocation8 + $0x68] sm:$0xf]
    %v3778 = vld [vmem:[#allocation8 + $0x6c] sm:$0xf]
    %v3779 = vld [vmem:[#allocation8 + $0x70] sm:$0xf]
    %v3780 = vld [vmem:[#allocation8 + $0x74] sm:$0xf]
    %v3781 = vld [vmem:[#allocation8 + $0x78] sm:$0xf]
    %v3782 = vld [vmem:[#allocation8 + $0x7c] sm:$0xf]
    %v3783 = vld [vmem:[#allocation8 + $0x80] sm:$0xf]
    %v3784 = vld [vmem:[#allocation8 + $0x84] sm:$0xf]
    %v3785 = vld [vmem:[#allocation8 + $0x88] sm:$0xf]
    %v3786 = vld [vmem:[#allocation8 + $0x8c] sm:$0xf]
    %v3787 = vld [vmem:[#allocation8 + $0x90] sm:$0xf]
    %v3788 = vld [vmem:[#allocation8 + $0x94] sm:$0xf]
    %v3789 = vld [vmem:[#allocation8 + $0x98] sm:$0xf]
    %v3790 = vld [vmem:[#allocation8 + $0x9c] sm:$0xf]
    %v3791 = vld [vmem:[#allocation8 + $0xa0] sm:$0xf]
    %v3792 = vld [vmem:[#allocation8 + $0xa4] sm:$0xf]
    %v3793 = vld [vmem:[#allocation8 + $0xa8] sm:$0xf]
    %v3794 = vld [vmem:[#allocation8 + $0xac] sm:$0xf]
    %v3795 = vld [vmem:[#allocation8 + $0xb0] sm:$0xf]
    %v3796 = vld [vmem:[#allocation8 + $0xb4] sm:$0xf]
    %v3797 = vld [vmem:[#allocation8 + $0xb8] sm:$0xf]
    %v3798 = vld [vmem:[#allocation8 + $0xbc] sm:$0xf]
    %v3799 = vld [vmem:[#allocation8 + $0xc0] sm:$0xf]
    %v3800 = vld [vmem:[#allocation8 + $0xc4] sm:$0xf]
    %v3801 = vld [vmem:[#allocation8 + $0xc8] sm:$0xf]
    %v3802 = vld [vmem:[#allocation8 + $0xcc] sm:$0xf]
    %v3803 = vld [vmem:[#allocation8 + $0xd0] sm:$0xf]
    %v3804 = vld [vmem:[#allocation8 + $0xd4] sm:$0xf]
    %v3805 = vld [vmem:[#allocation8 + $0xd8] sm:$0xf]
    %v3806 = vld [vmem:[#allocation8 + $0xdc] sm:$0xf]
    %v3807 = vld [vmem:[#allocation8 + $0xe0] sm:$0xf]
    %v3808 = vld [vmem:[#allocation8 + $0xe4] sm:$0xf]
    %v3809 = vld [vmem:[#allocation8 + $0xe8] sm:$0xf]
    %v3810 = vld [vmem:[#allocation8 + $0xec] sm:$0xf]
    %v3811 = vld [vmem:[#allocation8 + $0xf0] sm:$0xf]
    %v3812 = vld [vmem:[#allocation8 + $0xf4] sm:$0xf]
    %v3813 = vld [vmem:[#allocation8 + $0xf8] sm:$0xf]
    %v3814 = vld [vmem:[#allocation8 + $0xfc] sm:$0xf]
    %s3815 = scalar_lea.vmem [#allocation8], 256
    %v3816 = vld [vmem:[%s3815] sm:$0xf]
    %v3817 = vld [vmem:[%s3815 + $0x4] sm:$0xf]
    %v3818 = vld [vmem:[%s3815 + $0x8] sm:$0xf]
    %v3819 = vld [vmem:[%s3815 + $0xc] sm:$0xf]
    %v3820 = vld [vmem:[%s3815 + $0x10] sm:$0xf]
    %v3821 = vld [vmem:[%s3815 + $0x14] sm:$0xf]
    %v3822 = vld [vmem:[%s3815 + $0x18] sm:$0xf]
    %v3823 = vld [vmem:[%s3815 + $0x1c] sm:$0xf]
    %v3824 = vld [vmem:[%s3815 + $0x20] sm:$0xf]
    %v3825 = vld [vmem:[%s3815 + $0x24] sm:$0xf]
    %v3826 = vld [vmem:[%s3815 + $0x28] sm:$0xf]
    %v3827 = vld [vmem:[%s3815 + $0x2c] sm:$0xf]
    %v3828 = vld [vmem:[%s3815 + $0x30] sm:$0xf]
    %v3829 = vld [vmem:[%s3815 + $0x34] sm:$0xf]
    %v3830 = vld [vmem:[%s3815 + $0x38] sm:$0xf]
    %v3831 = vld [vmem:[%s3815 + $0x3c] sm:$0xf]
    %v3832 = vld [vmem:[%s3815 + $0x40] sm:$0xf]
    %v3833 = vld [vmem:[%s3815 + $0x44] sm:$0xf]
    %v3834 = vld [vmem:[%s3815 + $0x48] sm:$0xf]
    %v3835 = vld [vmem:[%s3815 + $0x4c] sm:$0xf]
    %v3836 = vld [vmem:[%s3815 + $0x50] sm:$0xf]
    %v3837 = vld [vmem:[%s3815 + $0x54] sm:$0xf]
    %v3838 = vld [vmem:[%s3815 + $0x58] sm:$0xf]
    %v3839 = vld [vmem:[%s3815 + $0x5c] sm:$0xf]
    %v3840 = vld [vmem:[%s3815 + $0x60] sm:$0xf]
    %v3841 = vld [vmem:[%s3815 + $0x64] sm:$0xf]
    %v3842 = vld [vmem:[%s3815 + $0x68] sm:$0xf]
    %v3843 = vld [vmem:[%s3815 + $0x6c] sm:$0xf]
    %v3844 = vld [vmem:[%s3815 + $0x70] sm:$0xf]
    %v3845 = vld [vmem:[%s3815 + $0x74] sm:$0xf]
    %v3846 = vld [vmem:[%s3815 + $0x78] sm:$0xf]
    %v3847 = vld [vmem:[%s3815 + $0x7c] sm:$0xf]
    %v3848 = vld [vmem:[%s3815 + $0x80] sm:$0xf]
    %v3849 = vld [vmem:[%s3815 + $0x84] sm:$0xf]
    %v3850 = vld [vmem:[%s3815 + $0x88] sm:$0xf]
    %v3851 = vld [vmem:[%s3815 + $0x8c] sm:$0xf]
    %v3852 = vld [vmem:[%s3815 + $0x90] sm:$0xf]
    %v3853 = vld [vmem:[%s3815 + $0x94] sm:$0xf]
    %v3854 = vld [vmem:[%s3815 + $0x98] sm:$0xf]
    %v3855 = vld [vmem:[%s3815 + $0x9c] sm:$0xf]
    %v3856 = vld [vmem:[%s3815 + $0xa0] sm:$0xf]
    %v3857 = vld [vmem:[%s3815 + $0xa4] sm:$0xf]
    %v3858 = vld [vmem:[%s3815 + $0xa8] sm:$0xf]
    %v3859 = vld [vmem:[%s3815 + $0xac] sm:$0xf]
    %v3860 = vld [vmem:[%s3815 + $0xb0] sm:$0xf]
    %v3861 = vld [vmem:[%s3815 + $0xb4] sm:$0xf]
    %v3862 = vld [vmem:[%s3815 + $0xb8] sm:$0xf]
    %v3863 = vld [vmem:[%s3815 + $0xbc] sm:$0xf]
    %v3864 = vld [vmem:[%s3815 + $0xc0] sm:$0xf]
    %v3865 = vld [vmem:[%s3815 + $0xc4] sm:$0xf]
    %v3866 = vld [vmem:[%s3815 + $0xc8] sm:$0xf]
    %v3867 = vld [vmem:[%s3815 + $0xcc] sm:$0xf]
    %v3868 = vld [vmem:[%s3815 + $0xd0] sm:$0xf]
    %v3869 = vld [vmem:[%s3815 + $0xd4] sm:$0xf]
    %v3870 = vld [vmem:[%s3815 + $0xd8] sm:$0xf]
    %v3871 = vld [vmem:[%s3815 + $0xdc] sm:$0xf]
    %v3872 = vld [vmem:[%s3815 + $0xe0] sm:$0xf]
    %v3873 = vld [vmem:[%s3815 + $0xe4] sm:$0xf]
    %v3874 = vld [vmem:[%s3815 + $0xe8] sm:$0xf]
    %v3875 = vld [vmem:[%s3815 + $0xec] sm:$0xf]
    %v3876 = vld [vmem:[%s3815 + $0xf0] sm:$0xf]
    %v3877 = vld [vmem:[%s3815 + $0xf4] sm:$0xf]
    %v3878 = vld [vmem:[%s3815 + $0xf8] sm:$0xf]
    %v3879 = vld [vmem:[%s3815 + $0xfc] sm:$0xf]
    %v3944 = vunpack.c.l.b16 %v3816
    %v3945 = vunpack.c.l.b16 %v3817
    %v3946 = vunpack.c.l.b16 %v3818
    %v3947 = vunpack.c.l.b16 %v3819
    %v3948 = vunpack.c.l.b16 %v3820
    %v3949 = vunpack.c.l.b16 %v3821
    %v3950 = vunpack.c.l.b16 %v3822
    %v3951 = vunpack.c.l.b16 %v3823
    %v3952 = vunpack.c.l.b16 %v3824
    %v3953 = vunpack.c.l.b16 %v3825
    %v3954 = vunpack.c.l.b16 %v3826
    %v3955 = vunpack.c.l.b16 %v3827
    %v3956 = vunpack.c.l.b16 %v3828
    %v3957 = vunpack.c.l.b16 %v3829
    %v3958 = vunpack.c.l.b16 %v3830
    %v3959 = vunpack.c.l.b16 %v3831
    %v3960 = vunpack.c.l.b16 %v3832
    %v3961 = vunpack.c.l.b16 %v3833
    %v3962 = vunpack.c.l.b16 %v3834
    %v3963 = vunpack.c.l.b16 %v3835
    %v3964 = vunpack.c.l.b16 %v3836
    %v3965 = vunpack.c.l.b16 %v3837
    %v3966 = vunpack.c.l.b16 %v3838
    %v3967 = vunpack.c.l.b16 %v3839
    %v3968 = vunpack.c.l.b16 %v3840
    %v3969 = vunpack.c.l.b16 %v3841
    %v3970 = vunpack.c.l.b16 %v3842
    %v3971 = vunpack.c.l.b16 %v3843
    %v3972 = vunpack.c.l.b16 %v3844
    %v3973 = vunpack.c.l.b16 %v3845
    %v3974 = vunpack.c.l.b16 %v3846
    %v3975 = vunpack.c.l.b16 %v3847
    %v3976 = vunpack.c.l.b16 %v3848
    %v3977 = vunpack.c.l.b16 %v3849
    %v3978 = vunpack.c.l.b16 %v3850
    %v3979 = vunpack.c.l.b16 %v3851
    %v3980 = vunpack.c.l.b16 %v3852
    %v3981 = vunpack.c.l.b16 %v3853
    %v3982 = vunpack.c.l.b16 %v3854
    %v3983 = vunpack.c.l.b16 %v3855
    %v3984 = vunpack.c.l.b16 %v3856
    %v3985 = vunpack.c.l.b16 %v3857
    %v3986 = vunpack.c.l.b16 %v3858
    %v3987 = vunpack.c.l.b16 %v3859
    %v3988 = vunpack.c.l.b16 %v3860
    %v3989 = vunpack.c.l.b16 %v3861
    %v3990 = vunpack.c.l.b16 %v3862
    %v3991 = vunpack.c.l.b16 %v3863
    %v3992 = vunpack.c.l.b16 %v3864
    %v3993 = vunpack.c.l.b16 %v3865
    %v3994 = vunpack.c.l.b16 %v3866
    %v3995 = vunpack.c.l.b16 %v3867
    %v3996 = vunpack.c.l.b16 %v3868
    %v3997 = vunpack.c.l.b16 %v3869
    %v3998 = vunpack.c.l.b16 %v3870
    %v3999 = vunpack.c.l.b16 %v3871
    %v4000 = vunpack.c.l.b16 %v3872
    %v4001 = vunpack.c.l.b16 %v3873
    %v4002 = vunpack.c.l.b16 %v3874
    %v4003 = vunpack.c.l.b16 %v3875
    %v4004 = vunpack.c.l.b16 %v3876
    %v4005 = vunpack.c.l.b16 %v3877
    %v4006 = vunpack.c.l.b16 %v3878
    %v4007 = vunpack.c.l.b16 %v3879
    %v4008 = vpack.c.b16 %v3945, %v3944
    %v4009 = vpack.c.b16 %v3947, %v3946
    %v4010 = vpack.c.b16 %v3949, %v3948
    %v4011 = vpack.c.b16 %v3951, %v3950
    %v4012 = vpack.c.b16 %v3953, %v3952
    %v4013 = vpack.c.b16 %v3955, %v3954
    %v4014 = vpack.c.b16 %v3957, %v3956
    %v4015 = vpack.c.b16 %v3959, %v3958
    %v4016 = vpack.c.b16 %v3961, %v3960
    %v4017 = vpack.c.b16 %v3963, %v3962
    %v4018 = vpack.c.b16 %v3965, %v3964
    %v4019 = vpack.c.b16 %v3967, %v3966
    %v4020 = vpack.c.b16 %v3969, %v3968
    %v4021 = vpack.c.b16 %v3971, %v3970
    %v4022 = vpack.c.b16 %v3973, %v3972
    %v4023 = vpack.c.b16 %v3975, %v3974
    %v4024 = vpack.c.b16 %v3977, %v3976
    %v4025 = vpack.c.b16 %v3979, %v3978
    %v4026 = vpack.c.b16 %v3981, %v3980
    %v4027 = vpack.c.b16 %v3983, %v3982
    %v4028 = vpack.c.b16 %v3985, %v3984
    %v4029 = vpack.c.b16 %v3987, %v3986
    %v4030 = vpack.c.b16 %v3989, %v3988
    %v4031 = vpack.c.b16 %v3991, %v3990
    %v4032 = vpack.c.b16 %v3993, %v3992
    %v4033 = vpack.c.b16 %v3995, %v3994
    %v4034 = vpack.c.b16 %v3997, %v3996
    %v4035 = vpack.c.b16 %v3999, %v3998
    %v4036 = vpack.c.b16 %v4001, %v4000
    %v4037 = vpack.c.b16 %v4003, %v4002
    %v4038 = vpack.c.b16 %v4005, %v4004
    %v4039 = vpack.c.b16 %v4007, %v4006
    %4080 = vrot.lane.b32.xlu0 %v3743, 120
    %v4081 = vpop.permute.xlu0 %4080
    %4082 = vrot.lane.b32.xlu0 %v3744, 120
    %v4083 = vpop.permute.xlu0 %4082
    %4084 = vrot.lane.b32.xlu0 %v3745, 120
    %v4085 = vpop.permute.xlu0 %4084
    %4086 = vrot.lane.b32.xlu0 %v3746, 120
    %v4087 = vpop.permute.xlu0 %4086
    %4088 = vrot.lane.b32.xlu0 %v3747, 120
    %v4089 = vpop.permute.xlu0 %4088
    %4090 = vrot.lane.b32.xlu0 %v3748, 120
    %v4091 = vpop.permute.xlu0 %4090
    %4092 = vrot.lane.b32.xlu0 %v3749, 120
    %v4093 = vpop.permute.xlu0 %4092
    %4094 = vrot.lane.b32.xlu0 %v3750, 120
    %v4095 = vpop.permute.xlu0 %4094
    %4104 = vmatprep.subr.bf16.mxu0 0
    %4105 = vmatpush1.bf16.msra.mxu0 %v4081
    %4106 = vmatprep.subr.bf16.mxu0 0
    %4107 = vmatpush1.bf16.msra.mxu0 %v4083
    %4108 = vmatprep.subr.bf16.mxu0 0
    %4109 = vmatpush1.bf16.msra.mxu0 %v4085
    %4110 = vmatprep.subr.bf16.mxu0 0
    %4111 = vmatpush1.bf16.msra.mxu0 %v4087
    %4112 = vmatprep.subr.bf16.mxu0 0
    %4113 = vmatpush1.bf16.msra.mxu0 %v4089
    %4114 = vmatprep.subr.bf16.mxu0 0
    %4115 = vmatpush1.bf16.msra.mxu0 %v4091
    %4116 = vmatprep.subr.bf16.mxu0 0
    %4117 = vmatpush1.bf16.msra.mxu0 %v4093
    %4118 = vmatprep.subr.bf16.mxu0 0
    %4119 = vmatpush1.bf16.msra.mxu0 %v4095
    %4120 = vmatprep.subr.bf16.mxu0 0
    %4121 = vmatpush1.bf16.msra.mxu0 0
    %4122 = vmatprep.subr.bf16.mxu0 0
    %4123 = vmatpush1.bf16.msra.mxu0 0
    %4124 = vmatprep.subr.bf16.mxu0 0
    %4125 = vmatpush1.bf16.msra.mxu0 0
    %4126 = vmatprep.subr.bf16.mxu0 0
    %4127 = vmatpush1.bf16.msra.mxu0 0
    %4128 = vmatprep.subr.bf16.mxu0 0
    %4129 = vmatpush1.bf16.msra.mxu0 0
    %4130 = vmatprep.subr.bf16.mxu0 0
    %4131 = vmatpush1.bf16.msra.mxu0 0
    %4132 = vmatprep.subr.bf16.mxu0 0
    %4133 = vmatpush1.bf16.msra.mxu0 0
    %4134 = vmatprep.subr.bf16.mxu0 0
    %4135 = vmatpush1.bf16.msra.mxu0 0
    %4136 = vmatprep.mubr.bf16.mxu0 0
    %4137 = vmatmul.mubr.bf16.gmra.mrb[0].mxu0 %v4008
    %v4138 = vpop.f32.mrb[0].mxu0
    %v4139 = vadd.f32 0.0, %v4138
    %v4140 = vpop.f32.mrb[0].mxu0
    %v4141 = vpop.f32.mrb[0].mxu0
    %v4142 = vadd.f32 0.0, %v4141
    %v4143 = vpop.f32.mrb[0].mxu0
    %4144 = vmatprep.mubr.bf16.mxu0 0
    %4145 = vmatmul.mubr.bf16.gmra.mrb[0].mxu0 %v4009
    %v4146 = vpop.f32.mrb[0].mxu0
    %v4147 = vadd.f32 0.0, %v4146
    %v4148 = vpop.f32.mrb[0].mxu0
    %v4149 = vpop.f32.mrb[0].mxu0
    %v4150 = vadd.f32 0.0, %v4149
    %v4151 = vpop.f32.mrb[0].mxu0
    %4152 = vmatprep.mubr.bf16.mxu0 0
    %4153 = vmatmul.mubr.bf16.gmra.mrb[0].mxu0 %v4010
    %v4154 = vpop.f32.mrb[0].mxu0
    %v4155 = vadd.f32 0.0, %v4154
    %v4156 = vpop.f32.mrb[0].mxu0
    %v4157 = vpop.f32.mrb[0].mxu0
    %v4158 = vadd.f32 0.0, %v4157
    %v4159 = vpop.f32.mrb[0].mxu0
    %4160 = vmatprep.mubr.bf16.mxu0 0
    %4161 = vmatmul.mubr.bf16.gmra.mrb[0].mxu0 %v4011
    %v4162 = vpop.f32.mrb[0].mxu0
    %v4163 = vadd.f32 0.0, %v4162
    %v4164 = vpop.f32.mrb[0].mxu0
    %v4165 = vpop.f32.mrb[0].mxu0
    %v4166 = vadd.f32 0.0, %v4165
    %v4167 = vpop.f32.mrb[0].mxu0
    %4168 = vmatprep.mubr.bf16.mxu0 0
    %4169 = vmatmul.mubr.bf16.gmra.mrb[0].mxu0 %v4012
    %v4170 = vpop.f32.mrb[0].mxu0
    %v4171 = vadd.f32 0.0, %v4170
    %v4172 = vpop.f32.mrb[0].mxu0
    %v4173 = vpop.f32.mrb[0].mxu0
    %v4174 = vadd.f32 0.0, %v4173
    %v4175 = vpop.f32.mrb[0].mxu0
    %4176 = vmatprep.mubr.bf16.mxu0 0
    %4177 = vmatmul.mubr.bf16.gmra.mrb[0].mxu0 %v4013
    %v4178 = vpop.f32.mrb[0].mxu0
    %v4179 = vadd.f32 0.0, %v4178
    %v4180 = vpop.f32.mrb[0].mxu0
    %v4181 = vpop.f32.mrb[0].mxu0
    %v4182 = vadd.f32 0.0, %v4181
    %v4183 = vpop.f32.mrb[0].mxu0
    %4184 = vmatprep.mubr.bf16.mxu0 0
    %4185 = vmatmul.mubr.bf16.gmra.mrb[0].mxu0 %v4014
    %v4186 = vpop.f32.mrb[0].mxu0
    %v4187 = vadd.f32 0.0, %v4186
    %v4188 = vpop.f32.mrb[0].mxu0
    %v4189 = vpop.f32.mrb[0].mxu0
    %v4190 = vadd.f32 0.0, %v4189
    %v4191 = vpop.f32.mrb[0].mxu0
    %4192 = vmatprep.mubr.bf16.mxu0 0
    %4193 = vmatmul.mubr.bf16.gmra.mrb[0].mxu0 %v4015
    %v4194 = vpop.f32.mrb[0].mxu0
    %v4195 = vadd.f32 0.0, %v4194
    %v4196 = vpop.f32.mrb[0].mxu0
    %v4197 = vpop.f32.mrb[0].mxu0
    %v4198 = vadd.f32 0.0, %v4197
    %v4199 = vpop.f32.mrb[0].mxu0
    %4200 = vmatprep.mubr.bf16.mxu0 0
    %4201 = vmatmul.mubr.bf16.gmra.mrb[0].mxu0 %v4016
    %v4202 = vpop.f32.mrb[0].mxu0
    %v4203 = vadd.f32 0.0, %v4202
    %v4204 = vpop.f32.mrb[0].mxu0
    %v4205 = vpop.f32.mrb[0].mxu0
    %v4206 = vadd.f32 0.0, %v4205
    %v4207 = vpop.f32.mrb[0].mxu0
    %4208 = vmatprep.mubr.bf16.mxu0 0
    %4209 = vmatmul.mubr.bf16.gmra.mrb[0].mxu0 %v4017
    %v4210 = vpop.f32.mrb[0].mxu0
    %v4211 = vadd.f32 0.0, %v4210
    %v4212 = vpop.f32.mrb[0].mxu0
    %v4213 = vpop.f32.mrb[0].mxu0
    %v4214 = vadd.f32 0.0, %v4213
    %v4215 = vpop.f32.mrb[0].mxu0
    %4216 = vmatprep.mubr.bf16.mxu0 0
    %4217 = vmatmul.mubr.bf16.gmra.mrb[0].mxu0 %v4018
    %v4218 = vpop.f32.mrb[0].mxu0
    %v4219 = vadd.f32 0.0, %v4218
    %v4220 = vpop.f32.mrb[0].mxu0
    %v4221 = vpop.f32.mrb[0].mxu0
    %v4222 = vadd.f32 0.0, %v4221
    %v4223 = vpop.f32.mrb[0].mxu0
    %4224 = vmatprep.mubr.bf16.mxu0 0
    %4225 = vmatmul.mubr.bf16.gmra.mrb[0].mxu0 %v4019
    %v4226 = vpop.f32.mrb[0].mxu0
    %v4227 = vadd.f32 0.0, %v4226
    %v4228 = vpop.f32.mrb[0].mxu0
    %v4229 = vpop.f32.mrb[0].mxu0
    %v4230 = vadd.f32 0.0, %v4229
    %v4231 = vpop.f32.mrb[0].mxu0
    %4232 = vmatprep.mubr.bf16.mxu0 0
    %4233 = vmatmul.mubr.bf16.gmra.mrb[0].mxu0 %v4020
    %v4234 = vpop.f32.mrb[0].mxu0
    %v4235 = vadd.f32 0.0, %v4234
    %v4236 = vpop.f32.mrb[0].mxu0
    %v4237 = vpop.f32.mrb[0].mxu0
    %v4238 = vadd.f32 0.0, %v4237
    %v4239 = vpop.f32.mrb[0].mxu0
    %4240 = vmatprep.mubr.bf16.mxu0 0
    %4241 = vmatmul.mubr.bf16.gmra.mrb[0].mxu0 %v4021
    %v4242 = vpop.f32.mrb[0].mxu0
    %v4243 = vadd.f32 0.0, %v4242
    %v4244 = vpop.f32.mrb[0].mxu0
    %v4245 = vpop.f32.mrb[0].mxu0
    %v4246 = vadd.f32 0.0, %v4245
    %v4247 = vpop.f32.mrb[0].mxu0
    %4248 = vmatprep.mubr.bf16.mxu0 0
    %4249 = vmatmul.mubr.bf16.gmra.mrb[0].mxu0 %v4022
    %v4250 = vpop.f32.mrb[0].mxu0
    %v4251 = vadd.f32 0.0, %v4250
    %v4252 = vpop.f32.mrb[0].mxu0
    %v4253 = vpop.f32.mrb[0].mxu0
    %v4254 = vadd.f32 0.0, %v4253
    %v4255 = vpop.f32.mrb[0].mxu0
    %4256 = vmatprep.mubr.bf16.mxu0 0
    %4257 = vmatmul.mubr.bf16.gmra.mrb[0].mxu0 %v4023
    %v4258 = vpop.f32.mrb[0].mxu0
    %v4259 = vadd.f32 0.0, %v4258
    %v4260 = vpop.f32.mrb[0].mxu0
    %v4261 = vpop.f32.mrb[0].mxu0
    %v4262 = vadd.f32 0.0, %v4261
    %v4263 = vpop.f32.mrb[0].mxu0
    %4264 = vmatprep.mubr.bf16.mxu0 0
    %4265 = vmatmul.mubr.bf16.gmra.mrb[0].mxu0 %v4024
    %v4266 = vpop.f32.mrb[0].mxu0
    %v4267 = vadd.f32 0.0, %v4266
    %v4268 = vpop.f32.mrb[0].mxu0
    %v4269 = vpop.f32.mrb[0].mxu0
    %v4270 = vadd.f32 0.0, %v4269
    %v4271 = vpop.f32.mrb[0].mxu0
    %4272 = vmatprep.mubr.bf16.mxu0 0
    %4273 = vmatmul.mubr.bf16.gmra.mrb[0].mxu0 %v4025
    %v4274 = vpop.f32.mrb[0].mxu0
    %v4275 = vadd.f32 0.0, %v4274
    %v4276 = vpop.f32.mrb[0].mxu0
    %v4277 = vpop.f32.mrb[0].mxu0
    %v4278 = vadd.f32 0.0, %v4277
    %v4279 = vpop.f32.mrb[0].mxu0
    %4280 = vmatprep.mubr.bf16.mxu0 0
    %4281 = vmatmul.mubr.bf16.gmra.mrb[0].mxu0 %v4026
    %v4282 = vpop.f32.mrb[0].mxu0
    %v4283 = vadd.f32 0.0, %v4282
    %v4284 = vpop.f32.mrb[0].mxu0
    %v4285 = vpop.f32.mrb[0].mxu0
    %v4286 = vadd.f32 0.0, %v4285
    %v4287 = vpop.f32.mrb[0].mxu0
    %4288 = vmatprep.mubr.bf16.mxu0 0
    %4289 = vmatmul.mubr.bf16.gmra.mrb[0].mxu0 %v4027
    %v4290 = vpop.f32.mrb[0].mxu0
    %v4291 = vadd.f32 0.0, %v4290
    %v4292 = vpop.f32.mrb[0].mxu0
    %v4293 = vpop.f32.mrb[0].mxu0
    %v4294 = vadd.f32 0.0, %v4293
    %v4295 = vpop.f32.mrb[0].mxu0
    %4296 = vmatprep.mubr.bf16.mxu0 0
    %4297 = vmatmul.mubr.bf16.gmra.mrb[0].mxu0 %v4028
    %v4298 = vpop.f32.mrb[0].mxu0
    %v4299 = vadd.f32 0.0, %v4298
    %v4300 = vpop.f32.mrb[0].mxu0
    %v4301 = vpop.f32.mrb[0].mxu0
    %v4302 = vadd.f32 0.0, %v4301
    %v4303 = vpop.f32.mrb[0].mxu0
    %4304 = vmatprep.mubr.bf16.mxu0 0
    %4305 = vmatmul.mubr.bf16.gmra.mrb[0].mxu0 %v4029
    %v4306 = vpop.f32.mrb[0].mxu0
    %v4307 = vadd.f32 0.0, %v4306
    %v4308 = vpop.f32.mrb[0].mxu0
    %v4309 = vpop.f32.mrb[0].mxu0
    %v4310 = vadd.f32 0.0, %v4309
    %v4311 = vpop.f32.mrb[0].mxu0
    %4312 = vmatprep.mubr.bf16.mxu0 0
    %4313 = vmatmul.mubr.bf16.gmra.mrb[0].mxu0 %v4030
    %v4314 = vpop.f32.mrb[0].mxu0
    %v4315 = vadd.f32 0.0, %v4314
    %v4316 = vpop.f32.mrb[0].mxu0
    %v4317 = vpop.f32.mrb[0].mxu0
    %v4318 = vadd.f32 0.0, %v4317
    %v4319 = vpop.f32.mrb[0].mxu0
    %4320 = vmatprep.mubr.bf16.mxu0 0
    %4321 = vmatmul.mubr.bf16.gmra.mrb[0].mxu0 %v4031
    %v4322 = vpop.f32.mrb[0].mxu0
    %v4323 = vadd.f32 0.0, %v4322
    %v4324 = vpop.f32.mrb[0].mxu0
    %v4325 = vpop.f32.mrb[0].mxu0
    %v4326 = vadd.f32 0.0, %v4325
    %v4327 = vpop.f32.mrb[0].mxu0
    %4328 = vmatprep.mubr.bf16.mxu0 0
    %4329 = vmatmul.mubr.bf16.gmra.mrb[0].mxu0 %v4032
    %v4330 = vpop.f32.mrb[0].mxu0
    %v4331 = vadd.f32 0.0, %v4330
    %v4332 = vpop.f32.mrb[0].mxu0
    %v4333 = vpop.f32.mrb[0].mxu0
    %v4334 = vadd.f32 0.0, %v4333
    %v4335 = vpop.f32.mrb[0].mxu0
    %4336 = vmatprep.mubr.bf16.mxu0 0
    %4337 = vmatmul.mubr.bf16.gmra.mrb[0].mxu0 %v4033
    %v4338 = vpop.f32.mrb[0].mxu0
    %v4339 = vadd.f32 0.0, %v4338
    %v4340 = vpop.f32.mrb[0].mxu0
    %v4341 = vpop.f32.mrb[0].mxu0
    %v4342 = vadd.f32 0.0, %v4341
    %v4343 = vpop.f32.mrb[0].mxu0
    %4344 = vmatprep.mubr.bf16.mxu0 0
    %4345 = vmatmul.mubr.bf16.gmra.mrb[0].mxu0 %v4034
    %v4346 = vpop.f32.mrb[0].mxu0
    %v4347 = vadd.f32 0.0, %v4346
    %v4348 = vpop.f32.mrb[0].mxu0
    %v4349 = vpop.f32.mrb[0].mxu0
    %v4350 = vadd.f32 0.0, %v4349
    %v4351 = vpop.f32.mrb[0].mxu0
    %4352 = vmatprep.mubr.bf16.mxu0 0
    %4353 = vmatmul.mubr.bf16.gmra.mrb[0].mxu0 %v4035
    %v4354 = vpop.f32.mrb[0].mxu0
    %v4355 = vadd.f32 0.0, %v4354
    %v4356 = vpop.f32.mrb[0].mxu0
    %v4357 = vpop.f32.mrb[0].mxu0
    %v4358 = vadd.f32 0.0, %v4357
    %v4359 = vpop.f32.mrb[0].mxu0
    %4360 = vmatprep.mubr.bf16.mxu0 0
    %4361 = vmatmul.mubr.bf16.gmra.mrb[0].mxu0 %v4036
    %v4362 = vpop.f32.mrb[0].mxu0
    %v4363 = vadd.f32 0.0, %v4362
    %v4364 = vpop.f32.mrb[0].mxu0
    %v4365 = vpop.f32.mrb[0].mxu0
    %v4366 = vadd.f32 0.0, %v4365
    %v4367 = vpop.f32.mrb[0].mxu0
    %4368 = vmatprep.mubr.bf16.mxu0 0
    %4369 = vmatmul.mubr.bf16.gmra.mrb[0].mxu0 %v4037
    %v4370 = vpop.f32.mrb[0].mxu0
    %v4371 = vadd.f32 0.0, %v4370
    %v4372 = vpop.f32.mrb[0].mxu0
    %v4373 = vpop.f32.mrb[0].mxu0
    %v4374 = vadd.f32 0.0, %v4373
    %v4375 = vpop.f32.mrb[0].mxu0
    %4376 = vmatprep.mubr.bf16.mxu0 0
    %4377 = vmatmul.mubr.bf16.gmra.mrb[0].mxu0 %v4038
    %v4378 = vpop.f32.mrb[0].mxu0
    %v4379 = vadd.f32 0.0, %v4378
    %v4380 = vpop.f32.mrb[0].mxu0
    %v4381 = vpop.f32.mrb[0].mxu0
    %v4382 = vadd.f32 0.0, %v4381
    %v4383 = vpop.f32.mrb[0].mxu0
    %4384 = vmatprep.mubr.bf16.mxu0 0
    %4385 = vmatmul.mubr.bf16.gmra.mrb[0].mxu0 %v4039
    %v4386 = vpop.f32.mrb[0].mxu0
    %v4387 = vadd.f32 0.0, %v4386
    %v4388 = vpop.f32.mrb[0].mxu0
    %v4389 = vpop.f32.mrb[0].mxu0
    %v4390 = vadd.f32 0.0, %v4389
    %v4391 = vpop.f32.mrb[0].mxu0
    %4392 = vdwg.mxu0
    %v4457 = vunpack.c.l.b16 %v3751
    %v4458 = vunpack.c.l.b16 %v3752
    %v4459 = vunpack.c.l.b16 %v3753
    %v4460 = vunpack.c.l.b16 %v3754
    %v4461 = vunpack.c.l.b16 %v3755
    %v4462 = vunpack.c.l.b16 %v3756
    %v4463 = vunpack.c.l.b16 %v3757
    %v4464 = vunpack.c.l.b16 %v3758
    %v4465 = vunpack.c.l.b16 %v3759
    %v4466 = vunpack.c.l.b16 %v3760
    %v4467 = vunpack.c.l.b16 %v3761
    %v4468 = vunpack.c.l.b16 %v3762
    %v4469 = vunpack.c.l.b16 %v3763
    %v4470 = vunpack.c.l.b16 %v3764
    %v4471 = vunpack.c.l.b16 %v3765
    %v4472 = vunpack.c.l.b16 %v3766
    %v4473 = vunpack.c.l.b16 %v3767
    %v4474 = vunpack.c.l.b16 %v3768
    %v4475 = vunpack.c.l.b16 %v3769
    %v4476 = vunpack.c.l.b16 %v3770
    %v4477 = vunpack.c.l.b16 %v3771
    %v4478 = vunpack.c.l.b16 %v3772
    %v4479 = vunpack.c.l.b16 %v3773
    %v4480 = vunpack.c.l.b16 %v3774
    %v4481 = vunpack.c.l.b16 %v3775
    %v4482 = vunpack.c.l.b16 %v3776
    %v4483 = vunpack.c.l.b16 %v3777
    %v4484 = vunpack.c.l.b16 %v3778
    %v4485 = vunpack.c.l.b16 %v3779
    %v4486 = vunpack.c.l.b16 %v3780
    %v4487 = vunpack.c.l.b16 %v3781
    %v4488 = vunpack.c.l.b16 %v3782
    %v4489 = vunpack.c.l.b16 %v3783
    %v4490 = vunpack.c.l.b16 %v3784
    %v4491 = vunpack.c.l.b16 %v3785
    %v4492 = vunpack.c.l.b16 %v3786
    %v4493 = vunpack.c.l.b16 %v3787
    %v4494 = vunpack.c.l.b16 %v3788
    %v4495 = vunpack.c.l.b16 %v3789
    %v4496 = vunpack.c.l.b16 %v3790
    %v4497 = vunpack.c.l.b16 %v3791
    %v4498 = vunpack.c.l.b16 %v3792
    %v4499 = vunpack.c.l.b16 %v3793
    %v4500 = vunpack.c.l.b16 %v3794
    %v4501 = vunpack.c.l.b16 %v3795
    %v4502 = vunpack.c.l.b16 %v3796
    %v4503 = vunpack.c.l.b16 %v3797
    %v4504 = vunpack.c.l.b16 %v3798
    %v4505 = vunpack.c.l.b16 %v3799
    %v4506 = vunpack.c.l.b16 %v3800
    %v4507 = vunpack.c.l.b16 %v3801
    %v4508 = vunpack.c.l.b16 %v3802
    %v4509 = vunpack.c.l.b16 %v3803
    %v4510 = vunpack.c.l.b16 %v3804
    %v4511 = vunpack.c.l.b16 %v3805
    %v4512 = vunpack.c.l.b16 %v3806
    %v4513 = vunpack.c.l.b16 %v3807
    %v4514 = vunpack.c.l.b16 %v3808
    %v4515 = vunpack.c.l.b16 %v3809
    %v4516 = vunpack.c.l.b16 %v3810
    %v4517 = vunpack.c.l.b16 %v3811
    %v4518 = vunpack.c.l.b16 %v3812
    %v4519 = vunpack.c.l.b16 %v3813
    %v4520 = vunpack.c.l.b16 %v3814
    %v4521 = vpack.c.b16 %v4458, %v4457
    %v4522 = vpack.c.b16 %v4460, %v4459
    %v4523 = vpack.c.b16 %v4462, %v4461
    %v4524 = vpack.c.b16 %v4464, %v4463
    %v4525 = vpack.c.b16 %v4466, %v4465
    %v4526 = vpack.c.b16 %v4468, %v4467
    %v4527 = vpack.c.b16 %v4470, %v4469
    %v4528 = vpack.c.b16 %v4472, %v4471
    %v4529 = vpack.c.b16 %v4474, %v4473
    %v4530 = vpack.c.b16 %v4476, %v4475
    %v4531 = vpack.c.b16 %v4478, %v4477
    %v4532 = vpack.c.b16 %v4480, %v4479
    %v4533 = vpack.c.b16 %v4482, %v4481
    %v4534 = vpack.c.b16 %v4484, %v4483
    %v4535 = vpack.c.b16 %v4486, %v4485
    %v4536 = vpack.c.b16 %v4488, %v4487
    %v4537 = vpack.c.b16 %v4490, %v4489
    %v4538 = vpack.c.b16 %v4492, %v4491
    %v4539 = vpack.c.b16 %v4494, %v4493
    %v4540 = vpack.c.b16 %v4496, %v4495
    %v4541 = vpack.c.b16 %v4498, %v4497
    %v4542 = vpack.c.b16 %v4500, %v4499
    %v4543 = vpack.c.b16 %v4502, %v4501
    %v4544 = vpack.c.b16 %v4504, %v4503
    %v4545 = vpack.c.b16 %v4506, %v4505
    %v4546 = vpack.c.b16 %v4508, %v4507
    %v4547 = vpack.c.b16 %v4510, %v4509
    %v4548 = vpack.c.b16 %v4512, %v4511
    %v4549 = vpack.c.b16 %v4514, %v4513
    %v4550 = vpack.c.b16 %v4516, %v4515
    %v4551 = vpack.c.b16 %v4518, %v4517
    %v4552 = vpack.c.b16 %v4520, %v4519
    %4585 = vmatprep.subr.bf16.mxu0 0
    %4586 = vmatpush1.bf16.msra.mxu0 %v3743
    %4587 = vmatprep.subr.bf16.mxu0 0
    %4588 = vmatpush1.bf16.msra.mxu0 %v3744
    %4589 = vmatprep.subr.bf16.mxu0 0
    %4590 = vmatpush1.bf16.msra.mxu0 %v3745
    %4591 = vmatprep.subr.bf16.mxu0 0
    %4592 = vmatpush1.bf16.msra.mxu0 %v3746
    %4593 = vmatprep.subr.bf16.mxu0 0
    %4594 = vmatpush1.bf16.msra.mxu0 %v3747
    %4595 = vmatprep.subr.bf16.mxu0 0
    %4596 = vmatpush1.bf16.msra.mxu0 %v3748
    %4597 = vmatprep.subr.bf16.mxu0 0
    %4598 = vmatpush1.bf16.msra.mxu0 %v3749
    %4599 = vmatprep.subr.bf16.mxu0 0
    %4600 = vmatpush1.bf16.msra.mxu0 %v3750
    %4601 = vmatprep.subr.bf16.mxu0 0
    %4602 = vmatpush1.bf16.msra.mxu0 0
    %4603 = vmatprep.subr.bf16.mxu0 0
    %4604 = vmatpush1.bf16.msra.mxu0 0
    %4605 = vmatprep.subr.bf16.mxu0 0
    %4606 = vmatpush1.bf16.msra.mxu0 0
    %4607 = vmatprep.subr.bf16.mxu0 0
    %4608 = vmatpush1.bf16.msra.mxu0 0
    %4609 = vmatprep.subr.bf16.mxu0 0
    %4610 = vmatpush1.bf16.msra.mxu0 0
    %4611 = vmatprep.subr.bf16.mxu0 0
    %4612 = vmatpush1.bf16.msra.mxu0 0
    %4613 = vmatprep.subr.bf16.mxu0 0
    %4614 = vmatpush1.bf16.msra.mxu0 0
    %4615 = vmatprep.subr.bf16.mxu0 0
    %4616 = vmatpush1.bf16.msra.mxu0 0
    %4617 = vmatprep.mubr.bf16.mxu0 0
    %4618 = vmatmul.mubr.bf16.gmra.mrb[0].mxu0 %v4521
    %v4619 = vpop.f32.mrb[0].mxu0
    %v4620 = vadd.f32 %v4139, %v4619
    %v4621 = vpop.f32.mrb[0].mxu0
    %v4622 = vpop.f32.mrb[0].mxu0
    %v4623 = vadd.f32 %v4142, %v4622
    %v4624 = vpop.f32.mrb[0].mxu0
    %4625 = vmatprep.mubr.bf16.mxu0 0
    %4626 = vmatmul.mubr.bf16.gmra.mrb[0].mxu0 %v4522
    %v4627 = vpop.f32.mrb[0].mxu0
    %v4628 = vadd.f32 %v4147, %v4627
    %v4629 = vpop.f32.mrb[0].mxu0
    %v4630 = vpop.f32.mrb[0].mxu0
    %v4631 = vadd.f32 %v4150, %v4630
    %v4632 = vpop.f32.mrb[0].mxu0
    %4633 = vmatprep.mubr.bf16.mxu0 0
    %4634 = vmatmul.mubr.bf16.gmra.mrb[0].mxu0 %v4523
    %v4635 = vpop.f32.mrb[0].mxu0
    %v4636 = vadd.f32 %v4155, %v4635
    %v4637 = vpop.f32.mrb[0].mxu0
    %v4638 = vpop.f32.mrb[0].mxu0
    %v4639 = vadd.f32 %v4158, %v4638
    %v4640 = vpop.f32.mrb[0].mxu0
    %4641 = vmatprep.mubr.bf16.mxu0 0
    %4642 = vmatmul.mubr.bf16.gmra.mrb[0].mxu0 %v4524
    %v4643 = vpop.f32.mrb[0].mxu0
    %v4644 = vadd.f32 %v4163, %v4643
    %v4645 = vpop.f32.mrb[0].mxu0
    %v4646 = vpop.f32.mrb[0].mxu0
    %v4647 = vadd.f32 %v4166, %v4646
    %v4648 = vpop.f32.mrb[0].mxu0
    %4649 = vmatprep.mubr.bf16.mxu0 0
    %4650 = vmatmul.mubr.bf16.gmra.mrb[0].mxu0 %v4525
    %v4651 = vpop.f32.mrb[0].mxu0
    %v4652 = vadd.f32 %v4171, %v4651
    %v4653 = vpop.f32.mrb[0].mxu0
    %v4654 = vpop.f32.mrb[0].mxu0
    %v4655 = vadd.f32 %v4174, %v4654
    %v4656 = vpop.f32.mrb[0].mxu0
    %4657 = vmatprep.mubr.bf16.mxu0 0
    %4658 = vmatmul.mubr.bf16.gmra.mrb[0].mxu0 %v4526
    %v4659 = vpop.f32.mrb[0].mxu0
    %v4660 = vadd.f32 %v4179, %v4659
    %v4661 = vpop.f32.mrb[0].mxu0
    %v4662 = vpop.f32.mrb[0].mxu0
    %v4663 = vadd.f32 %v4182, %v4662
    %v4664 = vpop.f32.mrb[0].mxu0
    %4665 = vmatprep.mubr.bf16.mxu0 0
    %4666 = vmatmul.mubr.bf16.gmra.mrb[0].mxu0 %v4527
    %v4667 = vpop.f32.mrb[0].mxu0
    %v4668 = vadd.f32 %v4187, %v4667
    %v4669 = vpop.f32.mrb[0].mxu0
    %v4670 = vpop.f32.mrb[0].mxu0
    %v4671 = vadd.f32 %v4190, %v4670
    %v4672 = vpop.f32.mrb[0].mxu0
    %4673 = vmatprep.mubr.bf16.mxu0 0
    %4674 = vmatmul.mubr.bf16.gmra.mrb[0].mxu0 %v4528
    %v4675 = vpop.f32.mrb[0].mxu0
    %v4676 = vadd.f32 %v4195, %v4675
    %v4677 = vpop.f32.mrb[0].mxu0
    %v4678 = vpop.f32.mrb[0].mxu0
    %v4679 = vadd.f32 %v4198, %v4678
    %v4680 = vpop.f32.mrb[0].mxu0
    %4681 = vmatprep.mubr.bf16.mxu0 0
    %4682 = vmatmul.mubr.bf16.gmra.mrb[0].mxu0 %v4529
    %v4683 = vpop.f32.mrb[0].mxu0
    %v4684 = vadd.f32 %v4203, %v4683
    %v4685 = vpop.f32.mrb[0].mxu0
    %v4686 = vpop.f32.mrb[0].mxu0
    %v4687 = vadd.f32 %v4206, %v4686
    %v4688 = vpop.f32.mrb[0].mxu0
    %4689 = vmatprep.mubr.bf16.mxu0 0
    %4690 = vmatmul.mubr.bf16.gmra.mrb[0].mxu0 %v4530
    %v4691 = vpop.f32.mrb[0].mxu0
    %v4692 = vadd.f32 %v4211, %v4691
    %v4693 = vpop.f32.mrb[0].mxu0
    %v4694 = vpop.f32.mrb[0].mxu0
    %v4695 = vadd.f32 %v4214, %v4694
    %v4696 = vpop.f32.mrb[0].mxu0
    %4697 = vmatprep.mubr.bf16.mxu0 0
    %4698 = vmatmul.mubr.bf16.gmra.mrb[0].mxu0 %v4531
    %v4699 = vpop.f32.mrb[0].mxu0
    %v4700 = vadd.f32 %v4219, %v4699
    %v4701 = vpop.f32.mrb[0].mxu0
    %v4702 = vpop.f32.mrb[0].mxu0
    %v4703 = vadd.f32 %v4222, %v4702
    %v4704 = vpop.f32.mrb[0].mxu0
    %4705 = vmatprep.mubr.bf16.mxu0 0
    %4706 = vmatmul.mubr.bf16.gmra.mrb[0].mxu0 %v4532
    %v4707 = vpop.f32.mrb[0].mxu0
    %v4708 = vadd.f32 %v4227, %v4707
    %v4709 = vpop.f32.mrb[0].mxu0
    %v4710 = vpop.f32.mrb[0].mxu0
    %v4711 = vadd.f32 %v4230, %v4710
    %v4712 = vpop.f32.mrb[0].mxu0
    %4713 = vmatprep.mubr.bf16.mxu0 0
    %4714 = vmatmul.mubr.bf16.gmra.mrb[0].mxu0 %v4533
    %v4715 = vpop.f32.mrb[0].mxu0
    %v4716 = vadd.f32 %v4235, %v4715
    %v4717 = vpop.f32.mrb[0].mxu0
    %v4718 = vpop.f32.mrb[0].mxu0
    %v4719 = vadd.f32 %v4238, %v4718
    %v4720 = vpop.f32.mrb[0].mxu0
    %4721 = vmatprep.mubr.bf16.mxu0 0
    %4722 = vmatmul.mubr.bf16.gmra.mrb[0].mxu0 %v4534
    %v4723 = vpop.f32.mrb[0].mxu0
    %v4724 = vadd.f32 %v4243, %v4723
    %v4725 = vpop.f32.mrb[0].mxu0
    %v4726 = vpop.f32.mrb[0].mxu0
    %v4727 = vadd.f32 %v4246, %v4726
    %v4728 = vpop.f32.mrb[0].mxu0
    %4729 = vmatprep.mubr.bf16.mxu0 0
    %4730 = vmatmul.mubr.bf16.gmra.mrb[0].mxu0 %v4535
    %v4731 = vpop.f32.mrb[0].mxu0
    %v4732 = vadd.f32 %v4251, %v4731
    %v4733 = vpop.f32.mrb[0].mxu0
    %v4734 = vpop.f32.mrb[0].mxu0
    %v4735 = vadd.f32 %v4254, %v4734
    %v4736 = vpop.f32.mrb[0].mxu0
    %4737 = vmatprep.mubr.bf16.mxu0 0
    %4738 = vmatmul.mubr.bf16.gmra.mrb[0].mxu0 %v4536
    %v4739 = vpop.f32.mrb[0].mxu0
    %v4740 = vadd.f32 %v4259, %v4739
    %v4741 = vpop.f32.mrb[0].mxu0
    %v4742 = vpop.f32.mrb[0].mxu0
    %v4743 = vadd.f32 %v4262, %v4742
    %v4744 = vpop.f32.mrb[0].mxu0
    %4745 = vmatprep.mubr.bf16.mxu0 0
    %4746 = vmatmul.mubr.bf16.gmra.mrb[0].mxu0 %v4537
    %v4747 = vpop.f32.mrb[0].mxu0
    %v4748 = vadd.f32 %v4267, %v4747
    %v4749 = vpop.f32.mrb[0].mxu0
    %v4750 = vpop.f32.mrb[0].mxu0
    %v4751 = vadd.f32 %v4270, %v4750
    %v4752 = vpop.f32.mrb[0].mxu0
    %4753 = vmatprep.mubr.bf16.mxu0 0
    %4754 = vmatmul.mubr.bf16.gmra.mrb[0].mxu0 %v4538
    %v4755 = vpop.f32.mrb[0].mxu0
    %v4756 = vadd.f32 %v4275, %v4755
    %v4757 = vpop.f32.mrb[0].mxu0
    %v4758 = vpop.f32.mrb[0].mxu0
    %v4759 = vadd.f32 %v4278, %v4758
    %v4760 = vpop.f32.mrb[0].mxu0
    %4761 = vmatprep.mubr.bf16.mxu0 0
    %4762 = vmatmul.mubr.bf16.gmra.mrb[0].mxu0 %v4539
    %v4763 = vpop.f32.mrb[0].mxu0
    %v4764 = vadd.f32 %v4283, %v4763
    %v4765 = vpop.f32.mrb[0].mxu0
    %v4766 = vpop.f32.mrb[0].mxu0
    %v4767 = vadd.f32 %v4286, %v4766
    %v4768 = vpop.f32.mrb[0].mxu0
    %4769 = vmatprep.mubr.bf16.mxu0 0
    %4770 = vmatmul.mubr.bf16.gmra.mrb[0].mxu0 %v4540
    %v4771 = vpop.f32.mrb[0].mxu0
    %v4772 = vadd.f32 %v4291, %v4771
    %v4773 = vpop.f32.mrb[0].mxu0
    %v4774 = vpop.f32.mrb[0].mxu0
    %v4775 = vadd.f32 %v4294, %v4774
    %v4776 = vpop.f32.mrb[0].mxu0
    %4777 = vmatprep.mubr.bf16.mxu0 0
    %4778 = vmatmul.mubr.bf16.gmra.mrb[0].mxu0 %v4541
    %v4779 = vpop.f32.mrb[0].mxu0
    %v4780 = vadd.f32 %v4299, %v4779
    %v4781 = vpop.f32.mrb[0].mxu0
    %v4782 = vpop.f32.mrb[0].mxu0
    %v4783 = vadd.f32 %v4302, %v4782
    %v4784 = vpop.f32.mrb[0].mxu0
    %4785 = vmatprep.mubr.bf16.mxu0 0
    %4786 = vmatmul.mubr.bf16.gmra.mrb[0].mxu0 %v4542
    %v4787 = vpop.f32.mrb[0].mxu0
    %v4788 = vadd.f32 %v4307, %v4787
    %v4789 = vpop.f32.mrb[0].mxu0
    %v4790 = vpop.f32.mrb[0].mxu0
    %v4791 = vadd.f32 %v4310, %v4790
    %v4792 = vpop.f32.mrb[0].mxu0
    %4793 = vmatprep.mubr.bf16.mxu0 0
    %4794 = vmatmul.mubr.bf16.gmra.mrb[0].mxu0 %v4543
    %v4795 = vpop.f32.mrb[0].mxu0
    %v4796 = vadd.f32 %v4315, %v4795
    %v4797 = vpop.f32.mrb[0].mxu0
    %v4798 = vpop.f32.mrb[0].mxu0
    %v4799 = vadd.f32 %v4318, %v4798
    %v4800 = vpop.f32.mrb[0].mxu0
    %4801 = vmatprep.mubr.bf16.mxu0 0
    %4802 = vmatmul.mubr.bf16.gmra.mrb[0].mxu0 %v4544
    %v4803 = vpop.f32.mrb[0].mxu0
    %v4804 = vadd.f32 %v4323, %v4803
    %v4805 = vpop.f32.mrb[0].mxu0
    %v4806 = vpop.f32.mrb[0].mxu0
    %v4807 = vadd.f32 %v4326, %v4806
    %v4808 = vpop.f32.mrb[0].mxu0
    %4809 = vmatprep.mubr.bf16.mxu0 0
    %4810 = vmatmul.mubr.bf16.gmra.mrb[0].mxu0 %v4545
    %v4811 = vpop.f32.mrb[0].mxu0
    %v4812 = vadd.f32 %v4331, %v4811
    %v4813 = vpop.f32.mrb[0].mxu0
    %v4814 = vpop.f32.mrb[0].mxu0
    %v4815 = vadd.f32 %v4334, %v4814
    %v4816 = vpop.f32.mrb[0].mxu0
    %4817 = vmatprep.mubr.bf16.mxu0 0
    %4818 = vmatmul.mubr.bf16.gmra.mrb[0].mxu0 %v4546
    %v4819 = vpop.f32.mrb[0].mxu0
    %v4820 = vadd.f32 %v4339, %v4819
    %v4821 = vpop.f32.mrb[0].mxu0
    %v4822 = vpop.f32.mrb[0].mxu0
    %v4823 = vadd.f32 %v4342, %v4822
    %v4824 = vpop.f32.mrb[0].mxu0
    %4825 = vmatprep.mubr.bf16.mxu0 0
    %4826 = vmatmul.mubr.bf16.gmra.mrb[0].mxu0 %v4547
    %v4827 = vpop.f32.mrb[0].mxu0
    %v4828 = vadd.f32 %v4347, %v4827
    %v4829 = vpop.f32.mrb[0].mxu0
    %v4830 = vpop.f32.mrb[0].mxu0
    %v4831 = vadd.f32 %v4350, %v4830
    %v4832 = vpop.f32.mrb[0].mxu0
    %4833 = vmatprep.mubr.bf16.mxu0 0
    %4834 = vmatmul.mubr.bf16.gmra.mrb[0].mxu0 %v4548
    %v4835 = vpop.f32.mrb[0].mxu0
    %v4836 = vadd.f32 %v4355, %v4835
    %v4837 = vpop.f32.mrb[0].mxu0
    %v4838 = vpop.f32.mrb[0].mxu0
    %v4839 = vadd.f32 %v4358, %v4838
    %v4840 = vpop.f32.mrb[0].mxu0
    %4841 = vmatprep.mubr.bf16.mxu0 0
    %4842 = vmatmul.mubr.bf16.gmra.mrb[0].mxu0 %v4549
    %v4843 = vpop.f32.mrb[0].mxu0
    %v4844 = vadd.f32 %v4363, %v4843
    %v4845 = vpop.f32.mrb[0].mxu0
    %v4846 = vpop.f32.mrb[0].mxu0
    %v4847 = vadd.f32 %v4366, %v4846
    %v4848 = vpop.f32.mrb[0].mxu0
    %4849 = vmatprep.mubr.bf16.mxu0 0
    %4850 = vmatmul.mubr.bf16.gmra.mrb[0].mxu0 %v4550
    %v4851 = vpop.f32.mrb[0].mxu0
    %v4852 = vadd.f32 %v4371, %v4851
    %v4853 = vpop.f32.mrb[0].mxu0
    %v4854 = vpop.f32.mrb[0].mxu0
    %v4855 = vadd.f32 %v4374, %v4854
    %v4856 = vpop.f32.mrb[0].mxu0
    %4857 = vmatprep.mubr.bf16.mxu0 0
    %4858 = vmatmul.mubr.bf16.gmra.mrb[0].mxu0 %v4551
    %v4859 = vpop.f32.mrb[0].mxu0
    %v4860 = vadd.f32 %v4379, %v4859
    %v4861 = vpop.f32.mrb[0].mxu0
    %v4862 = vpop.f32.mrb[0].mxu0
    %v4863 = vadd.f32 %v4382, %v4862
    %v4864 = vpop.f32.mrb[0].mxu0
    %4865 = vmatprep.mubr.bf16.mxu0 0
    %4866 = vmatmul.mubr.bf16.gmra.mrb[0].mxu0 %v4552
    %v4867 = vpop.f32.mrb[0].mxu0
    %v4868 = vadd.f32 %v4387, %v4867
    %v4869 = vpop.f32.mrb[0].mxu0
    %v4870 = vpop.f32.mrb[0].mxu0
    %v4871 = vadd.f32 %v4390, %v4870
    %v4872 = vpop.f32.mrb[0].mxu0
    %4873 = vdwg.mxu0
    %s4874 = scalar_lea.vmem [#allocation8], 512
    %v4875 = vld [vmem:[%s4874] sm:$0xf]
    %v4876 = vld [vmem:[%s4874 + $0x4] sm:$0xf]
    %v4877 = vld [vmem:[%s4874 + $0x8] sm:$0xf]
    %v4878 = vld [vmem:[%s4874 + $0xc] sm:$0xf]
    %v4879 = vld [vmem:[%s4874 + $0x10] sm:$0xf]
    %v4880 = vld [vmem:[%s4874 + $0x14] sm:$0xf]
    %v4881 = vld [vmem:[%s4874 + $0x18] sm:$0xf]
    %v4882 = vld [vmem:[%s4874 + $0x1c] sm:$0xf]
    %v4883 = vld [vmem:[%s4874 + $0x20] sm:$0xf]
    %v4884 = vld [vmem:[%s4874 + $0x24] sm:$0xf]
    %v4885 = vld [vmem:[%s4874 + $0x28] sm:$0xf]
    %v4886 = vld [vmem:[%s4874 + $0x2c] sm:$0xf]
    %v4887 = vld [vmem:[%s4874 + $0x30] sm:$0xf]
    %v4888 = vld [vmem:[%s4874 + $0x34] sm:$0xf]
    %v4889 = vld [vmem:[%s4874 + $0x38] sm:$0xf]
    %v4890 = vld [vmem:[%s4874 + $0x3c] sm:$0xf]
    %v4891 = vld [vmem:[%s4874 + $0x40] sm:$0xf]
    %v4892 = vld [vmem:[%s4874 + $0x44] sm:$0xf]
    %v4893 = vld [vmem:[%s4874 + $0x48] sm:$0xf]
    %v4894 = vld [vmem:[%s4874 + $0x4c] sm:$0xf]
    %v4895 = vld [vmem:[%s4874 + $0x50] sm:$0xf]
    %v4896 = vld [vmem:[%s4874 + $0x54] sm:$0xf]
    %v4897 = vld [vmem:[%s4874 + $0x58] sm:$0xf]
    %v4898 = vld [vmem:[%s4874 + $0x5c] sm:$0xf]
    %v4899 = vld [vmem:[%s4874 + $0x60] sm:$0xf]
    %v4900 = vld [vmem:[%s4874 + $0x64] sm:$0xf]
    %v4901 = vld [vmem:[%s4874 + $0x68] sm:$0xf]
    %v4902 = vld [vmem:[%s4874 + $0x6c] sm:$0xf]
    %v4903 = vld [vmem:[%s4874 + $0x70] sm:$0xf]
    %v4904 = vld [vmem:[%s4874 + $0x74] sm:$0xf]
    %v4905 = vld [vmem:[%s4874 + $0x78] sm:$0xf]
    %v4906 = vld [vmem:[%s4874 + $0x7c] sm:$0xf]
    %v4907 = vld [vmem:[%s4874 + $0x80] sm:$0xf]
    %v4908 = vld [vmem:[%s4874 + $0x84] sm:$0xf]
    %v4909 = vld [vmem:[%s4874 + $0x88] sm:$0xf]
    %v4910 = vld [vmem:[%s4874 + $0x8c] sm:$0xf]
    %v4911 = vld [vmem:[%s4874 + $0x90] sm:$0xf]
    %v4912 = vld [vmem:[%s4874 + $0x94] sm:$0xf]
    %v4913 = vld [vmem:[%s4874 + $0x98] sm:$0xf]
    %v4914 = vld [vmem:[%s4874 + $0x9c] sm:$0xf]
    %v4915 = vld [vmem:[%s4874 + $0xa0] sm:$0xf]
    %v4916 = vld [vmem:[%s4874 + $0xa4] sm:$0xf]
    %v4917 = vld [vmem:[%s4874 + $0xa8] sm:$0xf]
    %v4918 = vld [vmem:[%s4874 + $0xac] sm:$0xf]
    %v4919 = vld [vmem:[%s4874 + $0xb0] sm:$0xf]
    %v4920 = vld [vmem:[%s4874 + $0xb4] sm:$0xf]
    %v4921 = vld [vmem:[%s4874 + $0xb8] sm:$0xf]
    %v4922 = vld [vmem:[%s4874 + $0xbc] sm:$0xf]
    %v4923 = vld [vmem:[%s4874 + $0xc0] sm:$0xf]
    %v4924 = vld [vmem:[%s4874 + $0xc4] sm:$0xf]
    %v4925 = vld [vmem:[%s4874 + $0xc8] sm:$0xf]
    %v4926 = vld [vmem:[%s4874 + $0xcc] sm:$0xf]
    %v4927 = vld [vmem:[%s4874 + $0xd0] sm:$0xf]
    %v4928 = vld [vmem:[%s4874 + $0xd4] sm:$0xf]
    %v4929 = vld [vmem:[%s4874 + $0xd8] sm:$0xf]
    %v4930 = vld [vmem:[%s4874 + $0xdc] sm:$0xf]
    %v4931 = vld [vmem:[%s4874 + $0xe0] sm:$0xf]
    %v4932 = vld [vmem:[%s4874 + $0xe4] sm:$0xf]
    %v4933 = vld [vmem:[%s4874 + $0xe8] sm:$0xf]
    %v4934 = vld [vmem:[%s4874 + $0xec] sm:$0xf]
    %v4935 = vld [vmem:[%s4874 + $0xf0] sm:$0xf]
    %v4936 = vld [vmem:[%s4874 + $0xf4] sm:$0xf]
    %v4937 = vld [vmem:[%s4874 + $0xf8] sm:$0xf]
    %v4938 = vld [vmem:[%s4874 + $0xfc] sm:$0xf]
    %v5003 = vunpack.c.l.b16 %v4875
    %v5004 = vunpack.c.l.b16 %v4876
    %v5005 = vunpack.c.l.b16 %v4877
    %v5006 = vunpack.c.l.b16 %v4878
    %v5007 = vunpack.c.l.b16 %v4879
    %v5008 = vunpack.c.l.b16 %v4880
    %v5009 = vunpack.c.l.b16 %v4881
    %v5010 = vunpack.c.l.b16 %v4882
    %v5011 = vunpack.c.l.b16 %v4883
    %v5012 = vunpack.c.l.b16 %v4884
    %v5013 = vunpack.c.l.b16 %v4885
    %v5014 = vunpack.c.l.b16 %v4886
    %v5015 = vunpack.c.l.b16 %v4887
    %v5016 = vunpack.c.l.b16 %v4888
    %v5017 = vunpack.c.l.b16 %v4889
    %v5018 = vunpack.c.l.b16 %v4890
    %v5019 = vunpack.c.l.b16 %v4891
    %v5020 = vunpack.c.l.b16 %v4892
    %v5021 = vunpack.c.l.b16 %v4893
    %v5022 = vunpack.c.l.b16 %v4894
    %v5023 = vunpack.c.l.b16 %v4895
    %v5024 = vunpack.c.l.b16 %v4896
    %v5025 = vunpack.c.l.b16 %v4897
    %v5026 = vunpack.c.l.b16 %v4898
    %v5027 = vunpack.c.l.b16 %v4899
    %v5028 = vunpack.c.l.b16 %v4900
    %v5029 = vunpack.c.l.b16 %v4901
    %v5030 = vunpack.c.l.b16 %v4902
    %v5031 = vunpack.c.l.b16 %v4903
    %v5032 = vunpack.c.l.b16 %v4904
    %v5033 = vunpack.c.l.b16 %v4905
    %v5034 = vunpack.c.l.b16 %v4906
    %v5035 = vunpack.c.l.b16 %v4907
    %v5036 = vunpack.c.l.b16 %v4908
    %v5037 = vunpack.c.l.b16 %v4909
    %v5038 = vunpack.c.l.b16 %v4910
    %v5039 = vunpack.c.l.b16 %v4911
    %v5040 = vunpack.c.l.b16 %v4912
    %v5041 = vunpack.c.l.b16 %v4913
    %v5042 = vunpack.c.l.b16 %v4914
    %v5043 = vunpack.c.l.b16 %v4915
    %v5044 = vunpack.c.l.b16 %v4916
    %v5045 = vunpack.c.l.b16 %v4917
    %v5046 = vunpack.c.l.b16 %v4918
    %v5047 = vunpack.c.l.b16 %v4919
    %v5048 = vunpack.c.l.b16 %v4920
    %v5049 = vunpack.c.l.b16 %v4921
    %v5050 = vunpack.c.l.b16 %v4922
    %v5051 = vunpack.c.l.b16 %v4923
    %v5052 = vunpack.c.l.b16 %v4924
    %v5053 = vunpack.c.l.b16 %v4925
    %v5054 = vunpack.c.l.b16 %v4926
    %v5055 = vunpack.c.l.b16 %v4927
    %v5056 = vunpack.c.l.b16 %v4928
    %v5057 = vunpack.c.l.b16 %v4929
    %v5058 = vunpack.c.l.b16 %v4930
    %v5059 = vunpack.c.l.b16 %v4931
    %v5060 = vunpack.c.l.b16 %v4932
    %v5061 = vunpack.c.l.b16 %v4933
    %v5062 = vunpack.c.l.b16 %v4934
    %v5063 = vunpack.c.l.b16 %v4935
    %v5064 = vunpack.c.l.b16 %v4936
    %v5065 = vunpack.c.l.b16 %v4937
    %v5066 = vunpack.c.l.b16 %v4938
    %v5067 = vpack.c.b16 %v5004, %v5003
    %v5068 = vpack.c.b16 %v5006, %v5005
    %v5069 = vpack.c.b16 %v5008, %v5007
    %v5070 = vpack.c.b16 %v5010, %v5009
    %v5071 = vpack.c.b16 %v5012, %v5011
    %v5072 = vpack.c.b16 %v5014, %v5013
    %v5073 = vpack.c.b16 %v5016, %v5015
    %v5074 = vpack.c.b16 %v5018, %v5017
    %v5075 = vpack.c.b16 %v5020, %v5019
    %v5076 = vpack.c.b16 %v5022, %v5021
    %v5077 = vpack.c.b16 %v5024, %v5023
    %v5078 = vpack.c.b16 %v5026, %v5025
    %v5079 = vpack.c.b16 %v5028, %v5027
    %v5080 = vpack.c.b16 %v5030, %v5029
    %v5081 = vpack.c.b16 %v5032, %v5031
    %v5082 = vpack.c.b16 %v5034, %v5033
    %v5083 = vpack.c.b16 %v5036, %v5035
    %v5084 = vpack.c.b16 %v5038, %v5037
    %v5085 = vpack.c.b16 %v5040, %v5039
    %v5086 = vpack.c.b16 %v5042, %v5041
    %v5087 = vpack.c.b16 %v5044, %v5043
    %v5088 = vpack.c.b16 %v5046, %v5045
    %v5089 = vpack.c.b16 %v5048, %v5047
    %v5090 = vpack.c.b16 %v5050, %v5049
    %v5091 = vpack.c.b16 %v5052, %v5051
    %v5092 = vpack.c.b16 %v5054, %v5053
    %v5093 = vpack.c.b16 %v5056, %v5055
    %v5094 = vpack.c.b16 %v5058, %v5057
    %v5095 = vpack.c.b16 %v5060, %v5059
    %v5096 = vpack.c.b16 %v5062, %v5061
    %v5097 = vpack.c.b16 %v5064, %v5063
    %v5098 = vpack.c.b16 %v5066, %v5065
    %5131 = vrot.lane.b32.xlu0 %v3743, 112
    %v5132 = vpop.permute.xlu0 %5131
    %5133 = vrot.lane.b32.xlu0 %v3744, 112
    %v5134 = vpop.permute.xlu0 %5133
    %5135 = vrot.lane.b32.xlu0 %v3745, 112
    %v5136 = vpop.permute.xlu0 %5135
    %5137 = vrot.lane.b32.xlu0 %v3746, 112
    %v5138 = vpop.permute.xlu0 %5137
    %5139 = vrot.lane.b32.xlu0 %v3747, 112
    %v5140 = vpop.permute.xlu0 %5139
    %5141 = vrot.lane.b32.xlu0 %v3748, 112
    %v5142 = vpop.permute.xlu0 %5141
    %5143 = vrot.lane.b32.xlu0 %v3749, 112
    %v5144 = vpop.permute.xlu0 %5143
    %5145 = vrot.lane.b32.xlu0 %v3750, 112
    %v5146 = vpop.permute.xlu0 %5145
    %5155 = vmatprep.subr.bf16.mxu0 0
    %5156 = vmatpush1.bf16.msra.mxu0 %v5132
    %5157 = vmatprep.subr.bf16.mxu0 0
    %5158 = vmatpush1.bf16.msra.mxu0 %v5134
    %5159 = vmatprep.subr.bf16.mxu0 0
    %5160 = vmatpush1.bf16.msra.mxu0 %v5136
    %5161 = vmatprep.subr.bf16.mxu0 0
    %5162 = vmatpush1.bf16.msra.mxu0 %v5138
    %5163 = vmatprep.subr.bf16.mxu0 0
    %5164 = vmatpush1.bf16.msra.mxu0 %v5140
    %5165 = vmatprep.subr.bf16.mxu0 0
    %5166 = vmatpush1.bf16.msra.mxu0 %v5142
    %5167 = vmatprep.subr.bf16.mxu0 0
    %5168 = vmatpush1.bf16.msra.mxu0 %v5144
    %5169 = vmatprep.subr.bf16.mxu0 0
    %5170 = vmatpush1.bf16.msra.mxu0 %v5146
    %5171 = vmatprep.subr.bf16.mxu0 0
    %5172 = vmatpush1.bf16.msra.mxu0 0
    %5173 = vmatprep.subr.bf16.mxu0 0
    %5174 = vmatpush1.bf16.msra.mxu0 0
    %5175 = vmatprep.subr.bf16.mxu0 0
    %5176 = vmatpush1.bf16.msra.mxu0 0
    %5177 = vmatprep.subr.bf16.mxu0 0
    %5178 = vmatpush1.bf16.msra.mxu0 0
    %5179 = vmatprep.subr.bf16.mxu0 0
    %5180 = vmatpush1.bf16.msra.mxu0 0
    %5181 = vmatprep.subr.bf16.mxu0 0
    %5182 = vmatpush1.bf16.msra.mxu0 0
    %5183 = vmatprep.subr.bf16.mxu0 0
    %5184 = vmatpush1.bf16.msra.mxu0 0
    %5185 = vmatprep.subr.bf16.mxu0 0
    %5186 = vmatpush1.bf16.msra.mxu0 0
    %5187 = vmatprep.mubr.bf16.mxu0 0
    %5188 = vmatmul.mubr.bf16.gmra.mrb[0].mxu0 %v5067
    %v5189 = vpop.f32.mrb[0].mxu0
    %v5190 = vadd.f32 0.0, %v5189
    %v5191 = vpop.f32.mrb[0].mxu0
    %v5192 = vpop.f32.mrb[0].mxu0
    %v5193 = vadd.f32 0.0, %v5192
    %v5194 = vpop.f32.mrb[0].mxu0
    %5195 = vmatprep.mubr.bf16.mxu0 0
    %5196 = vmatmul.mubr.bf16.gmra.mrb[0].mxu0 %v5068
    %v5197 = vpop.f32.mrb[0].mxu0
    %v5198 = vadd.f32 0.0, %v5197
    %v5199 = vpop.f32.mrb[0].mxu0
    %v5200 = vpop.f32.mrb[0].mxu0
    %v5201 = vadd.f32 0.0, %v5200
    %v5202 = vpop.f32.mrb[0].mxu0
    %5203 = vmatprep.mubr.bf16.mxu0 0
    %5204 = vmatmul.mubr.bf16.gmra.mrb[0].mxu0 %v5069
    %v5205 = vpop.f32.mrb[0].mxu0
    %v5206 = vadd.f32 0.0, %v5205
    %v5207 = vpop.f32.mrb[0].mxu0
    %v5208 = vpop.f32.mrb[0].mxu0
    %v5209 = vadd.f32 0.0, %v5208
    %v5210 = vpop.f32.mrb[0].mxu0
    %5211 = vmatprep.mubr.bf16.mxu0 0
    %5212 = vmatmul.mubr.bf16.gmra.mrb[0].mxu0 %v5070
    %v5213 = vpop.f32.mrb[0].mxu0
    %v5214 = vadd.f32 0.0, %v5213
    %v5215 = vpop.f32.mrb[0].mxu0
    %v5216 = vpop.f32.mrb[0].mxu0
    %v5217 = vadd.f32 0.0, %v5216
    %v5218 = vpop.f32.mrb[0].mxu0
    %5219 = vmatprep.mubr.bf16.mxu0 0
    %5220 = vmatmul.mubr.bf16.gmra.mrb[0].mxu0 %v5071
    %v5221 = vpop.f32.mrb[0].mxu0
    %v5222 = vadd.f32 0.0, %v5221
    %v5223 = vpop.f32.mrb[0].mxu0
    %v5224 = vpop.f32.mrb[0].mxu0
    %v5225 = vadd.f32 0.0, %v5224
    %v5226 = vpop.f32.mrb[0].mxu0
    %5227 = vmatprep.mubr.bf16.mxu0 0
    %5228 = vmatmul.mubr.bf16.gmra.mrb[0].mxu0 %v5072
    %v5229 = vpop.f32.mrb[0].mxu0
    %v5230 = vadd.f32 0.0, %v5229
    %v5231 = vpop.f32.mrb[0].mxu0
    %v5232 = vpop.f32.mrb[0].mxu0
    %v5233 = vadd.f32 0.0, %v5232
    %v5234 = vpop.f32.mrb[0].mxu0
    %5235 = vmatprep.mubr.bf16.mxu0 0
    %5236 = vmatmul.mubr.bf16.gmra.mrb[0].mxu0 %v5073
    %v5237 = vpop.f32.mrb[0].mxu0
    %v5238 = vadd.f32 0.0, %v5237
    %v5239 = vpop.f32.mrb[0].mxu0
    %v5240 = vpop.f32.mrb[0].mxu0
    %v5241 = vadd.f32 0.0, %v5240
    %v5242 = vpop.f32.mrb[0].mxu0
    %5243 = vmatprep.mubr.bf16.mxu0 0
    %5244 = vmatmul.mubr.bf16.gmra.mrb[0].mxu0 %v5074
    %v5245 = vpop.f32.mrb[0].mxu0
    %v5246 = vadd.f32 0.0, %v5245
    %v5247 = vpop.f32.mrb[0].mxu0
    %v5248 = vpop.f32.mrb[0].mxu0
    %v5249 = vadd.f32 0.0, %v5248
    %v5250 = vpop.f32.mrb[0].mxu0
    %5251 = vmatprep.mubr.bf16.mxu0 0
    %5252 = vmatmul.mubr.bf16.gmra.mrb[0].mxu0 %v5075
    %v5253 = vpop.f32.mrb[0].mxu0
    %v5254 = vadd.f32 0.0, %v5253
    %v5255 = vpop.f32.mrb[0].mxu0
    %v5256 = vpop.f32.mrb[0].mxu0
    %v5257 = vadd.f32 0.0, %v5256
    %v5258 = vpop.f32.mrb[0].mxu0
    %5259 = vmatprep.mubr.bf16.mxu0 0
    %5260 = vmatmul.mubr.bf16.gmra.mrb[0].mxu0 %v5076
    %v5261 = vpop.f32.mrb[0].mxu0
    %v5262 = vadd.f32 0.0, %v5261
    %v5263 = vpop.f32.mrb[0].mxu0
    %v5264 = vpop.f32.mrb[0].mxu0
    %v5265 = vadd.f32 0.0, %v5264
    %v5266 = vpop.f32.mrb[0].mxu0
    %5267 = vmatprep.mubr.bf16.mxu0 0
    %5268 = vmatmul.mubr.bf16.gmra.mrb[0].mxu0 %v5077
    %v5269 = vpop.f32.mrb[0].mxu0
    %v5270 = vadd.f32 0.0, %v5269
    %v5271 = vpop.f32.mrb[0].mxu0
    %v5272 = vpop.f32.mrb[0].mxu0
    %v5273 = vadd.f32 0.0, %v5272
    %v5274 = vpop.f32.mrb[0].mxu0
    %5275 = vmatprep.mubr.bf16.mxu0 0
    %5276 = vmatmul.mubr.bf16.gmra.mrb[0].mxu0 %v5078
    %v5277 = vpop.f32.mrb[0].mxu0
    %v5278 = vadd.f32 0.0, %v5277
    %v5279 = vpop.f32.mrb[0].mxu0
    %v5280 = vpop.f32.mrb[0].mxu0
    %v5281 = vadd.f32 0.0, %v5280
    %v5282 = vpop.f32.mrb[0].mxu0
    %5283 = vmatprep.mubr.bf16.mxu0 0
    %5284 = vmatmul.mubr.bf16.gmra.mrb[0].mxu0 %v5079
    %v5285 = vpop.f32.mrb[0].mxu0
    %v5286 = vadd.f32 0.0, %v5285
    %v5287 = vpop.f32.mrb[0].mxu0
    %v5288 = vpop.f32.mrb[0].mxu0
    %v5289 = vadd.f32 0.0, %v5288
    %v5290 = vpop.f32.mrb[0].mxu0
    %5291 = vmatprep.mubr.bf16.mxu0 0
    %5292 = vmatmul.mubr.bf16.gmra.mrb[0].mxu0 %v5080
    %v5293 = vpop.f32.mrb[0].mxu0
    %v5294 = vadd.f32 0.0, %v5293
    %v5295 = vpop.f32.mrb[0].mxu0
    %v5296 = vpop.f32.mrb[0].mxu0
    %v5297 = vadd.f32 0.0, %v5296
    %v5298 = vpop.f32.mrb[0].mxu0
    %5299 = vmatprep.mubr.bf16.mxu0 0
    %5300 = vmatmul.mubr.bf16.gmra.mrb[0].mxu0 %v5081
    %v5301 = vpop.f32.mrb[0].mxu0
    %v5302 = vadd.f32 0.0, %v5301
    %v5303 = vpop.f32.mrb[0].mxu0
    %v5304 = vpop.f32.mrb[0].mxu0
    %v5305 = vadd.f32 0.0, %v5304
    %v5306 = vpop.f32.mrb[0].mxu0
    %5307 = vmatprep.mubr.bf16.mxu0 0
    %5308 = vmatmul.mubr.bf16.gmra.mrb[0].mxu0 %v5082
    %v5309 = vpop.f32.mrb[0].mxu0
    %v5310 = vadd.f32 0.0, %v5309
    %v5311 = vpop.f32.mrb[0].mxu0
    %v5312 = vpop.f32.mrb[0].mxu0
    %v5313 = vadd.f32 0.0, %v5312
    %v5314 = vpop.f32.mrb[0].mxu0
    %5315 = vmatprep.mubr.bf16.mxu0 0
    %5316 = vmatmul.mubr.bf16.gmra.mrb[0].mxu0 %v5083
    %v5317 = vpop.f32.mrb[0].mxu0
    %v5318 = vadd.f32 0.0, %v5317
    %v5319 = vpop.f32.mrb[0].mxu0
    %v5320 = vpop.f32.mrb[0].mxu0
    %v5321 = vadd.f32 0.0, %v5320
    %v5322 = vpop.f32.mrb[0].mxu0
    %5323 = vmatprep.mubr.bf16.mxu0 0
    %5324 = vmatmul.mubr.bf16.gmra.mrb[0].mxu0 %v5084
    %v5325 = vpop.f32.mrb[0].mxu0
    %v5326 = vadd.f32 0.0, %v5325
    %v5327 = vpop.f32.mrb[0].mxu0
    %v5328 = vpop.f32.mrb[0].mxu0
    %v5329 = vadd.f32 0.0, %v5328
    %v5330 = vpop.f32.mrb[0].mxu0
    %5331 = vmatprep.mubr.bf16.mxu0 0
    %5332 = vmatmul.mubr.bf16.gmra.mrb[0].mxu0 %v5085
    %v5333 = vpop.f32.mrb[0].mxu0
    %v5334 = vadd.f32 0.0, %v5333
    %v5335 = vpop.f32.mrb[0].mxu0
    %v5336 = vpop.f32.mrb[0].mxu0
    %v5337 = vadd.f32 0.0, %v5336
    %v5338 = vpop.f32.mrb[0].mxu0
    %5339 = vmatprep.mubr.bf16.mxu0 0
    %5340 = vmatmul.mubr.bf16.gmra.mrb[0].mxu0 %v5086
    %v5341 = vpop.f32.mrb[0].mxu0
    %v5342 = vadd.f32 0.0, %v5341
    %v5343 = vpop.f32.mrb[0].mxu0
    %v5344 = vpop.f32.mrb[0].mxu0
    %v5345 = vadd.f32 0.0, %v5344
    %v5346 = vpop.f32.mrb[0].mxu0
    %5347 = vmatprep.mubr.bf16.mxu0 0
    %5348 = vmatmul.mubr.bf16.gmra.mrb[0].mxu0 %v5087
    %v5349 = vpop.f32.mrb[0].mxu0
    %v5350 = vadd.f32 0.0, %v5349
    %v5351 = vpop.f32.mrb[0].mxu0
    %v5352 = vpop.f32.mrb[0].mxu0
    %v5353 = vadd.f32 0.0, %v5352
    %v5354 = vpop.f32.mrb[0].mxu0
    %5355 = vmatprep.mubr.bf16.mxu0 0
    %5356 = vmatmul.mubr.bf16.gmra.mrb[0].mxu0 %v5088
    %v5357 = vpop.f32.mrb[0].mxu0
    %v5358 = vadd.f32 0.0, %v5357
    %v5359 = vpop.f32.mrb[0].mxu0
    %v5360 = vpop.f32.mrb[0].mxu0
    %v5361 = vadd.f32 0.0, %v5360
    %v5362 = vpop.f32.mrb[0].mxu0
    %5363 = vmatprep.mubr.bf16.mxu0 0
    %5364 = vmatmul.mubr.bf16.gmra.mrb[0].mxu0 %v5089
    %v5365 = vpop.f32.mrb[0].mxu0
    %v5366 = vadd.f32 0.0, %v5365
    %v5367 = vpop.f32.mrb[0].mxu0
    %v5368 = vpop.f32.mrb[0].mxu0
    %v5369 = vadd.f32 0.0, %v5368
    %v5370 = vpop.f32.mrb[0].mxu0
    %5371 = vmatprep.mubr.bf16.mxu0 0
    %5372 = vmatmul.mubr.bf16.gmra.mrb[0].mxu0 %v5090
    %v5373 = vpop.f32.mrb[0].mxu0
    %v5374 = vadd.f32 0.0, %v5373
    %v5375 = vpop.f32.mrb[0].mxu0
    %v5376 = vpop.f32.mrb[0].mxu0
    %v5377 = vadd.f32 0.0, %v5376
    %v5378 = vpop.f32.mrb[0].mxu0
    %5379 = vmatprep.mubr.bf16.mxu0 0
    %5380 = vmatmul.mubr.bf16.gmra.mrb[0].mxu0 %v5091
    %v5381 = vpop.f32.mrb[0].mxu0
    %v5382 = vadd.f32 0.0, %v5381
    %v5383 = vpop.f32.mrb[0].mxu0
    %v5384 = vpop.f32.mrb[0].mxu0
    %v5385 = vadd.f32 0.0, %v5384
    %v5386 = vpop.f32.mrb[0].mxu0
    %5387 = vmatprep.mubr.bf16.mxu0 0
    %5388 = vmatmul.mubr.bf16.gmra.mrb[0].mxu0 %v5092
    %v5389 = vpop.f32.mrb[0].mxu0
    %v5390 = vadd.f32 0.0, %v5389
    %v5391 = vpop.f32.mrb[0].mxu0
    %v5392 = vpop.f32.mrb[0].mxu0
    %v5393 = vadd.f32 0.0, %v5392
    %v5394 = vpop.f32.mrb[0].mxu0
    %5395 = vmatprep.mubr.bf16.mxu0 0
    %5396 = vmatmul.mubr.bf16.gmra.mrb[0].mxu0 %v5093
    %v5397 = vpop.f32.mrb[0].mxu0
    %v5398 = vadd.f32 0.0, %v5397
    %v5399 = vpop.f32.mrb[0].mxu0
    %v5400 = vpop.f32.mrb[0].mxu0
    %v5401 = vadd.f32 0.0, %v5400
    %v5402 = vpop.f32.mrb[0].mxu0
    %5403 = vmatprep.mubr.bf16.mxu0 0
    %5404 = vmatmul.mubr.bf16.gmra.mrb[0].mxu0 %v5094
    %v5405 = vpop.f32.mrb[0].mxu0
    %v5406 = vadd.f32 0.0, %v5405
    %v5407 = vpop.f32.mrb[0].mxu0
    %v5408 = vpop.f32.mrb[0].mxu0
    %v5409 = vadd.f32 0.0, %v5408
    %v5410 = vpop.f32.mrb[0].mxu0
    %5411 = vmatprep.mubr.bf16.mxu0 0
    %5412 = vmatmul.mubr.bf16.gmra.mrb[0].mxu0 %v5095
    %v5413 = vpop.f32.mrb[0].mxu0
    %v5414 = vadd.f32 0.0, %v5413
    %v5415 = vpop.f32.mrb[0].mxu0
    %v5416 = vpop.f32.mrb[0].mxu0
    %v5417 = vadd.f32 0.0, %v5416
    %v5418 = vpop.f32.mrb[0].mxu0
    %5419 = vmatprep.mubr.bf16.mxu0 0
    %5420 = vmatmul.mubr.bf16.gmra.mrb[0].mxu0 %v5096
    %v5421 = vpop.f32.mrb[0].mxu0
    %v5422 = vadd.f32 0.0, %v5421
    %v5423 = vpop.f32.mrb[0].mxu0
    %v5424 = vpop.f32.mrb[0].mxu0
    %v5425 = vadd.f32 0.0, %v5424
    %v5426 = vpop.f32.mrb[0].mxu0
    %5427 = vmatprep.mubr.bf16.mxu0 0
    %5428 = vmatmul.mubr.bf16.gmra.mrb[0].mxu0 %v5097
    %v5429 = vpop.f32.mrb[0].mxu0
    %v5430 = vadd.f32 0.0, %v5429
    %v5431 = vpop.f32.mrb[0].mxu0
    %v5432 = vpop.f32.mrb[0].mxu0
    %v5433 = vadd.f32 0.0, %v5432
    %v5434 = vpop.f32.mrb[0].mxu0
    %5435 = vmatprep.mubr.bf16.mxu0 0
    %5436 = vmatmul.mubr.bf16.gmra.mrb[0].mxu0 %v5098
    %v5437 = vpop.f32.mrb[0].mxu0
    %v5438 = vadd.f32 0.0, %v5437
    %v5439 = vpop.f32.mrb[0].mxu0
    %v5440 = vpop.f32.mrb[0].mxu0
    %v5441 = vadd.f32 0.0, %v5440
    %v5442 = vpop.f32.mrb[0].mxu0
    %5443 = vdwg.mxu0
    %v5444 = vadd.f32 %v4620, %v5190
    %v5445 = vadd.f32 %v4623, %v5193
    %v5446 = vadd.f32 %v4628, %v5198
    %v5447 = vadd.f32 %v4631, %v5201
    %v5448 = vadd.f32 %v4636, %v5206
    %v5449 = vadd.f32 %v4639, %v5209
    %v5450 = vadd.f32 %v4644, %v5214
    %v5451 = vadd.f32 %v4647, %v5217
    %v5452 = vadd.f32 %v4652, %v5222
    %v5453 = vadd.f32 %v4655, %v5225
    %v5454 = vadd.f32 %v4660, %v5230
    %v5455 = vadd.f32 %v4663, %v5233
    %v5456 = vadd.f32 %v4668, %v5238
    %v5457 = vadd.f32 %v4671, %v5241
    %v5458 = vadd.f32 %v4676, %v5246
    %v5459 = vadd.f32 %v4679, %v5249
    %v5460 = vadd.f32 %v4684, %v5254
    %v5461 = vadd.f32 %v4687, %v5257
    %v5462 = vadd.f32 %v4692, %v5262
    %v5463 = vadd.f32 %v4695, %v5265
    %v5464 = vadd.f32 %v4700, %v5270
    %v5465 = vadd.f32 %v4703, %v5273
    %v5466 = vadd.f32 %v4708, %v5278
    %v5467 = vadd.f32 %v4711, %v5281
    %v5468 = vadd.f32 %v4716, %v5286
    %v5469 = vadd.f32 %v4719, %v5289
    %v5470 = vadd.f32 %v4724, %v5294
    %v5471 = vadd.f32 %v4727, %v5297
    %v5472 = vadd.f32 %v4732, %v5302
    %v5473 = vadd.f32 %v4735, %v5305
    %v5474 = vadd.f32 %v4740, %v5310
    %v5475 = vadd.f32 %v4743, %v5313
    %v5476 = vadd.f32 %v4748, %v5318
    %v5477 = vadd.f32 %v4751, %v5321
    %v5478 = vadd.f32 %v4756, %v5326
    %v5479 = vadd.f32 %v4759, %v5329
    %v5480 = vadd.f32 %v4764, %v5334
    %v5481 = vadd.f32 %v4767, %v5337
    %v5482 = vadd.f32 %v4772, %v5342
    %v5483 = vadd.f32 %v4775, %v5345
    %v5484 = vadd.f32 %v4780, %v5350
    %v5485 = vadd.f32 %v4783, %v5353
    %v5486 = vadd.f32 %v4788, %v5358
    %v5487 = vadd.f32 %v4791, %v5361
    %v5488 = vadd.f32 %v4796, %v5366
    %v5489 = vadd.f32 %v4799, %v5369
    %v5490 = vadd.f32 %v4804, %v5374
    %v5491 = vadd.f32 %v4807, %v5377
    %v5492 = vadd.f32 %v4812, %v5382
    %v5493 = vadd.f32 %v4815, %v5385
    %v5494 = vadd.f32 %v4820, %v5390
    %v5495 = vadd.f32 %v4823, %v5393
    %v5496 = vadd.f32 %v4828, %v5398
    %v5497 = vadd.f32 %v4831, %v5401
    %v5498 = vadd.f32 %v4836, %v5406
    %v5499 = vadd.f32 %v4839, %v5409
    %v5500 = vadd.f32 %v4844, %v5414
    %v5501 = vadd.f32 %v4847, %v5417
    %v5502 = vadd.f32 %v4852, %v5422
    %v5503 = vadd.f32 %v4855, %v5425
    %v5504 = vadd.f32 %v4860, %v5430
    %v5505 = vadd.f32 %v4863, %v5433
    %v5506 = vadd.f32 %v4868, %v5438
    %v5507 = vadd.f32 %v4871, %v5441
    %s5508 = scalar_lea.vmem [#allocation8], 768
    %v5509 = vld [vmem:[%s5508] sm:$0xf]
    %v5510 = vld [vmem:[%s5508 + $0x4] sm:$0xf]
    %v5511 = vld [vmem:[%s5508 + $0x8] sm:$0xf]
    %v5512 = vld [vmem:[%s5508 + $0xc] sm:$0xf]
    %v5513 = vld [vmem:[%s5508 + $0x10] sm:$0xf]
    %v5514 = vld [vmem:[%s5508 + $0x14] sm:$0xf]
    %v5515 = vld [vmem:[%s5508 + $0x18] sm:$0xf]
    %v5516 = vld [vmem:[%s5508 + $0x1c] sm:$0xf]
    %v5517 = vld [vmem:[%s5508 + $0x20] sm:$0xf]
    %v5518 = vld [vmem:[%s5508 + $0x24] sm:$0xf]
    %v5519 = vld [vmem:[%s5508 + $0x28] sm:$0xf]
    %v5520 = vld [vmem:[%s5508 + $0x2c] sm:$0xf]
    %v5521 = vld [vmem:[%s5508 + $0x30] sm:$0xf]
    %v5522 = vld [vmem:[%s5508 + $0x34] sm:$0xf]
    %v5523 = vld [vmem:[%s5508 + $0x38] sm:$0xf]
    %v5524 = vld [vmem:[%s5508 + $0x3c] sm:$0xf]
    %v5525 = vld [vmem:[%s5508 + $0x40] sm:$0xf]
    %v5526 = vld [vmem:[%s5508 + $0x44] sm:$0xf]
    %v5527 = vld [vmem:[%s5508 + $0x48] sm:$0xf]
    %v5528 = vld [vmem:[%s5508 + $0x4c] sm:$0xf]
    %v5529 = vld [vmem:[%s5508 + $0x50] sm:$0xf]
    %v5530 = vld [vmem:[%s5508 + $0x54] sm:$0xf]
    %v5531 = vld [vmem:[%s5508 + $0x58] sm:$0xf]
    %v5532 = vld [vmem:[%s5508 + $0x5c] sm:$0xf]
    %v5533 = vld [vmem:[%s5508 + $0x60] sm:$0xf]
    %v5534 = vld [vmem:[%s5508 + $0x64] sm:$0xf]
    %v5535 = vld [vmem:[%s5508 + $0x68] sm:$0xf]
    %v5536 = vld [vmem:[%s5508 + $0x6c] sm:$0xf]
    %v5537 = vld [vmem:[%s5508 + $0x70] sm:$0xf]
    %v5538 = vld [vmem:[%s5508 + $0x74] sm:$0xf]
    %v5539 = vld [vmem:[%s5508 + $0x78] sm:$0xf]
    %v5540 = vld [vmem:[%s5508 + $0x7c] sm:$0xf]
    %v5541 = vld [vmem:[%s5508 + $0x80] sm:$0xf]
    %v5542 = vld [vmem:[%s5508 + $0x84] sm:$0xf]
    %v5543 = vld [vmem:[%s5508 + $0x88] sm:$0xf]
    %v5544 = vld [vmem:[%s5508 + $0x8c] sm:$0xf]
    %v5545 = vld [vmem:[%s5508 + $0x90] sm:$0xf]
    %v5546 = vld [vmem:[%s5508 + $0x94] sm:$0xf]
    %v5547 = vld [vmem:[%s5508 + $0x98] sm:$0xf]
    %v5548 = vld [vmem:[%s5508 + $0x9c] sm:$0xf]
    %v5549 = vld [vmem:[%s5508 + $0xa0] sm:$0xf]
    %v5550 = vld [vmem:[%s5508 + $0xa4] sm:$0xf]
    %v5551 = vld [vmem:[%s5508 + $0xa8] sm:$0xf]
    %v5552 = vld [vmem:[%s5508 + $0xac] sm:$0xf]
    %v5553 = vld [vmem:[%s5508 + $0xb0] sm:$0xf]
    %v5554 = vld [vmem:[%s5508 + $0xb4] sm:$0xf]
    %v5555 = vld [vmem:[%s5508 + $0xb8] sm:$0xf]
    %v5556 = vld [vmem:[%s5508 + $0xbc] sm:$0xf]
    %v5557 = vld [vmem:[%s5508 + $0xc0] sm:$0xf]
    %v5558 = vld [vmem:[%s5508 + $0xc4] sm:$0xf]
    %v5559 = vld [vmem:[%s5508 + $0xc8] sm:$0xf]
    %v5560 = vld [vmem:[%s5508 + $0xcc] sm:$0xf]
    %v5561 = vld [vmem:[%s5508 + $0xd0] sm:$0xf]
    %v5562 = vld [vmem:[%s5508 + $0xd4] sm:$0xf]
    %v5563 = vld [vmem:[%s5508 + $0xd8] sm:$0xf]
    %v5564 = vld [vmem:[%s5508 + $0xdc] sm:$0xf]
    %v5565 = vld [vmem:[%s5508 + $0xe0] sm:$0xf]
    %v5566 = vld [vmem:[%s5508 + $0xe4] sm:$0xf]
    %v5567 = vld [vmem:[%s5508 + $0xe8] sm:$0xf]
    %v5568 = vld [vmem:[%s5508 + $0xec] sm:$0xf]
    %v5569 = vld [vmem:[%s5508 + $0xf0] sm:$0xf]
    %v5570 = vld [vmem:[%s5508 + $0xf4] sm:$0xf]
    %v5571 = vld [vmem:[%s5508 + $0xf8] sm:$0xf]
    %v5572 = vld [vmem:[%s5508 + $0xfc] sm:$0xf]
    %v5637 = vunpack.c.l.b16 %v5509
    %v5638 = vunpack.c.l.b16 %v5510
    %v5639 = vunpack.c.l.b16 %v5511
    %v5640 = vunpack.c.l.b16 %v5512
    %v5641 = vunpack.c.l.b16 %v5513
    %v5642 = vunpack.c.l.b16 %v5514
    %v5643 = vunpack.c.l.b16 %v5515
    %v5644 = vunpack.c.l.b16 %v5516
    %v5645 = vunpack.c.l.b16 %v5517
    %v5646 = vunpack.c.l.b16 %v5518
    %v5647 = vunpack.c.l.b16 %v5519
    %v5648 = vunpack.c.l.b16 %v5520
    %v5649 = vunpack.c.l.b16 %v5521
    %v5650 = vunpack.c.l.b16 %v5522
    %v5651 = vunpack.c.l.b16 %v5523
    %v5652 = vunpack.c.l.b16 %v5524
    %v5653 = vunpack.c.l.b16 %v5525
    %v5654 = vunpack.c.l.b16 %v5526
    %v5655 = vunpack.c.l.b16 %v5527
    %v5656 = vunpack.c.l.b16 %v5528
    %v5657 = vunpack.c.l.b16 %v5529
    %v5658 = vunpack.c.l.b16 %v5530
    %v5659 = vunpack.c.l.b16 %v5531
    %v5660 = vunpack.c.l.b16 %v5532
    %v5661 = vunpack.c.l.b16 %v5533
    %v5662 = vunpack.c.l.b16 %v5534
    %v5663 = vunpack.c.l.b16 %v5535
    %v5664 = vunpack.c.l.b16 %v5536
    %v5665 = vunpack.c.l.b16 %v5537
    %v5666 = vunpack.c.l.b16 %v5538
    %v5667 = vunpack.c.l.b16 %v5539
    %v5668 = vunpack.c.l.b16 %v5540
    %v5669 = vunpack.c.l.b16 %v5541
    %v5670 = vunpack.c.l.b16 %v5542
    %v5671 = vunpack.c.l.b16 %v5543
    %v5672 = vunpack.c.l.b16 %v5544
    %v5673 = vunpack.c.l.b16 %v5545
    %v5674 = vunpack.c.l.b16 %v5546
    %v5675 = vunpack.c.l.b16 %v5547
    %v5676 = vunpack.c.l.b16 %v5548
    %v5677 = vunpack.c.l.b16 %v5549
    %v5678 = vunpack.c.l.b16 %v5550
    %v5679 = vunpack.c.l.b16 %v5551
    %v5680 = vunpack.c.l.b16 %v5552
    %v5681 = vunpack.c.l.b16 %v5553
    %v5682 = vunpack.c.l.b16 %v5554
    %v5683 = vunpack.c.l.b16 %v5555
    %v5684 = vunpack.c.l.b16 %v5556
    %v5685 = vunpack.c.l.b16 %v5557
    %v5686 = vunpack.c.l.b16 %v5558
    %v5687 = vunpack.c.l.b16 %v5559
    %v5688 = vunpack.c.l.b16 %v5560
    %v5689 = vunpack.c.l.b16 %v5561
    %v5690 = vunpack.c.l.b16 %v5562
    %v5691 = vunpack.c.l.b16 %v5563
    %v5692 = vunpack.c.l.b16 %v5564
    %v5693 = vunpack.c.l.b16 %v5565
    %v5694 = vunpack.c.l.b16 %v5566
    %v5695 = vunpack.c.l.b16 %v5567
    %v5696 = vunpack.c.l.b16 %v5568
    %v5697 = vunpack.c.l.b16 %v5569
    %v5698 = vunpack.c.l.b16 %v5570
    %v5699 = vunpack.c.l.b16 %v5571
    %v5700 = vunpack.c.l.b16 %v5572
    %v5701 = vpack.c.b16 %v5638, %v5637
    %v5702 = vpack.c.b16 %v5640, %v5639
    %v5703 = vpack.c.b16 %v5642, %v5641
    %v5704 = vpack.c.b16 %v5644, %v5643
    %v5705 = vpack.c.b16 %v5646, %v5645
    %v5706 = vpack.c.b16 %v5648, %v5647
    %v5707 = vpack.c.b16 %v5650, %v5649
    %v5708 = vpack.c.b16 %v5652, %v5651
    %v5709 = vpack.c.b16 %v5654, %v5653
    %v5710 = vpack.c.b16 %v5656, %v5655
    %v5711 = vpack.c.b16 %v5658, %v5657
    %v5712 = vpack.c.b16 %v5660, %v5659
    %v5713 = vpack.c.b16 %v5662, %v5661
    %v5714 = vpack.c.b16 %v5664, %v5663
    %v5715 = vpack.c.b16 %v5666, %v5665
    %v5716 = vpack.c.b16 %v5668, %v5667
    %v5717 = vpack.c.b16 %v5670, %v5669
    %v5718 = vpack.c.b16 %v5672, %v5671
    %v5719 = vpack.c.b16 %v5674, %v5673
    %v5720 = vpack.c.b16 %v5676, %v5675
    %v5721 = vpack.c.b16 %v5678, %v5677
    %v5722 = vpack.c.b16 %v5680, %v5679
    %v5723 = vpack.c.b16 %v5682, %v5681
    %v5724 = vpack.c.b16 %v5684, %v5683
    %v5725 = vpack.c.b16 %v5686, %v5685
    %v5726 = vpack.c.b16 %v5688, %v5687
    %v5727 = vpack.c.b16 %v5690, %v5689
    %v5728 = vpack.c.b16 %v5692, %v5691
    %v5729 = vpack.c.b16 %v5694, %v5693
    %v5730 = vpack.c.b16 %v5696, %v5695
    %v5731 = vpack.c.b16 %v5698, %v5697
    %v5732 = vpack.c.b16 %v5700, %v5699
    %5765 = vrot.lane.b32.xlu0 %v3743, 104
    %v5766 = vpop.permute.xlu0 %5765
    %5767 = vrot.lane.b32.xlu0 %v3744, 104
    %v5768 = vpop.permute.xlu0 %5767
    %5769 = vrot.lane.b32.xlu0 %v3745, 104
    %v5770 = vpop.permute.xlu0 %5769
    %5771 = vrot.lane.b32.xlu0 %v3746, 104
    %v5772 = vpop.permute.xlu0 %5771
    %5773 = vrot.lane.b32.xlu0 %v3747, 104
    %v5774 = vpop.permute.xlu0 %5773
    %5775 = vrot.lane.b32.xlu0 %v3748, 104
    %v5776 = vpop.permute.xlu0 %5775
    %5777 = vrot.lane.b32.xlu0 %v3749, 104
    %v5778 = vpop.permute.xlu0 %5777
    %5779 = vrot.lane.b32.xlu0 %v3750, 104
    %v5780 = vpop.permute.xlu0 %5779
    %5789 = vmatprep.subr.bf16.mxu0 0
    %5790 = vmatpush1.bf16.msra.mxu0 %v5766
    %5791 = vmatprep.subr.bf16.mxu0 0
    %5792 = vmatpush1.bf16.msra.mxu0 %v5768
    %5793 = vmatprep.subr.bf16.mxu0 0
    %5794 = vmatpush1.bf16.msra.mxu0 %v5770
    %5795 = vmatprep.subr.bf16.mxu0 0
    %5796 = vmatpush1.bf16.msra.mxu0 %v5772
    %5797 = vmatprep.subr.bf16.mxu0 0
    %5798 = vmatpush1.bf16.msra.mxu0 %v5774
    %5799 = vmatprep.subr.bf16.mxu0 0
    %5800 = vmatpush1.bf16.msra.mxu0 %v5776
    %5801 = vmatprep.subr.bf16.mxu0 0
    %5802 = vmatpush1.bf16.msra.mxu0 %v5778
    %5803 = vmatprep.subr.bf16.mxu0 0
    %5804 = vmatpush1.bf16.msra.mxu0 %v5780
    %5805 = vmatprep.subr.bf16.mxu0 0
    %5806 = vmatpush1.bf16.msra.mxu0 0
    %5807 = vmatprep.subr.bf16.mxu0 0
    %5808 = vmatpush1.bf16.msra.mxu0 0
    %5809 = vmatprep.subr.bf16.mxu0 0
    %5810 = vmatpush1.bf16.msra.mxu0 0
    %5811 = vmatprep.subr.bf16.mxu0 0
    %5812 = vmatpush1.bf16.msra.mxu0 0
    %5813 = vmatprep.subr.bf16.mxu0 0
    %5814 = vmatpush1.bf16.msra.mxu0 0
    %5815 = vmatprep.subr.bf16.mxu0 0
    %5816 = vmatpush1.bf16.msra.mxu0 0
    %5817 = vmatprep.subr.bf16.mxu0 0
    %5818 = vmatpush1.bf16.msra.mxu0 0
    %5819 = vmatprep.subr.bf16.mxu0 0
    %5820 = vmatpush1.bf16.msra.mxu0 0
    %5821 = vmatprep.mubr.bf16.mxu0 0
    %5822 = vmatmul.mubr.bf16.gmra.mrb[0].mxu0 %v5701
    %v5823 = vpop.f32.mrb[0].mxu0
    %v5824 = vadd.f32 0.0, %v5823
    %v5825 = vpop.f32.mrb[0].mxu0
    %v5826 = vpop.f32.mrb[0].mxu0
    %v5827 = vadd.f32 0.0, %v5826
    %v5828 = vpop.f32.mrb[0].mxu0
    %5829 = vmatprep.mubr.bf16.mxu0 0
    %5830 = vmatmul.mubr.bf16.gmra.mrb[0].mxu0 %v5702
    %v5831 = vpop.f32.mrb[0].mxu0
    %v5832 = vadd.f32 0.0, %v5831
    %v5833 = vpop.f32.mrb[0].mxu0
    %v5834 = vpop.f32.mrb[0].mxu0
    %v5835 = vadd.f32 0.0, %v5834
    %v5836 = vpop.f32.mrb[0].mxu0
    %5837 = vmatprep.mubr.bf16.mxu0 0
    %5838 = vmatmul.mubr.bf16.gmra.mrb[0].mxu0 %v5703
    %v5839 = vpop.f32.mrb[0].mxu0
    %v5840 = vadd.f32 0.0, %v5839
    %v5841 = vpop.f32.mrb[0].mxu0
    %v5842 = vpop.f32.mrb[0].mxu0
    %v5843 = vadd.f32 0.0, %v5842
    %v5844 = vpop.f32.mrb[0].mxu0
    %5845 = vmatprep.mubr.bf16.mxu0 0
    %5846 = vmatmul.mubr.bf16.gmra.mrb[0].mxu0 %v5704
    %v5847 = vpop.f32.mrb[0].mxu0
    %v5848 = vadd.f32 0.0, %v5847
    %v5849 = vpop.f32.mrb[0].mxu0
    %v5850 = vpop.f32.mrb[0].mxu0
    %v5851 = vadd.f32 0.0, %v5850
    %v5852 = vpop.f32.mrb[0].mxu0
    %5853 = vmatprep.mubr.bf16.mxu0 0
    %5854 = vmatmul.mubr.bf16.gmra.mrb[0].mxu0 %v5705
    %v5855 = vpop.f32.mrb[0].mxu0
    %v5856 = vadd.f32 0.0, %v5855
    %v5857 = vpop.f32.mrb[0].mxu0
    %v5858 = vpop.f32.mrb[0].mxu0
    %v5859 = vadd.f32 0.0, %v5858
    %v5860 = vpop.f32.mrb[0].mxu0
    %5861 = vmatprep.mubr.bf16.mxu0 0
    %5862 = vmatmul.mubr.bf16.gmra.mrb[0].mxu0 %v5706
    %v5863 = vpop.f32.mrb[0].mxu0
    %v5864 = vadd.f32 0.0, %v5863
    %v5865 = vpop.f32.mrb[0].mxu0
    %v5866 = vpop.f32.mrb[0].mxu0
    %v5867 = vadd.f32 0.0, %v5866
    %v5868 = vpop.f32.mrb[0].mxu0
    %5869 = vmatprep.mubr.bf16.mxu0 0
    %5870 = vmatmul.mubr.bf16.gmra.mrb[0].mxu0 %v5707
    %v5871 = vpop.f32.mrb[0].mxu0
    %v5872 = vadd.f32 0.0, %v5871
    %v5873 = vpop.f32.mrb[0].mxu0
    %v5874 = vpop.f32.mrb[0].mxu0
    %v5875 = vadd.f32 0.0, %v5874
    %v5876 = vpop.f32.mrb[0].mxu0
    %5877 = vmatprep.mubr.bf16.mxu0 0
    %5878 = vmatmul.mubr.bf16.gmra.mrb[0].mxu0 %v5708
    %v5879 = vpop.f32.mrb[0].mxu0
    %v5880 = vadd.f32 0.0, %v5879
    %v5881 = vpop.f32.mrb[0].mxu0
    %v5882 = vpop.f32.mrb[0].mxu0
    %v5883 = vadd.f32 0.0, %v5882
    %v5884 = vpop.f32.mrb[0].mxu0
    %5885 = vmatprep.mubr.bf16.mxu0 0
    %5886 = vmatmul.mubr.bf16.gmra.mrb[0].mxu0 %v5709
    %v5887 = vpop.f32.mrb[0].mxu0
    %v5888 = vadd.f32 0.0, %v5887
    %v5889 = vpop.f32.mrb[0].mxu0
    %v5890 = vpop.f32.mrb[0].mxu0
    %v5891 = vadd.f32 0.0, %v5890
    %v5892 = vpop.f32.mrb[0].mxu0
    %5893 = vmatprep.mubr.bf16.mxu0 0
    %5894 = vmatmul.mubr.bf16.gmra.mrb[0].mxu0 %v5710
    %v5895 = vpop.f32.mrb[0].mxu0
    %v5896 = vadd.f32 0.0, %v5895
    %v5897 = vpop.f32.mrb[0].mxu0
    %v5898 = vpop.f32.mrb[0].mxu0
    %v5899 = vadd.f32 0.0, %v5898
    %v5900 = vpop.f32.mrb[0].mxu0
    %5901 = vmatprep.mubr.bf16.mxu0 0
    %5902 = vmatmul.mubr.bf16.gmra.mrb[0].mxu0 %v5711
    %v5903 = vpop.f32.mrb[0].mxu0
    %v5904 = vadd.f32 0.0, %v5903
    %v5905 = vpop.f32.mrb[0].mxu0
    %v5906 = vpop.f32.mrb[0].mxu0
    %v5907 = vadd.f32 0.0, %v5906
    %v5908 = vpop.f32.mrb[0].mxu0
    %5909 = vmatprep.mubr.bf16.mxu0 0
    %5910 = vmatmul.mubr.bf16.gmra.mrb[0].mxu0 %v5712
    %v5911 = vpop.f32.mrb[0].mxu0
    %v5912 = vadd.f32 0.0, %v5911
    %v5913 = vpop.f32.mrb[0].mxu0
    %v5914 = vpop.f32.mrb[0].mxu0
    %v5915 = vadd.f32 0.0, %v5914
    %v5916 = vpop.f32.mrb[0].mxu0
    %5917 = vmatprep.mubr.bf16.mxu0 0
    %5918 = vmatmul.mubr.bf16.gmra.mrb[0].mxu0 %v5713
    %v5919 = vpop.f32.mrb[0].mxu0
    %v5920 = vadd.f32 0.0, %v5919
    %v5921 = vpop.f32.mrb[0].mxu0
    %v5922 = vpop.f32.mrb[0].mxu0
    %v5923 = vadd.f32 0.0, %v5922
    %v5924 = vpop.f32.mrb[0].mxu0
    %5925 = vmatprep.mubr.bf16.mxu0 0
    %5926 = vmatmul.mubr.bf16.gmra.mrb[0].mxu0 %v5714
    %v5927 = vpop.f32.mrb[0].mxu0
    %v5928 = vadd.f32 0.0, %v5927
    %v5929 = vpop.f32.mrb[0].mxu0
    %v5930 = vpop.f32.mrb[0].mxu0
    %v5931 = vadd.f32 0.0, %v5930
    %v5932 = vpop.f32.mrb[0].mxu0
    %5933 = vmatprep.mubr.bf16.mxu0 0
    %5934 = vmatmul.mubr.bf16.gmra.mrb[0].mxu0 %v5715
    %v5935 = vpop.f32.mrb[0].mxu0
    %v5936 = vadd.f32 0.0, %v5935
    %v5937 = vpop.f32.mrb[0].mxu0
    %v5938 = vpop.f32.mrb[0].mxu0
    %v5939 = vadd.f32 0.0, %v5938
    %v5940 = vpop.f32.mrb[0].mxu0
    %5941 = vmatprep.mubr.bf16.mxu0 0
    %5942 = vmatmul.mubr.bf16.gmra.mrb[0].mxu0 %v5716
    %v5943 = vpop.f32.mrb[0].mxu0
    %v5944 = vadd.f32 0.0, %v5943
    %v5945 = vpop.f32.mrb[0].mxu0
    %v5946 = vpop.f32.mrb[0].mxu0
    %v5947 = vadd.f32 0.0, %v5946
    %v5948 = vpop.f32.mrb[0].mxu0
    %5949 = vmatprep.mubr.bf16.mxu0 0
    %5950 = vmatmul.mubr.bf16.gmra.mrb[0].mxu0 %v5717
    %v5951 = vpop.f32.mrb[0].mxu0
    %v5952 = vadd.f32 0.0, %v5951
    %v5953 = vpop.f32.mrb[0].mxu0
    %v5954 = vpop.f32.mrb[0].mxu0
    %v5955 = vadd.f32 0.0, %v5954
    %v5956 = vpop.f32.mrb[0].mxu0
    %5957 = vmatprep.mubr.bf16.mxu0 0
    %5958 = vmatmul.mubr.bf16.gmra.mrb[0].mxu0 %v5718
    %v5959 = vpop.f32.mrb[0].mxu0
    %v5960 = vadd.f32 0.0, %v5959
    %v5961 = vpop.f32.mrb[0].mxu0
    %v5962 = vpop.f32.mrb[0].mxu0
    %v5963 = vadd.f32 0.0, %v5962
    %v5964 = vpop.f32.mrb[0].mxu0
    %5965 = vmatprep.mubr.bf16.mxu0 0
    %5966 = vmatmul.mubr.bf16.gmra.mrb[0].mxu0 %v5719
    %v5967 = vpop.f32.mrb[0].mxu0
    %v5968 = vadd.f32 0.0, %v5967
    %v5969 = vpop.f32.mrb[0].mxu0
    %v5970 = vpop.f32.mrb[0].mxu0
    %v5971 = vadd.f32 0.0, %v5970
    %v5972 = vpop.f32.mrb[0].mxu0
    %5973 = vmatprep.mubr.bf16.mxu0 0
    %5974 = vmatmul.mubr.bf16.gmra.mrb[0].mxu0 %v5720
    %v5975 = vpop.f32.mrb[0].mxu0
    %v5976 = vadd.f32 0.0, %v5975
    %v5977 = vpop.f32.mrb[0].mxu0
    %v5978 = vpop.f32.mrb[0].mxu0
    %v5979 = vadd.f32 0.0, %v5978
    %v5980 = vpop.f32.mrb[0].mxu0
    %5981 = vmatprep.mubr.bf16.mxu0 0
    %5982 = vmatmul.mubr.bf16.gmra.mrb[0].mxu0 %v5721
    %v5983 = vpop.f32.mrb[0].mxu0
    %v5984 = vadd.f32 0.0, %v5983
    %v5985 = vpop.f32.mrb[0].mxu0
    %v5986 = vpop.f32.mrb[0].mxu0
    %v5987 = vadd.f32 0.0, %v5986
    %v5988 = vpop.f32.mrb[0].mxu0
    %5989 = vmatprep.mubr.bf16.mxu0 0
    %5990 = vmatmul.mubr.bf16.gmra.mrb[0].mxu0 %v5722
    %v5991 = vpop.f32.mrb[0].mxu0
    %v5992 = vadd.f32 0.0, %v5991
    %v5993 = vpop.f32.mrb[0].mxu0
    %v5994 = vpop.f32.mrb[0].mxu0
    %v5995 = vadd.f32 0.0, %v5994
    %v5996 = vpop.f32.mrb[0].mxu0
    %5997 = vmatprep.mubr.bf16.mxu0 0
    %5998 = vmatmul.mubr.bf16.gmra.mrb[0].mxu0 %v5723
    %v5999 = vpop.f32.mrb[0].mxu0
    %v6000 = vadd.f32 0.0, %v5999
    %v6001 = vpop.f32.mrb[0].mxu0
    %v6002 = vpop.f32.mrb[0].mxu0
    %v6003 = vadd.f32 0.0, %v6002
    %v6004 = vpop.f32.mrb[0].mxu0
    %6005 = vmatprep.mubr.bf16.mxu0 0
    %6006 = vmatmul.mubr.bf16.gmra.mrb[0].mxu0 %v5724
    %v6007 = vpop.f32.mrb[0].mxu0
    %v6008 = vadd.f32 0.0, %v6007
    %v6009 = vpop.f32.mrb[0].mxu0
    %v6010 = vpop.f32.mrb[0].mxu0
    %v6011 = vadd.f32 0.0, %v6010
    %v6012 = vpop.f32.mrb[0].mxu0
    %6013 = vmatprep.mubr.bf16.mxu0 0
    %6014 = vmatmul.mubr.bf16.gmra.mrb[0].mxu0 %v5725
    %v6015 = vpop.f32.mrb[0].mxu0
    %v6016 = vadd.f32 0.0, %v6015
    %v6017 = vpop.f32.mrb[0].mxu0
    %v6018 = vpop.f32.mrb[0].mxu0
    %v6019 = vadd.f32 0.0, %v6018
    %v6020 = vpop.f32.mrb[0].mxu0
    %6021 = vmatprep.mubr.bf16.mxu0 0
    %6022 = vmatmul.mubr.bf16.gmra.mrb[0].mxu0 %v5726
    %v6023 = vpop.f32.mrb[0].mxu0
    %v6024 = vadd.f32 0.0, %v6023
    %v6025 = vpop.f32.mrb[0].mxu0
    %v6026 = vpop.f32.mrb[0].mxu0
    %v6027 = vadd.f32 0.0, %v6026
    %v6028 = vpop.f32.mrb[0].mxu0
    %6029 = vmatprep.mubr.bf16.mxu0 0
    %6030 = vmatmul.mubr.bf16.gmra.mrb[0].mxu0 %v5727
    %v6031 = vpop.f32.mrb[0].mxu0
    %v6032 = vadd.f32 0.0, %v6031
    %v6033 = vpop.f32.mrb[0].mxu0
    %v6034 = vpop.f32.mrb[0].mxu0
    %v6035 = vadd.f32 0.0, %v6034
    %v6036 = vpop.f32.mrb[0].mxu0
    %6037 = vmatprep.mubr.bf16.mxu0 0
    %6038 = vmatmul.mubr.bf16.gmra.mrb[0].mxu0 %v5728
    %v6039 = vpop.f32.mrb[0].mxu0
    %v6040 = vadd.f32 0.0, %v6039
    %v6041 = vpop.f32.mrb[0].mxu0
    %v6042 = vpop.f32.mrb[0].mxu0
    %v6043 = vadd.f32 0.0, %v6042
    %v6044 = vpop.f32.mrb[0].mxu0
    %6045 = vmatprep.mubr.bf16.mxu0 0
    %6046 = vmatmul.mubr.bf16.gmra.mrb[0].mxu0 %v5729
    %v6047 = vpop.f32.mrb[0].mxu0
    %v6048 = vadd.f32 0.0, %v6047
    %v6049 = vpop.f32.mrb[0].mxu0
    %v6050 = vpop.f32.mrb[0].mxu0
    %v6051 = vadd.f32 0.0, %v6050
    %v6052 = vpop.f32.mrb[0].mxu0
    %6053 = vmatprep.mubr.bf16.mxu0 0
    %6054 = vmatmul.mubr.bf16.gmra.mrb[0].mxu0 %v5730
    %v6055 = vpop.f32.mrb[0].mxu0
    %v6056 = vadd.f32 0.0, %v6055
    %v6057 = vpop.f32.mrb[0].mxu0
    %v6058 = vpop.f32.mrb[0].mxu0
    %v6059 = vadd.f32 0.0, %v6058
    %v6060 = vpop.f32.mrb[0].mxu0
    %6061 = vmatprep.mubr.bf16.mxu0 0
    %6062 = vmatmul.mubr.bf16.gmra.mrb[0].mxu0 %v5731
    %v6063 = vpop.f32.mrb[0].mxu0
    %v6064 = vadd.f32 0.0, %v6063
    %v6065 = vpop.f32.mrb[0].mxu0
    %v6066 = vpop.f32.mrb[0].mxu0
    %v6067 = vadd.f32 0.0, %v6066
    %v6068 = vpop.f32.mrb[0].mxu0
    %6069 = vmatprep.mubr.bf16.mxu0 0
    %6070 = vmatmul.mubr.bf16.gmra.mrb[0].mxu0 %v5732
    %v6071 = vpop.f32.mrb[0].mxu0
    %v6072 = vadd.f32 0.0, %v6071
    %v6073 = vpop.f32.mrb[0].mxu0
    %v6074 = vpop.f32.mrb[0].mxu0
    %v6075 = vadd.f32 0.0, %v6074
    %v6076 = vpop.f32.mrb[0].mxu0
    %6077 = vdwg.mxu0
    %v6078 = vadd.f32 %v5444, %v5824
    %v6079 = vadd.f32 %v5445, %v5827
    %v6080 = vadd.f32 %v5446, %v5832
    %v6081 = vadd.f32 %v5447, %v5835
    %v6082 = vadd.f32 %v5448, %v5840
    %v6083 = vadd.f32 %v5449, %v5843
    %v6084 = vadd.f32 %v5450, %v5848
    %v6085 = vadd.f32 %v5451, %v5851
    %v6086 = vadd.f32 %v5452, %v5856
    %v6087 = vadd.f32 %v5453, %v5859
    %v6088 = vadd.f32 %v5454, %v5864
    %v6089 = vadd.f32 %v5455, %v5867
    %v6090 = vadd.f32 %v5456, %v5872
    %v6091 = vadd.f32 %v5457, %v5875
    %v6092 = vadd.f32 %v5458, %v5880
    %v6093 = vadd.f32 %v5459, %v5883
    %v6094 = vadd.f32 %v5460, %v5888
    %v6095 = vadd.f32 %v5461, %v5891
    %v6096 = vadd.f32 %v5462, %v5896
    %v6097 = vadd.f32 %v5463, %v5899
    %v6098 = vadd.f32 %v5464, %v5904
    %v6099 = vadd.f32 %v5465, %v5907
    %v6100 = vadd.f32 %v5466, %v5912
    %v6101 = vadd.f32 %v5467, %v5915
    %v6102 = vadd.f32 %v5468, %v5920
    %v6103 = vadd.f32 %v5469, %v5923
    %v6104 = vadd.f32 %v5470, %v5928
    %v6105 = vadd.f32 %v5471, %v5931
    %v6106 = vadd.f32 %v5472, %v5936
    %v6107 = vadd.f32 %v5473, %v5939
    %v6108 = vadd.f32 %v5474, %v5944
    %v6109 = vadd.f32 %v5475, %v5947
    %v6110 = vadd.f32 %v5476, %v5952
    %v6111 = vadd.f32 %v5477, %v5955
    %v6112 = vadd.f32 %v5478, %v5960
    %v6113 = vadd.f32 %v5479, %v5963
    %v6114 = vadd.f32 %v5480, %v5968
    %v6115 = vadd.f32 %v5481, %v5971
    %v6116 = vadd.f32 %v5482, %v5976
    %v6117 = vadd.f32 %v5483, %v5979
    %v6118 = vadd.f32 %v5484, %v5984
    %v6119 = vadd.f32 %v5485, %v5987
    %v6120 = vadd.f32 %v5486, %v5992
    %v6121 = vadd.f32 %v5487, %v5995
    %v6122 = vadd.f32 %v5488, %v6000
    %v6123 = vadd.f32 %v5489, %v6003
    %v6124 = vadd.f32 %v5490, %v6008
    %v6125 = vadd.f32 %v5491, %v6011
    %v6126 = vadd.f32 %v5492, %v6016
    %v6127 = vadd.f32 %v5493, %v6019
    %v6128 = vadd.f32 %v5494, %v6024
    %v6129 = vadd.f32 %v5495, %v6027
    %v6130 = vadd.f32 %v5496, %v6032
    %v6131 = vadd.f32 %v5497, %v6035
    %v6132 = vadd.f32 %v5498, %v6040
    %v6133 = vadd.f32 %v5499, %v6043
    %v6134 = vadd.f32 %v5500, %v6048
    %v6135 = vadd.f32 %v5501, %v6051
    %v6136 = vadd.f32 %v5502, %v6056
    %v6137 = vadd.f32 %v5503, %v6059
    %v6138 = vadd.f32 %v5504, %v6064
    %v6139 = vadd.f32 %v5505, %v6067
    %v6140 = vadd.f32 %v5506, %v6072
    %v6141 = vadd.f32 %v5507, %v6075
    %s6142 = scalar_lea.vmem [#allocation8], 1024
    %v6143 = vld [vmem:[%s6142] sm:$0xf]
    %v6144 = vld [vmem:[%s6142 + $0x4] sm:$0xf]
    %v6145 = vld [vmem:[%s6142 + $0x8] sm:$0xf]
    %v6146 = vld [vmem:[%s6142 + $0xc] sm:$0xf]
    %v6147 = vld [vmem:[%s6142 + $0x10] sm:$0xf]
    %v6148 = vld [vmem:[%s6142 + $0x14] sm:$0xf]
    %v6149 = vld [vmem:[%s6142 + $0x18] sm:$0xf]
    %v6150 = vld [vmem:[%s6142 + $0x1c] sm:$0xf]
    %v6151 = vld [vmem:[%s6142 + $0x20] sm:$0xf]
    %v6152 = vld [vmem:[%s6142 + $0x24] sm:$0xf]
    %v6153 = vld [vmem:[%s6142 + $0x28] sm:$0xf]
    %v6154 = vld [vmem:[%s6142 + $0x2c] sm:$0xf]
    %v6155 = vld [vmem:[%s6142 + $0x30] sm:$0xf]
    %v6156 = vld [vmem:[%s6142 + $0x34] sm:$0xf]
    %v6157 = vld [vmem:[%s6142 + $0x38] sm:$0xf]
    %v6158 = vld [vmem:[%s6142 + $0x3c] sm:$0xf]
    %v6159 = vld [vmem:[%s6142 + $0x40] sm:$0xf]
    %v6160 = vld [vmem:[%s6142 + $0x44] sm:$0xf]
    %v6161 = vld [vmem:[%s6142 + $0x48] sm:$0xf]
    %v6162 = vld [vmem:[%s6142 + $0x4c] sm:$0xf]
    %v6163 = vld [vmem:[%s6142 + $0x50] sm:$0xf]
    %v6164 = vld [vmem:[%s6142 + $0x54] sm:$0xf]
    %v6165 = vld [vmem:[%s6142 + $0x58] sm:$0xf]
    %v6166 = vld [vmem:[%s6142 + $0x5c] sm:$0xf]
    %v6167 = vld [vmem:[%s6142 + $0x60] sm:$0xf]
    %v6168 = vld [vmem:[%s6142 + $0x64] sm:$0xf]
    %v6169 = vld [vmem:[%s6142 + $0x68] sm:$0xf]
    %v6170 = vld [vmem:[%s6142 + $0x6c] sm:$0xf]
    %v6171 = vld [vmem:[%s6142 + $0x70] sm:$0xf]
    %v6172 = vld [vmem:[%s6142 + $0x74] sm:$0xf]
    %v6173 = vld [vmem:[%s6142 + $0x78] sm:$0xf]
    %v6174 = vld [vmem:[%s6142 + $0x7c] sm:$0xf]
    %v6175 = vld [vmem:[%s6142 + $0x80] sm:$0xf]
    %v6176 = vld [vmem:[%s6142 + $0x84] sm:$0xf]
    %v6177 = vld [vmem:[%s6142 + $0x88] sm:$0xf]
    %v6178 = vld [vmem:[%s6142 + $0x8c] sm:$0xf]
    %v6179 = vld [vmem:[%s6142 + $0x90] sm:$0xf]
    %v6180 = vld [vmem:[%s6142 + $0x94] sm:$0xf]
    %v6181 = vld [vmem:[%s6142 + $0x98] sm:$0xf]
    %v6182 = vld [vmem:[%s6142 + $0x9c] sm:$0xf]
    %v6183 = vld [vmem:[%s6142 + $0xa0] sm:$0xf]
    %v6184 = vld [vmem:[%s6142 + $0xa4] sm:$0xf]
    %v6185 = vld [vmem:[%s6142 + $0xa8] sm:$0xf]
    %v6186 = vld [vmem:[%s6142 + $0xac] sm:$0xf]
    %v6187 = vld [vmem:[%s6142 + $0xb0] sm:$0xf]
    %v6188 = vld [vmem:[%s6142 + $0xb4] sm:$0xf]
    %v6189 = vld [vmem:[%s6142 + $0xb8] sm:$0xf]
    %v6190 = vld [vmem:[%s6142 + $0xbc] sm:$0xf]
    %v6191 = vld [vmem:[%s6142 + $0xc0] sm:$0xf]
    %v6192 = vld [vmem:[%s6142 + $0xc4] sm:$0xf]
    %v6193 = vld [vmem:[%s6142 + $0xc8] sm:$0xf]
    %v6194 = vld [vmem:[%s6142 + $0xcc] sm:$0xf]
    %v6195 = vld [vmem:[%s6142 + $0xd0] sm:$0xf]
    %v6196 = vld [vmem:[%s6142 + $0xd4] sm:$0xf]
    %v6197 = vld [vmem:[%s6142 + $0xd8] sm:$0xf]
    %v6198 = vld [vmem:[%s6142 + $0xdc] sm:$0xf]
    %v6199 = vld [vmem:[%s6142 + $0xe0] sm:$0xf]
    %v6200 = vld [vmem:[%s6142 + $0xe4] sm:$0xf]
    %v6201 = vld [vmem:[%s6142 + $0xe8] sm:$0xf]
    %v6202 = vld [vmem:[%s6142 + $0xec] sm:$0xf]
    %v6203 = vld [vmem:[%s6142 + $0xf0] sm:$0xf]
    %v6204 = vld [vmem:[%s6142 + $0xf4] sm:$0xf]
    %v6205 = vld [vmem:[%s6142 + $0xf8] sm:$0xf]
    %v6206 = vld [vmem:[%s6142 + $0xfc] sm:$0xf]
    %v6271 = vunpack.c.l.b16 %v6143
    %v6272 = vunpack.c.l.b16 %v6144
    %v6273 = vunpack.c.l.b16 %v6145
    %v6274 = vunpack.c.l.b16 %v6146
    %v6275 = vunpack.c.l.b16 %v6147
    %v6276 = vunpack.c.l.b16 %v6148
    %v6277 = vunpack.c.l.b16 %v6149
    %v6278 = vunpack.c.l.b16 %v6150
    %v6279 = vunpack.c.l.b16 %v6151
    %v6280 = vunpack.c.l.b16 %v6152
    %v6281 = vunpack.c.l.b16 %v6153
    %v6282 = vunpack.c.l.b16 %v6154
    %v6283 = vunpack.c.l.b16 %v6155
    %v6284 = vunpack.c.l.b16 %v6156
    %v6285 = vunpack.c.l.b16 %v6157
    %v6286 = vunpack.c.l.b16 %v6158
    %v6287 = vunpack.c.l.b16 %v6159
    %v6288 = vunpack.c.l.b16 %v6160
    %v6289 = vunpack.c.l.b16 %v6161
    %v6290 = vunpack.c.l.b16 %v6162
    %v6291 = vunpack.c.l.b16 %v6163
    %v6292 = vunpack.c.l.b16 %v6164
    %v6293 = vunpack.c.l.b16 %v6165
    %v6294 = vunpack.c.l.b16 %v6166
    %v6295 = vunpack.c.l.b16 %v6167
    %v6296 = vunpack.c.l.b16 %v6168
    %v6297 = vunpack.c.l.b16 %v6169
    %v6298 = vunpack.c.l.b16 %v6170
    %v6299 = vunpack.c.l.b16 %v6171
    %v6300 = vunpack.c.l.b16 %v6172
    %v6301 = vunpack.c.l.b16 %v6173
    %v6302 = vunpack.c.l.b16 %v6174
    %v6303 = vunpack.c.l.b16 %v6175
    %v6304 = vunpack.c.l.b16 %v6176
    %v6305 = vunpack.c.l.b16 %v6177
    %v6306 = vunpack.c.l.b16 %v6178
    %v6307 = vunpack.c.l.b16 %v6179
    %v6308 = vunpack.c.l.b16 %v6180
    %v6309 = vunpack.c.l.b16 %v6181
    %v6310 = vunpack.c.l.b16 %v6182
    %v6311 = vunpack.c.l.b16 %v6183
    %v6312 = vunpack.c.l.b16 %v6184
    %v6313 = vunpack.c.l.b16 %v6185
    %v6314 = vunpack.c.l.b16 %v6186
    %v6315 = vunpack.c.l.b16 %v6187
    %v6316 = vunpack.c.l.b16 %v6188
    %v6317 = vunpack.c.l.b16 %v6189
    %v6318 = vunpack.c.l.b16 %v6190
    %v6319 = vunpack.c.l.b16 %v6191
    %v6320 = vunpack.c.l.b16 %v6192
    %v6321 = vunpack.c.l.b16 %v6193
    %v6322 = vunpack.c.l.b16 %v6194
    %v6323 = vunpack.c.l.b16 %v6195
    %v6324 = vunpack.c.l.b16 %v6196
    %v6325 = vunpack.c.l.b16 %v6197
    %v6326 = vunpack.c.l.b16 %v6198
    %v6327 = vunpack.c.l.b16 %v6199
    %v6328 = vunpack.c.l.b16 %v6200
    %v6329 = vunpack.c.l.b16 %v6201
    %v6330 = vunpack.c.l.b16 %v6202
    %v6331 = vunpack.c.l.b16 %v6203
    %v6332 = vunpack.c.l.b16 %v6204
    %v6333 = vunpack.c.l.b16 %v6205
    %v6334 = vunpack.c.l.b16 %v6206
    %v6335 = vpack.c.b16 %v6272, %v6271
    %v6336 = vpack.c.b16 %v6274, %v6273
    %v6337 = vpack.c.b16 %v6276, %v6275
    %v6338 = vpack.c.b16 %v6278, %v6277
    %v6339 = vpack.c.b16 %v6280, %v6279
    %v6340 = vpack.c.b16 %v6282, %v6281
    %v6341 = vpack.c.b16 %v6284, %v6283
    %v6342 = vpack.c.b16 %v6286, %v6285
    %v6343 = vpack.c.b16 %v6288, %v6287
    %v6344 = vpack.c.b16 %v6290, %v6289
    %v6345 = vpack.c.b16 %v6292, %v6291
    %v6346 = vpack.c.b16 %v6294, %v6293
    %v6347 = vpack.c.b16 %v6296, %v6295
    %v6348 = vpack.c.b16 %v6298, %v6297
    %v6349 = vpack.c.b16 %v6300, %v6299
    %v6350 = vpack.c.b16 %v6302, %v6301
    %v6351 = vpack.c.b16 %v6304, %v6303
    %v6352 = vpack.c.b16 %v6306, %v6305
    %v6353 = vpack.c.b16 %v6308, %v6307
    %v6354 = vpack.c.b16 %v6310, %v6309
    %v6355 = vpack.c.b16 %v6312, %v6311
    %v6356 = vpack.c.b16 %v6314, %v6313
    %v6357 = vpack.c.b16 %v6316, %v6315
    %v6358 = vpack.c.b16 %v6318, %v6317
    %v6359 = vpack.c.b16 %v6320, %v6319
    %v6360 = vpack.c.b16 %v6322, %v6321
    %v6361 = vpack.c.b16 %v6324, %v6323
    %v6362 = vpack.c.b16 %v6326, %v6325
    %v6363 = vpack.c.b16 %v6328, %v6327
    %v6364 = vpack.c.b16 %v6330, %v6329
    %v6365 = vpack.c.b16 %v6332, %v6331
    %v6366 = vpack.c.b16 %v6334, %v6333
    %6399 = vrot.lane.b32.xlu0 %v3743, 96
    %v6400 = vpop.permute.xlu0 %6399
    %6401 = vrot.lane.b32.xlu0 %v3744, 96
    %v6402 = vpop.permute.xlu0 %6401
    %6403 = vrot.lane.b32.xlu0 %v3745, 96
    %v6404 = vpop.permute.xlu0 %6403
    %6405 = vrot.lane.b32.xlu0 %v3746, 96
    %v6406 = vpop.permute.xlu0 %6405
    %6407 = vrot.lane.b32.xlu0 %v3747, 96
    %v6408 = vpop.permute.xlu0 %6407
    %6409 = vrot.lane.b32.xlu0 %v3748, 96
    %v6410 = vpop.permute.xlu0 %6409
    %6411 = vrot.lane.b32.xlu0 %v3749, 96
    %v6412 = vpop.permute.xlu0 %6411
    %6413 = vrot.lane.b32.xlu0 %v3750, 96
    %v6414 = vpop.permute.xlu0 %6413
    %6423 = vmatprep.subr.bf16.mxu0 0
    %6424 = vmatpush1.bf16.msra.mxu0 %v6400
    %6425 = vmatprep.subr.bf16.mxu0 0
    %6426 = vmatpush1.bf16.msra.mxu0 %v6402
    %6427 = vmatprep.subr.bf16.mxu0 0
    %6428 = vmatpush1.bf16.msra.mxu0 %v6404
    %6429 = vmatprep.subr.bf16.mxu0 0
    %6430 = vmatpush1.bf16.msra.mxu0 %v6406
    %6431 = vmatprep.subr.bf16.mxu0 0
    %6432 = vmatpush1.bf16.msra.mxu0 %v6408
    %6433 = vmatprep.subr.bf16.mxu0 0
    %6434 = vmatpush1.bf16.msra.mxu0 %v6410
    %6435 = vmatprep.subr.bf16.mxu0 0
    %6436 = vmatpush1.bf16.msra.mxu0 %v6412
    %6437 = vmatprep.subr.bf16.mxu0 0
    %6438 = vmatpush1.bf16.msra.mxu0 %v6414
    %6439 = vmatprep.subr.bf16.mxu0 0
    %6440 = vmatpush1.bf16.msra.mxu0 0
    %6441 = vmatprep.subr.bf16.mxu0 0
    %6442 = vmatpush1.bf16.msra.mxu0 0
    %6443 = vmatprep.subr.bf16.mxu0 0
    %6444 = vmatpush1.bf16.msra.mxu0 0
    %6445 = vmatprep.subr.bf16.mxu0 0
    %6446 = vmatpush1.bf16.msra.mxu0 0
    %6447 = vmatprep.subr.bf16.mxu0 0
    %6448 = vmatpush1.bf16.msra.mxu0 0
    %6449 = vmatprep.subr.bf16.mxu0 0
    %6450 = vmatpush1.bf16.msra.mxu0 0
    %6451 = vmatprep.subr.bf16.mxu0 0
    %6452 = vmatpush1.bf16.msra.mxu0 0
    %6453 = vmatprep.subr.bf16.mxu0 0
    %6454 = vmatpush1.bf16.msra.mxu0 0
    %6455 = vmatprep.mubr.bf16.mxu0 0
    %6456 = vmatmul.mubr.bf16.gmra.mrb[0].mxu0 %v6335
    %v6457 = vpop.f32.mrb[0].mxu0
    %v6458 = vadd.f32 0.0, %v6457
    %v6459 = vpop.f32.mrb[0].mxu0
    %v6460 = vpop.f32.mrb[0].mxu0
    %v6461 = vadd.f32 0.0, %v6460
    %v6462 = vpop.f32.mrb[0].mxu0
    %6463 = vmatprep.mubr.bf16.mxu0 0
    %6464 = vmatmul.mubr.bf16.gmra.mrb[0].mxu0 %v6336
    %v6465 = vpop.f32.mrb[0].mxu0
    %v6466 = vadd.f32 0.0, %v6465
    %v6467 = vpop.f32.mrb[0].mxu0
    %v6468 = vpop.f32.mrb[0].mxu0
    %v6469 = vadd.f32 0.0, %v6468
    %v6470 = vpop.f32.mrb[0].mxu0
    %6471 = vmatprep.mubr.bf16.mxu0 0
    %6472 = vmatmul.mubr.bf16.gmra.mrb[0].mxu0 %v6337
    %v6473 = vpop.f32.mrb[0].mxu0
    %v6474 = vadd.f32 0.0, %v6473
    %v6475 = vpop.f32.mrb[0].mxu0
    %v6476 = vpop.f32.mrb[0].mxu0
    %v6477 = vadd.f32 0.0, %v6476
    %v6478 = vpop.f32.mrb[0].mxu0
    %6479 = vmatprep.mubr.bf16.mxu0 0
    %6480 = vmatmul.mubr.bf16.gmra.mrb[0].mxu0 %v6338
    %v6481 = vpop.f32.mrb[0].mxu0
    %v6482 = vadd.f32 0.0, %v6481
    %v6483 = vpop.f32.mrb[0].mxu0
    %v6484 = vpop.f32.mrb[0].mxu0
    %v6485 = vadd.f32 0.0, %v6484
    %v6486 = vpop.f32.mrb[0].mxu0
    %6487 = vmatprep.mubr.bf16.mxu0 0
    %6488 = vmatmul.mubr.bf16.gmra.mrb[0].mxu0 %v6339
    %v6489 = vpop.f32.mrb[0].mxu0
    %v6490 = vadd.f32 0.0, %v6489
    %v6491 = vpop.f32.mrb[0].mxu0
    %v6492 = vpop.f32.mrb[0].mxu0
    %v6493 = vadd.f32 0.0, %v6492
    %v6494 = vpop.f32.mrb[0].mxu0
    %6495 = vmatprep.mubr.bf16.mxu0 0
    %6496 = vmatmul.mubr.bf16.gmra.mrb[0].mxu0 %v6340
    %v6497 = vpop.f32.mrb[0].mxu0
    %v6498 = vadd.f32 0.0, %v6497
    %v6499 = vpop.f32.mrb[0].mxu0
    %v6500 = vpop.f32.mrb[0].mxu0
    %v6501 = vadd.f32 0.0, %v6500
    %v6502 = vpop.f32.mrb[0].mxu0
    %6503 = vmatprep.mubr.bf16.mxu0 0
    %6504 = vmatmul.mubr.bf16.gmra.mrb[0].mxu0 %v6341
    %v6505 = vpop.f32.mrb[0].mxu0
    %v6506 = vadd.f32 0.0, %v6505
    %v6507 = vpop.f32.mrb[0].mxu0
    %v6508 = vpop.f32.mrb[0].mxu0
    %v6509 = vadd.f32 0.0, %v6508
    %v6510 = vpop.f32.mrb[0].mxu0
    %6511 = vmatprep.mubr.bf16.mxu0 0
    %6512 = vmatmul.mubr.bf16.gmra.mrb[0].mxu0 %v6342
    %v6513 = vpop.f32.mrb[0].mxu0
    %v6514 = vadd.f32 0.0, %v6513
    %v6515 = vpop.f32.mrb[0].mxu0
    %v6516 = vpop.f32.mrb[0].mxu0
    %v6517 = vadd.f32 0.0, %v6516
    %v6518 = vpop.f32.mrb[0].mxu0
    %6519 = vmatprep.mubr.bf16.mxu0 0
    %6520 = vmatmul.mubr.bf16.gmra.mrb[0].mxu0 %v6343
    %v6521 = vpop.f32.mrb[0].mxu0
    %v6522 = vadd.f32 0.0, %v6521
    %v6523 = vpop.f32.mrb[0].mxu0
    %v6524 = vpop.f32.mrb[0].mxu0
    %v6525 = vadd.f32 0.0, %v6524
    %v6526 = vpop.f32.mrb[0].mxu0
    %6527 = vmatprep.mubr.bf16.mxu0 0
    %6528 = vmatmul.mubr.bf16.gmra.mrb[0].mxu0 %v6344
    %v6529 = vpop.f32.mrb[0].mxu0
    %v6530 = vadd.f32 0.0, %v6529
    %v6531 = vpop.f32.mrb[0].mxu0
    %v6532 = vpop.f32.mrb[0].mxu0
    %v6533 = vadd.f32 0.0, %v6532
    %v6534 = vpop.f32.mrb[0].mxu0
    %6535 = vmatprep.mubr.bf16.mxu0 0
    %6536 = vmatmul.mubr.bf16.gmra.mrb[0].mxu0 %v6345
    %v6537 = vpop.f32.mrb[0].mxu0
    %v6538 = vadd.f32 0.0, %v6537
    %v6539 = vpop.f32.mrb[0].mxu0
    %v6540 = vpop.f32.mrb[0].mxu0
    %v6541 = vadd.f32 0.0, %v6540
    %v6542 = vpop.f32.mrb[0].mxu0
    %6543 = vmatprep.mubr.bf16.mxu0 0
    %6544 = vmatmul.mubr.bf16.gmra.mrb[0].mxu0 %v6346
    %v6545 = vpop.f32.mrb[0].mxu0
    %v6546 = vadd.f32 0.0, %v6545
    %v6547 = vpop.f32.mrb[0].mxu0
    %v6548 = vpop.f32.mrb[0].mxu0
    %v6549 = vadd.f32 0.0, %v6548
    %v6550 = vpop.f32.mrb[0].mxu0
    %6551 = vmatprep.mubr.bf16.mxu0 0
    %6552 = vmatmul.mubr.bf16.gmra.mrb[0].mxu0 %v6347
    %v6553 = vpop.f32.mrb[0].mxu0
    %v6554 = vadd.f32 0.0, %v6553
    %v6555 = vpop.f32.mrb[0].mxu0
    %v6556 = vpop.f32.mrb[0].mxu0
    %v6557 = vadd.f32 0.0, %v6556
    %v6558 = vpop.f32.mrb[0].mxu0
    %6559 = vmatprep.mubr.bf16.mxu0 0
    %6560 = vmatmul.mubr.bf16.gmra.mrb[0].mxu0 %v6348
    %v6561 = vpop.f32.mrb[0].mxu0
    %v6562 = vadd.f32 0.0, %v6561
    %v6563 = vpop.f32.mrb[0].mxu0
    %v6564 = vpop.f32.mrb[0].mxu0
    %v6565 = vadd.f32 0.0, %v6564
    %v6566 = vpop.f32.mrb[0].mxu0
    %6567 = vmatprep.mubr.bf16.mxu0 0
    %6568 = vmatmul.mubr.bf16.gmra.mrb[0].mxu0 %v6349
    %v6569 = vpop.f32.mrb[0].mxu0
    %v6570 = vadd.f32 0.0, %v6569
    %v6571 = vpop.f32.mrb[0].mxu0
    %v6572 = vpop.f32.mrb[0].mxu0
    %v6573 = vadd.f32 0.0, %v6572
    %v6574 = vpop.f32.mrb[0].mxu0
    %6575 = vmatprep.mubr.bf16.mxu0 0
    %6576 = vmatmul.mubr.bf16.gmra.mrb[0].mxu0 %v6350
    %v6577 = vpop.f32.mrb[0].mxu0
    %v6578 = vadd.f32 0.0, %v6577
    %v6579 = vpop.f32.mrb[0].mxu0
    %v6580 = vpop.f32.mrb[0].mxu0
    %v6581 = vadd.f32 0.0, %v6580
    %v6582 = vpop.f32.mrb[0].mxu0
    %6583 = vmatprep.mubr.bf16.mxu0 0
    %6584 = vmatmul.mubr.bf16.gmra.mrb[0].mxu0 %v6351
    %v6585 = vpop.f32.mrb[0].mxu0
    %v6586 = vadd.f32 0.0, %v6585
    %v6587 = vpop.f32.mrb[0].mxu0
    %v6588 = vpop.f32.mrb[0].mxu0
    %v6589 = vadd.f32 0.0, %v6588
    %v6590 = vpop.f32.mrb[0].mxu0
    %6591 = vmatprep.mubr.bf16.mxu0 0
    %6592 = vmatmul.mubr.bf16.gmra.mrb[0].mxu0 %v6352
    %v6593 = vpop.f32.mrb[0].mxu0
    %v6594 = vadd.f32 0.0, %v6593
    %v6595 = vpop.f32.mrb[0].mxu0
    %v6596 = vpop.f32.mrb[0].mxu0
    %v6597 = vadd.f32 0.0, %v6596
    %v6598 = vpop.f32.mrb[0].mxu0
    %6599 = vmatprep.mubr.bf16.mxu0 0
    %6600 = vmatmul.mubr.bf16.gmra.mrb[0].mxu0 %v6353
    %v6601 = vpop.f32.mrb[0].mxu0
    %v6602 = vadd.f32 0.0, %v6601
    %v6603 = vpop.f32.mrb[0].mxu0
    %v6604 = vpop.f32.mrb[0].mxu0
    %v6605 = vadd.f32 0.0, %v6604
    %v6606 = vpop.f32.mrb[0].mxu0
    %6607 = vmatprep.mubr.bf16.mxu0 0
    %6608 = vmatmul.mubr.bf16.gmra.mrb[0].mxu0 %v6354
    %v6609 = vpop.f32.mrb[0].mxu0
    %v6610 = vadd.f32 0.0, %v6609
    %v6611 = vpop.f32.mrb[0].mxu0
    %v6612 = vpop.f32.mrb[0].mxu0
    %v6613 = vadd.f32 0.0, %v6612
    %v6614 = vpop.f32.mrb[0].mxu0
    %6615 = vmatprep.mubr.bf16.mxu0 0
    %6616 = vmatmul.mubr.bf16.gmra.mrb[0].mxu0 %v6355
    %v6617 = vpop.f32.mrb[0].mxu0
    %v6618 = vadd.f32 0.0, %v6617
    %v6619 = vpop.f32.mrb[0].mxu0
    %v6620 = vpop.f32.mrb[0].mxu0
    %v6621 = vadd.f32 0.0, %v6620
    %v6622 = vpop.f32.mrb[0].mxu0
    %6623 = vmatprep.mubr.bf16.mxu0 0
    %6624 = vmatmul.mubr.bf16.gmra.mrb[0].mxu0 %v6356
    %v6625 = vpop.f32.mrb[0].mxu0
    %v6626 = vadd.f32 0.0, %v6625
    %v6627 = vpop.f32.mrb[0].mxu0
    %v6628 = vpop.f32.mrb[0].mxu0
    %v6629 = vadd.f32 0.0, %v6628
    %v6630 = vpop.f32.mrb[0].mxu0
    %6631 = vmatprep.mubr.bf16.mxu0 0
    %6632 = vmatmul.mubr.bf16.gmra.mrb[0].mxu0 %v6357
    %v6633 = vpop.f32.mrb[0].mxu0
    %v6634 = vadd.f32 0.0, %v6633
    %v6635 = vpop.f32.mrb[0].mxu0
    %v6636 = vpop.f32.mrb[0].mxu0
    %v6637 = vadd.f32 0.0, %v6636
    %v6638 = vpop.f32.mrb[0].mxu0
    %6639 = vmatprep.mubr.bf16.mxu0 0
    %6640 = vmatmul.mubr.bf16.gmra.mrb[0].mxu0 %v6358
    %v6641 = vpop.f32.mrb[0].mxu0
    %v6642 = vadd.f32 0.0, %v6641
    %v6643 = vpop.f32.mrb[0].mxu0
    %v6644 = vpop.f32.mrb[0].mxu0
    %v6645 = vadd.f32 0.0, %v6644
    %v6646 = vpop.f32.mrb[0].mxu0
    %6647 = vmatprep.mubr.bf16.mxu0 0
    %6648 = vmatmul.mubr.bf16.gmra.mrb[0].mxu0 %v6359
    %v6649 = vpop.f32.mrb[0].mxu0
    %v6650 = vadd.f32 0.0, %v6649
    %v6651 = vpop.f32.mrb[0].mxu0
    %v6652 = vpop.f32.mrb[0].mxu0
    %v6653 = vadd.f32 0.0, %v6652
    %v6654 = vpop.f32.mrb[0].mxu0
    %6655 = vmatprep.mubr.bf16.mxu0 0
    %6656 = vmatmul.mubr.bf16.gmra.mrb[0].mxu0 %v6360
    %v6657 = vpop.f32.mrb[0].mxu0
    %v6658 = vadd.f32 0.0, %v6657
    %v6659 = vpop.f32.mrb[0].mxu0
    %v6660 = vpop.f32.mrb[0].mxu0
    %v6661 = vadd.f32 0.0, %v6660
    %v6662 = vpop.f32.mrb[0].mxu0
    %6663 = vmatprep.mubr.bf16.mxu0 0
    %6664 = vmatmul.mubr.bf16.gmra.mrb[0].mxu0 %v6361
    %v6665 = vpop.f32.mrb[0].mxu0
    %v6666 = vadd.f32 0.0, %v6665
    %v6667 = vpop.f32.mrb[0].mxu0
    %v6668 = vpop.f32.mrb[0].mxu0
    %v6669 = vadd.f32 0.0, %v6668
    %v6670 = vpop.f32.mrb[0].mxu0
    %6671 = vmatprep.mubr.bf16.mxu0 0
    %6672 = vmatmul.mubr.bf16.gmra.mrb[0].mxu0 %v6362
    %v6673 = vpop.f32.mrb[0].mxu0
    %v6674 = vadd.f32 0.0, %v6673
    %v6675 = vpop.f32.mrb[0].mxu0
    %v6676 = vpop.f32.mrb[0].mxu0
    %v6677 = vadd.f32 0.0, %v6676
    %v6678 = vpop.f32.mrb[0].mxu0
    %6679 = vmatprep.mubr.bf16.mxu0 0
    %6680 = vmatmul.mubr.bf16.gmra.mrb[0].mxu0 %v6363
    %v6681 = vpop.f32.mrb[0].mxu0
    %v6682 = vadd.f32 0.0, %v6681
    %v6683 = vpop.f32.mrb[0].mxu0
    %v6684 = vpop.f32.mrb[0].mxu0
    %v6685 = vadd.f32 0.0, %v6684
    %v6686 = vpop.f32.mrb[0].mxu0
    %6687 = vmatprep.mubr.bf16.mxu0 0
    %6688 = vmatmul.mubr.bf16.gmra.mrb[0].mxu0 %v6364
    %v6689 = vpop.f32.mrb[0].mxu0
    %v6690 = vadd.f32 0.0, %v6689
    %v6691 = vpop.f32.mrb[0].mxu0
    %v6692 = vpop.f32.mrb[0].mxu0
    %v6693 = vadd.f32 0.0, %v6692
    %v6694 = vpop.f32.mrb[0].mxu0
    %6695 = vmatprep.mubr.bf16.mxu0 0
    %6696 = vmatmul.mubr.bf16.gmra.mrb[0].mxu0 %v6365
    %v6697 = vpop.f32.mrb[0].mxu0
    %v6698 = vadd.f32 0.0, %v6697
    %v6699 = vpop.f32.mrb[0].mxu0
    %v6700 = vpop.f32.mrb[0].mxu0
    %v6701 = vadd.f32 0.0, %v6700
    %v6702 = vpop.f32.mrb[0].mxu0
    %6703 = vmatprep.mubr.bf16.mxu0 0
    %6704 = vmatmul.mubr.bf16.gmra.mrb[0].mxu0 %v6366
    %v6705 = vpop.f32.mrb[0].mxu0
    %v6706 = vadd.f32 0.0, %v6705
    %v6707 = vpop.f32.mrb[0].mxu0
    %v6708 = vpop.f32.mrb[0].mxu0
    %v6709 = vadd.f32 0.0, %v6708
    %v6710 = vpop.f32.mrb[0].mxu0
    %6711 = vdwg.mxu0
    %v6712 = vadd.f32 %v6078, %v6458
    %v6713 = vadd.f32 %v6079, %v6461
    %v6714 = vadd.f32 %v6080, %v6466
    %v6715 = vadd.f32 %v6081, %v6469
    %v6716 = vadd.f32 %v6082, %v6474
    %v6717 = vadd.f32 %v6083, %v6477
    %v6718 = vadd.f32 %v6084, %v6482
    %v6719 = vadd.f32 %v6085, %v6485
    %v6720 = vadd.f32 %v6086, %v6490
    %v6721 = vadd.f32 %v6087, %v6493
    %v6722 = vadd.f32 %v6088, %v6498
    %v6723 = vadd.f32 %v6089, %v6501
    %v6724 = vadd.f32 %v6090, %v6506
    %v6725 = vadd.f32 %v6091, %v6509
    %v6726 = vadd.f32 %v6092, %v6514
    %v6727 = vadd.f32 %v6093, %v6517
    %v6728 = vadd.f32 %v6094, %v6522
    %v6729 = vadd.f32 %v6095, %v6525
    %v6730 = vadd.f32 %v6096, %v6530
    %v6731 = vadd.f32 %v6097, %v6533
    %v6732 = vadd.f32 %v6098, %v6538
    %v6733 = vadd.f32 %v6099, %v6541
    %v6734 = vadd.f32 %v6100, %v6546
    %v6735 = vadd.f32 %v6101, %v6549
    %v6736 = vadd.f32 %v6102, %v6554
    %v6737 = vadd.f32 %v6103, %v6557
    %v6738 = vadd.f32 %v6104, %v6562
    %v6739 = vadd.f32 %v6105, %v6565
    %v6740 = vadd.f32 %v6106, %v6570
    %v6741 = vadd.f32 %v6107, %v6573
    %v6742 = vadd.f32 %v6108, %v6578
    %v6743 = vadd.f32 %v6109, %v6581
    %v6744 = vadd.f32 %v6110, %v6586
    %v6745 = vadd.f32 %v6111, %v6589
    %v6746 = vadd.f32 %v6112, %v6594
    %v6747 = vadd.f32 %v6113, %v6597
    %v6748 = vadd.f32 %v6114, %v6602
    %v6749 = vadd.f32 %v6115, %v6605
    %v6750 = vadd.f32 %v6116, %v6610
    %v6751 = vadd.f32 %v6117, %v6613
    %v6752 = vadd.f32 %v6118, %v6618
    %v6753 = vadd.f32 %v6119, %v6621
    %v6754 = vadd.f32 %v6120, %v6626
    %v6755 = vadd.f32 %v6121, %v6629
    %v6756 = vadd.f32 %v6122, %v6634
    %v6757 = vadd.f32 %v6123, %v6637
    %v6758 = vadd.f32 %v6124, %v6642
    %v6759 = vadd.f32 %v6125, %v6645
    %v6760 = vadd.f32 %v6126, %v6650
    %v6761 = vadd.f32 %v6127, %v6653
    %v6762 = vadd.f32 %v6128, %v6658
    %v6763 = vadd.f32 %v6129, %v6661
    %v6764 = vadd.f32 %v6130, %v6666
    %v6765 = vadd.f32 %v6131, %v6669
    %v6766 = vadd.f32 %v6132, %v6674
    %v6767 = vadd.f32 %v6133, %v6677
    %v6768 = vadd.f32 %v6134, %v6682
    %v6769 = vadd.f32 %v6135, %v6685
    %v6770 = vadd.f32 %v6136, %v6690
    %v6771 = vadd.f32 %v6137, %v6693
    %v6772 = vadd.f32 %v6138, %v6698
    %v6773 = vadd.f32 %v6139, %v6701
    %v6774 = vadd.f32 %v6140, %v6706
    %v6775 = vadd.f32 %v6141, %v6709
    %s6776 = scalar_lea.vmem [#allocation8], 1280
    %v6777 = vld [vmem:[%s6776] sm:$0xf]
    %v6778 = vld [vmem:[%s6776 + $0x4] sm:$0xf]
    %v6779 = vld [vmem:[%s6776 + $0x8] sm:$0xf]
    %v6780 = vld [vmem:[%s6776 + $0xc] sm:$0xf]
    %v6781 = vld [vmem:[%s6776 + $0x10] sm:$0xf]
    %v6782 = vld [vmem:[%s6776 + $0x14] sm:$0xf]
    %v6783 = vld [vmem:[%s6776 + $0x18] sm:$0xf]
    %v6784 = vld [vmem:[%s6776 + $0x1c] sm:$0xf]
    %v6785 = vld [vmem:[%s6776 + $0x20] sm:$0xf]
    %v6786 = vld [vmem:[%s6776 + $0x24] sm:$0xf]
    %v6787 = vld [vmem:[%s6776 + $0x28] sm:$0xf]
    %v6788 = vld [vmem:[%s6776 + $0x2c] sm:$0xf]
    %v6789 = vld [vmem:[%s6776 + $0x30] sm:$0xf]
    %v6790 = vld [vmem:[%s6776 + $0x34] sm:$0xf]
    %v6791 = vld [vmem:[%s6776 + $0x38] sm:$0xf]
    %v6792 = vld [vmem:[%s6776 + $0x3c] sm:$0xf]
    %v6793 = vld [vmem:[%s6776 + $0x40] sm:$0xf]
    %v6794 = vld [vmem:[%s6776 + $0x44] sm:$0xf]
    %v6795 = vld [vmem:[%s6776 + $0x48] sm:$0xf]
    %v6796 = vld [vmem:[%s6776 + $0x4c] sm:$0xf]
    %v6797 = vld [vmem:[%s6776 + $0x50] sm:$0xf]
    %v6798 = vld [vmem:[%s6776 + $0x54] sm:$0xf]
    %v6799 = vld [vmem:[%s6776 + $0x58] sm:$0xf]
    %v6800 = vld [vmem:[%s6776 + $0x5c] sm:$0xf]
    %v6801 = vld [vmem:[%s6776 + $0x60] sm:$0xf]
    %v6802 = vld [vmem:[%s6776 + $0x64] sm:$0xf]
    %v6803 = vld [vmem:[%s6776 + $0x68] sm:$0xf]
    %v6804 = vld [vmem:[%s6776 + $0x6c] sm:$0xf]
    %v6805 = vld [vmem:[%s6776 + $0x70] sm:$0xf]
    %v6806 = vld [vmem:[%s6776 + $0x74] sm:$0xf]
    %v6807 = vld [vmem:[%s6776 + $0x78] sm:$0xf]
    %v6808 = vld [vmem:[%s6776 + $0x7c] sm:$0xf]
    %v6809 = vld [vmem:[%s6776 + $0x80] sm:$0xf]
    %v6810 = vld [vmem:[%s6776 + $0x84] sm:$0xf]
    %v6811 = vld [vmem:[%s6776 + $0x88] sm:$0xf]
    %v6812 = vld [vmem:[%s6776 + $0x8c] sm:$0xf]
    %v6813 = vld [vmem:[%s6776 + $0x90] sm:$0xf]
    %v6814 = vld [vmem:[%s6776 + $0x94] sm:$0xf]
    %v6815 = vld [vmem:[%s6776 + $0x98] sm:$0xf]
    %v6816 = vld [vmem:[%s6776 + $0x9c] sm:$0xf]
    %v6817 = vld [vmem:[%s6776 + $0xa0] sm:$0xf]
    %v6818 = vld [vmem:[%s6776 + $0xa4] sm:$0xf]
    %v6819 = vld [vmem:[%s6776 + $0xa8] sm:$0xf]
    %v6820 = vld [vmem:[%s6776 + $0xac] sm:$0xf]
    %v6821 = vld [vmem:[%s6776 + $0xb0] sm:$0xf]
    %v6822 = vld [vmem:[%s6776 + $0xb4] sm:$0xf]
    %v6823 = vld [vmem:[%s6776 + $0xb8] sm:$0xf]
    %v6824 = vld [vmem:[%s6776 + $0xbc] sm:$0xf]
    %v6825 = vld [vmem:[%s6776 + $0xc0] sm:$0xf]
    %v6826 = vld [vmem:[%s6776 + $0xc4] sm:$0xf]
    %v6827 = vld [vmem:[%s6776 + $0xc8] sm:$0xf]
    %v6828 = vld [vmem:[%s6776 + $0xcc] sm:$0xf]
    %v6829 = vld [vmem:[%s6776 + $0xd0] sm:$0xf]
    %v6830 = vld [vmem:[%s6776 + $0xd4] sm:$0xf]
    %v6831 = vld [vmem:[%s6776 + $0xd8] sm:$0xf]
    %v6832 = vld [vmem:[%s6776 + $0xdc] sm:$0xf]
    %v6833 = vld [vmem:[%s6776 + $0xe0] sm:$0xf]
    %v6834 = vld [vmem:[%s6776 + $0xe4] sm:$0xf]
    %v6835 = vld [vmem:[%s6776 + $0xe8] sm:$0xf]
    %v6836 = vld [vmem:[%s6776 + $0xec] sm:$0xf]
    %v6837 = vld [vmem:[%s6776 + $0xf0] sm:$0xf]
    %v6838 = vld [vmem:[%s6776 + $0xf4] sm:$0xf]
    %v6839 = vld [vmem:[%s6776 + $0xf8] sm:$0xf]
    %v6840 = vld [vmem:[%s6776 + $0xfc] sm:$0xf]
    %v6905 = vunpack.c.l.b16 %v6777
    %v6906 = vunpack.c.l.b16 %v6778
    %v6907 = vunpack.c.l.b16 %v6779
    %v6908 = vunpack.c.l.b16 %v6780
    %v6909 = vunpack.c.l.b16 %v6781
    %v6910 = vunpack.c.l.b16 %v6782
    %v6911 = vunpack.c.l.b16 %v6783
    %v6912 = vunpack.c.l.b16 %v6784
    %v6913 = vunpack.c.l.b16 %v6785
    %v6914 = vunpack.c.l.b16 %v6786
    %v6915 = vunpack.c.l.b16 %v6787
    %v6916 = vunpack.c.l.b16 %v6788
    %v6917 = vunpack.c.l.b16 %v6789
    %v6918 = vunpack.c.l.b16 %v6790
    %v6919 = vunpack.c.l.b16 %v6791
    %v6920 = vunpack.c.l.b16 %v6792
    %v6921 = vunpack.c.l.b16 %v6793
    %v6922 = vunpack.c.l.b16 %v6794
    %v6923 = vunpack.c.l.b16 %v6795
    %v6924 = vunpack.c.l.b16 %v6796
    %v6925 = vunpack.c.l.b16 %v6797
    %v6926 = vunpack.c.l.b16 %v6798
    %v6927 = vunpack.c.l.b16 %v6799
    %v6928 = vunpack.c.l.b16 %v6800
    %v6929 = vunpack.c.l.b16 %v6801
    %v6930 = vunpack.c.l.b16 %v6802
    %v6931 = vunpack.c.l.b16 %v6803
    %v6932 = vunpack.c.l.b16 %v6804
    %v6933 = vunpack.c.l.b16 %v6805
    %v6934 = vunpack.c.l.b16 %v6806
    %v6935 = vunpack.c.l.b16 %v6807
    %v6936 = vunpack.c.l.b16 %v6808
    %v6937 = vunpack.c.l.b16 %v6809
    %v6938 = vunpack.c.l.b16 %v6810
    %v6939 = vunpack.c.l.b16 %v6811
    %v6940 = vunpack.c.l.b16 %v6812
    %v6941 = vunpack.c.l.b16 %v6813
    %v6942 = vunpack.c.l.b16 %v6814
    %v6943 = vunpack.c.l.b16 %v6815
    %v6944 = vunpack.c.l.b16 %v6816
    %v6945 = vunpack.c.l.b16 %v6817
    %v6946 = vunpack.c.l.b16 %v6818
    %v6947 = vunpack.c.l.b16 %v6819
    %v6948 = vunpack.c.l.b16 %v6820
    %v6949 = vunpack.c.l.b16 %v6821
    %v6950 = vunpack.c.l.b16 %v6822
    %v6951 = vunpack.c.l.b16 %v6823
    %v6952 = vunpack.c.l.b16 %v6824
    %v6953 = vunpack.c.l.b16 %v6825
    %v6954 = vunpack.c.l.b16 %v6826
    %v6955 = vunpack.c.l.b16 %v6827
    %v6956 = vunpack.c.l.b16 %v6828
    %v6957 = vunpack.c.l.b16 %v6829
    %v6958 = vunpack.c.l.b16 %v6830
    %v6959 = vunpack.c.l.b16 %v6831
    %v6960 = vunpack.c.l.b16 %v6832
    %v6961 = vunpack.c.l.b16 %v6833
    %v6962 = vunpack.c.l.b16 %v6834
    %v6963 = vunpack.c.l.b16 %v6835
    %v6964 = vunpack.c.l.b16 %v6836
    %v6965 = vunpack.c.l.b16 %v6837
    %v6966 = vunpack.c.l.b16 %v6838
    %v6967 = vunpack.c.l.b16 %v6839
    %v6968 = vunpack.c.l.b16 %v6840
    %v6969 = vpack.c.b16 %v6906, %v6905
    %v6970 = vpack.c.b16 %v6908, %v6907
    %v6971 = vpack.c.b16 %v6910, %v6909
    %v6972 = vpack.c.b16 %v6912, %v6911
    %v6973 = vpack.c.b16 %v6914, %v6913
    %v6974 = vpack.c.b16 %v6916, %v6915
    %v6975 = vpack.c.b16 %v6918, %v6917
    %v6976 = vpack.c.b16 %v6920, %v6919
    %v6977 = vpack.c.b16 %v6922, %v6921
    %v6978 = vpack.c.b16 %v6924, %v6923
    %v6979 = vpack.c.b16 %v6926, %v6925
    %v6980 = vpack.c.b16 %v6928, %v6927
    %v6981 = vpack.c.b16 %v6930, %v6929
    %v6982 = vpack.c.b16 %v6932, %v6931
    %v6983 = vpack.c.b16 %v6934, %v6933
    %v6984 = vpack.c.b16 %v6936, %v6935
    %v6985 = vpack.c.b16 %v6938, %v6937
    %v6986 = vpack.c.b16 %v6940, %v6939
    %v6987 = vpack.c.b16 %v6942, %v6941
    %v6988 = vpack.c.b16 %v6944, %v6943
    %v6989 = vpack.c.b16 %v6946, %v6945
    %v6990 = vpack.c.b16 %v6948, %v6947
    %v6991 = vpack.c.b16 %v6950, %v6949
    %v6992 = vpack.c.b16 %v6952, %v6951
    %v6993 = vpack.c.b16 %v6954, %v6953
    %v6994 = vpack.c.b16 %v6956, %v6955
    %v6995 = vpack.c.b16 %v6958, %v6957
    %v6996 = vpack.c.b16 %v6960, %v6959
    %v6997 = vpack.c.b16 %v6962, %v6961
    %v6998 = vpack.c.b16 %v6964, %v6963
    %v6999 = vpack.c.b16 %v6966, %v6965
    %v7000 = vpack.c.b16 %v6968, %v6967
    %7033 = vrot.lane.b32.xlu0 %v3743, 88
    %v7034 = vpop.permute.xlu0 %7033
    %7035 = vrot.lane.b32.xlu0 %v3744, 88
    %v7036 = vpop.permute.xlu0 %7035
    %7037 = vrot.lane.b32.xlu0 %v3745, 88
    %v7038 = vpop.permute.xlu0 %7037
    %7039 = vrot.lane.b32.xlu0 %v3746, 88
    %v7040 = vpop.permute.xlu0 %7039
    %7041 = vrot.lane.b32.xlu0 %v3747, 88
    %v7042 = vpop.permute.xlu0 %7041
    %7043 = vrot.lane.b32.xlu0 %v3748, 88
    %v7044 = vpop.permute.xlu0 %7043
    %7045 = vrot.lane.b32.xlu0 %v3749, 88
    %v7046 = vpop.permute.xlu0 %7045
    %7047 = vrot.lane.b32.xlu0 %v3750, 88
    %v7048 = vpop.permute.xlu0 %7047
    %7057 = vmatprep.subr.bf16.mxu0 0
    %7058 = vmatpush1.bf16.msra.mxu0 %v7034
    %7059 = vmatprep.subr.bf16.mxu0 0
    %7060 = vmatpush1.bf16.msra.mxu0 %v7036
    %7061 = vmatprep.subr.bf16.mxu0 0
    %7062 = vmatpush1.bf16.msra.mxu0 %v7038
    %7063 = vmatprep.subr.bf16.mxu0 0
    %7064 = vmatpush1.bf16.msra.mxu0 %v7040
    %7065 = vmatprep.subr.bf16.mxu0 0
    %7066 = vmatpush1.bf16.msra.mxu0 %v7042
    %7067 = vmatprep.subr.bf16.mxu0 0
    %7068 = vmatpush1.bf16.msra.mxu0 %v7044
    %7069 = vmatprep.subr.bf16.mxu0 0
    %7070 = vmatpush1.bf16.msra.mxu0 %v7046
    %7071 = vmatprep.subr.bf16.mxu0 0
    %7072 = vmatpush1.bf16.msra.mxu0 %v7048
    %7073 = vmatprep.subr.bf16.mxu0 0
    %7074 = vmatpush1.bf16.msra.mxu0 0
    %7075 = vmatprep.subr.bf16.mxu0 0
    %7076 = vmatpush1.bf16.msra.mxu0 0
    %7077 = vmatprep.subr.bf16.mxu0 0
    %7078 = vmatpush1.bf16.msra.mxu0 0
    %7079 = vmatprep.subr.bf16.mxu0 0
    %7080 = vmatpush1.bf16.msra.mxu0 0
    %7081 = vmatprep.subr.bf16.mxu0 0
    %7082 = vmatpush1.bf16.msra.mxu0 0
    %7083 = vmatprep.subr.bf16.mxu0 0
    %7084 = vmatpush1.bf16.msra.mxu0 0
    %7085 = vmatprep.subr.bf16.mxu0 0
    %7086 = vmatpush1.bf16.msra.mxu0 0
    %7087 = vmatprep.subr.bf16.mxu0 0
    %7088 = vmatpush1.bf16.msra.mxu0 0
    %7089 = vmatprep.mubr.bf16.mxu0 0
    %7090 = vmatmul.mubr.bf16.gmra.mrb[0].mxu0 %v6969
    %v7091 = vpop.f32.mrb[0].mxu0
    %v7092 = vadd.f32 0.0, %v7091
    %v7093 = vpop.f32.mrb[0].mxu0
    %v7094 = vpop.f32.mrb[0].mxu0
    %v7095 = vadd.f32 0.0, %v7094
    %v7096 = vpop.f32.mrb[0].mxu0
    %7097 = vmatprep.mubr.bf16.mxu0 0
    %7098 = vmatmul.mubr.bf16.gmra.mrb[0].mxu0 %v6970
    %v7099 = vpop.f32.mrb[0].mxu0
    %v7100 = vadd.f32 0.0, %v7099
    %v7101 = vpop.f32.mrb[0].mxu0
    %v7102 = vpop.f32.mrb[0].mxu0
    %v7103 = vadd.f32 0.0, %v7102
    %v7104 = vpop.f32.mrb[0].mxu0
    %7105 = vmatprep.mubr.bf16.mxu0 0
    %7106 = vmatmul.mubr.bf16.gmra.mrb[0].mxu0 %v6971
    %v7107 = vpop.f32.mrb[0].mxu0
    %v7108 = vadd.f32 0.0, %v7107
    %v7109 = vpop.f32.mrb[0].mxu0
    %v7110 = vpop.f32.mrb[0].mxu0
    %v7111 = vadd.f32 0.0, %v7110
    %v7112 = vpop.f32.mrb[0].mxu0
    %7113 = vmatprep.mubr.bf16.mxu0 0
    %7114 = vmatmul.mubr.bf16.gmra.mrb[0].mxu0 %v6972
    %v7115 = vpop.f32.mrb[0].mxu0
    %v7116 = vadd.f32 0.0, %v7115
    %v7117 = vpop.f32.mrb[0].mxu0
    %v7118 = vpop.f32.mrb[0].mxu0
    %v7119 = vadd.f32 0.0, %v7118
    %v7120 = vpop.f32.mrb[0].mxu0
    %7121 = vmatprep.mubr.bf16.mxu0 0
    %7122 = vmatmul.mubr.bf16.gmra.mrb[0].mxu0 %v6973
    %v7123 = vpop.f32.mrb[0].mxu0
    %v7124 = vadd.f32 0.0, %v7123
    %v7125 = vpop.f32.mrb[0].mxu0
    %v7126 = vpop.f32.mrb[0].mxu0
    %v7127 = vadd.f32 0.0, %v7126
    %v7128 = vpop.f32.mrb[0].mxu0
    %7129 = vmatprep.mubr.bf16.mxu0 0
    %7130 = vmatmul.mubr.bf16.gmra.mrb[0].mxu0 %v6974
    %v7131 = vpop.f32.mrb[0].mxu0
    %v7132 = vadd.f32 0.0, %v7131
    %v7133 = vpop.f32.mrb[0].mxu0
    %v7134 = vpop.f32.mrb[0].mxu0
    %v7135 = vadd.f32 0.0, %v7134
    %v7136 = vpop.f32.mrb[0].mxu0
    %7137 = vmatprep.mubr.bf16.mxu0 0
    %7138 = vmatmul.mubr.bf16.gmra.mrb[0].mxu0 %v6975
    %v7139 = vpop.f32.mrb[0].mxu0
    %v7140 = vadd.f32 0.0, %v7139
    %v7141 = vpop.f32.mrb[0].mxu0
    %v7142 = vpop.f32.mrb[0].mxu0
    %v7143 = vadd.f32 0.0, %v7142
    %v7144 = vpop.f32.mrb[0].mxu0
    %7145 = vmatprep.mubr.bf16.mxu0 0
    %7146 = vmatmul.mubr.bf16.gmra.mrb[0].mxu0 %v6976
    %v7147 = vpop.f32.mrb[0].mxu0
    %v7148 = vadd.f32 0.0, %v7147
    %v7149 = vpop.f32.mrb[0].mxu0
    %v7150 = vpop.f32.mrb[0].mxu0
    %v7151 = vadd.f32 0.0, %v7150
    %v7152 = vpop.f32.mrb[0].mxu0
    %7153 = vmatprep.mubr.bf16.mxu0 0
    %7154 = vmatmul.mubr.bf16.gmra.mrb[0].mxu0 %v6977
    %v7155 = vpop.f32.mrb[0].mxu0
    %v7156 = vadd.f32 0.0, %v7155
    %v7157 = vpop.f32.mrb[0].mxu0
    %v7158 = vpop.f32.mrb[0].mxu0
    %v7159 = vadd.f32 0.0, %v7158
    %v7160 = vpop.f32.mrb[0].mxu0
    %7161 = vmatprep.mubr.bf16.mxu0 0
    %7162 = vmatmul.mubr.bf16.gmra.mrb[0].mxu0 %v6978
    %v7163 = vpop.f32.mrb[0].mxu0
    %v7164 = vadd.f32 0.0, %v7163
    %v7165 = vpop.f32.mrb[0].mxu0
    %v7166 = vpop.f32.mrb[0].mxu0
    %v7167 = vadd.f32 0.0, %v7166
    %v7168 = vpop.f32.mrb[0].mxu0
    %7169 = vmatprep.mubr.bf16.mxu0 0
    %7170 = vmatmul.mubr.bf16.gmra.mrb[0].mxu0 %v6979
    %v7171 = vpop.f32.mrb[0].mxu0
    %v7172 = vadd.f32 0.0, %v7171
    %v7173 = vpop.f32.mrb[0].mxu0
    %v7174 = vpop.f32.mrb[0].mxu0
    %v7175 = vadd.f32 0.0, %v7174
    %v7176 = vpop.f32.mrb[0].mxu0
    %7177 = vmatprep.mubr.bf16.mxu0 0
    %7178 = vmatmul.mubr.bf16.gmra.mrb[0].mxu0 %v6980
    %v7179 = vpop.f32.mrb[0].mxu0
    %v7180 = vadd.f32 0.0, %v7179
    %v7181 = vpop.f32.mrb[0].mxu0
    %v7182 = vpop.f32.mrb[0].mxu0
    %v7183 = vadd.f32 0.0, %v7182
    %v7184 = vpop.f32.mrb[0].mxu0
    %7185 = vmatprep.mubr.bf16.mxu0 0
    %7186 = vmatmul.mubr.bf16.gmra.mrb[0].mxu0 %v6981
    %v7187 = vpop.f32.mrb[0].mxu0
    %v7188 = vadd.f32 0.0, %v7187
    %v7189 = vpop.f32.mrb[0].mxu0
    %v7190 = vpop.f32.mrb[0].mxu0
    %v7191 = vadd.f32 0.0, %v7190
    %v7192 = vpop.f32.mrb[0].mxu0
    %7193 = vmatprep.mubr.bf16.mxu0 0
    %7194 = vmatmul.mubr.bf16.gmra.mrb[0].mxu0 %v6982
    %v7195 = vpop.f32.mrb[0].mxu0
    %v7196 = vadd.f32 0.0, %v7195
    %v7197 = vpop.f32.mrb[0].mxu0
    %v7198 = vpop.f32.mrb[0].mxu0
    %v7199 = vadd.f32 0.0, %v7198
    %v7200 = vpop.f32.mrb[0].mxu0
    %7201 = vmatprep.mubr.bf16.mxu0 0
    %7202 = vmatmul.mubr.bf16.gmra.mrb[0].mxu0 %v6983
    %v7203 = vpop.f32.mrb[0].mxu0
    %v7204 = vadd.f32 0.0, %v7203
    %v7205 = vpop.f32.mrb[0].mxu0
    %v7206 = vpop.f32.mrb[0].mxu0
    %v7207 = vadd.f32 0.0, %v7206
    %v7208 = vpop.f32.mrb[0].mxu0
    %7209 = vmatprep.mubr.bf16.mxu0 0
    %7210 = vmatmul.mubr.bf16.gmra.mrb[0].mxu0 %v6984
    %v7211 = vpop.f32.mrb[0].mxu0
    %v7212 = vadd.f32 0.0, %v7211
    %v7213 = vpop.f32.mrb[0].mxu0
    %v7214 = vpop.f32.mrb[0].mxu0
    %v7215 = vadd.f32 0.0, %v7214
    %v7216 = vpop.f32.mrb[0].mxu0
    %7217 = vmatprep.mubr.bf16.mxu0 0
    %7218 = vmatmul.mubr.bf16.gmra.mrb[0].mxu0 %v6985
    %v7219 = vpop.f32.mrb[0].mxu0
    %v7220 = vadd.f32 0.0, %v7219
    %v7221 = vpop.f32.mrb[0].mxu0
    %v7222 = vpop.f32.mrb[0].mxu0
    %v7223 = vadd.f32 0.0, %v7222
    %v7224 = vpop.f32.mrb[0].mxu0
    %7225 = vmatprep.mubr.bf16.mxu0 0
    %7226 = vmatmul.mubr.bf16.gmra.mrb[0].mxu0 %v6986
    %v7227 = vpop.f32.mrb[0].mxu0
    %v7228 = vadd.f32 0.0, %v7227
    %v7229 = vpop.f32.mrb[0].mxu0
    %v7230 = vpop.f32.mrb[0].mxu0
    %v7231 = vadd.f32 0.0, %v7230
    %v7232 = vpop.f32.mrb[0].mxu0
    %7233 = vmatprep.mubr.bf16.mxu0 0
    %7234 = vmatmul.mubr.bf16.gmra.mrb[0].mxu0 %v6987
    %v7235 = vpop.f32.mrb[0].mxu0
    %v7236 = vadd.f32 0.0, %v7235
    %v7237 = vpop.f32.mrb[0].mxu0
    %v7238 = vpop.f32.mrb[0].mxu0
    %v7239 = vadd.f32 0.0, %v7238
    %v7240 = vpop.f32.mrb[0].mxu0
    %7241 = vmatprep.mubr.bf16.mxu0 0
    %7242 = vmatmul.mubr.bf16.gmra.mrb[0].mxu0 %v6988
    %v7243 = vpop.f32.mrb[0].mxu0
    %v7244 = vadd.f32 0.0, %v7243
    %v7245 = vpop.f32.mrb[0].mxu0
    %v7246 = vpop.f32.mrb[0].mxu0
    %v7247 = vadd.f32 0.0, %v7246
    %v7248 = vpop.f32.mrb[0].mxu0
    %7249 = vmatprep.mubr.bf16.mxu0 0
    %7250 = vmatmul.mubr.bf16.gmra.mrb[0].mxu0 %v6989
    %v7251 = vpop.f32.mrb[0].mxu0
    %v7252 = vadd.f32 0.0, %v7251
    %v7253 = vpop.f32.mrb[0].mxu0
    %v7254 = vpop.f32.mrb[0].mxu0
    %v7255 = vadd.f32 0.0, %v7254
    %v7256 = vpop.f32.mrb[0].mxu0
    %7257 = vmatprep.mubr.bf16.mxu0 0
    %7258 = vmatmul.mubr.bf16.gmra.mrb[0].mxu0 %v6990
    %v7259 = vpop.f32.mrb[0].mxu0
    %v7260 = vadd.f32 0.0, %v7259
    %v7261 = vpop.f32.mrb[0].mxu0
    %v7262 = vpop.f32.mrb[0].mxu0
    %v7263 = vadd.f32 0.0, %v7262
    %v7264 = vpop.f32.mrb[0].mxu0
    %7265 = vmatprep.mubr.bf16.mxu0 0
    %7266 = vmatmul.mubr.bf16.gmra.mrb[0].mxu0 %v6991
    %v7267 = vpop.f32.mrb[0].mxu0
    %v7268 = vadd.f32 0.0, %v7267
    %v7269 = vpop.f32.mrb[0].mxu0
    %v7270 = vpop.f32.mrb[0].mxu0
    %v7271 = vadd.f32 0.0, %v7270
    %v7272 = vpop.f32.mrb[0].mxu0
    %7273 = vmatprep.mubr.bf16.mxu0 0
    %7274 = vmatmul.mubr.bf16.gmra.mrb[0].mxu0 %v6992
    %v7275 = vpop.f32.mrb[0].mxu0
    %v7276 = vadd.f32 0.0, %v7275
    %v7277 = vpop.f32.mrb[0].mxu0
    %v7278 = vpop.f32.mrb[0].mxu0
    %v7279 = vadd.f32 0.0, %v7278
    %v7280 = vpop.f32.mrb[0].mxu0
    %7281 = vmatprep.mubr.bf16.mxu0 0
    %7282 = vmatmul.mubr.bf16.gmra.mrb[0].mxu0 %v6993
    %v7283 = vpop.f32.mrb[0].mxu0
    %v7284 = vadd.f32 0.0, %v7283
    %v7285 = vpop.f32.mrb[0].mxu0
    %v7286 = vpop.f32.mrb[0].mxu0
    %v7287 = vadd.f32 0.0, %v7286
    %v7288 = vpop.f32.mrb[0].mxu0
    %7289 = vmatprep.mubr.bf16.mxu0 0
    %7290 = vmatmul.mubr.bf16.gmra.mrb[0].mxu0 %v6994
    %v7291 = vpop.f32.mrb[0].mxu0
    %v7292 = vadd.f32 0.0, %v7291
    %v7293 = vpop.f32.mrb[0].mxu0
    %v7294 = vpop.f32.mrb[0].mxu0
    %v7295 = vadd.f32 0.0, %v7294
    %v7296 = vpop.f32.mrb[0].mxu0
    %7297 = vmatprep.mubr.bf16.mxu0 0
    %7298 = vmatmul.mubr.bf16.gmra.mrb[0].mxu0 %v6995
    %v7299 = vpop.f32.mrb[0].mxu0
    %v7300 = vadd.f32 0.0, %v7299
    %v7301 = vpop.f32.mrb[0].mxu0
    %v7302 = vpop.f32.mrb[0].mxu0
    %v7303 = vadd.f32 0.0, %v7302
    %v7304 = vpop.f32.mrb[0].mxu0
    %7305 = vmatprep.mubr.bf16.mxu0 0
    %7306 = vmatmul.mubr.bf16.gmra.mrb[0].mxu0 %v6996
    %v7307 = vpop.f32.mrb[0].mxu0
    %v7308 = vadd.f32 0.0, %v7307
    %v7309 = vpop.f32.mrb[0].mxu0
    %v7310 = vpop.f32.mrb[0].mxu0
    %v7311 = vadd.f32 0.0, %v7310
    %v7312 = vpop.f32.mrb[0].mxu0
    %7313 = vmatprep.mubr.bf16.mxu0 0
    %7314 = vmatmul.mubr.bf16.gmra.mrb[0].mxu0 %v6997
    %v7315 = vpop.f32.mrb[0].mxu0
    %v7316 = vadd.f32 0.0, %v7315
    %v7317 = vpop.f32.mrb[0].mxu0
    %v7318 = vpop.f32.mrb[0].mxu0
    %v7319 = vadd.f32 0.0, %v7318
    %v7320 = vpop.f32.mrb[0].mxu0
    %7321 = vmatprep.mubr.bf16.mxu0 0
    %7322 = vmatmul.mubr.bf16.gmra.mrb[0].mxu0 %v6998
    %v7323 = vpop.f32.mrb[0].mxu0
    %v7324 = vadd.f32 0.0, %v7323
    %v7325 = vpop.f32.mrb[0].mxu0
    %v7326 = vpop.f32.mrb[0].mxu0
    %v7327 = vadd.f32 0.0, %v7326
    %v7328 = vpop.f32.mrb[0].mxu0
    %7329 = vmatprep.mubr.bf16.mxu0 0
    %7330 = vmatmul.mubr.bf16.gmra.mrb[0].mxu0 %v6999
    %v7331 = vpop.f32.mrb[0].mxu0
    %v7332 = vadd.f32 0.0, %v7331
    %v7333 = vpop.f32.mrb[0].mxu0
    %v7334 = vpop.f32.mrb[0].mxu0
    %v7335 = vadd.f32 0.0, %v7334
    %v7336 = vpop.f32.mrb[0].mxu0
    %7337 = vmatprep.mubr.bf16.mxu0 0
    %7338 = vmatmul.mubr.bf16.gmra.mrb[0].mxu0 %v7000
    %v7339 = vpop.f32.mrb[0].mxu0
    %v7340 = vadd.f32 0.0, %v7339
    %v7341 = vpop.f32.mrb[0].mxu0
    %v7342 = vpop.f32.mrb[0].mxu0
    %v7343 = vadd.f32 0.0, %v7342
    %v7344 = vpop.f32.mrb[0].mxu0
    %7345 = vdwg.mxu0
    %v7346 = vadd.f32 %v6712, %v7092
    %v7347 = vadd.f32 %v6713, %v7095
    %v7348 = vadd.f32 %v6714, %v7100
    %v7349 = vadd.f32 %v6715, %v7103
    %v7350 = vadd.f32 %v6716, %v7108
    %v7351 = vadd.f32 %v6717, %v7111
    %v7352 = vadd.f32 %v6718, %v7116
    %v7353 = vadd.f32 %v6719, %v7119
    %v7354 = vadd.f32 %v6720, %v7124
    %v7355 = vadd.f32 %v6721, %v7127
    %v7356 = vadd.f32 %v6722, %v7132
    %v7357 = vadd.f32 %v6723, %v7135
    %v7358 = vadd.f32 %v6724, %v7140
    %v7359 = vadd.f32 %v6725, %v7143
    %v7360 = vadd.f32 %v6726, %v7148
    %v7361 = vadd.f32 %v6727, %v7151
    %v7362 = vadd.f32 %v6728, %v7156
    %v7363 = vadd.f32 %v6729, %v7159
    %v7364 = vadd.f32 %v6730, %v7164
    %v7365 = vadd.f32 %v6731, %v7167
    %v7366 = vadd.f32 %v6732, %v7172
    %v7367 = vadd.f32 %v6733, %v7175
    %v7368 = vadd.f32 %v6734, %v7180
    %v7369 = vadd.f32 %v6735, %v7183
    %v7370 = vadd.f32 %v6736, %v7188
    %v7371 = vadd.f32 %v6737, %v7191
    %v7372 = vadd.f32 %v6738, %v7196
    %v7373 = vadd.f32 %v6739, %v7199
    %v7374 = vadd.f32 %v6740, %v7204
    %v7375 = vadd.f32 %v6741, %v7207
    %v7376 = vadd.f32 %v6742, %v7212
    %v7377 = vadd.f32 %v6743, %v7215
    %v7378 = vadd.f32 %v6744, %v7220
    %v7379 = vadd.f32 %v6745, %v7223
    %v7380 = vadd.f32 %v6746, %v7228
    %v7381 = vadd.f32 %v6747, %v7231
    %v7382 = vadd.f32 %v6748, %v7236
    %v7383 = vadd.f32 %v6749, %v7239
    %v7384 = vadd.f32 %v6750, %v7244
    %v7385 = vadd.f32 %v6751, %v7247
    %v7386 = vadd.f32 %v6752, %v7252
    %v7387 = vadd.f32 %v6753, %v7255
    %v7388 = vadd.f32 %v6754, %v7260
    %v7389 = vadd.f32 %v6755, %v7263
    %v7390 = vadd.f32 %v6756, %v7268
    %v7391 = vadd.f32 %v6757, %v7271
    %v7392 = vadd.f32 %v6758, %v7276
    %v7393 = vadd.f32 %v6759, %v7279
    %v7394 = vadd.f32 %v6760, %v7284
    %v7395 = vadd.f32 %v6761, %v7287
    %v7396 = vadd.f32 %v6762, %v7292
    %v7397 = vadd.f32 %v6763, %v7295
    %v7398 = vadd.f32 %v6764, %v7300
    %v7399 = vadd.f32 %v6765, %v7303
    %v7400 = vadd.f32 %v6766, %v7308
    %v7401 = vadd.f32 %v6767, %v7311
    %v7402 = vadd.f32 %v6768, %v7316
    %v7403 = vadd.f32 %v6769, %v7319
    %v7404 = vadd.f32 %v6770, %v7324
    %v7405 = vadd.f32 %v6771, %v7327
    %v7406 = vadd.f32 %v6772, %v7332
    %v7407 = vadd.f32 %v6773, %v7335
    %v7408 = vadd.f32 %v6774, %v7340
    %v7409 = vadd.f32 %v6775, %v7343
    %s7410 = scalar_lea.vmem [#allocation8], 1536
    %v7411 = vld [vmem:[%s7410] sm:$0xf]
    %v7412 = vld [vmem:[%s7410 + $0x4] sm:$0xf]
    %v7413 = vld [vmem:[%s7410 + $0x8] sm:$0xf]
    %v7414 = vld [vmem:[%s7410 + $0xc] sm:$0xf]
    %v7415 = vld [vmem:[%s7410 + $0x10] sm:$0xf]
    %v7416 = vld [vmem:[%s7410 + $0x14] sm:$0xf]
    %v7417 = vld [vmem:[%s7410 + $0x18] sm:$0xf]
    %v7418 = vld [vmem:[%s7410 + $0x1c] sm:$0xf]
    %v7419 = vld [vmem:[%s7410 + $0x20] sm:$0xf]
    %v7420 = vld [vmem:[%s7410 + $0x24] sm:$0xf]
    %v7421 = vld [vmem:[%s7410 + $0x28] sm:$0xf]
    %v7422 = vld [vmem:[%s7410 + $0x2c] sm:$0xf]
    %v7423 = vld [vmem:[%s7410 + $0x30] sm:$0xf]
    %v7424 = vld [vmem:[%s7410 + $0x34] sm:$0xf]
    %v7425 = vld [vmem:[%s7410 + $0x38] sm:$0xf]
    %v7426 = vld [vmem:[%s7410 + $0x3c] sm:$0xf]
    %v7427 = vld [vmem:[%s7410 + $0x40] sm:$0xf]
    %v7428 = vld [vmem:[%s7410 + $0x44] sm:$0xf]
    %v7429 = vld [vmem:[%s7410 + $0x48] sm:$0xf]
    %v7430 = vld [vmem:[%s7410 + $0x4c] sm:$0xf]
    %v7431 = vld [vmem:[%s7410 + $0x50] sm:$0xf]
    %v7432 = vld [vmem:[%s7410 + $0x54] sm:$0xf]
    %v7433 = vld [vmem:[%s7410 + $0x58] sm:$0xf]
    %v7434 = vld [vmem:[%s7410 + $0x5c] sm:$0xf]
    %v7435 = vld [vmem:[%s7410 + $0x60] sm:$0xf]
    %v7436 = vld [vmem:[%s7410 + $0x64] sm:$0xf]
    %v7437 = vld [vmem:[%s7410 + $0x68] sm:$0xf]
    %v7438 = vld [vmem:[%s7410 + $0x6c] sm:$0xf]
    %v7439 = vld [vmem:[%s7410 + $0x70] sm:$0xf]
    %v7440 = vld [vmem:[%s7410 + $0x74] sm:$0xf]
    %v7441 = vld [vmem:[%s7410 + $0x78] sm:$0xf]
    %v7442 = vld [vmem:[%s7410 + $0x7c] sm:$0xf]
    %v7443 = vld [vmem:[%s7410 + $0x80] sm:$0xf]
    %v7444 = vld [vmem:[%s7410 + $0x84] sm:$0xf]
    %v7445 = vld [vmem:[%s7410 + $0x88] sm:$0xf]
    %v7446 = vld [vmem:[%s7410 + $0x8c] sm:$0xf]
    %v7447 = vld [vmem:[%s7410 + $0x90] sm:$0xf]
    %v7448 = vld [vmem:[%s7410 + $0x94] sm:$0xf]
    %v7449 = vld [vmem:[%s7410 + $0x98] sm:$0xf]
    %v7450 = vld [vmem:[%s7410 + $0x9c] sm:$0xf]
    %v7451 = vld [vmem:[%s7410 + $0xa0] sm:$0xf]
    %v7452 = vld [vmem:[%s7410 + $0xa4] sm:$0xf]
    %v7453 = vld [vmem:[%s7410 + $0xa8] sm:$0xf]
    %v7454 = vld [vmem:[%s7410 + $0xac] sm:$0xf]
    %v7455 = vld [vmem:[%s7410 + $0xb0] sm:$0xf]
    %v7456 = vld [vmem:[%s7410 + $0xb4] sm:$0xf]
    %v7457 = vld [vmem:[%s7410 + $0xb8] sm:$0xf]
    %v7458 = vld [vmem:[%s7410 + $0xbc] sm:$0xf]
    %v7459 = vld [vmem:[%s7410 + $0xc0] sm:$0xf]
    %v7460 = vld [vmem:[%s7410 + $0xc4] sm:$0xf]
    %v7461 = vld [vmem:[%s7410 + $0xc8] sm:$0xf]
    %v7462 = vld [vmem:[%s7410 + $0xcc] sm:$0xf]
    %v7463 = vld [vmem:[%s7410 + $0xd0] sm:$0xf]
    %v7464 = vld [vmem:[%s7410 + $0xd4] sm:$0xf]
    %v7465 = vld [vmem:[%s7410 + $0xd8] sm:$0xf]
    %v7466 = vld [vmem:[%s7410 + $0xdc] sm:$0xf]
    %v7467 = vld [vmem:[%s7410 + $0xe0] sm:$0xf]
    %v7468 = vld [vmem:[%s7410 + $0xe4] sm:$0xf]
    %v7469 = vld [vmem:[%s7410 + $0xe8] sm:$0xf]
    %v7470 = vld [vmem:[%s7410 + $0xec] sm:$0xf]
    %v7471 = vld [vmem:[%s7410 + $0xf0] sm:$0xf]
    %v7472 = vld [vmem:[%s7410 + $0xf4] sm:$0xf]
    %v7473 = vld [vmem:[%s7410 + $0xf8] sm:$0xf]
    %v7474 = vld [vmem:[%s7410 + $0xfc] sm:$0xf]
    %v7539 = vunpack.c.l.b16 %v7411
    %v7540 = vunpack.c.l.b16 %v7412
    %v7541 = vunpack.c.l.b16 %v7413
    %v7542 = vunpack.c.l.b16 %v7414
    %v7543 = vunpack.c.l.b16 %v7415
    %v7544 = vunpack.c.l.b16 %v7416
    %v7545 = vunpack.c.l.b16 %v7417
    %v7546 = vunpack.c.l.b16 %v7418
    %v7547 = vunpack.c.l.b16 %v7419
    %v7548 = vunpack.c.l.b16 %v7420
    %v7549 = vunpack.c.l.b16 %v7421
    %v7550 = vunpack.c.l.b16 %v7422
    %v7551 = vunpack.c.l.b16 %v7423
    %v7552 = vunpack.c.l.b16 %v7424
    %v7553 = vunpack.c.l.b16 %v7425
    %v7554 = vunpack.c.l.b16 %v7426
    %v7555 = vunpack.c.l.b16 %v7427
    %v7556 = vunpack.c.l.b16 %v7428
    %v7557 = vunpack.c.l.b16 %v7429
    %v7558 = vunpack.c.l.b16 %v7430
    %v7559 = vunpack.c.l.b16 %v7431
    %v7560 = vunpack.c.l.b16 %v7432
    %v7561 = vunpack.c.l.b16 %v7433
    %v7562 = vunpack.c.l.b16 %v7434
    %v7563 = vunpack.c.l.b16 %v7435
    %v7564 = vunpack.c.l.b16 %v7436
    %v7565 = vunpack.c.l.b16 %v7437
    %v7566 = vunpack.c.l.b16 %v7438
    %v7567 = vunpack.c.l.b16 %v7439
    %v7568 = vunpack.c.l.b16 %v7440
    %v7569 = vunpack.c.l.b16 %v7441
    %v7570 = vunpack.c.l.b16 %v7442
    %v7571 = vunpack.c.l.b16 %v7443
    %v7572 = vunpack.c.l.b16 %v7444
    %v7573 = vunpack.c.l.b16 %v7445
    %v7574 = vunpack.c.l.b16 %v7446
    %v7575 = vunpack.c.l.b16 %v7447
    %v7576 = vunpack.c.l.b16 %v7448
    %v7577 = vunpack.c.l.b16 %v7449
    %v7578 = vunpack.c.l.b16 %v7450
    %v7579 = vunpack.c.l.b16 %v7451
    %v7580 = vunpack.c.l.b16 %v7452
    %v7581 = vunpack.c.l.b16 %v7453
    %v7582 = vunpack.c.l.b16 %v7454
    %v7583 = vunpack.c.l.b16 %v7455
    %v7584 = vunpack.c.l.b16 %v7456
    %v7585 = vunpack.c.l.b16 %v7457
    %v7586 = vunpack.c.l.b16 %v7458
    %v7587 = vunpack.c.l.b16 %v7459
    %v7588 = vunpack.c.l.b16 %v7460
    %v7589 = vunpack.c.l.b16 %v7461
    %v7590 = vunpack.c.l.b16 %v7462
    %v7591 = vunpack.c.l.b16 %v7463
    %v7592 = vunpack.c.l.b16 %v7464
    %v7593 = vunpack.c.l.b16 %v7465
    %v7594 = vunpack.c.l.b16 %v7466
    %v7595 = vunpack.c.l.b16 %v7467
    %v7596 = vunpack.c.l.b16 %v7468
    %v7597 = vunpack.c.l.b16 %v7469
    %v7598 = vunpack.c.l.b16 %v7470
    %v7599 = vunpack.c.l.b16 %v7471
    %v7600 = vunpack.c.l.b16 %v7472
    %v7601 = vunpack.c.l.b16 %v7473
    %v7602 = vunpack.c.l.b16 %v7474
    %v7603 = vpack.c.b16 %v7540, %v7539
    %v7604 = vpack.c.b16 %v7542, %v7541
    %v7605 = vpack.c.b16 %v7544, %v7543
    %v7606 = vpack.c.b16 %v7546, %v7545
    %v7607 = vpack.c.b16 %v7548, %v7547
    %v7608 = vpack.c.b16 %v7550, %v7549
    %v7609 = vpack.c.b16 %v7552, %v7551
    %v7610 = vpack.c.b16 %v7554, %v7553
    %v7611 = vpack.c.b16 %v7556, %v7555
    %v7612 = vpack.c.b16 %v7558, %v7557
    %v7613 = vpack.c.b16 %v7560, %v7559
    %v7614 = vpack.c.b16 %v7562, %v7561
    %v7615 = vpack.c.b16 %v7564, %v7563
    %v7616 = vpack.c.b16 %v7566, %v7565
    %v7617 = vpack.c.b16 %v7568, %v7567
    %v7618 = vpack.c.b16 %v7570, %v7569
    %v7619 = vpack.c.b16 %v7572, %v7571
    %v7620 = vpack.c.b16 %v7574, %v7573
    %v7621 = vpack.c.b16 %v7576, %v7575
    %v7622 = vpack.c.b16 %v7578, %v7577
    %v7623 = vpack.c.b16 %v7580, %v7579
    %v7624 = vpack.c.b16 %v7582, %v7581
    %v7625 = vpack.c.b16 %v7584, %v7583
    %v7626 = vpack.c.b16 %v7586, %v7585
    %v7627 = vpack.c.b16 %v7588, %v7587
    %v7628 = vpack.c.b16 %v7590, %v7589
    %v7629 = vpack.c.b16 %v7592, %v7591
    %v7630 = vpack.c.b16 %v7594, %v7593
    %v7631 = vpack.c.b16 %v7596, %v7595
    %v7632 = vpack.c.b16 %v7598, %v7597
    %v7633 = vpack.c.b16 %v7600, %v7599
    %v7634 = vpack.c.b16 %v7602, %v7601
    %7667 = vrot.lane.b32.xlu0 %v3743, 80
    %v7668 = vpop.permute.xlu0 %7667
    %7669 = vrot.lane.b32.xlu0 %v3744, 80
    %v7670 = vpop.permute.xlu0 %7669
    %7671 = vrot.lane.b32.xlu0 %v3745, 80
    %v7672 = vpop.permute.xlu0 %7671
    %7673 = vrot.lane.b32.xlu0 %v3746, 80
    %v7674 = vpop.permute.xlu0 %7673
    %7675 = vrot.lane.b32.xlu0 %v3747, 80
    %v7676 = vpop.permute.xlu0 %7675
    %7677 = vrot.lane.b32.xlu0 %v3748, 80
    %v7678 = vpop.permute.xlu0 %7677
    %7679 = vrot.lane.b32.xlu0 %v3749, 80
    %v7680 = vpop.permute.xlu0 %7679
    %7681 = vrot.lane.b32.xlu0 %v3750, 80
    %v7682 = vpop.permute.xlu0 %7681
    %7691 = vmatprep.subr.bf16.mxu0 0
    %7692 = vmatpush1.bf16.msra.mxu0 %v7668
    %7693 = vmatprep.subr.bf16.mxu0 0
    %7694 = vmatpush1.bf16.msra.mxu0 %v7670
    %7695 = vmatprep.subr.bf16.mxu0 0
    %7696 = vmatpush1.bf16.msra.mxu0 %v7672
    %7697 = vmatprep.subr.bf16.mxu0 0
    %7698 = vmatpush1.bf16.msra.mxu0 %v7674
    %7699 = vmatprep.subr.bf16.mxu0 0
    %7700 = vmatpush1.bf16.msra.mxu0 %v7676
    %7701 = vmatprep.subr.bf16.mxu0 0
    %7702 = vmatpush1.bf16.msra.mxu0 %v7678
    %7703 = vmatprep.subr.bf16.mxu0 0
    %7704 = vmatpush1.bf16.msra.mxu0 %v7680
    %7705 = vmatprep.subr.bf16.mxu0 0
    %7706 = vmatpush1.bf16.msra.mxu0 %v7682
    %7707 = vmatprep.subr.bf16.mxu0 0
    %7708 = vmatpush1.bf16.msra.mxu0 0
    %7709 = vmatprep.subr.bf16.mxu0 0
    %7710 = vmatpush1.bf16.msra.mxu0 0
    %7711 = vmatprep.subr.bf16.mxu0 0
    %7712 = vmatpush1.bf16.msra.mxu0 0
    %7713 = vmatprep.subr.bf16.mxu0 0
    %7714 = vmatpush1.bf16.msra.mxu0 0
    %7715 = vmatprep.subr.bf16.mxu0 0
    %7716 = vmatpush1.bf16.msra.mxu0 0
    %7717 = vmatprep.subr.bf16.mxu0 0
    %7718 = vmatpush1.bf16.msra.mxu0 0
    %7719 = vmatprep.subr.bf16.mxu0 0
    %7720 = vmatpush1.bf16.msra.mxu0 0
    %7721 = vmatprep.subr.bf16.mxu0 0
    %7722 = vmatpush1.bf16.msra.mxu0 0
    %7723 = vmatprep.mubr.bf16.mxu0 0
    %7724 = vmatmul.mubr.bf16.gmra.mrb[0].mxu0 %v7603
    %v7725 = vpop.f32.mrb[0].mxu0
    %v7726 = vadd.f32 0.0, %v7725
    %v7727 = vpop.f32.mrb[0].mxu0
    %v7728 = vpop.f32.mrb[0].mxu0
    %v7729 = vadd.f32 0.0, %v7728
    %v7730 = vpop.f32.mrb[0].mxu0
    %7731 = vmatprep.mubr.bf16.mxu0 0
    %7732 = vmatmul.mubr.bf16.gmra.mrb[0].mxu0 %v7604
    %v7733 = vpop.f32.mrb[0].mxu0
    %v7734 = vadd.f32 0.0, %v7733
    %v7735 = vpop.f32.mrb[0].mxu0
    %v7736 = vpop.f32.mrb[0].mxu0
    %v7737 = vadd.f32 0.0, %v7736
    %v7738 = vpop.f32.mrb[0].mxu0
    %7739 = vmatprep.mubr.bf16.mxu0 0
    %7740 = vmatmul.mubr.bf16.gmra.mrb[0].mxu0 %v7605
    %v7741 = vpop.f32.mrb[0].mxu0
    %v7742 = vadd.f32 0.0, %v7741
    %v7743 = vpop.f32.mrb[0].mxu0
    %v7744 = vpop.f32.mrb[0].mxu0
    %v7745 = vadd.f32 0.0, %v7744
    %v7746 = vpop.f32.mrb[0].mxu0
    %7747 = vmatprep.mubr.bf16.mxu0 0
    %7748 = vmatmul.mubr.bf16.gmra.mrb[0].mxu0 %v7606
    %v7749 = vpop.f32.mrb[0].mxu0
    %v7750 = vadd.f32 0.0, %v7749
    %v7751 = vpop.f32.mrb[0].mxu0
    %v7752 = vpop.f32.mrb[0].mxu0
    %v7753 = vadd.f32 0.0, %v7752
    %v7754 = vpop.f32.mrb[0].mxu0
    %7755 = vmatprep.mubr.bf16.mxu0 0
    %7756 = vmatmul.mubr.bf16.gmra.mrb[0].mxu0 %v7607
    %v7757 = vpop.f32.mrb[0].mxu0
    %v7758 = vadd.f32 0.0, %v7757
    %v7759 = vpop.f32.mrb[0].mxu0
    %v7760 = vpop.f32.mrb[0].mxu0
    %v7761 = vadd.f32 0.0, %v7760
    %v7762 = vpop.f32.mrb[0].mxu0
    %7763 = vmatprep.mubr.bf16.mxu0 0
    %7764 = vmatmul.mubr.bf16.gmra.mrb[0].mxu0 %v7608
    %v7765 = vpop.f32.mrb[0].mxu0
    %v7766 = vadd.f32 0.0, %v7765
    %v7767 = vpop.f32.mrb[0].mxu0
    %v7768 = vpop.f32.mrb[0].mxu0
    %v7769 = vadd.f32 0.0, %v7768
    %v7770 = vpop.f32.mrb[0].mxu0
    %7771 = vmatprep.mubr.bf16.mxu0 0
    %7772 = vmatmul.mubr.bf16.gmra.mrb[0].mxu0 %v7609
    %v7773 = vpop.f32.mrb[0].mxu0
    %v7774 = vadd.f32 0.0, %v7773
    %v7775 = vpop.f32.mrb[0].mxu0
    %v7776 = vpop.f32.mrb[0].mxu0
    %v7777 = vadd.f32 0.0, %v7776
    %v7778 = vpop.f32.mrb[0].mxu0
    %7779 = vmatprep.mubr.bf16.mxu0 0
    %7780 = vmatmul.mubr.bf16.gmra.mrb[0].mxu0 %v7610
    %v7781 = vpop.f32.mrb[0].mxu0
    %v7782 = vadd.f32 0.0, %v7781
    %v7783 = vpop.f32.mrb[0].mxu0
    %v7784 = vpop.f32.mrb[0].mxu0
    %v7785 = vadd.f32 0.0, %v7784
    %v7786 = vpop.f32.mrb[0].mxu0
    %7787 = vmatprep.mubr.bf16.mxu0 0
    %7788 = vmatmul.mubr.bf16.gmra.mrb[0].mxu0 %v7611
    %v7789 = vpop.f32.mrb[0].mxu0
    %v7790 = vadd.f32 0.0, %v7789
    %v7791 = vpop.f32.mrb[0].mxu0
    %v7792 = vpop.f32.mrb[0].mxu0
    %v7793 = vadd.f32 0.0, %v7792
    %v7794 = vpop.f32.mrb[0].mxu0
    %7795 = vmatprep.mubr.bf16.mxu0 0
    %7796 = vmatmul.mubr.bf16.gmra.mrb[0].mxu0 %v7612
    %v7797 = vpop.f32.mrb[0].mxu0
    %v7798 = vadd.f32 0.0, %v7797
    %v7799 = vpop.f32.mrb[0].mxu0
    %v7800 = vpop.f32.mrb[0].mxu0
    %v7801 = vadd.f32 0.0, %v7800
    %v7802 = vpop.f32.mrb[0].mxu0
    %7803 = vmatprep.mubr.bf16.mxu0 0
    %7804 = vmatmul.mubr.bf16.gmra.mrb[0].mxu0 %v7613
    %v7805 = vpop.f32.mrb[0].mxu0
    %v7806 = vadd.f32 0.0, %v7805
    %v7807 = vpop.f32.mrb[0].mxu0
    %v7808 = vpop.f32.mrb[0].mxu0
    %v7809 = vadd.f32 0.0, %v7808
    %v7810 = vpop.f32.mrb[0].mxu0
    %7811 = vmatprep.mubr.bf16.mxu0 0
    %7812 = vmatmul.mubr.bf16.gmra.mrb[0].mxu0 %v7614
    %v7813 = vpop.f32.mrb[0].mxu0
    %v7814 = vadd.f32 0.0, %v7813
    %v7815 = vpop.f32.mrb[0].mxu0
    %v7816 = vpop.f32.mrb[0].mxu0
    %v7817 = vadd.f32 0.0, %v7816
    %v7818 = vpop.f32.mrb[0].mxu0
    %7819 = vmatprep.mubr.bf16.mxu0 0
    %7820 = vmatmul.mubr.bf16.gmra.mrb[0].mxu0 %v7615
    %v7821 = vpop.f32.mrb[0].mxu0
    %v7822 = vadd.f32 0.0, %v7821
    %v7823 = vpop.f32.mrb[0].mxu0
    %v7824 = vpop.f32.mrb[0].mxu0
    %v7825 = vadd.f32 0.0, %v7824
    %v7826 = vpop.f32.mrb[0].mxu0
    %7827 = vmatprep.mubr.bf16.mxu0 0
    %7828 = vmatmul.mubr.bf16.gmra.mrb[0].mxu0 %v7616
    %v7829 = vpop.f32.mrb[0].mxu0
    %v7830 = vadd.f32 0.0, %v7829
    %v7831 = vpop.f32.mrb[0].mxu0
    %v7832 = vpop.f32.mrb[0].mxu0
    %v7833 = vadd.f32 0.0, %v7832
    %v7834 = vpop.f32.mrb[0].mxu0
    %7835 = vmatprep.mubr.bf16.mxu0 0
    %7836 = vmatmul.mubr.bf16.gmra.mrb[0].mxu0 %v7617
    %v7837 = vpop.f32.mrb[0].mxu0
    %v7838 = vadd.f32 0.0, %v7837
    %v7839 = vpop.f32.mrb[0].mxu0
    %v7840 = vpop.f32.mrb[0].mxu0
    %v7841 = vadd.f32 0.0, %v7840
    %v7842 = vpop.f32.mrb[0].mxu0
    %7843 = vmatprep.mubr.bf16.mxu0 0
    %7844 = vmatmul.mubr.bf16.gmra.mrb[0].mxu0 %v7618
    %v7845 = vpop.f32.mrb[0].mxu0
    %v7846 = vadd.f32 0.0, %v7845
    %v7847 = vpop.f32.mrb[0].mxu0
    %v7848 = vpop.f32.mrb[0].mxu0
    %v7849 = vadd.f32 0.0, %v7848
    %v7850 = vpop.f32.mrb[0].mxu0
    %7851 = vmatprep.mubr.bf16.mxu0 0
    %7852 = vmatmul.mubr.bf16.gmra.mrb[0].mxu0 %v7619
    %v7853 = vpop.f32.mrb[0].mxu0
    %v7854 = vadd.f32 0.0, %v7853
    %v7855 = vpop.f32.mrb[0].mxu0
    %v7856 = vpop.f32.mrb[0].mxu0
    %v7857 = vadd.f32 0.0, %v7856
    %v7858 = vpop.f32.mrb[0].mxu0
    %7859 = vmatprep.mubr.bf16.mxu0 0
    %7860 = vmatmul.mubr.bf16.gmra.mrb[0].mxu0 %v7620
    %v7861 = vpop.f32.mrb[0].mxu0
    %v7862 = vadd.f32 0.0, %v7861
    %v7863 = vpop.f32.mrb[0].mxu0
    %v7864 = vpop.f32.mrb[0].mxu0
    %v7865 = vadd.f32 0.0, %v7864
    %v7866 = vpop.f32.mrb[0].mxu0
    %7867 = vmatprep.mubr.bf16.mxu0 0
    %7868 = vmatmul.mubr.bf16.gmra.mrb[0].mxu0 %v7621
    %v7869 = vpop.f32.mrb[0].mxu0
    %v7870 = vadd.f32 0.0, %v7869
    %v7871 = vpop.f32.mrb[0].mxu0
    %v7872 = vpop.f32.mrb[0].mxu0
    %v7873 = vadd.f32 0.0, %v7872
    %v7874 = vpop.f32.mrb[0].mxu0
    %7875 = vmatprep.mubr.bf16.mxu0 0
    %7876 = vmatmul.mubr.bf16.gmra.mrb[0].mxu0 %v7622
    %v7877 = vpop.f32.mrb[0].mxu0
    %v7878 = vadd.f32 0.0, %v7877
    %v7879 = vpop.f32.mrb[0].mxu0
    %v7880 = vpop.f32.mrb[0].mxu0
    %v7881 = vadd.f32 0.0, %v7880
    %v7882 = vpop.f32.mrb[0].mxu0
    %7883 = vmatprep.mubr.bf16.mxu0 0
    %7884 = vmatmul.mubr.bf16.gmra.mrb[0].mxu0 %v7623
    %v7885 = vpop.f32.mrb[0].mxu0
    %v7886 = vadd.f32 0.0, %v7885
    %v7887 = vpop.f32.mrb[0].mxu0
    %v7888 = vpop.f32.mrb[0].mxu0
    %v7889 = vadd.f32 0.0, %v7888
    %v7890 = vpop.f32.mrb[0].mxu0
    %7891 = vmatprep.mubr.bf16.mxu0 0
    %7892 = vmatmul.mubr.bf16.gmra.mrb[0].mxu0 %v7624
    %v7893 = vpop.f32.mrb[0].mxu0
    %v7894 = vadd.f32 0.0, %v7893
    %v7895 = vpop.f32.mrb[0].mxu0
    %v7896 = vpop.f32.mrb[0].mxu0
    %v7897 = vadd.f32 0.0, %v7896
    %v7898 = vpop.f32.mrb[0].mxu0
    %7899 = vmatprep.mubr.bf16.mxu0 0
    %7900 = vmatmul.mubr.bf16.gmra.mrb[0].mxu0 %v7625
    %v7901 = vpop.f32.mrb[0].mxu0
    %v7902 = vadd.f32 0.0, %v7901
    %v7903 = vpop.f32.mrb[0].mxu0
    %v7904 = vpop.f32.mrb[0].mxu0
    %v7905 = vadd.f32 0.0, %v7904
    %v7906 = vpop.f32.mrb[0].mxu0
    %7907 = vmatprep.mubr.bf16.mxu0 0
    %7908 = vmatmul.mubr.bf16.gmra.mrb[0].mxu0 %v7626
    %v7909 = vpop.f32.mrb[0].mxu0
    %v7910 = vadd.f32 0.0, %v7909
    %v7911 = vpop.f32.mrb[0].mxu0
    %v7912 = vpop.f32.mrb[0].mxu0
    %v7913 = vadd.f32 0.0, %v7912
    %v7914 = vpop.f32.mrb[0].mxu0
    %7915 = vmatprep.mubr.bf16.mxu0 0
    %7916 = vmatmul.mubr.bf16.gmra.mrb[0].mxu0 %v7627
    %v7917 = vpop.f32.mrb[0].mxu0
    %v7918 = vadd.f32 0.0, %v7917
    %v7919 = vpop.f32.mrb[0].mxu0
    %v7920 = vpop.f32.mrb[0].mxu0
    %v7921 = vadd.f32 0.0, %v7920
    %v7922 = vpop.f32.mrb[0].mxu0
    %7923 = vmatprep.mubr.bf16.mxu0 0
    %7924 = vmatmul.mubr.bf16.gmra.mrb[0].mxu0 %v7628
    %v7925 = vpop.f32.mrb[0].mxu0
    %v7926 = vadd.f32 0.0, %v7925
    %v7927 = vpop.f32.mrb[0].mxu0
    %v7928 = vpop.f32.mrb[0].mxu0
    %v7929 = vadd.f32 0.0, %v7928
    %v7930 = vpop.f32.mrb[0].mxu0
    %7931 = vmatprep.mubr.bf16.mxu0 0
    %7932 = vmatmul.mubr.bf16.gmra.mrb[0].mxu0 %v7629
    %v7933 = vpop.f32.mrb[0].mxu0
    %v7934 = vadd.f32 0.0, %v7933
    %v7935 = vpop.f32.mrb[0].mxu0
    %v7936 = vpop.f32.mrb[0].mxu0
    %v7937 = vadd.f32 0.0, %v7936
    %v7938 = vpop.f32.mrb[0].mxu0
    %7939 = vmatprep.mubr.bf16.mxu0 0
    %7940 = vmatmul.mubr.bf16.gmra.mrb[0].mxu0 %v7630
    %v7941 = vpop.f32.mrb[0].mxu0
    %v7942 = vadd.f32 0.0, %v7941
    %v7943 = vpop.f32.mrb[0].mxu0
    %v7944 = vpop.f32.mrb[0].mxu0
    %v7945 = vadd.f32 0.0, %v7944
    %v7946 = vpop.f32.mrb[0].mxu0
    %7947 = vmatprep.mubr.bf16.mxu0 0
    %7948 = vmatmul.mubr.bf16.gmra.mrb[0].mxu0 %v7631
    %v7949 = vpop.f32.mrb[0].mxu0
    %v7950 = vadd.f32 0.0, %v7949
    %v7951 = vpop.f32.mrb[0].mxu0
    %v7952 = vpop.f32.mrb[0].mxu0
    %v7953 = vadd.f32 0.0, %v7952
    %v7954 = vpop.f32.mrb[0].mxu0
    %7955 = vmatprep.mubr.bf16.mxu0 0
    %7956 = vmatmul.mubr.bf16.gmra.mrb[0].mxu0 %v7632
    %v7957 = vpop.f32.mrb[0].mxu0
    %v7958 = vadd.f32 0.0, %v7957
    %v7959 = vpop.f32.mrb[0].mxu0
    %v7960 = vpop.f32.mrb[0].mxu0
    %v7961 = vadd.f32 0.0, %v7960
    %v7962 = vpop.f32.mrb[0].mxu0
    %7963 = vmatprep.mubr.bf16.mxu0 0
    %7964 = vmatmul.mubr.bf16.gmra.mrb[0].mxu0 %v7633
    %v7965 = vpop.f32.mrb[0].mxu0
    %v7966 = vadd.f32 0.0, %v7965
    %v7967 = vpop.f32.mrb[0].mxu0
    %v7968 = vpop.f32.mrb[0].mxu0
    %v7969 = vadd.f32 0.0, %v7968
    %v7970 = vpop.f32.mrb[0].mxu0
    %7971 = vmatprep.mubr.bf16.mxu0 0
    %7972 = vmatmul.mubr.bf16.gmra.mrb[0].mxu0 %v7634
    %v7973 = vpop.f32.mrb[0].mxu0
    %v7974 = vadd.f32 0.0, %v7973
    %v7975 = vpop.f32.mrb[0].mxu0
    %v7976 = vpop.f32.mrb[0].mxu0
    %v7977 = vadd.f32 0.0, %v7976
    %v7978 = vpop.f32.mrb[0].mxu0
    %7979 = vdwg.mxu0
    %v7980 = vadd.f32 %v7346, %v7726
    %v7981 = vadd.f32 %v7347, %v7729
    %v7982 = vadd.f32 %v7348, %v7734
    %v7983 = vadd.f32 %v7349, %v7737
    %v7984 = vadd.f32 %v7350, %v7742
    %v7985 = vadd.f32 %v7351, %v7745
    %v7986 = vadd.f32 %v7352, %v7750
    %v7987 = vadd.f32 %v7353, %v7753
    %v7988 = vadd.f32 %v7354, %v7758
    %v7989 = vadd.f32 %v7355, %v7761
    %v7990 = vadd.f32 %v7356, %v7766
    %v7991 = vadd.f32 %v7357, %v7769
    %v7992 = vadd.f32 %v7358, %v7774
    %v7993 = vadd.f32 %v7359, %v7777
    %v7994 = vadd.f32 %v7360, %v7782
    %v7995 = vadd.f32 %v7361, %v7785
    %v7996 = vadd.f32 %v7362, %v7790
    %v7997 = vadd.f32 %v7363, %v7793
    %v7998 = vadd.f32 %v7364, %v7798
    %v7999 = vadd.f32 %v7365, %v7801
    %v8000 = vadd.f32 %v7366, %v7806
    %v8001 = vadd.f32 %v7367, %v7809
    %v8002 = vadd.f32 %v7368, %v7814
    %v8003 = vadd.f32 %v7369, %v7817
    %v8004 = vadd.f32 %v7370, %v7822
    %v8005 = vadd.f32 %v7371, %v7825
    %v8006 = vadd.f32 %v7372, %v7830
    %v8007 = vadd.f32 %v7373, %v7833
    %v8008 = vadd.f32 %v7374, %v7838
    %v8009 = vadd.f32 %v7375, %v7841
    %v8010 = vadd.f32 %v7376, %v7846
    %v8011 = vadd.f32 %v7377, %v7849
    %v8012 = vadd.f32 %v7378, %v7854
    %v8013 = vadd.f32 %v7379, %v7857
    %v8014 = vadd.f32 %v7380, %v7862
    %v8015 = vadd.f32 %v7381, %v7865
    %v8016 = vadd.f32 %v7382, %v7870
    %v8017 = vadd.f32 %v7383, %v7873
    %v8018 = vadd.f32 %v7384, %v7878
    %v8019 = vadd.f32 %v7385, %v7881
    %v8020 = vadd.f32 %v7386, %v7886
    %v8021 = vadd.f32 %v7387, %v7889
    %v8022 = vadd.f32 %v7388, %v7894
    %v8023 = vadd.f32 %v7389, %v7897
    %v8024 = vadd.f32 %v7390, %v7902
    %v8025 = vadd.f32 %v7391, %v7905
    %v8026 = vadd.f32 %v7392, %v7910
    %v8027 = vadd.f32 %v7393, %v7913
    %v8028 = vadd.f32 %v7394, %v7918
    %v8029 = vadd.f32 %v7395, %v7921
    %v8030 = vadd.f32 %v7396, %v7926
    %v8031 = vadd.f32 %v7397, %v7929
    %v8032 = vadd.f32 %v7398, %v7934
    %v8033 = vadd.f32 %v7399, %v7937
    %v8034 = vadd.f32 %v7400, %v7942
    %v8035 = vadd.f32 %v7401, %v7945
    %v8036 = vadd.f32 %v7402, %v7950
    %v8037 = vadd.f32 %v7403, %v7953
    %v8038 = vadd.f32 %v7404, %v7958
    %v8039 = vadd.f32 %v7405, %v7961
    %v8040 = vadd.f32 %v7406, %v7966
    %v8041 = vadd.f32 %v7407, %v7969
    %v8042 = vadd.f32 %v7408, %v7974
    %v8043 = vadd.f32 %v7409, %v7977
    %s8044 = scalar_lea.vmem [#allocation8], 1792
    %v8045 = vld [vmem:[%s8044] sm:$0xf]
    %v8046 = vld [vmem:[%s8044 + $0x4] sm:$0xf]
    %v8047 = vld [vmem:[%s8044 + $0x8] sm:$0xf]
    %v8048 = vld [vmem:[%s8044 + $0xc] sm:$0xf]
    %v8049 = vld [vmem:[%s8044 + $0x10] sm:$0xf]
    %v8050 = vld [vmem:[%s8044 + $0x14] sm:$0xf]
    %v8051 = vld [vmem:[%s8044 + $0x18] sm:$0xf]
    %v8052 = vld [vmem:[%s8044 + $0x1c] sm:$0xf]
    %v8053 = vld [vmem:[%s8044 + $0x20] sm:$0xf]
    %v8054 = vld [vmem:[%s8044 + $0x24] sm:$0xf]
    %v8055 = vld [vmem:[%s8044 + $0x28] sm:$0xf]
    %v8056 = vld [vmem:[%s8044 + $0x2c] sm:$0xf]
    %v8057 = vld [vmem:[%s8044 + $0x30] sm:$0xf]
    %v8058 = vld [vmem:[%s8044 + $0x34] sm:$0xf]
    %v8059 = vld [vmem:[%s8044 + $0x38] sm:$0xf]
    %v8060 = vld [vmem:[%s8044 + $0x3c] sm:$0xf]
    %v8061 = vld [vmem:[%s8044 + $0x40] sm:$0xf]
    %v8062 = vld [vmem:[%s8044 + $0x44] sm:$0xf]
    %v8063 = vld [vmem:[%s8044 + $0x48] sm:$0xf]
    %v8064 = vld [vmem:[%s8044 + $0x4c] sm:$0xf]
    %v8065 = vld [vmem:[%s8044 + $0x50] sm:$0xf]
    %v8066 = vld [vmem:[%s8044 + $0x54] sm:$0xf]
    %v8067 = vld [vmem:[%s8044 + $0x58] sm:$0xf]
    %v8068 = vld [vmem:[%s8044 + $0x5c] sm:$0xf]
    %v8069 = vld [vmem:[%s8044 + $0x60] sm:$0xf]
    %v8070 = vld [vmem:[%s8044 + $0x64] sm:$0xf]
    %v8071 = vld [vmem:[%s8044 + $0x68] sm:$0xf]
    %v8072 = vld [vmem:[%s8044 + $0x6c] sm:$0xf]
    %v8073 = vld [vmem:[%s8044 + $0x70] sm:$0xf]
    %v8074 = vld [vmem:[%s8044 + $0x74] sm:$0xf]
    %v8075 = vld [vmem:[%s8044 + $0x78] sm:$0xf]
    %v8076 = vld [vmem:[%s8044 + $0x7c] sm:$0xf]
    %v8077 = vld [vmem:[%s8044 + $0x80] sm:$0xf]
    %v8078 = vld [vmem:[%s8044 + $0x84] sm:$0xf]
    %v8079 = vld [vmem:[%s8044 + $0x88] sm:$0xf]
    %v8080 = vld [vmem:[%s8044 + $0x8c] sm:$0xf]
    %v8081 = vld [vmem:[%s8044 + $0x90] sm:$0xf]
    %v8082 = vld [vmem:[%s8044 + $0x94] sm:$0xf]
    %v8083 = vld [vmem:[%s8044 + $0x98] sm:$0xf]
    %v8084 = vld [vmem:[%s8044 + $0x9c] sm:$0xf]
    %v8085 = vld [vmem:[%s8044 + $0xa0] sm:$0xf]
    %v8086 = vld [vmem:[%s8044 + $0xa4] sm:$0xf]
    %v8087 = vld [vmem:[%s8044 + $0xa8] sm:$0xf]
    %v8088 = vld [vmem:[%s8044 + $0xac] sm:$0xf]
    %v8089 = vld [vmem:[%s8044 + $0xb0] sm:$0xf]
    %v8090 = vld [vmem:[%s8044 + $0xb4] sm:$0xf]
    %v8091 = vld [vmem:[%s8044 + $0xb8] sm:$0xf]
    %v8092 = vld [vmem:[%s8044 + $0xbc] sm:$0xf]
    %v8093 = vld [vmem:[%s8044 + $0xc0] sm:$0xf]
    %v8094 = vld [vmem:[%s8044 + $0xc4] sm:$0xf]
    %v8095 = vld [vmem:[%s8044 + $0xc8] sm:$0xf]
    %v8096 = vld [vmem:[%s8044 + $0xcc] sm:$0xf]
    %v8097 = vld [vmem:[%s8044 + $0xd0] sm:$0xf]
    %v8098 = vld [vmem:[%s8044 + $0xd4] sm:$0xf]
    %v8099 = vld [vmem:[%s8044 + $0xd8] sm:$0xf]
    %v8100 = vld [vmem:[%s8044 + $0xdc] sm:$0xf]
    %v8101 = vld [vmem:[%s8044 + $0xe0] sm:$0xf]
    %v8102 = vld [vmem:[%s8044 + $0xe4] sm:$0xf]
    %v8103 = vld [vmem:[%s8044 + $0xe8] sm:$0xf]
    %v8104 = vld [vmem:[%s8044 + $0xec] sm:$0xf]
    %v8105 = vld [vmem:[%s8044 + $0xf0] sm:$0xf]
    %v8106 = vld [vmem:[%s8044 + $0xf4] sm:$0xf]
    %v8107 = vld [vmem:[%s8044 + $0xf8] sm:$0xf]
    %v8108 = vld [vmem:[%s8044 + $0xfc] sm:$0xf]
    %v8173 = vunpack.c.l.b16 %v8045
    %v8174 = vunpack.c.l.b16 %v8046
    %v8175 = vunpack.c.l.b16 %v8047
    %v8176 = vunpack.c.l.b16 %v8048
    %v8177 = vunpack.c.l.b16 %v8049
    %v8178 = vunpack.c.l.b16 %v8050
    %v8179 = vunpack.c.l.b16 %v8051
    %v8180 = vunpack.c.l.b16 %v8052
    %v8181 = vunpack.c.l.b16 %v8053
    %v8182 = vunpack.c.l.b16 %v8054
    %v8183 = vunpack.c.l.b16 %v8055
    %v8184 = vunpack.c.l.b16 %v8056
    %v8185 = vunpack.c.l.b16 %v8057
    %v8186 = vunpack.c.l.b16 %v8058
    %v8187 = vunpack.c.l.b16 %v8059
    %v8188 = vunpack.c.l.b16 %v8060
    %v8189 = vunpack.c.l.b16 %v8061
    %v8190 = vunpack.c.l.b16 %v8062
    %v8191 = vunpack.c.l.b16 %v8063
    %v8192 = vunpack.c.l.b16 %v8064
    %v8193 = vunpack.c.l.b16 %v8065
    %v8194 = vunpack.c.l.b16 %v8066
    %v8195 = vunpack.c.l.b16 %v8067
    %v8196 = vunpack.c.l.b16 %v8068
    %v8197 = vunpack.c.l.b16 %v8069
    %v8198 = vunpack.c.l.b16 %v8070
    %v8199 = vunpack.c.l.b16 %v8071
    %v8200 = vunpack.c.l.b16 %v8072
    %v8201 = vunpack.c.l.b16 %v8073
    %v8202 = vunpack.c.l.b16 %v8074
    %v8203 = vunpack.c.l.b16 %v8075
    %v8204 = vunpack.c.l.b16 %v8076
    %v8205 = vunpack.c.l.b16 %v8077
    %v8206 = vunpack.c.l.b16 %v8078
    %v8207 = vunpack.c.l.b16 %v8079
    %v8208 = vunpack.c.l.b16 %v8080
    %v8209 = vunpack.c.l.b16 %v8081
    %v8210 = vunpack.c.l.b16 %v8082
    %v8211 = vunpack.c.l.b16 %v8083
    %v8212 = vunpack.c.l.b16 %v8084
    %v8213 = vunpack.c.l.b16 %v8085
    %v8214 = vunpack.c.l.b16 %v8086
    %v8215 = vunpack.c.l.b16 %v8087
    %v8216 = vunpack.c.l.b16 %v8088
    %v8217 = vunpack.c.l.b16 %v8089
    %v8218 = vunpack.c.l.b16 %v8090
    %v8219 = vunpack.c.l.b16 %v8091
    %v8220 = vunpack.c.l.b16 %v8092
    %v8221 = vunpack.c.l.b16 %v8093
    %v8222 = vunpack.c.l.b16 %v8094
    %v8223 = vunpack.c.l.b16 %v8095
    %v8224 = vunpack.c.l.b16 %v8096
    %v8225 = vunpack.c.l.b16 %v8097
    %v8226 = vunpack.c.l.b16 %v8098
    %v8227 = vunpack.c.l.b16 %v8099
    %v8228 = vunpack.c.l.b16 %v8100
    %v8229 = vunpack.c.l.b16 %v8101
    %v8230 = vunpack.c.l.b16 %v8102
    %v8231 = vunpack.c.l.b16 %v8103
    %v8232 = vunpack.c.l.b16 %v8104
    %v8233 = vunpack.c.l.b16 %v8105
    %v8234 = vunpack.c.l.b16 %v8106
    %v8235 = vunpack.c.l.b16 %v8107
    %v8236 = vunpack.c.l.b16 %v8108
    %v8237 = vpack.c.b16 %v8174, %v8173
    %v8238 = vpack.c.b16 %v8176, %v8175
    %v8239 = vpack.c.b16 %v8178, %v8177
    %v8240 = vpack.c.b16 %v8180, %v8179
    %v8241 = vpack.c.b16 %v8182, %v8181
    %v8242 = vpack.c.b16 %v8184, %v8183
    %v8243 = vpack.c.b16 %v8186, %v8185
    %v8244 = vpack.c.b16 %v8188, %v8187
    %v8245 = vpack.c.b16 %v8190, %v8189
    %v8246 = vpack.c.b16 %v8192, %v8191
    %v8247 = vpack.c.b16 %v8194, %v8193
    %v8248 = vpack.c.b16 %v8196, %v8195
    %v8249 = vpack.c.b16 %v8198, %v8197
    %v8250 = vpack.c.b16 %v8200, %v8199
    %v8251 = vpack.c.b16 %v8202, %v8201
    %v8252 = vpack.c.b16 %v8204, %v8203
    %v8253 = vpack.c.b16 %v8206, %v8205
    %v8254 = vpack.c.b16 %v8208, %v8207
    %v8255 = vpack.c.b16 %v8210, %v8209
    %v8256 = vpack.c.b16 %v8212, %v8211
    %v8257 = vpack.c.b16 %v8214, %v8213
    %v8258 = vpack.c.b16 %v8216, %v8215
    %v8259 = vpack.c.b16 %v8218, %v8217
    %v8260 = vpack.c.b16 %v8220, %v8219
    %v8261 = vpack.c.b16 %v8222, %v8221
    %v8262 = vpack.c.b16 %v8224, %v8223
    %v8263 = vpack.c.b16 %v8226, %v8225
    %v8264 = vpack.c.b16 %v8228, %v8227
    %v8265 = vpack.c.b16 %v8230, %v8229
    %v8266 = vpack.c.b16 %v8232, %v8231
    %v8267 = vpack.c.b16 %v8234, %v8233
    %v8268 = vpack.c.b16 %v8236, %v8235
    %8301 = vrot.lane.b32.xlu0 %v3743, 72
    %v8302 = vpop.permute.xlu0 %8301
    %8303 = vrot.lane.b32.xlu0 %v3744, 72
    %v8304 = vpop.permute.xlu0 %8303
    %8305 = vrot.lane.b32.xlu0 %v3745, 72
    %v8306 = vpop.permute.xlu0 %8305
    %8307 = vrot.lane.b32.xlu0 %v3746, 72
    %v8308 = vpop.permute.xlu0 %8307
    %8309 = vrot.lane.b32.xlu0 %v3747, 72
    %v8310 = vpop.permute.xlu0 %8309
    %8311 = vrot.lane.b32.xlu0 %v3748, 72
    %v8312 = vpop.permute.xlu0 %8311
    %8313 = vrot.lane.b32.xlu0 %v3749, 72
    %v8314 = vpop.permute.xlu0 %8313
    %8315 = vrot.lane.b32.xlu0 %v3750, 72
    %v8316 = vpop.permute.xlu0 %8315
    %8325 = vmatprep.subr.bf16.mxu0 0
    %8326 = vmatpush1.bf16.msra.mxu0 %v8302
    %8327 = vmatprep.subr.bf16.mxu0 0
    %8328 = vmatpush1.bf16.msra.mxu0 %v8304
    %8329 = vmatprep.subr.bf16.mxu0 0
    %8330 = vmatpush1.bf16.msra.mxu0 %v8306
    %8331 = vmatprep.subr.bf16.mxu0 0
    %8332 = vmatpush1.bf16.msra.mxu0 %v8308
    %8333 = vmatprep.subr.bf16.mxu0 0
    %8334 = vmatpush1.bf16.msra.mxu0 %v8310
    %8335 = vmatprep.subr.bf16.mxu0 0
    %8336 = vmatpush1.bf16.msra.mxu0 %v8312
    %8337 = vmatprep.subr.bf16.mxu0 0
    %8338 = vmatpush1.bf16.msra.mxu0 %v8314
    %8339 = vmatprep.subr.bf16.mxu0 0
    %8340 = vmatpush1.bf16.msra.mxu0 %v8316
    %8341 = vmatprep.subr.bf16.mxu0 0
    %8342 = vmatpush1.bf16.msra.mxu0 0
    %8343 = vmatprep.subr.bf16.mxu0 0
    %8344 = vmatpush1.bf16.msra.mxu0 0
    %8345 = vmatprep.subr.bf16.mxu0 0
    %8346 = vmatpush1.bf16.msra.mxu0 0
    %8347 = vmatprep.subr.bf16.mxu0 0
    %8348 = vmatpush1.bf16.msra.mxu0 0
    %8349 = vmatprep.subr.bf16.mxu0 0
    %8350 = vmatpush1.bf16.msra.mxu0 0
    %8351 = vmatprep.subr.bf16.mxu0 0
    %8352 = vmatpush1.bf16.msra.mxu0 0
    %8353 = vmatprep.subr.bf16.mxu0 0
    %8354 = vmatpush1.bf16.msra.mxu0 0
    %8355 = vmatprep.subr.bf16.mxu0 0
    %8356 = vmatpush1.bf16.msra.mxu0 0
    %8357 = vmatprep.mubr.bf16.mxu0 0
    %8358 = vmatmul.mubr.bf16.gmra.mrb[0].mxu0 %v8237
    %v8359 = vpop.f32.mrb[0].mxu0
    %v8360 = vadd.f32 0.0, %v8359
    %v8361 = vpop.f32.mrb[0].mxu0
    %v8362 = vpop.f32.mrb[0].mxu0
    %v8363 = vadd.f32 0.0, %v8362
    %v8364 = vpop.f32.mrb[0].mxu0
    %8365 = vmatprep.mubr.bf16.mxu0 0
    %8366 = vmatmul.mubr.bf16.gmra.mrb[0].mxu0 %v8238
    %v8367 = vpop.f32.mrb[0].mxu0
    %v8368 = vadd.f32 0.0, %v8367
    %v8369 = vpop.f32.mrb[0].mxu0
    %v8370 = vpop.f32.mrb[0].mxu0
    %v8371 = vadd.f32 0.0, %v8370
    %v8372 = vpop.f32.mrb[0].mxu0
    %8373 = vmatprep.mubr.bf16.mxu0 0
    %8374 = vmatmul.mubr.bf16.gmra.mrb[0].mxu0 %v8239
    %v8375 = vpop.f32.mrb[0].mxu0
    %v8376 = vadd.f32 0.0, %v8375
    %v8377 = vpop.f32.mrb[0].mxu0
    %v8378 = vpop.f32.mrb[0].mxu0
    %v8379 = vadd.f32 0.0, %v8378
    %v8380 = vpop.f32.mrb[0].mxu0
    %8381 = vmatprep.mubr.bf16.mxu0 0
    %8382 = vmatmul.mubr.bf16.gmra.mrb[0].mxu0 %v8240
    %v8383 = vpop.f32.mrb[0].mxu0
    %v8384 = vadd.f32 0.0, %v8383
    %v8385 = vpop.f32.mrb[0].mxu0
    %v8386 = vpop.f32.mrb[0].mxu0
    %v8387 = vadd.f32 0.0, %v8386
    %v8388 = vpop.f32.mrb[0].mxu0
    %8389 = vmatprep.mubr.bf16.mxu0 0
    %8390 = vmatmul.mubr.bf16.gmra.mrb[0].mxu0 %v8241
    %v8391 = vpop.f32.mrb[0].mxu0
    %v8392 = vadd.f32 0.0, %v8391
    %v8393 = vpop.f32.mrb[0].mxu0
    %v8394 = vpop.f32.mrb[0].mxu0
    %v8395 = vadd.f32 0.0, %v8394
    %v8396 = vpop.f32.mrb[0].mxu0
    %8397 = vmatprep.mubr.bf16.mxu0 0
    %8398 = vmatmul.mubr.bf16.gmra.mrb[0].mxu0 %v8242
    %v8399 = vpop.f32.mrb[0].mxu0
    %v8400 = vadd.f32 0.0, %v8399
    %v8401 = vpop.f32.mrb[0].mxu0
    %v8402 = vpop.f32.mrb[0].mxu0
    %v8403 = vadd.f32 0.0, %v8402
    %v8404 = vpop.f32.mrb[0].mxu0
    %8405 = vmatprep.mubr.bf16.mxu0 0
    %8406 = vmatmul.mubr.bf16.gmra.mrb[0].mxu0 %v8243
    %v8407 = vpop.f32.mrb[0].mxu0
    %v8408 = vadd.f32 0.0, %v8407
    %v8409 = vpop.f32.mrb[0].mxu0
    %v8410 = vpop.f32.mrb[0].mxu0
    %v8411 = vadd.f32 0.0, %v8410
    %v8412 = vpop.f32.mrb[0].mxu0
    %8413 = vmatprep.mubr.bf16.mxu0 0
    %8414 = vmatmul.mubr.bf16.gmra.mrb[0].mxu0 %v8244
    %v8415 = vpop.f32.mrb[0].mxu0
    %v8416 = vadd.f32 0.0, %v8415
    %v8417 = vpop.f32.mrb[0].mxu0
    %v8418 = vpop.f32.mrb[0].mxu0
    %v8419 = vadd.f32 0.0, %v8418
    %v8420 = vpop.f32.mrb[0].mxu0
    %8421 = vmatprep.mubr.bf16.mxu0 0
    %8422 = vmatmul.mubr.bf16.gmra.mrb[0].mxu0 %v8245
    %v8423 = vpop.f32.mrb[0].mxu0
    %v8424 = vadd.f32 0.0, %v8423
    %v8425 = vpop.f32.mrb[0].mxu0
    %v8426 = vpop.f32.mrb[0].mxu0
    %v8427 = vadd.f32 0.0, %v8426
    %v8428 = vpop.f32.mrb[0].mxu0
    %8429 = vmatprep.mubr.bf16.mxu0 0
    %8430 = vmatmul.mubr.bf16.gmra.mrb[0].mxu0 %v8246
    %v8431 = vpop.f32.mrb[0].mxu0
    %v8432 = vadd.f32 0.0, %v8431
    %v8433 = vpop.f32.mrb[0].mxu0
    %v8434 = vpop.f32.mrb[0].mxu0
    %v8435 = vadd.f32 0.0, %v8434
    %v8436 = vpop.f32.mrb[0].mxu0
    %8437 = vmatprep.mubr.bf16.mxu0 0
    %8438 = vmatmul.mubr.bf16.gmra.mrb[0].mxu0 %v8247
    %v8439 = vpop.f32.mrb[0].mxu0
    %v8440 = vadd.f32 0.0, %v8439
    %v8441 = vpop.f32.mrb[0].mxu0
    %v8442 = vpop.f32.mrb[0].mxu0
    %v8443 = vadd.f32 0.0, %v8442
    %v8444 = vpop.f32.mrb[0].mxu0
    %8445 = vmatprep.mubr.bf16.mxu0 0
    %8446 = vmatmul.mubr.bf16.gmra.mrb[0].mxu0 %v8248
    %v8447 = vpop.f32.mrb[0].mxu0
    %v8448 = vadd.f32 0.0, %v8447
    %v8449 = vpop.f32.mrb[0].mxu0
    %v8450 = vpop.f32.mrb[0].mxu0
    %v8451 = vadd.f32 0.0, %v8450
    %v8452 = vpop.f32.mrb[0].mxu0
    %8453 = vmatprep.mubr.bf16.mxu0 0
    %8454 = vmatmul.mubr.bf16.gmra.mrb[0].mxu0 %v8249
    %v8455 = vpop.f32.mrb[0].mxu0
    %v8456 = vadd.f32 0.0, %v8455
    %v8457 = vpop.f32.mrb[0].mxu0
    %v8458 = vpop.f32.mrb[0].mxu0
    %v8459 = vadd.f32 0.0, %v8458
    %v8460 = vpop.f32.mrb[0].mxu0
    %8461 = vmatprep.mubr.bf16.mxu0 0
    %8462 = vmatmul.mubr.bf16.gmra.mrb[0].mxu0 %v8250
    %v8463 = vpop.f32.mrb[0].mxu0
    %v8464 = vadd.f32 0.0, %v8463
    %v8465 = vpop.f32.mrb[0].mxu0
    %v8466 = vpop.f32.mrb[0].mxu0
    %v8467 = vadd.f32 0.0, %v8466
    %v8468 = vpop.f32.mrb[0].mxu0
    %8469 = vmatprep.mubr.bf16.mxu0 0
    %8470 = vmatmul.mubr.bf16.gmra.mrb[0].mxu0 %v8251
    %v8471 = vpop.f32.mrb[0].mxu0
    %v8472 = vadd.f32 0.0, %v8471
    %v8473 = vpop.f32.mrb[0].mxu0
    %v8474 = vpop.f32.mrb[0].mxu0
    %v8475 = vadd.f32 0.0, %v8474
    %v8476 = vpop.f32.mrb[0].mxu0
    %8477 = vmatprep.mubr.bf16.mxu0 0
    %8478 = vmatmul.mubr.bf16.gmra.mrb[0].mxu0 %v8252
    %v8479 = vpop.f32.mrb[0].mxu0
    %v8480 = vadd.f32 0.0, %v8479
    %v8481 = vpop.f32.mrb[0].mxu0
    %v8482 = vpop.f32.mrb[0].mxu0
    %v8483 = vadd.f32 0.0, %v8482
    %v8484 = vpop.f32.mrb[0].mxu0
    %8485 = vmatprep.mubr.bf16.mxu0 0
    %8486 = vmatmul.mubr.bf16.gmra.mrb[0].mxu0 %v8253
    %v8487 = vpop.f32.mrb[0].mxu0
    %v8488 = vadd.f32 0.0, %v8487
    %v8489 = vpop.f32.mrb[0].mxu0
    %v8490 = vpop.f32.mrb[0].mxu0
    %v8491 = vadd.f32 0.0, %v8490
    %v8492 = vpop.f32.mrb[0].mxu0
    %8493 = vmatprep.mubr.bf16.mxu0 0
    %8494 = vmatmul.mubr.bf16.gmra.mrb[0].mxu0 %v8254
    %v8495 = vpop.f32.mrb[0].mxu0
    %v8496 = vadd.f32 0.0, %v8495
    %v8497 = vpop.f32.mrb[0].mxu0
    %v8498 = vpop.f32.mrb[0].mxu0
    %v8499 = vadd.f32 0.0, %v8498
    %v8500 = vpop.f32.mrb[0].mxu0
    %8501 = vmatprep.mubr.bf16.mxu0 0
    %8502 = vmatmul.mubr.bf16.gmra.mrb[0].mxu0 %v8255
    %v8503 = vpop.f32.mrb[0].mxu0
    %v8504 = vadd.f32 0.0, %v8503
    %v8505 = vpop.f32.mrb[0].mxu0
    %v8506 = vpop.f32.mrb[0].mxu0
    %v8507 = vadd.f32 0.0, %v8506
    %v8508 = vpop.f32.mrb[0].mxu0
    %8509 = vmatprep.mubr.bf16.mxu0 0
    %8510 = vmatmul.mubr.bf16.gmra.mrb[0].mxu0 %v8256
    %v8511 = vpop.f32.mrb[0].mxu0
    %v8512 = vadd.f32 0.0, %v8511
    %v8513 = vpop.f32.mrb[0].mxu0
    %v8514 = vpop.f32.mrb[0].mxu0
    %v8515 = vadd.f32 0.0, %v8514
    %v8516 = vpop.f32.mrb[0].mxu0
    %8517 = vmatprep.mubr.bf16.mxu0 0
    %8518 = vmatmul.mubr.bf16.gmra.mrb[0].mxu0 %v8257
    %v8519 = vpop.f32.mrb[0].mxu0
    %v8520 = vadd.f32 0.0, %v8519
    %v8521 = vpop.f32.mrb[0].mxu0
    %v8522 = vpop.f32.mrb[0].mxu0
    %v8523 = vadd.f32 0.0, %v8522
    %v8524 = vpop.f32.mrb[0].mxu0
    %8525 = vmatprep.mubr.bf16.mxu0 0
    %8526 = vmatmul.mubr.bf16.gmra.mrb[0].mxu0 %v8258
    %v8527 = vpop.f32.mrb[0].mxu0
    %v8528 = vadd.f32 0.0, %v8527
    %v8529 = vpop.f32.mrb[0].mxu0
    %v8530 = vpop.f32.mrb[0].mxu0
    %v8531 = vadd.f32 0.0, %v8530
    %v8532 = vpop.f32.mrb[0].mxu0
    %8533 = vmatprep.mubr.bf16.mxu0 0
    %8534 = vmatmul.mubr.bf16.gmra.mrb[0].mxu0 %v8259
    %v8535 = vpop.f32.mrb[0].mxu0
    %v8536 = vadd.f32 0.0, %v8535
    %v8537 = vpop.f32.mrb[0].mxu0
    %v8538 = vpop.f32.mrb[0].mxu0
    %v8539 = vadd.f32 0.0, %v8538
    %v8540 = vpop.f32.mrb[0].mxu0
    %8541 = vmatprep.mubr.bf16.mxu0 0
    %8542 = vmatmul.mubr.bf16.gmra.mrb[0].mxu0 %v8260
    %v8543 = vpop.f32.mrb[0].mxu0
    %v8544 = vadd.f32 0.0, %v8543
    %v8545 = vpop.f32.mrb[0].mxu0
    %v8546 = vpop.f32.mrb[0].mxu0
    %v8547 = vadd.f32 0.0, %v8546
    %v8548 = vpop.f32.mrb[0].mxu0
    %8549 = vmatprep.mubr.bf16.mxu0 0
    %8550 = vmatmul.mubr.bf16.gmra.mrb[0].mxu0 %v8261
    %v8551 = vpop.f32.mrb[0].mxu0
    %v8552 = vadd.f32 0.0, %v8551
    %v8553 = vpop.f32.mrb[0].mxu0
    %v8554 = vpop.f32.mrb[0].mxu0
    %v8555 = vadd.f32 0.0, %v8554
    %v8556 = vpop.f32.mrb[0].mxu0
    %8557 = vmatprep.mubr.bf16.mxu0 0
    %8558 = vmatmul.mubr.bf16.gmra.mrb[0].mxu0 %v8262
    %v8559 = vpop.f32.mrb[0].mxu0
    %v8560 = vadd.f32 0.0, %v8559
    %v8561 = vpop.f32.mrb[0].mxu0
    %v8562 = vpop.f32.mrb[0].mxu0
    %v8563 = vadd.f32 0.0, %v8562
    %v8564 = vpop.f32.mrb[0].mxu0
    %8565 = vmatprep.mubr.bf16.mxu0 0
    %8566 = vmatmul.mubr.bf16.gmra.mrb[0].mxu0 %v8263
    %v8567 = vpop.f32.mrb[0].mxu0
    %v8568 = vadd.f32 0.0, %v8567
    %v8569 = vpop.f32.mrb[0].mxu0
    %v8570 = vpop.f32.mrb[0].mxu0
    %v8571 = vadd.f32 0.0, %v8570
    %v8572 = vpop.f32.mrb[0].mxu0
    %8573 = vmatprep.mubr.bf16.mxu0 0
    %8574 = vmatmul.mubr.bf16.gmra.mrb[0].mxu0 %v8264
    %v8575 = vpop.f32.mrb[0].mxu0
    %v8576 = vadd.f32 0.0, %v8575
    %v8577 = vpop.f32.mrb[0].mxu0
    %v8578 = vpop.f32.mrb[0].mxu0
    %v8579 = vadd.f32 0.0, %v8578
    %v8580 = vpop.f32.mrb[0].mxu0
    %8581 = vmatprep.mubr.bf16.mxu0 0
    %8582 = vmatmul.mubr.bf16.gmra.mrb[0].mxu0 %v8265
    %v8583 = vpop.f32.mrb[0].mxu0
    %v8584 = vadd.f32 0.0, %v8583
    %v8585 = vpop.f32.mrb[0].mxu0
    %v8586 = vpop.f32.mrb[0].mxu0
    %v8587 = vadd.f32 0.0, %v8586
    %v8588 = vpop.f32.mrb[0].mxu0
    %8589 = vmatprep.mubr.bf16.mxu0 0
    %8590 = vmatmul.mubr.bf16.gmra.mrb[0].mxu0 %v8266
    %v8591 = vpop.f32.mrb[0].mxu0
    %v8592 = vadd.f32 0.0, %v8591
    %v8593 = vpop.f32.mrb[0].mxu0
    %v8594 = vpop.f32.mrb[0].mxu0
    %v8595 = vadd.f32 0.0, %v8594
    %v8596 = vpop.f32.mrb[0].mxu0
    %8597 = vmatprep.mubr.bf16.mxu0 0
    %8598 = vmatmul.mubr.bf16.gmra.mrb[0].mxu0 %v8267
    %v8599 = vpop.f32.mrb[0].mxu0
    %v8600 = vadd.f32 0.0, %v8599
    %v8601 = vpop.f32.mrb[0].mxu0
    %v8602 = vpop.f32.mrb[0].mxu0
    %v8603 = vadd.f32 0.0, %v8602
    %v8604 = vpop.f32.mrb[0].mxu0
    %8605 = vmatprep.mubr.bf16.mxu0 0
    %8606 = vmatmul.mubr.bf16.gmra.mrb[0].mxu0 %v8268
    %v8607 = vpop.f32.mrb[0].mxu0
    %v8608 = vadd.f32 0.0, %v8607
    %v8609 = vpop.f32.mrb[0].mxu0
    %v8610 = vpop.f32.mrb[0].mxu0
    %v8611 = vadd.f32 0.0, %v8610
    %v8612 = vpop.f32.mrb[0].mxu0
    %8613 = vdwg.mxu0
    %v8614 = vadd.f32 %v7980, %v8360
    %v8615 = vadd.f32 %v7981, %v8363
    %v8616 = vadd.f32 %v7982, %v8368
    %v8617 = vadd.f32 %v7983, %v8371
    %v8618 = vadd.f32 %v7984, %v8376
    %v8619 = vadd.f32 %v7985, %v8379
    %v8620 = vadd.f32 %v7986, %v8384
    %v8621 = vadd.f32 %v7987, %v8387
    %v8622 = vadd.f32 %v7988, %v8392
    %v8623 = vadd.f32 %v7989, %v8395
    %v8624 = vadd.f32 %v7990, %v8400
    %v8625 = vadd.f32 %v7991, %v8403
    %v8626 = vadd.f32 %v7992, %v8408
    %v8627 = vadd.f32 %v7993, %v8411
    %v8628 = vadd.f32 %v7994, %v8416
    %v8629 = vadd.f32 %v7995, %v8419
    %v8630 = vadd.f32 %v7996, %v8424
    %v8631 = vadd.f32 %v7997, %v8427
    %v8632 = vadd.f32 %v7998, %v8432
    %v8633 = vadd.f32 %v7999, %v8435
    %v8634 = vadd.f32 %v8000, %v8440
    %v8635 = vadd.f32 %v8001, %v8443
    %v8636 = vadd.f32 %v8002, %v8448
    %v8637 = vadd.f32 %v8003, %v8451
    %v8638 = vadd.f32 %v8004, %v8456
    %v8639 = vadd.f32 %v8005, %v8459
    %v8640 = vadd.f32 %v8006, %v8464
    %v8641 = vadd.f32 %v8007, %v8467
    %v8642 = vadd.f32 %v8008, %v8472
    %v8643 = vadd.f32 %v8009, %v8475
    %v8644 = vadd.f32 %v8010, %v8480
    %v8645 = vadd.f32 %v8011, %v8483
    %v8646 = vadd.f32 %v8012, %v8488
    %v8647 = vadd.f32 %v8013, %v8491
    %v8648 = vadd.f32 %v8014, %v8496
    %v8649 = vadd.f32 %v8015, %v8499
    %v8650 = vadd.f32 %v8016, %v8504
    %v8651 = vadd.f32 %v8017, %v8507
    %v8652 = vadd.f32 %v8018, %v8512
    %v8653 = vadd.f32 %v8019, %v8515
    %v8654 = vadd.f32 %v8020, %v8520
    %v8655 = vadd.f32 %v8021, %v8523
    %v8656 = vadd.f32 %v8022, %v8528
    %v8657 = vadd.f32 %v8023, %v8531
    %v8658 = vadd.f32 %v8024, %v8536
    %v8659 = vadd.f32 %v8025, %v8539
    %v8660 = vadd.f32 %v8026, %v8544
    %v8661 = vadd.f32 %v8027, %v8547
    %v8662 = vadd.f32 %v8028, %v8552
    %v8663 = vadd.f32 %v8029, %v8555
    %v8664 = vadd.f32 %v8030, %v8560
    %v8665 = vadd.f32 %v8031, %v8563
    %v8666 = vadd.f32 %v8032, %v8568
    %v8667 = vadd.f32 %v8033, %v8571
    %v8668 = vadd.f32 %v8034, %v8576
    %v8669 = vadd.f32 %v8035, %v8579
    %v8670 = vadd.f32 %v8036, %v8584
    %v8671 = vadd.f32 %v8037, %v8587
    %v8672 = vadd.f32 %v8038, %v8592
    %v8673 = vadd.f32 %v8039, %v8595
    %v8674 = vadd.f32 %v8040, %v8600
    %v8675 = vadd.f32 %v8041, %v8603
    %v8676 = vadd.f32 %v8042, %v8608
    %v8677 = vadd.f32 %v8043, %v8611
    %s8678 = scalar_lea.vmem [#allocation8], 2048
    %v8679 = vld [vmem:[%s8678] sm:$0xf]
    %v8680 = vld [vmem:[%s8678 + $0x4] sm:$0xf]
    %v8681 = vld [vmem:[%s8678 + $0x8] sm:$0xf]
    %v8682 = vld [vmem:[%s8678 + $0xc] sm:$0xf]
    %v8683 = vld [vmem:[%s8678 + $0x10] sm:$0xf]
    %v8684 = vld [vmem:[%s8678 + $0x14] sm:$0xf]
    %v8685 = vld [vmem:[%s8678 + $0x18] sm:$0xf]
    %v8686 = vld [vmem:[%s8678 + $0x1c] sm:$0xf]
    %v8687 = vld [vmem:[%s8678 + $0x20] sm:$0xf]
    %v8688 = vld [vmem:[%s8678 + $0x24] sm:$0xf]
    %v8689 = vld [vmem:[%s8678 + $0x28] sm:$0xf]
    %v8690 = vld [vmem:[%s8678 + $0x2c] sm:$0xf]
    %v8691 = vld [vmem:[%s8678 + $0x30] sm:$0xf]
    %v8692 = vld [vmem:[%s8678 + $0x34] sm:$0xf]
    %v8693 = vld [vmem:[%s8678 + $0x38] sm:$0xf]
    %v8694 = vld [vmem:[%s8678 + $0x3c] sm:$0xf]
    %v8695 = vld [vmem:[%s8678 + $0x40] sm:$0xf]
    %v8696 = vld [vmem:[%s8678 + $0x44] sm:$0xf]
    %v8697 = vld [vmem:[%s8678 + $0x48] sm:$0xf]
    %v8698 = vld [vmem:[%s8678 + $0x4c] sm:$0xf]
    %v8699 = vld [vmem:[%s8678 + $0x50] sm:$0xf]
    %v8700 = vld [vmem:[%s8678 + $0x54] sm:$0xf]
    %v8701 = vld [vmem:[%s8678 + $0x58] sm:$0xf]
    %v8702 = vld [vmem:[%s8678 + $0x5c] sm:$0xf]
    %v8703 = vld [vmem:[%s8678 + $0x60] sm:$0xf]
    %v8704 = vld [vmem:[%s8678 + $0x64] sm:$0xf]
    %v8705 = vld [vmem:[%s8678 + $0x68] sm:$0xf]
    %v8706 = vld [vmem:[%s8678 + $0x6c] sm:$0xf]
    %v8707 = vld [vmem:[%s8678 + $0x70] sm:$0xf]
    %v8708 = vld [vmem:[%s8678 + $0x74] sm:$0xf]
    %v8709 = vld [vmem:[%s8678 + $0x78] sm:$0xf]
    %v8710 = vld [vmem:[%s8678 + $0x7c] sm:$0xf]
    %v8711 = vld [vmem:[%s8678 + $0x80] sm:$0xf]
    %v8712 = vld [vmem:[%s8678 + $0x84] sm:$0xf]
    %v8713 = vld [vmem:[%s8678 + $0x88] sm:$0xf]
    %v8714 = vld [vmem:[%s8678 + $0x8c] sm:$0xf]
    %v8715 = vld [vmem:[%s8678 + $0x90] sm:$0xf]
    %v8716 = vld [vmem:[%s8678 + $0x94] sm:$0xf]
    %v8717 = vld [vmem:[%s8678 + $0x98] sm:$0xf]
    %v8718 = vld [vmem:[%s8678 + $0x9c] sm:$0xf]
    %v8719 = vld [vmem:[%s8678 + $0xa0] sm:$0xf]
    %v8720 = vld [vmem:[%s8678 + $0xa4] sm:$0xf]
    %v8721 = vld [vmem:[%s8678 + $0xa8] sm:$0xf]
    %v8722 = vld [vmem:[%s8678 + $0xac] sm:$0xf]
    %v8723 = vld [vmem:[%s8678 + $0xb0] sm:$0xf]
    %v8724 = vld [vmem:[%s8678 + $0xb4] sm:$0xf]
    %v8725 = vld [vmem:[%s8678 + $0xb8] sm:$0xf]
    %v8726 = vld [vmem:[%s8678 + $0xbc] sm:$0xf]
    %v8727 = vld [vmem:[%s8678 + $0xc0] sm:$0xf]
    %v8728 = vld [vmem:[%s8678 + $0xc4] sm:$0xf]
    %v8729 = vld [vmem:[%s8678 + $0xc8] sm:$0xf]
    %v8730 = vld [vmem:[%s8678 + $0xcc] sm:$0xf]
    %v8731 = vld [vmem:[%s8678 + $0xd0] sm:$0xf]
    %v8732 = vld [vmem:[%s8678 + $0xd4] sm:$0xf]
    %v8733 = vld [vmem:[%s8678 + $0xd8] sm:$0xf]
    %v8734 = vld [vmem:[%s8678 + $0xdc] sm:$0xf]
    %v8735 = vld [vmem:[%s8678 + $0xe0] sm:$0xf]
    %v8736 = vld [vmem:[%s8678 + $0xe4] sm:$0xf]
    %v8737 = vld [vmem:[%s8678 + $0xe8] sm:$0xf]
    %v8738 = vld [vmem:[%s8678 + $0xec] sm:$0xf]
    %v8739 = vld [vmem:[%s8678 + $0xf0] sm:$0xf]
    %v8740 = vld [vmem:[%s8678 + $0xf4] sm:$0xf]
    %v8741 = vld [vmem:[%s8678 + $0xf8] sm:$0xf]
    %v8742 = vld [vmem:[%s8678 + $0xfc] sm:$0xf]
    %v8807 = vunpack.c.l.b16 %v8679
    %v8808 = vunpack.c.l.b16 %v8680
    %v8809 = vunpack.c.l.b16 %v8681
    %v8810 = vunpack.c.l.b16 %v8682
    %v8811 = vunpack.c.l.b16 %v8683
    %v8812 = vunpack.c.l.b16 %v8684
    %v8813 = vunpack.c.l.b16 %v8685
    %v8814 = vunpack.c.l.b16 %v8686
    %v8815 = vunpack.c.l.b16 %v8687
    %v8816 = vunpack.c.l.b16 %v8688
    %v8817 = vunpack.c.l.b16 %v8689
    %v8818 = vunpack.c.l.b16 %v8690
    %v8819 = vunpack.c.l.b16 %v8691
    %v8820 = vunpack.c.l.b16 %v8692
    %v8821 = vunpack.c.l.b16 %v8693
    %v8822 = vunpack.c.l.b16 %v8694
    %v8823 = vunpack.c.l.b16 %v8695
    %v8824 = vunpack.c.l.b16 %v8696
    %v8825 = vunpack.c.l.b16 %v8697
    %v8826 = vunpack.c.l.b16 %v8698
    %v8827 = vunpack.c.l.b16 %v8699
    %v8828 = vunpack.c.l.b16 %v8700
    %v8829 = vunpack.c.l.b16 %v8701
    %v8830 = vunpack.c.l.b16 %v8702
    %v8831 = vunpack.c.l.b16 %v8703
    %v8832 = vunpack.c.l.b16 %v8704
    %v8833 = vunpack.c.l.b16 %v8705
    %v8834 = vunpack.c.l.b16 %v8706
    %v8835 = vunpack.c.l.b16 %v8707
    %v8836 = vunpack.c.l.b16 %v8708
    %v8837 = vunpack.c.l.b16 %v8709
    %v8838 = vunpack.c.l.b16 %v8710
    %v8839 = vunpack.c.l.b16 %v8711
    %v8840 = vunpack.c.l.b16 %v8712
    %v8841 = vunpack.c.l.b16 %v8713
    %v8842 = vunpack.c.l.b16 %v8714
    %v8843 = vunpack.c.l.b16 %v8715
    %v8844 = vunpack.c.l.b16 %v8716
    %v8845 = vunpack.c.l.b16 %v8717
    %v8846 = vunpack.c.l.b16 %v8718
    %v8847 = vunpack.c.l.b16 %v8719
    %v8848 = vunpack.c.l.b16 %v8720
    %v8849 = vunpack.c.l.b16 %v8721
    %v8850 = vunpack.c.l.b16 %v8722
    %v8851 = vunpack.c.l.b16 %v8723
    %v8852 = vunpack.c.l.b16 %v8724
    %v8853 = vunpack.c.l.b16 %v8725
    %v8854 = vunpack.c.l.b16 %v8726
    %v8855 = vunpack.c.l.b16 %v8727
    %v8856 = vunpack.c.l.b16 %v8728
    %v8857 = vunpack.c.l.b16 %v8729
    %v8858 = vunpack.c.l.b16 %v8730
    %v8859 = vunpack.c.l.b16 %v8731
    %v8860 = vunpack.c.l.b16 %v8732
    %v8861 = vunpack.c.l.b16 %v8733
    %v8862 = vunpack.c.l.b16 %v8734
    %v8863 = vunpack.c.l.b16 %v8735
    %v8864 = vunpack.c.l.b16 %v8736
    %v8865 = vunpack.c.l.b16 %v8737
    %v8866 = vunpack.c.l.b16 %v8738
    %v8867 = vunpack.c.l.b16 %v8739
    %v8868 = vunpack.c.l.b16 %v8740
    %v8869 = vunpack.c.l.b16 %v8741
    %v8870 = vunpack.c.l.b16 %v8742
    %v8871 = vpack.c.b16 %v8808, %v8807
    %v8872 = vpack.c.b16 %v8810, %v8809
    %v8873 = vpack.c.b16 %v8812, %v8811
    %v8874 = vpack.c.b16 %v8814, %v8813
    %v8875 = vpack.c.b16 %v8816, %v8815
    %v8876 = vpack.c.b16 %v8818, %v8817
    %v8877 = vpack.c.b16 %v8820, %v8819
    %v8878 = vpack.c.b16 %v8822, %v8821
    %v8879 = vpack.c.b16 %v8824, %v8823
    %v8880 = vpack.c.b16 %v8826, %v8825
    %v8881 = vpack.c.b16 %v8828, %v8827
    %v8882 = vpack.c.b16 %v8830, %v8829
    %v8883 = vpack.c.b16 %v8832, %v8831
    %v8884 = vpack.c.b16 %v8834, %v8833
    %v8885 = vpack.c.b16 %v8836, %v8835
    %v8886 = vpack.c.b16 %v8838, %v8837
    %v8887 = vpack.c.b16 %v8840, %v8839
    %v8888 = vpack.c.b16 %v8842, %v8841
    %v8889 = vpack.c.b16 %v8844, %v8843
    %v8890 = vpack.c.b16 %v8846, %v8845
    %v8891 = vpack.c.b16 %v8848, %v8847
    %v8892 = vpack.c.b16 %v8850, %v8849
    %v8893 = vpack.c.b16 %v8852, %v8851
    %v8894 = vpack.c.b16 %v8854, %v8853
    %v8895 = vpack.c.b16 %v8856, %v8855
    %v8896 = vpack.c.b16 %v8858, %v8857
    %v8897 = vpack.c.b16 %v8860, %v8859
    %v8898 = vpack.c.b16 %v8862, %v8861
    %v8899 = vpack.c.b16 %v8864, %v8863
    %v8900 = vpack.c.b16 %v8866, %v8865
    %v8901 = vpack.c.b16 %v8868, %v8867
    %v8902 = vpack.c.b16 %v8870, %v8869
    %8935 = vrot.lane.b32.xlu0 %v3743, 64
    %v8936 = vpop.permute.xlu0 %8935
    %8937 = vrot.lane.b32.xlu0 %v3744, 64
    %v8938 = vpop.permute.xlu0 %8937
    %8939 = vrot.lane.b32.xlu0 %v3745, 64
    %v8940 = vpop.permute.xlu0 %8939
    %8941 = vrot.lane.b32.xlu0 %v3746, 64
    %v8942 = vpop.permute.xlu0 %8941
    %8943 = vrot.lane.b32.xlu0 %v3747, 64
    %v8944 = vpop.permute.xlu0 %8943
    %8945 = vrot.lane.b32.xlu0 %v3748, 64
    %v8946 = vpop.permute.xlu0 %8945
    %8947 = vrot.lane.b32.xlu0 %v3749, 64
    %v8948 = vpop.permute.xlu0 %8947
    %8949 = vrot.lane.b32.xlu0 %v3750, 64
    %v8950 = vpop.permute.xlu0 %8949
    %8959 = vmatprep.subr.bf16.mxu0 0
    %8960 = vmatpush1.bf16.msra.mxu0 %v8936
    %8961 = vmatprep.subr.bf16.mxu0 0
    %8962 = vmatpush1.bf16.msra.mxu0 %v8938
    %8963 = vmatprep.subr.bf16.mxu0 0
    %8964 = vmatpush1.bf16.msra.mxu0 %v8940
    %8965 = vmatprep.subr.bf16.mxu0 0
    %8966 = vmatpush1.bf16.msra.mxu0 %v8942
    %8967 = vmatprep.subr.bf16.mxu0 0
    %8968 = vmatpush1.bf16.msra.mxu0 %v8944
    %8969 = vmatprep.subr.bf16.mxu0 0
    %8970 = vmatpush1.bf16.msra.mxu0 %v8946
    %8971 = vmatprep.subr.bf16.mxu0 0
    %8972 = vmatpush1.bf16.msra.mxu0 %v8948
    %8973 = vmatprep.subr.bf16.mxu0 0
    %8974 = vmatpush1.bf16.msra.mxu0 %v8950
    %8975 = vmatprep.subr.bf16.mxu0 0
    %8976 = vmatpush1.bf16.msra.mxu0 0
    %8977 = vmatprep.subr.bf16.mxu0 0
    %8978 = vmatpush1.bf16.msra.mxu0 0
    %8979 = vmatprep.subr.bf16.mxu0 0
    %8980 = vmatpush1.bf16.msra.mxu0 0
    %8981 = vmatprep.subr.bf16.mxu0 0
    %8982 = vmatpush1.bf16.msra.mxu0 0
    %8983 = vmatprep.subr.bf16.mxu0 0
    %8984 = vmatpush1.bf16.msra.mxu0 0
    %8985 = vmatprep.subr.bf16.mxu0 0
    %8986 = vmatpush1.bf16.msra.mxu0 0
    %8987 = vmatprep.subr.bf16.mxu0 0
    %8988 = vmatpush1.bf16.msra.mxu0 0
    %8989 = vmatprep.subr.bf16.mxu0 0
    %8990 = vmatpush1.bf16.msra.mxu0 0
    %8991 = vmatprep.mubr.bf16.mxu0 0
    %8992 = vmatmul.mubr.bf16.gmra.mrb[0].mxu0 %v8871
    %v8993 = vpop.f32.mrb[0].mxu0
    %v8994 = vadd.f32 0.0, %v8993
    %v8995 = vpop.f32.mrb[0].mxu0
    %v8996 = vpop.f32.mrb[0].mxu0
    %v8997 = vadd.f32 0.0, %v8996
    %v8998 = vpop.f32.mrb[0].mxu0
    %8999 = vmatprep.mubr.bf16.mxu0 0
    %9000 = vmatmul.mubr.bf16.gmra.mrb[0].mxu0 %v8872
    %v9001 = vpop.f32.mrb[0].mxu0
    %v9002 = vadd.f32 0.0, %v9001
    %v9003 = vpop.f32.mrb[0].mxu0
    %v9004 = vpop.f32.mrb[0].mxu0
    %v9005 = vadd.f32 0.0, %v9004
    %v9006 = vpop.f32.mrb[0].mxu0
    %9007 = vmatprep.mubr.bf16.mxu0 0
    %9008 = vmatmul.mubr.bf16.gmra.mrb[0].mxu0 %v8873
    %v9009 = vpop.f32.mrb[0].mxu0
    %v9010 = vadd.f32 0.0, %v9009
    %v9011 = vpop.f32.mrb[0].mxu0
    %v9012 = vpop.f32.mrb[0].mxu0
    %v9013 = vadd.f32 0.0, %v9012
    %v9014 = vpop.f32.mrb[0].mxu0
    %9015 = vmatprep.mubr.bf16.mxu0 0
    %9016 = vmatmul.mubr.bf16.gmra.mrb[0].mxu0 %v8874
    %v9017 = vpop.f32.mrb[0].mxu0
    %v9018 = vadd.f32 0.0, %v9017
    %v9019 = vpop.f32.mrb[0].mxu0
    %v9020 = vpop.f32.mrb[0].mxu0
    %v9021 = vadd.f32 0.0, %v9020
    %v9022 = vpop.f32.mrb[0].mxu0
    %9023 = vmatprep.mubr.bf16.mxu0 0
    %9024 = vmatmul.mubr.bf16.gmra.mrb[0].mxu0 %v8875
    %v9025 = vpop.f32.mrb[0].mxu0
    %v9026 = vadd.f32 0.0, %v9025
    %v9027 = vpop.f32.mrb[0].mxu0
    %v9028 = vpop.f32.mrb[0].mxu0
    %v9029 = vadd.f32 0.0, %v9028
    %v9030 = vpop.f32.mrb[0].mxu0
    %9031 = vmatprep.mubr.bf16.mxu0 0
    %9032 = vmatmul.mubr.bf16.gmra.mrb[0].mxu0 %v8876
    %v9033 = vpop.f32.mrb[0].mxu0
    %v9034 = vadd.f32 0.0, %v9033
    %v9035 = vpop.f32.mrb[0].mxu0
    %v9036 = vpop.f32.mrb[0].mxu0
    %v9037 = vadd.f32 0.0, %v9036
    %v9038 = vpop.f32.mrb[0].mxu0
    %9039 = vmatprep.mubr.bf16.mxu0 0
    %9040 = vmatmul.mubr.bf16.gmra.mrb[0].mxu0 %v8877
    %v9041 = vpop.f32.mrb[0].mxu0
    %v9042 = vadd.f32 0.0, %v9041
    %v9043 = vpop.f32.mrb[0].mxu0
    %v9044 = vpop.f32.mrb[0].mxu0
    %v9045 = vadd.f32 0.0, %v9044
    %v9046 = vpop.f32.mrb[0].mxu0
    %9047 = vmatprep.mubr.bf16.mxu0 0
    %9048 = vmatmul.mubr.bf16.gmra.mrb[0].mxu0 %v8878
    %v9049 = vpop.f32.mrb[0].mxu0
    %v9050 = vadd.f32 0.0, %v9049
    %v9051 = vpop.f32.mrb[0].mxu0
    %v9052 = vpop.f32.mrb[0].mxu0
    %v9053 = vadd.f32 0.0, %v9052
    %v9054 = vpop.f32.mrb[0].mxu0
    %9055 = vmatprep.mubr.bf16.mxu0 0
    %9056 = vmatmul.mubr.bf16.gmra.mrb[0].mxu0 %v8879
    %v9057 = vpop.f32.mrb[0].mxu0
    %v9058 = vadd.f32 0.0, %v9057
    %v9059 = vpop.f32.mrb[0].mxu0
    %v9060 = vpop.f32.mrb[0].mxu0
    %v9061 = vadd.f32 0.0, %v9060
    %v9062 = vpop.f32.mrb[0].mxu0
    %9063 = vmatprep.mubr.bf16.mxu0 0
    %9064 = vmatmul.mubr.bf16.gmra.mrb[0].mxu0 %v8880
    %v9065 = vpop.f32.mrb[0].mxu0
    %v9066 = vadd.f32 0.0, %v9065
    %v9067 = vpop.f32.mrb[0].mxu0
    %v9068 = vpop.f32.mrb[0].mxu0
    %v9069 = vadd.f32 0.0, %v9068
    %v9070 = vpop.f32.mrb[0].mxu0
    %9071 = vmatprep.mubr.bf16.mxu0 0
    %9072 = vmatmul.mubr.bf16.gmra.mrb[0].mxu0 %v8881
    %v9073 = vpop.f32.mrb[0].mxu0
    %v9074 = vadd.f32 0.0, %v9073
    %v9075 = vpop.f32.mrb[0].mxu0
    %v9076 = vpop.f32.mrb[0].mxu0
    %v9077 = vadd.f32 0.0, %v9076
    %v9078 = vpop.f32.mrb[0].mxu0
    %9079 = vmatprep.mubr.bf16.mxu0 0
    %9080 = vmatmul.mubr.bf16.gmra.mrb[0].mxu0 %v8882
    %v9081 = vpop.f32.mrb[0].mxu0
    %v9082 = vadd.f32 0.0, %v9081
    %v9083 = vpop.f32.mrb[0].mxu0
    %v9084 = vpop.f32.mrb[0].mxu0
    %v9085 = vadd.f32 0.0, %v9084
    %v9086 = vpop.f32.mrb[0].mxu0
    %9087 = vmatprep.mubr.bf16.mxu0 0
    %9088 = vmatmul.mubr.bf16.gmra.mrb[0].mxu0 %v8883
    %v9089 = vpop.f32.mrb[0].mxu0
    %v9090 = vadd.f32 0.0, %v9089
    %v9091 = vpop.f32.mrb[0].mxu0
    %v9092 = vpop.f32.mrb[0].mxu0
    %v9093 = vadd.f32 0.0, %v9092
    %v9094 = vpop.f32.mrb[0].mxu0
    %9095 = vmatprep.mubr.bf16.mxu0 0
    %9096 = vmatmul.mubr.bf16.gmra.mrb[0].mxu0 %v8884
    %v9097 = vpop.f32.mrb[0].mxu0
    %v9098 = vadd.f32 0.0, %v9097
    %v9099 = vpop.f32.mrb[0].mxu0
    %v9100 = vpop.f32.mrb[0].mxu0
    %v9101 = vadd.f32 0.0, %v9100
    %v9102 = vpop.f32.mrb[0].mxu0
    %9103 = vmatprep.mubr.bf16.mxu0 0
    %9104 = vmatmul.mubr.bf16.gmra.mrb[0].mxu0 %v8885
    %v9105 = vpop.f32.mrb[0].mxu0
    %v9106 = vadd.f32 0.0, %v9105
    %v9107 = vpop.f32.mrb[0].mxu0
    %v9108 = vpop.f32.mrb[0].mxu0
    %v9109 = vadd.f32 0.0, %v9108
    %v9110 = vpop.f32.mrb[0].mxu0
    %9111 = vmatprep.mubr.bf16.mxu0 0
    %9112 = vmatmul.mubr.bf16.gmra.mrb[0].mxu0 %v8886
    %v9113 = vpop.f32.mrb[0].mxu0
    %v9114 = vadd.f32 0.0, %v9113
    %v9115 = vpop.f32.mrb[0].mxu0
    %v9116 = vpop.f32.mrb[0].mxu0
    %v9117 = vadd.f32 0.0, %v9116
    %v9118 = vpop.f32.mrb[0].mxu0
    %9119 = vmatprep.mubr.bf16.mxu0 0
    %9120 = vmatmul.mubr.bf16.gmra.mrb[0].mxu0 %v8887
    %v9121 = vpop.f32.mrb[0].mxu0
    %v9122 = vadd.f32 0.0, %v9121
    %v9123 = vpop.f32.mrb[0].mxu0
    %v9124 = vpop.f32.mrb[0].mxu0
    %v9125 = vadd.f32 0.0, %v9124
    %v9126 = vpop.f32.mrb[0].mxu0
    %9127 = vmatprep.mubr.bf16.mxu0 0
    %9128 = vmatmul.mubr.bf16.gmra.mrb[0].mxu0 %v8888
    %v9129 = vpop.f32.mrb[0].mxu0
    %v9130 = vadd.f32 0.0, %v9129
    %v9131 = vpop.f32.mrb[0].mxu0
    %v9132 = vpop.f32.mrb[0].mxu0
    %v9133 = vadd.f32 0.0, %v9132
    %v9134 = vpop.f32.mrb[0].mxu0
    %9135 = vmatprep.mubr.bf16.mxu0 0
    %9136 = vmatmul.mubr.bf16.gmra.mrb[0].mxu0 %v8889
    %v9137 = vpop.f32.mrb[0].mxu0
    %v9138 = vadd.f32 0.0, %v9137
    %v9139 = vpop.f32.mrb[0].mxu0
    %v9140 = vpop.f32.mrb[0].mxu0
    %v9141 = vadd.f32 0.0, %v9140
    %v9142 = vpop.f32.mrb[0].mxu0
    %9143 = vmatprep.mubr.bf16.mxu0 0
    %9144 = vmatmul.mubr.bf16.gmra.mrb[0].mxu0 %v8890
    %v9145 = vpop.f32.mrb[0].mxu0
    %v9146 = vadd.f32 0.0, %v9145
    %v9147 = vpop.f32.mrb[0].mxu0
    %v9148 = vpop.f32.mrb[0].mxu0
    %v9149 = vadd.f32 0.0, %v9148
    %v9150 = vpop.f32.mrb[0].mxu0
    %9151 = vmatprep.mubr.bf16.mxu0 0
    %9152 = vmatmul.mubr.bf16.gmra.mrb[0].mxu0 %v8891
    %v9153 = vpop.f32.mrb[0].mxu0
    %v9154 = vadd.f32 0.0, %v9153
    %v9155 = vpop.f32.mrb[0].mxu0
    %v9156 = vpop.f32.mrb[0].mxu0
    %v9157 = vadd.f32 0.0, %v9156
    %v9158 = vpop.f32.mrb[0].mxu0
    %9159 = vmatprep.mubr.bf16.mxu0 0
    %9160 = vmatmul.mubr.bf16.gmra.mrb[0].mxu0 %v8892
    %v9161 = vpop.f32.mrb[0].mxu0
    %v9162 = vadd.f32 0.0, %v9161
    %v9163 = vpop.f32.mrb[0].mxu0
    %v9164 = vpop.f32.mrb[0].mxu0
    %v9165 = vadd.f32 0.0, %v9164
    %v9166 = vpop.f32.mrb[0].mxu0
    %9167 = vmatprep.mubr.bf16.mxu0 0
    %9168 = vmatmul.mubr.bf16.gmra.mrb[0].mxu0 %v8893
    %v9169 = vpop.f32.mrb[0].mxu0
    %v9170 = vadd.f32 0.0, %v9169
    %v9171 = vpop.f32.mrb[0].mxu0
    %v9172 = vpop.f32.mrb[0].mxu0
    %v9173 = vadd.f32 0.0, %v9172
    %v9174 = vpop.f32.mrb[0].mxu0
    %9175 = vmatprep.mubr.bf16.mxu0 0
    %9176 = vmatmul.mubr.bf16.gmra.mrb[0].mxu0 %v8894
    %v9177 = vpop.f32.mrb[0].mxu0
    %v9178 = vadd.f32 0.0, %v9177
    %v9179 = vpop.f32.mrb[0].mxu0
    %v9180 = vpop.f32.mrb[0].mxu0
    %v9181 = vadd.f32 0.0, %v9180
    %v9182 = vpop.f32.mrb[0].mxu0
    %9183 = vmatprep.mubr.bf16.mxu0 0
    %9184 = vmatmul.mubr.bf16.gmra.mrb[0].mxu0 %v8895
    %v9185 = vpop.f32.mrb[0].mxu0
    %v9186 = vadd.f32 0.0, %v9185
    %v9187 = vpop.f32.mrb[0].mxu0
    %v9188 = vpop.f32.mrb[0].mxu0
    %v9189 = vadd.f32 0.0, %v9188
    %v9190 = vpop.f32.mrb[0].mxu0
    %9191 = vmatprep.mubr.bf16.mxu0 0
    %9192 = vmatmul.mubr.bf16.gmra.mrb[0].mxu0 %v8896
    %v9193 = vpop.f32.mrb[0].mxu0
    %v9194 = vadd.f32 0.0, %v9193
    %v9195 = vpop.f32.mrb[0].mxu0
    %v9196 = vpop.f32.mrb[0].mxu0
    %v9197 = vadd.f32 0.0, %v9196
    %v9198 = vpop.f32.mrb[0].mxu0
    %9199 = vmatprep.mubr.bf16.mxu0 0
    %9200 = vmatmul.mubr.bf16.gmra.mrb[0].mxu0 %v8897
    %v9201 = vpop.f32.mrb[0].mxu0
    %v9202 = vadd.f32 0.0, %v9201
    %v9203 = vpop.f32.mrb[0].mxu0
    %v9204 = vpop.f32.mrb[0].mxu0
    %v9205 = vadd.f32 0.0, %v9204
    %v9206 = vpop.f32.mrb[0].mxu0
    %9207 = vmatprep.mubr.bf16.mxu0 0
    %9208 = vmatmul.mubr.bf16.gmra.mrb[0].mxu0 %v8898
    %v9209 = vpop.f32.mrb[0].mxu0
    %v9210 = vadd.f32 0.0, %v9209
    %v9211 = vpop.f32.mrb[0].mxu0
    %v9212 = vpop.f32.mrb[0].mxu0
    %v9213 = vadd.f32 0.0, %v9212
    %v9214 = vpop.f32.mrb[0].mxu0
    %9215 = vmatprep.mubr.bf16.mxu0 0
    %9216 = vmatmul.mubr.bf16.gmra.mrb[0].mxu0 %v8899
    %v9217 = vpop.f32.mrb[0].mxu0
    %v9218 = vadd.f32 0.0, %v9217
    %v9219 = vpop.f32.mrb[0].mxu0
    %v9220 = vpop.f32.mrb[0].mxu0
    %v9221 = vadd.f32 0.0, %v9220
    %v9222 = vpop.f32.mrb[0].mxu0
    %9223 = vmatprep.mubr.bf16.mxu0 0
    %9224 = vmatmul.mubr.bf16.gmra.mrb[0].mxu0 %v8900
    %v9225 = vpop.f32.mrb[0].mxu0
    %v9226 = vadd.f32 0.0, %v9225
    %v9227 = vpop.f32.mrb[0].mxu0
    %v9228 = vpop.f32.mrb[0].mxu0
    %v9229 = vadd.f32 0.0, %v9228
    %v9230 = vpop.f32.mrb[0].mxu0
    %9231 = vmatprep.mubr.bf16.mxu0 0
    %9232 = vmatmul.mubr.bf16.gmra.mrb[0].mxu0 %v8901
    %v9233 = vpop.f32.mrb[0].mxu0
    %v9234 = vadd.f32 0.0, %v9233
    %v9235 = vpop.f32.mrb[0].mxu0
    %v9236 = vpop.f32.mrb[0].mxu0
    %v9237 = vadd.f32 0.0, %v9236
    %v9238 = vpop.f32.mrb[0].mxu0
    %9239 = vmatprep.mubr.bf16.mxu0 0
    %9240 = vmatmul.mubr.bf16.gmra.mrb[0].mxu0 %v8902
    %v9241 = vpop.f32.mrb[0].mxu0
    %v9242 = vadd.f32 0.0, %v9241
    %v9243 = vpop.f32.mrb[0].mxu0
    %v9244 = vpop.f32.mrb[0].mxu0
    %v9245 = vadd.f32 0.0, %v9244
    %v9246 = vpop.f32.mrb[0].mxu0
    %9247 = vdwg.mxu0
    %v9248 = vadd.f32 %v8614, %v8994
    %v9249 = vadd.f32 %v8615, %v8997
    %v9250 = vadd.f32 %v8616, %v9002
    %v9251 = vadd.f32 %v8617, %v9005
    %v9252 = vadd.f32 %v8618, %v9010
    %v9253 = vadd.f32 %v8619, %v9013
    %v9254 = vadd.f32 %v8620, %v9018
    %v9255 = vadd.f32 %v8621, %v9021
    %v9256 = vadd.f32 %v8622, %v9026
    %v9257 = vadd.f32 %v8623, %v9029
    %v9258 = vadd.f32 %v8624, %v9034
    %v9259 = vadd.f32 %v8625, %v9037
    %v9260 = vadd.f32 %v8626, %v9042
    %v9261 = vadd.f32 %v8627, %v9045
    %v9262 = vadd.f32 %v8628, %v9050
    %v9263 = vadd.f32 %v8629, %v9053
    %v9264 = vadd.f32 %v8630, %v9058
    %v9265 = vadd.f32 %v8631, %v9061
    %v9266 = vadd.f32 %v8632, %v9066
    %v9267 = vadd.f32 %v8633, %v9069
    %v9268 = vadd.f32 %v8634, %v9074
    %v9269 = vadd.f32 %v8635, %v9077
    %v9270 = vadd.f32 %v8636, %v9082
    %v9271 = vadd.f32 %v8637, %v9085
    %v9272 = vadd.f32 %v8638, %v9090
    %v9273 = vadd.f32 %v8639, %v9093
    %v9274 = vadd.f32 %v8640, %v9098
    %v9275 = vadd.f32 %v8641, %v9101
    %v9276 = vadd.f32 %v8642, %v9106
    %v9277 = vadd.f32 %v8643, %v9109
    %v9278 = vadd.f32 %v8644, %v9114
    %v9279 = vadd.f32 %v8645, %v9117
    %v9280 = vadd.f32 %v8646, %v9122
    %v9281 = vadd.f32 %v8647, %v9125
    %v9282 = vadd.f32 %v8648, %v9130
    %v9283 = vadd.f32 %v8649, %v9133
    %v9284 = vadd.f32 %v8650, %v9138
    %v9285 = vadd.f32 %v8651, %v9141
    %v9286 = vadd.f32 %v8652, %v9146
    %v9287 = vadd.f32 %v8653, %v9149
    %v9288 = vadd.f32 %v8654, %v9154
    %v9289 = vadd.f32 %v8655, %v9157
    %v9290 = vadd.f32 %v8656, %v9162
    %v9291 = vadd.f32 %v8657, %v9165
    %v9292 = vadd.f32 %v8658, %v9170
    %v9293 = vadd.f32 %v8659, %v9173
    %v9294 = vadd.f32 %v8660, %v9178
    %v9295 = vadd.f32 %v8661, %v9181
    %v9296 = vadd.f32 %v8662, %v9186
    %v9297 = vadd.f32 %v8663, %v9189
    %v9298 = vadd.f32 %v8664, %v9194
    %v9299 = vadd.f32 %v8665, %v9197
    %v9300 = vadd.f32 %v8666, %v9202
    %v9301 = vadd.f32 %v8667, %v9205
    %v9302 = vadd.f32 %v8668, %v9210
    %v9303 = vadd.f32 %v8669, %v9213
    %v9304 = vadd.f32 %v8670, %v9218
    %v9305 = vadd.f32 %v8671, %v9221
    %v9306 = vadd.f32 %v8672, %v9226
    %v9307 = vadd.f32 %v8673, %v9229
    %v9308 = vadd.f32 %v8674, %v9234
    %v9309 = vadd.f32 %v8675, %v9237
    %v9310 = vadd.f32 %v8676, %v9242
    %v9311 = vadd.f32 %v8677, %v9245
    %v9312 = vld [vmem:[%s8] sm:$0xff]
    %v9313 = vld [vmem:[%s8 + $0x8] sm:$0xff]
    %v9314 = vld [vmem:[%s8 + $0x10] sm:$0xff]
    %v9315 = vld [vmem:[%s8 + $0x18] sm:$0xff]
    %v9316 = vld [vmem:[%s8 + $0x20] sm:$0xff]
    %v9317 = vld [vmem:[%s8 + $0x28] sm:$0xff]
    %v9318 = vld [vmem:[%s8 + $0x30] sm:$0xff]
    %v9319 = vld [vmem:[%s8 + $0x38] sm:$0xff]
    %v9320 = vld [vmem:[%s8 + $0x40] sm:$0xff]
    %v9321 = vld [vmem:[%s8 + $0x48] sm:$0xff]
    %v9322 = vld [vmem:[%s8 + $0x50] sm:$0xff]
    %v9323 = vld [vmem:[%s8 + $0x58] sm:$0xff]
    %v9324 = vld [vmem:[%s8 + $0x60] sm:$0xff]
    %v9325 = vld [vmem:[%s8 + $0x68] sm:$0xff]
    %v9326 = vld [vmem:[%s8 + $0x70] sm:$0xff]
    %v9327 = vld [vmem:[%s8 + $0x78] sm:$0xff]
    %v9328 = vld [vmem:[%s8 + $0x80] sm:$0xff]
    %v9329 = vld [vmem:[%s8 + $0x88] sm:$0xff]
    %v9330 = vld [vmem:[%s8 + $0x90] sm:$0xff]
    %v9331 = vld [vmem:[%s8 + $0x98] sm:$0xff]
    %v9332 = vld [vmem:[%s8 + $0xa0] sm:$0xff]
    %v9333 = vld [vmem:[%s8 + $0xa8] sm:$0xff]
    %v9334 = vld [vmem:[%s8 + $0xb0] sm:$0xff]
    %v9335 = vld [vmem:[%s8 + $0xb8] sm:$0xff]
    %v9336 = vld [vmem:[%s8 + $0xc0] sm:$0xff]
    %v9337 = vld [vmem:[%s8 + $0xc8] sm:$0xff]
    %v9338 = vld [vmem:[%s8 + $0xd0] sm:$0xff]
    %v9339 = vld [vmem:[%s8 + $0xd8] sm:$0xff]
    %v9340 = vld [vmem:[%s8 + $0xe0] sm:$0xff]
    %v9341 = vld [vmem:[%s8 + $0xe8] sm:$0xff]
    %v9342 = vld [vmem:[%s8 + $0xf0] sm:$0xff]
    %v9343 = vld [vmem:[%s8 + $0xf8] sm:$0xff]
    %v9344 = vld [vmem:[%s8 + $0x100] sm:$0xff]
    %v9345 = vld [vmem:[%s8 + $0x108] sm:$0xff]
    %v9346 = vld [vmem:[%s8 + $0x110] sm:$0xff]
    %v9347 = vld [vmem:[%s8 + $0x118] sm:$0xff]
    %v9348 = vld [vmem:[%s8 + $0x120] sm:$0xff]
    %v9349 = vld [vmem:[%s8 + $0x128] sm:$0xff]
    %v9350 = vld [vmem:[%s8 + $0x130] sm:$0xff]
    %v9351 = vld [vmem:[%s8 + $0x138] sm:$0xff]
    %v9352 = vld [vmem:[%s8 + $0x140] sm:$0xff]
    %v9353 = vld [vmem:[%s8 + $0x148] sm:$0xff]
    %v9354 = vld [vmem:[%s8 + $0x150] sm:$0xff]
    %v9355 = vld [vmem:[%s8 + $0x158] sm:$0xff]
    %v9356 = vld [vmem:[%s8 + $0x160] sm:$0xff]
    %v9357 = vld [vmem:[%s8 + $0x168] sm:$0xff]
    %v9358 = vld [vmem:[%s8 + $0x170] sm:$0xff]
    %v9359 = vld [vmem:[%s8 + $0x178] sm:$0xff]
    %v9360 = vld [vmem:[%s8 + $0x180] sm:$0xff]
    %v9361 = vld [vmem:[%s8 + $0x188] sm:$0xff]
    %v9362 = vld [vmem:[%s8 + $0x190] sm:$0xff]
    %v9363 = vld [vmem:[%s8 + $0x198] sm:$0xff]
    %v9364 = vld [vmem:[%s8 + $0x1a0] sm:$0xff]
    %v9365 = vld [vmem:[%s8 + $0x1a8] sm:$0xff]
    %v9366 = vld [vmem:[%s8 + $0x1b0] sm:$0xff]
    %v9367 = vld [vmem:[%s8 + $0x1b8] sm:$0xff]
    %v9368 = vld [vmem:[%s8 + $0x1c0] sm:$0xff]
    %v9369 = vld [vmem:[%s8 + $0x1c8] sm:$0xff]
    %v9370 = vld [vmem:[%s8 + $0x1d0] sm:$0xff]
    %v9371 = vld [vmem:[%s8 + $0x1d8] sm:$0xff]
    %v9372 = vld [vmem:[%s8 + $0x1e0] sm:$0xff]
    %v9373 = vld [vmem:[%s8 + $0x1e8] sm:$0xff]
    %v9374 = vld [vmem:[%s8 + $0x1f0] sm:$0xff]
    %v9375 = vld [vmem:[%s8 + $0x1f8] sm:$0xff]
    %9377 = vset.pattern.permute.xlu0 0
    %9378 = vperm.xlu0 %9377, %v9312
    %v9379 = vpop.permute.xlu0 %9378
    %9382 = vset.pattern.permute.xlu0 0
    %9383 = vperm.xlu0 %9382, %v9313
    %v9384 = vpop.permute.xlu0 %9383
    %9387 = vset.pattern.permute.xlu0 0
    %9388 = vperm.xlu0 %9387, %v9314
    %v9389 = vpop.permute.xlu0 %9388
    %9392 = vset.pattern.permute.xlu0 0
    %9393 = vperm.xlu0 %9392, %v9315
    %v9394 = vpop.permute.xlu0 %9393
    %9397 = vset.pattern.permute.xlu0 0
    %9398 = vperm.xlu0 %9397, %v9316
    %v9399 = vpop.permute.xlu0 %9398
    %9402 = vset.pattern.permute.xlu0 0
    %9403 = vperm.xlu0 %9402, %v9317
    %v9404 = vpop.permute.xlu0 %9403
    %9407 = vset.pattern.permute.xlu0 0
    %9408 = vperm.xlu0 %9407, %v9318
    %v9409 = vpop.permute.xlu0 %9408
    %9412 = vset.pattern.permute.xlu0 0
    %9413 = vperm.xlu0 %9412, %v9319
    %v9414 = vpop.permute.xlu0 %9413
    %9417 = vset.pattern.permute.xlu0 0
    %9418 = vperm.xlu0 %9417, %v9320
    %v9419 = vpop.permute.xlu0 %9418
    %9422 = vset.pattern.permute.xlu0 0
    %9423 = vperm.xlu0 %9422, %v9321
    %v9424 = vpop.permute.xlu0 %9423
    %9427 = vset.pattern.permute.xlu0 0
    %9428 = vperm.xlu0 %9427, %v9322
    %v9429 = vpop.permute.xlu0 %9428
    %9432 = vset.pattern.permute.xlu0 0
    %9433 = vperm.xlu0 %9432, %v9323
    %v9434 = vpop.permute.xlu0 %9433
    %9437 = vset.pattern.permute.xlu0 0
    %9438 = vperm.xlu0 %9437, %v9324
    %v9439 = vpop.permute.xlu0 %9438
    %9442 = vset.pattern.permute.xlu0 0
    %9443 = vperm.xlu0 %9442, %v9325
    %v9444 = vpop.permute.xlu0 %9443
    %9447 = vset.pattern.permute.xlu0 0
    %9448 = vperm.xlu0 %9447, %v9326
    %v9449 = vpop.permute.xlu0 %9448
    %9452 = vset.pattern.permute.xlu0 0
    %9453 = vperm.xlu0 %9452, %v9327
    %v9454 = vpop.permute.xlu0 %9453
    %9457 = vset.pattern.permute.xlu0 0
    %9458 = vperm.xlu0 %9457, %v9328
    %v9459 = vpop.permute.xlu0 %9458
    %9462 = vset.pattern.permute.xlu0 0
    %9463 = vperm.xlu0 %9462, %v9329
    %v9464 = vpop.permute.xlu0 %9463
    %9467 = vset.pattern.permute.xlu0 0
    %9468 = vperm.xlu0 %9467, %v9330
    %v9469 = vpop.permute.xlu0 %9468
    %9472 = vset.pattern.permute.xlu0 0
    %9473 = vperm.xlu0 %9472, %v9331
    %v9474 = vpop.permute.xlu0 %9473
    %9477 = vset.pattern.permute.xlu0 0
    %9478 = vperm.xlu0 %9477, %v9332
    %v9479 = vpop.permute.xlu0 %9478
    %9482 = vset.pattern.permute.xlu0 0
    %9483 = vperm.xlu0 %9482, %v9333
    %v9484 = vpop.permute.xlu0 %9483
    %9487 = vset.pattern.permute.xlu0 0
    %9488 = vperm.xlu0 %9487, %v9334
    %v9489 = vpop.permute.xlu0 %9488
    %9492 = vset.pattern.permute.xlu0 0
    %9493 = vperm.xlu0 %9492, %v9335
    %v9494 = vpop.permute.xlu0 %9493
    %9497 = vset.pattern.permute.xlu0 0
    %9498 = vperm.xlu0 %9497, %v9336
    %v9499 = vpop.permute.xlu0 %9498
    %9502 = vset.pattern.permute.xlu0 0
    %9503 = vperm.xlu0 %9502, %v9337
    %v9504 = vpop.permute.xlu0 %9503
    %9507 = vset.pattern.permute.xlu0 0
    %9508 = vperm.xlu0 %9507, %v9338
    %v9509 = vpop.permute.xlu0 %9508
    %9512 = vset.pattern.permute.xlu0 0
    %9513 = vperm.xlu0 %9512, %v9339
    %v9514 = vpop.permute.xlu0 %9513
    %9517 = vset.pattern.permute.xlu0 0
    %9518 = vperm.xlu0 %9517, %v9340
    %v9519 = vpop.permute.xlu0 %9518
    %9522 = vset.pattern.permute.xlu0 0
    %9523 = vperm.xlu0 %9522, %v9341
    %v9524 = vpop.permute.xlu0 %9523
    %9527 = vset.pattern.permute.xlu0 0
    %9528 = vperm.xlu0 %9527, %v9342
    %v9529 = vpop.permute.xlu0 %9528
    %9532 = vset.pattern.permute.xlu0 0
    %9533 = vperm.xlu0 %9532, %v9343
    %v9534 = vpop.permute.xlu0 %9533
    %9537 = vset.pattern.permute.xlu0 0
    %9538 = vperm.xlu0 %9537, %v9344
    %v9539 = vpop.permute.xlu0 %9538
    %9542 = vset.pattern.permute.xlu0 0
    %9543 = vperm.xlu0 %9542, %v9345
    %v9544 = vpop.permute.xlu0 %9543
    %9547 = vset.pattern.permute.xlu0 0
    %9548 = vperm.xlu0 %9547, %v9346
    %v9549 = vpop.permute.xlu0 %9548
    %9552 = vset.pattern.permute.xlu0 0
    %9553 = vperm.xlu0 %9552, %v9347
    %v9554 = vpop.permute.xlu0 %9553
    %9557 = vset.pattern.permute.xlu0 0
    %9558 = vperm.xlu0 %9557, %v9348
    %v9559 = vpop.permute.xlu0 %9558
    %9562 = vset.pattern.permute.xlu0 0
    %9563 = vperm.xlu0 %9562, %v9349
    %v9564 = vpop.permute.xlu0 %9563
    %9567 = vset.pattern.permute.xlu0 0
    %9568 = vperm.xlu0 %9567, %v9350
    %v9569 = vpop.permute.xlu0 %9568
    %9572 = vset.pattern.permute.xlu0 0
    %9573 = vperm.xlu0 %9572, %v9351
    %v9574 = vpop.permute.xlu0 %9573
    %9577 = vset.pattern.permute.xlu0 0
    %9578 = vperm.xlu0 %9577, %v9352
    %v9579 = vpop.permute.xlu0 %9578
    %9582 = vset.pattern.permute.xlu0 0
    %9583 = vperm.xlu0 %9582, %v9353
    %v9584 = vpop.permute.xlu0 %9583
    %9587 = vset.pattern.permute.xlu0 0
    %9588 = vperm.xlu0 %9587, %v9354
    %v9589 = vpop.permute.xlu0 %9588
    %9592 = vset.pattern.permute.xlu0 0
    %9593 = vperm.xlu0 %9592, %v9355
    %v9594 = vpop.permute.xlu0 %9593
    %9597 = vset.pattern.permute.xlu0 0
    %9598 = vperm.xlu0 %9597, %v9356
    %v9599 = vpop.permute.xlu0 %9598
    %9602 = vset.pattern.permute.xlu0 0
    %9603 = vperm.xlu0 %9602, %v9357
    %v9604 = vpop.permute.xlu0 %9603
    %9607 = vset.pattern.permute.xlu0 0
    %9608 = vperm.xlu0 %9607, %v9358
    %v9609 = vpop.permute.xlu0 %9608
    %9612 = vset.pattern.permute.xlu0 0
    %9613 = vperm.xlu0 %9612, %v9359
    %v9614 = vpop.permute.xlu0 %9613
    %9617 = vset.pattern.permute.xlu0 0
    %9618 = vperm.xlu0 %9617, %v9360
    %v9619 = vpop.permute.xlu0 %9618
    %9622 = vset.pattern.permute.xlu0 0
    %9623 = vperm.xlu0 %9622, %v9361
    %v9624 = vpop.permute.xlu0 %9623
    %9627 = vset.pattern.permute.xlu0 0
    %9628 = vperm.xlu0 %9627, %v9362
    %v9629 = vpop.permute.xlu0 %9628
    %9632 = vset.pattern.permute.xlu0 0
    %9633 = vperm.xlu0 %9632, %v9363
    %v9634 = vpop.permute.xlu0 %9633
    %9637 = vset.pattern.permute.xlu0 0
    %9638 = vperm.xlu0 %9637, %v9364
    %v9639 = vpop.permute.xlu0 %9638
    %9642 = vset.pattern.permute.xlu0 0
    %9643 = vperm.xlu0 %9642, %v9365
    %v9644 = vpop.permute.xlu0 %9643
    %9647 = vset.pattern.permute.xlu0 0
    %9648 = vperm.xlu0 %9647, %v9366
    %v9649 = vpop.permute.xlu0 %9648
    %9652 = vset.pattern.permute.xlu0 0
    %9653 = vperm.xlu0 %9652, %v9367
    %v9654 = vpop.permute.xlu0 %9653
    %9657 = vset.pattern.permute.xlu0 0
    %9658 = vperm.xlu0 %9657, %v9368
    %v9659 = vpop.permute.xlu0 %9658
    %9662 = vset.pattern.permute.xlu0 0
    %9663 = vperm.xlu0 %9662, %v9369
    %v9664 = vpop.permute.xlu0 %9663
    %9667 = vset.pattern.permute.xlu0 0
    %9668 = vperm.xlu0 %9667, %v9370
    %v9669 = vpop.permute.xlu0 %9668
    %9672 = vset.pattern.permute.xlu0 0
    %9673 = vperm.xlu0 %9672, %v9371
    %v9674 = vpop.permute.xlu0 %9673
    %9677 = vset.pattern.permute.xlu0 0
    %9678 = vperm.xlu0 %9677, %v9372
    %v9679 = vpop.permute.xlu0 %9678
    %9682 = vset.pattern.permute.xlu0 0
    %9683 = vperm.xlu0 %9682, %v9373
    %v9684 = vpop.permute.xlu0 %9683
    %9687 = vset.pattern.permute.xlu0 0
    %9688 = vperm.xlu0 %9687, %v9374
    %v9689 = vpop.permute.xlu0 %9688
    %9692 = vset.pattern.permute.xlu0 0
    %9693 = vperm.xlu0 %9692, %v9375
    %v9694 = vpop.permute.xlu0 %9693
    %v9696 = vadd.f32 %v9248, %v9379
    %v9697 = vadd.f32 %v9249, %v9384
    %v9698 = vadd.f32 %v9250, %v9389
    %v9699 = vadd.f32 %v9251, %v9394
    %v9700 = vadd.f32 %v9252, %v9399
    %v9701 = vadd.f32 %v9253, %v9404
    %v9702 = vadd.f32 %v9254, %v9409
    %v9703 = vadd.f32 %v9255, %v9414
    %v9704 = vadd.f32 %v9256, %v9419
    %v9705 = vadd.f32 %v9257, %v9424
    %v9706 = vadd.f32 %v9258, %v9429
    %v9707 = vadd.f32 %v9259, %v9434
    %v9708 = vadd.f32 %v9260, %v9439
    %v9709 = vadd.f32 %v9261, %v9444
    %v9710 = vadd.f32 %v9262, %v9449
    %v9711 = vadd.f32 %v9263, %v9454
    %v9712 = vadd.f32 %v9264, %v9459
    %v9713 = vadd.f32 %v9265, %v9464
    %v9714 = vadd.f32 %v9266, %v9469
    %v9715 = vadd.f32 %v9267, %v9474
    %v9716 = vadd.f32 %v9268, %v9479
    %v9717 = vadd.f32 %v9269, %v9484
    %v9718 = vadd.f32 %v9270, %v9489
    %v9719 = vadd.f32 %v9271, %v9494
    %v9720 = vadd.f32 %v9272, %v9499
    %v9721 = vadd.f32 %v9273, %v9504
    %v9722 = vadd.f32 %v9274, %v9509
    %v9723 = vadd.f32 %v9275, %v9514
    %v9724 = vadd.f32 %v9276, %v9519
    %v9725 = vadd.f32 %v9277, %v9524
    %v9726 = vadd.f32 %v9278, %v9529
    %v9727 = vadd.f32 %v9279, %v9534
    %v9728 = vadd.f32 %v9280, %v9539
    %v9729 = vadd.f32 %v9281, %v9544
    %v9730 = vadd.f32 %v9282, %v9549
    %v9731 = vadd.f32 %v9283, %v9554
    %v9732 = vadd.f32 %v9284, %v9559
    %v9733 = vadd.f32 %v9285, %v9564
    %v9734 = vadd.f32 %v9286, %v9569
    %v9735 = vadd.f32 %v9287, %v9574
    %v9736 = vadd.f32 %v9288, %v9579
    %v9737 = vadd.f32 %v9289, %v9584
    %v9738 = vadd.f32 %v9290, %v9589
    %v9739 = vadd.f32 %v9291, %v9594
    %v9740 = vadd.f32 %v9292, %v9599
    %v9741 = vadd.f32 %v9293, %v9604
    %v9742 = vadd.f32 %v9294, %v9609
    %v9743 = vadd.f32 %v9295, %v9614
    %v9744 = vadd.f32 %v9296, %v9619
    %v9745 = vadd.f32 %v9297, %v9624
    %v9746 = vadd.f32 %v9298, %v9629
    %v9747 = vadd.f32 %v9299, %v9634
    %v9748 = vadd.f32 %v9300, %v9639
    %v9749 = vadd.f32 %v9301, %v9644
    %v9750 = vadd.f32 %v9302, %v9649
    %v9751 = vadd.f32 %v9303, %v9654
    %v9752 = vadd.f32 %v9304, %v9659
    %v9753 = vadd.f32 %v9305, %v9664
    %v9754 = vadd.f32 %v9306, %v9669
    %v9755 = vadd.f32 %v9307, %v9674
    %v9756 = vadd.f32 %v9308, %v9679
    %v9757 = vadd.f32 %v9309, %v9684
    %v9758 = vadd.f32 %v9310, %v9689
    %v9759 = vadd.f32 %v9311, %v9694
    %v9760 = vmul.f32 %v9696, 0.1
    %v9761 = vmul.f32 %v9697, 0.1
    %v9762 = vmul.f32 %v9698, 0.1
    %v9763 = vmul.f32 %v9699, 0.1
    %v9764 = vmul.f32 %v9700, 0.1
    %v9765 = vmul.f32 %v9701, 0.1
    %v9766 = vmul.f32 %v9702, 0.1
    %v9767 = vmul.f32 %v9703, 0.1
    %v9768 = vmul.f32 %v9704, 0.1
    %v9769 = vmul.f32 %v9705, 0.1
    %v9770 = vmul.f32 %v9706, 0.1
    %v9771 = vmul.f32 %v9707, 0.1
    %v9772 = vmul.f32 %v9708, 0.1
    %v9773 = vmul.f32 %v9709, 0.1
    %v9774 = vmul.f32 %v9710, 0.1
    %v9775 = vmul.f32 %v9711, 0.1
    %v9776 = vmul.f32 %v9712, 0.1
    %v9777 = vmul.f32 %v9713, 0.1
    %v9778 = vmul.f32 %v9714, 0.1
    %v9779 = vmul.f32 %v9715, 0.1
    %v9780 = vmul.f32 %v9716, 0.1
    %v9781 = vmul.f32 %v9717, 0.1
    %v9782 = vmul.f32 %v9718, 0.1
    %v9783 = vmul.f32 %v9719, 0.1
    %v9784 = vmul.f32 %v9720, 0.1
    %v9785 = vmul.f32 %v9721, 0.1
    %v9786 = vmul.f32 %v9722, 0.1
    %v9787 = vmul.f32 %v9723, 0.1
    %v9788 = vmul.f32 %v9724, 0.1
    %v9789 = vmul.f32 %v9725, 0.1
    %v9790 = vmul.f32 %v9726, 0.1
    %v9791 = vmul.f32 %v9727, 0.1
    %v9792 = vmul.f32 %v9728, 0.1
    %v9793 = vmul.f32 %v9729, 0.1
    %v9794 = vmul.f32 %v9730, 0.1
    %v9795 = vmul.f32 %v9731, 0.1
    %v9796 = vmul.f32 %v9732, 0.1
    %v9797 = vmul.f32 %v9733, 0.1
    %v9798 = vmul.f32 %v9734, 0.1
    %v9799 = vmul.f32 %v9735, 0.1
    %v9800 = vmul.f32 %v9736, 0.1
    %v9801 = vmul.f32 %v9737, 0.1
    %v9802 = vmul.f32 %v9738, 0.1
    %v9803 = vmul.f32 %v9739, 0.1
    %v9804 = vmul.f32 %v9740, 0.1
    %v9805 = vmul.f32 %v9741, 0.1
    %v9806 = vmul.f32 %v9742, 0.1
    %v9807 = vmul.f32 %v9743, 0.1
    %v9808 = vmul.f32 %v9744, 0.1
    %v9809 = vmul.f32 %v9745, 0.1
    %v9810 = vmul.f32 %v9746, 0.1
    %v9811 = vmul.f32 %v9747, 0.1
    %v9812 = vmul.f32 %v9748, 0.1
    %v9813 = vmul.f32 %v9749, 0.1
    %v9814 = vmul.f32 %v9750, 0.1
    %v9815 = vmul.f32 %v9751, 0.1
    %v9816 = vmul.f32 %v9752, 0.1
    %v9817 = vmul.f32 %v9753, 0.1
    %v9818 = vmul.f32 %v9754, 0.1
    %v9819 = vmul.f32 %v9755, 0.1
    %v9820 = vmul.f32 %v9756, 0.1
    %v9821 = vmul.f32 %v9757, 0.1
    %v9822 = vmul.f32 %v9758, 0.1
    %v9823 = vmul.f32 %v9759, 0.1
    %v9824 = vmax.f32 %v9696, %v9760
    %v9825 = vmax.f32 %v9697, %v9761
    %v9826 = vmax.f32 %v9698, %v9762
    %v9827 = vmax.f32 %v9699, %v9763
    %v9828 = vmax.f32 %v9700, %v9764
    %v9829 = vmax.f32 %v9701, %v9765
    %v9830 = vmax.f32 %v9702, %v9766
    %v9831 = vmax.f32 %v9703, %v9767
    %v9832 = vmax.f32 %v9704, %v9768
    %v9833 = vmax.f32 %v9705, %v9769
    %v9834 = vmax.f32 %v9706, %v9770
    %v9835 = vmax.f32 %v9707, %v9771
    %v9836 = vmax.f32 %v9708, %v9772
    %v9837 = vmax.f32 %v9709, %v9773
    %v9838 = vmax.f32 %v9710, %v9774
    %v9839 = vmax.f32 %v9711, %v9775
    %v9840 = vmax.f32 %v9712, %v9776
    %v9841 = vmax.f32 %v9713, %v9777
    %v9842 = vmax.f32 %v9714, %v9778
    %v9843 = vmax.f32 %v9715, %v9779
    %v9844 = vmax.f32 %v9716, %v9780
    %v9845 = vmax.f32 %v9717, %v9781
    %v9846 = vmax.f32 %v9718, %v9782
    %v9847 = vmax.f32 %v9719, %v9783
    %v9848 = vmax.f32 %v9720, %v9784
    %v9849 = vmax.f32 %v9721, %v9785
    %v9850 = vmax.f32 %v9722, %v9786
    %v9851 = vmax.f32 %v9723, %v9787
    %v9852 = vmax.f32 %v9724, %v9788
    %v9853 = vmax.f32 %v9725, %v9789
    %v9854 = vmax.f32 %v9726, %v9790
    %v9855 = vmax.f32 %v9727, %v9791
    %v9856 = vmax.f32 %v9728, %v9792
    %v9857 = vmax.f32 %v9729, %v9793
    %v9858 = vmax.f32 %v9730, %v9794
    %v9859 = vmax.f32 %v9731, %v9795
    %v9860 = vmax.f32 %v9732, %v9796
    %v9861 = vmax.f32 %v9733, %v9797
    %v9862 = vmax.f32 %v9734, %v9798
    %v9863 = vmax.f32 %v9735, %v9799
    %v9864 = vmax.f32 %v9736, %v9800
    %v9865 = vmax.f32 %v9737, %v9801
    %v9866 = vmax.f32 %v9738, %v9802
    %v9867 = vmax.f32 %v9739, %v9803
    %v9868 = vmax.f32 %v9740, %v9804
    %v9869 = vmax.f32 %v9741, %v9805
    %v9870 = vmax.f32 %v9742, %v9806
    %v9871 = vmax.f32 %v9743, %v9807
    %v9872 = vmax.f32 %v9744, %v9808
    %v9873 = vmax.f32 %v9745, %v9809
    %v9874 = vmax.f32 %v9746, %v9810
    %v9875 = vmax.f32 %v9747, %v9811
    %v9876 = vmax.f32 %v9748, %v9812
    %v9877 = vmax.f32 %v9749, %v9813
    %v9878 = vmax.f32 %v9750, %v9814
    %v9879 = vmax.f32 %v9751, %v9815
    %v9880 = vmax.f32 %v9752, %v9816
    %v9881 = vmax.f32 %v9753, %v9817
    %v9882 = vmax.f32 %v9754, %v9818
    %v9883 = vmax.f32 %v9755, %v9819
    %v9884 = vmax.f32 %v9756, %v9820
    %v9885 = vmax.f32 %v9757, %v9821
    %v9886 = vmax.f32 %v9758, %v9822
    %v9887 = vmax.f32 %v9759, %v9823
    %v9888 = vpack.c.bf16 %v9825, %v9824
    %v9889 = vpack.c.bf16 %v9827, %v9826
    %v9890 = vpack.c.bf16 %v9829, %v9828
    %v9891 = vpack.c.bf16 %v9831, %v9830
    %v9892 = vpack.c.bf16 %v9833, %v9832
    %v9893 = vpack.c.bf16 %v9835, %v9834
    %v9894 = vpack.c.bf16 %v9837, %v9836
    %v9895 = vpack.c.bf16 %v9839, %v9838
    %v9896 = vpack.c.bf16 %v9841, %v9840
    %v9897 = vpack.c.bf16 %v9843, %v9842
    %v9898 = vpack.c.bf16 %v9845, %v9844
    %v9899 = vpack.c.bf16 %v9847, %v9846
    %v9900 = vpack.c.bf16 %v9849, %v9848
    %v9901 = vpack.c.bf16 %v9851, %v9850
    %v9902 = vpack.c.bf16 %v9853, %v9852
    %v9903 = vpack.c.bf16 %v9855, %v9854
    %v9904 = vpack.c.bf16 %v9857, %v9856
    %v9905 = vpack.c.bf16 %v9859, %v9858
    %v9906 = vpack.c.bf16 %v9861, %v9860
    %v9907 = vpack.c.bf16 %v9863, %v9862
    %v9908 = vpack.c.bf16 %v9865, %v9864
    %v9909 = vpack.c.bf16 %v9867, %v9866
    %v9910 = vpack.c.bf16 %v9869, %v9868
    %v9911 = vpack.c.bf16 %v9871, %v9870
    %v9912 = vpack.c.bf16 %v9873, %v9872
    %v9913 = vpack.c.bf16 %v9875, %v9874
    %v9914 = vpack.c.bf16 %v9877, %v9876
    %v9915 = vpack.c.bf16 %v9879, %v9878
    %v9916 = vpack.c.bf16 %v9881, %v9880
    %v9917 = vpack.c.bf16 %v9883, %v9882
    %v9918 = vpack.c.bf16 %v9885, %v9884
    %v9919 = vpack.c.bf16 %v9887, %v9886
    %v9920 = vld [vmem:[#allocation10] sm:$0xff]
    %v9921 = vld [vmem:[#allocation10 + $0x8] sm:$0xff]
    %v9922 = vld [vmem:[#allocation10 + $0x10] sm:$0xff]
    %v9923 = vld [vmem:[#allocation10 + $0x18] sm:$0xff]
    %v9924 = vld [vmem:[#allocation10 + $0x20] sm:$0xff]
    %v9925 = vld [vmem:[#allocation10 + $0x28] sm:$0xff]
    %v9926 = vld [vmem:[#allocation10 + $0x30] sm:$0xff]
    %v9927 = vld [vmem:[#allocation10 + $0x38] sm:$0xff]
    %v9928 = vld [vmem:[#allocation10 + $0x40] sm:$0xff]
    %v9929 = vld [vmem:[#allocation10 + $0x48] sm:$0xff]
    %v9930 = vld [vmem:[#allocation10 + $0x50] sm:$0xff]
    %v9931 = vld [vmem:[#allocation10 + $0x58] sm:$0xff]
    %v9932 = vld [vmem:[#allocation10 + $0x60] sm:$0xff]
    %v9933 = vld [vmem:[#allocation10 + $0x68] sm:$0xff]
    %v9934 = vld [vmem:[#allocation10 + $0x70] sm:$0xff]
    %v9935 = vld [vmem:[#allocation10 + $0x78] sm:$0xff]
    %v9936 = vld [vmem:[#allocation10 + $0x80] sm:$0xff]
    %v9937 = vld [vmem:[#allocation10 + $0x88] sm:$0xff]
    %v9938 = vld [vmem:[#allocation10 + $0x90] sm:$0xff]
    %v9939 = vld [vmem:[#allocation10 + $0x98] sm:$0xff]
    %v9940 = vld [vmem:[#allocation10 + $0xa0] sm:$0xff]
    %v9941 = vld [vmem:[#allocation10 + $0xa8] sm:$0xff]
    %v9942 = vld [vmem:[#allocation10 + $0xb0] sm:$0xff]
    %v9943 = vld [vmem:[#allocation10 + $0xb8] sm:$0xff]
    %v9944 = vld [vmem:[#allocation10 + $0xc0] sm:$0xff]
    %v9945 = vld [vmem:[#allocation10 + $0xc8] sm:$0xff]
    %v9946 = vld [vmem:[#allocation10 + $0xd0] sm:$0xff]
    %v9947 = vld [vmem:[#allocation10 + $0xd8] sm:$0xff]
    %v9948 = vld [vmem:[#allocation10 + $0xe0] sm:$0xff]
    %v9949 = vld [vmem:[#allocation10 + $0xe8] sm:$0xff]
    %v9950 = vld [vmem:[#allocation10 + $0xf0] sm:$0xff]
    %v9951 = vld [vmem:[#allocation10 + $0xf8] sm:$0xff]
    %v9952 = vld [vmem:[#allocation10 + $0x100] sm:$0xff]
    %v9953 = vld [vmem:[#allocation10 + $0x108] sm:$0xff]
    %v9954 = vld [vmem:[#allocation10 + $0x110] sm:$0xff]
    %v9955 = vld [vmem:[#allocation10 + $0x118] sm:$0xff]
    %v9956 = vld [vmem:[#allocation10 + $0x120] sm:$0xff]
    %v9957 = vld [vmem:[#allocation10 + $0x128] sm:$0xff]
    %v9958 = vld [vmem:[#allocation10 + $0x130] sm:$0xff]
    %v9959 = vld [vmem:[#allocation10 + $0x138] sm:$0xff]
    %v9960 = vld [vmem:[#allocation10 + $0x140] sm:$0xff]
    %v9961 = vld [vmem:[#allocation10 + $0x148] sm:$0xff]
    %v9962 = vld [vmem:[#allocation10 + $0x150] sm:$0xff]
    %v9963 = vld [vmem:[#allocation10 + $0x158] sm:$0xff]
    %v9964 = vld [vmem:[#allocation10 + $0x160] sm:$0xff]
    %v9965 = vld [vmem:[#allocation10 + $0x168] sm:$0xff]
    %v9966 = vld [vmem:[#allocation10 + $0x170] sm:$0xff]
    %v9967 = vld [vmem:[#allocation10 + $0x178] sm:$0xff]
    %v9968 = vld [vmem:[#allocation10 + $0x180] sm:$0xff]
    %v9969 = vld [vmem:[#allocation10 + $0x188] sm:$0xff]
    %v9970 = vld [vmem:[#allocation10 + $0x190] sm:$0xff]
    %v9971 = vld [vmem:[#allocation10 + $0x198] sm:$0xff]
    %v9972 = vld [vmem:[#allocation10 + $0x1a0] sm:$0xff]
    %v9973 = vld [vmem:[#allocation10 + $0x1a8] sm:$0xff]
    %v9974 = vld [vmem:[#allocation10 + $0x1b0] sm:$0xff]
    %v9975 = vld [vmem:[#allocation10 + $0x1b8] sm:$0xff]
    %v9976 = vld [vmem:[#allocation10 + $0x1c0] sm:$0xff]
    %v9977 = vld [vmem:[#allocation10 + $0x1c8] sm:$0xff]
    %v9978 = vld [vmem:[#allocation10 + $0x1d0] sm:$0xff]
    %v9979 = vld [vmem:[#allocation10 + $0x1d8] sm:$0xff]
    %v9980 = vld [vmem:[#allocation10 + $0x1e0] sm:$0xff]
    %v9981 = vld [vmem:[#allocation10 + $0x1e8] sm:$0xff]
    %v9982 = vld [vmem:[#allocation10 + $0x1f0] sm:$0xff]
    %v9983 = vld [vmem:[#allocation10 + $0x1f8] sm:$0xff]
    %v9984 = vld [vmem:[%s10] sm:$0xff]
    %v9985 = vld [vmem:[%s10 + $0x8] sm:$0xff]
    %v9986 = vld [vmem:[%s10 + $0x10] sm:$0xff]
    %v9987 = vld [vmem:[%s10 + $0x18] sm:$0xff]
    %v9988 = vld [vmem:[%s10 + $0x20] sm:$0xff]
    %v9989 = vld [vmem:[%s10 + $0x28] sm:$0xff]
    %v9990 = vld [vmem:[%s10 + $0x30] sm:$0xff]
    %v9991 = vld [vmem:[%s10 + $0x38] sm:$0xff]
    %v9992 = vld [vmem:[%s10 + $0x40] sm:$0xff]
    %v9993 = vld [vmem:[%s10 + $0x48] sm:$0xff]
    %v9994 = vld [vmem:[%s10 + $0x50] sm:$0xff]
    %v9995 = vld [vmem:[%s10 + $0x58] sm:$0xff]
    %v9996 = vld [vmem:[%s10 + $0x60] sm:$0xff]
    %v9997 = vld [vmem:[%s10 + $0x68] sm:$0xff]
    %v9998 = vld [vmem:[%s10 + $0x70] sm:$0xff]
    %v9999 = vld [vmem:[%s10 + $0x78] sm:$0xff]
    %v10000 = vld [vmem:[%s10 + $0x80] sm:$0xff]
    %v10001 = vld [vmem:[%s10 + $0x88] sm:$0xff]
    %v10002 = vld [vmem:[%s10 + $0x90] sm:$0xff]
    %v10003 = vld [vmem:[%s10 + $0x98] sm:$0xff]
    %v10004 = vld [vmem:[%s10 + $0xa0] sm:$0xff]
    %v10005 = vld [vmem:[%s10 + $0xa8] sm:$0xff]
    %v10006 = vld [vmem:[%s10 + $0xb0] sm:$0xff]
    %v10007 = vld [vmem:[%s10 + $0xb8] sm:$0xff]
    %v10008 = vld [vmem:[%s10 + $0xc0] sm:$0xff]
    %v10009 = vld [vmem:[%s10 + $0xc8] sm:$0xff]
    %v10010 = vld [vmem:[%s10 + $0xd0] sm:$0xff]
    %v10011 = vld [vmem:[%s10 + $0xd8] sm:$0xff]
    %v10012 = vld [vmem:[%s10 + $0xe0] sm:$0xff]
    %v10013 = vld [vmem:[%s10 + $0xe8] sm:$0xff]
    %v10014 = vld [vmem:[%s10 + $0xf0] sm:$0xff]
    %v10015 = vld [vmem:[%s10 + $0xf8] sm:$0xff]
    %10017 = vset.pattern.permute.xlu0 0
    %10018 = vperm.xlu0 %10017, %v9984
    %v10019 = vpop.permute.xlu0 %10018
    %10022 = vset.pattern.permute.xlu0 0
    %10023 = vperm.xlu0 %10022, %v9985
    %v10024 = vpop.permute.xlu0 %10023
    %10027 = vset.pattern.permute.xlu0 0
    %10028 = vperm.xlu0 %10027, %v9986
    %v10029 = vpop.permute.xlu0 %10028
    %10032 = vset.pattern.permute.xlu0 0
    %10033 = vperm.xlu0 %10032, %v9987
    %v10034 = vpop.permute.xlu0 %10033
    %10037 = vset.pattern.permute.xlu0 0
    %10038 = vperm.xlu0 %10037, %v9988
    %v10039 = vpop.permute.xlu0 %10038
    %10042 = vset.pattern.permute.xlu0 0
    %10043 = vperm.xlu0 %10042, %v9989
    %v10044 = vpop.permute.xlu0 %10043
    %10047 = vset.pattern.permute.xlu0 0
    %10048 = vperm.xlu0 %10047, %v9990
    %v10049 = vpop.permute.xlu0 %10048
    %10052 = vset.pattern.permute.xlu0 0
    %10053 = vperm.xlu0 %10052, %v9991
    %v10054 = vpop.permute.xlu0 %10053
    %10057 = vset.pattern.permute.xlu0 0
    %10058 = vperm.xlu0 %10057, %v9992
    %v10059 = vpop.permute.xlu0 %10058
    %10062 = vset.pattern.permute.xlu0 0
    %10063 = vperm.xlu0 %10062, %v9993
    %v10064 = vpop.permute.xlu0 %10063
    %10067 = vset.pattern.permute.xlu0 0
    %10068 = vperm.xlu0 %10067, %v9994
    %v10069 = vpop.permute.xlu0 %10068
    %10072 = vset.pattern.permute.xlu0 0
    %10073 = vperm.xlu0 %10072, %v9995
    %v10074 = vpop.permute.xlu0 %10073
    %10077 = vset.pattern.permute.xlu0 0
    %10078 = vperm.xlu0 %10077, %v9996
    %v10079 = vpop.permute.xlu0 %10078
    %10082 = vset.pattern.permute.xlu0 0
    %10083 = vperm.xlu0 %10082, %v9997
    %v10084 = vpop.permute.xlu0 %10083
    %10087 = vset.pattern.permute.xlu0 0
    %10088 = vperm.xlu0 %10087, %v9998
    %v10089 = vpop.permute.xlu0 %10088
    %10092 = vset.pattern.permute.xlu0 0
    %10093 = vperm.xlu0 %10092, %v9999
    %v10094 = vpop.permute.xlu0 %10093
    %10097 = vset.pattern.permute.xlu0 0
    %10098 = vperm.xlu0 %10097, %v10000
    %v10099 = vpop.permute.xlu0 %10098
    %10102 = vset.pattern.permute.xlu0 0
    %10103 = vperm.xlu0 %10102, %v10001
    %v10104 = vpop.permute.xlu0 %10103
    %10107 = vset.pattern.permute.xlu0 0
    %10108 = vperm.xlu0 %10107, %v10002
    %v10109 = vpop.permute.xlu0 %10108
    %10112 = vset.pattern.permute.xlu0 0
    %10113 = vperm.xlu0 %10112, %v10003
    %v10114 = vpop.permute.xlu0 %10113
    %10117 = vset.pattern.permute.xlu0 0
    %10118 = vperm.xlu0 %10117, %v10004
    %v10119 = vpop.permute.xlu0 %10118
    %10122 = vset.pattern.permute.xlu0 0
    %10123 = vperm.xlu0 %10122, %v10005
    %v10124 = vpop.permute.xlu0 %10123
    %10127 = vset.pattern.permute.xlu0 0
    %10128 = vperm.xlu0 %10127, %v10006
    %v10129 = vpop.permute.xlu0 %10128
    %10132 = vset.pattern.permute.xlu0 0
    %10133 = vperm.xlu0 %10132, %v10007
    %v10134 = vpop.permute.xlu0 %10133
    %10137 = vset.pattern.permute.xlu0 0
    %10138 = vperm.xlu0 %10137, %v10008
    %v10139 = vpop.permute.xlu0 %10138
    %10142 = vset.pattern.permute.xlu0 0
    %10143 = vperm.xlu0 %10142, %v10009
    %v10144 = vpop.permute.xlu0 %10143
    %10147 = vset.pattern.permute.xlu0 0
    %10148 = vperm.xlu0 %10147, %v10010
    %v10149 = vpop.permute.xlu0 %10148
    %10152 = vset.pattern.permute.xlu0 0
    %10153 = vperm.xlu0 %10152, %v10011
    %v10154 = vpop.permute.xlu0 %10153
    %10157 = vset.pattern.permute.xlu0 0
    %10158 = vperm.xlu0 %10157, %v10012
    %v10159 = vpop.permute.xlu0 %10158
    %10162 = vset.pattern.permute.xlu0 0
    %10163 = vperm.xlu0 %10162, %v10013
    %v10164 = vpop.permute.xlu0 %10163
    %10167 = vset.pattern.permute.xlu0 0
    %10168 = vperm.xlu0 %10167, %v10014
    %v10169 = vpop.permute.xlu0 %10168
    %10172 = vset.pattern.permute.xlu0 0
    %10173 = vperm.xlu0 %10172, %v10015
    %v10174 = vpop.permute.xlu0 %10173
    %v10240 = vunpack.c.l.b16 %v9920
    %v10241 = vunpack.c.h.b16 %v9920
    %v10242 = vunpack.c.l.b16 %v9921
    %v10243 = vunpack.c.h.b16 %v9921
    %v10244 = vunpack.c.l.b16 %v9922
    %v10245 = vunpack.c.h.b16 %v9922
    %v10246 = vunpack.c.l.b16 %v9923
    %v10247 = vunpack.c.h.b16 %v9923
    %v10248 = vunpack.c.l.b16 %v9924
    %v10249 = vunpack.c.h.b16 %v9924
    %v10250 = vunpack.c.l.b16 %v9925
    %v10251 = vunpack.c.h.b16 %v9925
    %v10252 = vunpack.c.l.b16 %v9926
    %v10253 = vunpack.c.h.b16 %v9926
    %v10254 = vunpack.c.l.b16 %v9927
    %v10255 = vunpack.c.h.b16 %v9927
    %v10256 = vunpack.c.l.b16 %v9928
    %v10257 = vunpack.c.h.b16 %v9928
    %v10258 = vunpack.c.l.b16 %v9929
    %v10259 = vunpack.c.h.b16 %v9929
    %v10260 = vunpack.c.l.b16 %v9930
    %v10261 = vunpack.c.h.b16 %v9930
    %v10262 = vunpack.c.l.b16 %v9931
    %v10263 = vunpack.c.h.b16 %v9931
    %v10264 = vunpack.c.l.b16 %v9932
    %v10265 = vunpack.c.h.b16 %v9932
    %v10266 = vunpack.c.l.b16 %v9933
    %v10267 = vunpack.c.h.b16 %v9933
    %v10268 = vunpack.c.l.b16 %v9934
    %v10269 = vunpack.c.h.b16 %v9934
    %v10270 = vunpack.c.l.b16 %v9935
    %v10271 = vunpack.c.h.b16 %v9935
    %v10272 = vunpack.c.l.b16 %v9936
    %v10273 = vunpack.c.h.b16 %v9936
    %v10274 = vunpack.c.l.b16 %v9937
    %v10275 = vunpack.c.h.b16 %v9937
    %v10276 = vunpack.c.l.b16 %v9938
    %v10277 = vunpack.c.h.b16 %v9938
    %v10278 = vunpack.c.l.b16 %v9939
    %v10279 = vunpack.c.h.b16 %v9939
    %v10280 = vunpack.c.l.b16 %v9940
    %v10281 = vunpack.c.h.b16 %v9940
    %v10282 = vunpack.c.l.b16 %v9941
    %v10283 = vunpack.c.h.b16 %v9941
    %v10284 = vunpack.c.l.b16 %v9942
    %v10285 = vunpack.c.h.b16 %v9942
    %v10286 = vunpack.c.l.b16 %v9943
    %v10287 = vunpack.c.h.b16 %v9943
    %v10288 = vunpack.c.l.b16 %v9944
    %v10289 = vunpack.c.h.b16 %v9944
    %v10290 = vunpack.c.l.b16 %v9945
    %v10291 = vunpack.c.h.b16 %v9945
    %v10292 = vunpack.c.l.b16 %v9946
    %v10293 = vunpack.c.h.b16 %v9946
    %v10294 = vunpack.c.l.b16 %v9947
    %v10295 = vunpack.c.h.b16 %v9947
    %v10296 = vunpack.c.l.b16 %v9948
    %v10297 = vunpack.c.h.b16 %v9948
    %v10298 = vunpack.c.l.b16 %v9949
    %v10299 = vunpack.c.h.b16 %v9949
    %v10300 = vunpack.c.l.b16 %v9950
    %v10301 = vunpack.c.h.b16 %v9950
    %v10302 = vunpack.c.l.b16 %v9951
    %v10303 = vunpack.c.h.b16 %v9951
    %v10304 = vunpack.c.l.b16 %v9952
    %v10305 = vunpack.c.h.b16 %v9952
    %v10306 = vunpack.c.l.b16 %v9953
    %v10307 = vunpack.c.h.b16 %v9953
    %v10308 = vunpack.c.l.b16 %v9954
    %v10309 = vunpack.c.h.b16 %v9954
    %v10310 = vunpack.c.l.b16 %v9955
    %v10311 = vunpack.c.h.b16 %v9955
    %v10312 = vunpack.c.l.b16 %v9956
    %v10313 = vunpack.c.h.b16 %v9956
    %v10314 = vunpack.c.l.b16 %v9957
    %v10315 = vunpack.c.h.b16 %v9957
    %v10316 = vunpack.c.l.b16 %v9958
    %v10317 = vunpack.c.h.b16 %v9958
    %v10318 = vunpack.c.l.b16 %v9959
    %v10319 = vunpack.c.h.b16 %v9959
    %v10320 = vunpack.c.l.b16 %v9960
    %v10321 = vunpack.c.h.b16 %v9960
    %v10322 = vunpack.c.l.b16 %v9961
    %v10323 = vunpack.c.h.b16 %v9961
    %v10324 = vunpack.c.l.b16 %v9962
    %v10325 = vunpack.c.h.b16 %v9962
    %v10326 = vunpack.c.l.b16 %v9963
    %v10327 = vunpack.c.h.b16 %v9963
    %v10328 = vunpack.c.l.b16 %v9964
    %v10329 = vunpack.c.h.b16 %v9964
    %v10330 = vunpack.c.l.b16 %v9965
    %v10331 = vunpack.c.h.b16 %v9965
    %v10332 = vunpack.c.l.b16 %v9966
    %v10333 = vunpack.c.h.b16 %v9966
    %v10334 = vunpack.c.l.b16 %v9967
    %v10335 = vunpack.c.h.b16 %v9967
    %v10336 = vunpack.c.l.b16 %v9968
    %v10337 = vunpack.c.h.b16 %v9968
    %v10338 = vunpack.c.l.b16 %v9969
    %v10339 = vunpack.c.h.b16 %v9969
    %v10340 = vunpack.c.l.b16 %v9970
    %v10341 = vunpack.c.h.b16 %v9970
    %v10342 = vunpack.c.l.b16 %v9971
    %v10343 = vunpack.c.h.b16 %v9971
    %v10344 = vunpack.c.l.b16 %v9972
    %v10345 = vunpack.c.h.b16 %v9972
    %v10346 = vunpack.c.l.b16 %v9973
    %v10347 = vunpack.c.h.b16 %v9973
    %v10348 = vunpack.c.l.b16 %v9974
    %v10349 = vunpack.c.h.b16 %v9974
    %v10350 = vunpack.c.l.b16 %v9975
    %v10351 = vunpack.c.h.b16 %v9975
    %v10352 = vunpack.c.l.b16 %v9976
    %v10353 = vunpack.c.h.b16 %v9976
    %v10354 = vunpack.c.l.b16 %v9977
    %v10355 = vunpack.c.h.b16 %v9977
    %v10356 = vunpack.c.l.b16 %v9978
    %v10357 = vunpack.c.h.b16 %v9978
    %v10358 = vunpack.c.l.b16 %v9979
    %v10359 = vunpack.c.h.b16 %v9979
    %v10360 = vunpack.c.l.b16 %v9980
    %v10361 = vunpack.c.h.b16 %v9980
    %v10362 = vunpack.c.l.b16 %v9981
    %v10363 = vunpack.c.h.b16 %v9981
    %v10364 = vunpack.c.l.b16 %v9982
    %v10365 = vunpack.c.h.b16 %v9982
    %v10366 = vunpack.c.l.b16 %v9983
    %v10367 = vunpack.c.h.b16 %v9983
    %v10368 = vpack.c.b16 %v10244, %v10240
    %v10369 = vpack.c.b16 %v10245, %v10241
    %v10370 = vpack.c.b16 %v10246, %v10242
    %v10371 = vpack.c.b16 %v10247, %v10243
    %v10372 = vpack.c.b16 %v10252, %v10248
    %v10373 = vpack.c.b16 %v10253, %v10249
    %v10374 = vpack.c.b16 %v10254, %v10250
    %v10375 = vpack.c.b16 %v10255, %v10251
    %v10376 = vpack.c.b16 %v10260, %v10256
    %v10377 = vpack.c.b16 %v10261, %v10257
    %v10378 = vpack.c.b16 %v10262, %v10258
    %v10379 = vpack.c.b16 %v10263, %v10259
    %v10380 = vpack.c.b16 %v10268, %v10264
    %v10381 = vpack.c.b16 %v10269, %v10265
    %v10382 = vpack.c.b16 %v10270, %v10266
    %v10383 = vpack.c.b16 %v10271, %v10267
    %v10384 = vpack.c.b16 %v10276, %v10272
    %v10385 = vpack.c.b16 %v10277, %v10273
    %v10386 = vpack.c.b16 %v10278, %v10274
    %v10387 = vpack.c.b16 %v10279, %v10275
    %v10388 = vpack.c.b16 %v10284, %v10280
    %v10389 = vpack.c.b16 %v10285, %v10281
    %v10390 = vpack.c.b16 %v10286, %v10282
    %v10391 = vpack.c.b16 %v10287, %v10283
    %v10392 = vpack.c.b16 %v10292, %v10288
    %v10393 = vpack.c.b16 %v10293, %v10289
    %v10394 = vpack.c.b16 %v10294, %v10290
    %v10395 = vpack.c.b16 %v10295, %v10291
    %v10396 = vpack.c.b16 %v10300, %v10296
    %v10397 = vpack.c.b16 %v10301, %v10297
    %v10398 = vpack.c.b16 %v10302, %v10298
    %v10399 = vpack.c.b16 %v10303, %v10299
    %v10400 = vpack.c.b16 %v10308, %v10304
    %v10401 = vpack.c.b16 %v10309, %v10305
    %v10402 = vpack.c.b16 %v10310, %v10306
    %v10403 = vpack.c.b16 %v10311, %v10307
    %v10404 = vpack.c.b16 %v10316, %v10312
    %v10405 = vpack.c.b16 %v10317, %v10313
    %v10406 = vpack.c.b16 %v10318, %v10314
    %v10407 = vpack.c.b16 %v10319, %v10315
    %v10408 = vpack.c.b16 %v10324, %v10320
    %v10409 = vpack.c.b16 %v10325, %v10321
    %v10410 = vpack.c.b16 %v10326, %v10322
    %v10411 = vpack.c.b16 %v10327, %v10323
    %v10412 = vpack.c.b16 %v10332, %v10328
    %v10413 = vpack.c.b16 %v10333, %v10329
    %v10414 = vpack.c.b16 %v10334, %v10330
    %v10415 = vpack.c.b16 %v10335, %v10331
    %v10416 = vpack.c.b16 %v10340, %v10336
    %v10417 = vpack.c.b16 %v10341, %v10337
    %v10418 = vpack.c.b16 %v10342, %v10338
    %v10419 = vpack.c.b16 %v10343, %v10339
    %v10420 = vpack.c.b16 %v10348, %v10344
    %v10421 = vpack.c.b16 %v10349, %v10345
    %v10422 = vpack.c.b16 %v10350, %v10346
    %v10423 = vpack.c.b16 %v10351, %v10347
    %v10424 = vpack.c.b16 %v10356, %v10352
    %v10425 = vpack.c.b16 %v10357, %v10353
    %v10426 = vpack.c.b16 %v10358, %v10354
    %v10427 = vpack.c.b16 %v10359, %v10355
    %v10428 = vpack.c.b16 %v10364, %v10360
    %v10429 = vpack.c.b16 %v10365, %v10361
    %v10430 = vpack.c.b16 %v10366, %v10362
    %v10431 = vpack.c.b16 %v10367, %v10363
    %10496 = vmatprep.subr.bf16.mxu0 0
    %10497 = vmatpush1.bf16.msra.mxu0 %v9888
    %10498 = vmatprep.subr.bf16.mxu0 0
    %10499 = vmatpush1.bf16.msra.mxu0 %v9889
    %10500 = vmatprep.subr.bf16.mxu0 0
    %10501 = vmatpush1.bf16.msra.mxu0 %v9890
    %10502 = vmatprep.subr.bf16.mxu0 0
    %10503 = vmatpush1.bf16.msra.mxu0 %v9891
    %10504 = vmatprep.subr.bf16.mxu0 0
    %10505 = vmatpush1.bf16.msra.mxu0 %v9892
    %10506 = vmatprep.subr.bf16.mxu0 0
    %10507 = vmatpush1.bf16.msra.mxu0 %v9893
    %10508 = vmatprep.subr.bf16.mxu0 0
    %10509 = vmatpush1.bf16.msra.mxu0 %v9894
    %10510 = vmatprep.subr.bf16.mxu0 0
    %10511 = vmatpush1.bf16.msra.mxu0 %v9895
    %10512 = vmatprep.subr.bf16.mxu0 0
    %10513 = vmatpush1.bf16.msra.mxu0 %v9896
    %10514 = vmatprep.subr.bf16.mxu0 0
    %10515 = vmatpush1.bf16.msra.mxu0 %v9897
    %10516 = vmatprep.subr.bf16.mxu0 0
    %10517 = vmatpush1.bf16.msra.mxu0 %v9898
    %10518 = vmatprep.subr.bf16.mxu0 0
    %10519 = vmatpush1.bf16.msra.mxu0 %v9899
    %10520 = vmatprep.subr.bf16.mxu0 0
    %10521 = vmatpush1.bf16.msra.mxu0 %v9900
    %10522 = vmatprep.subr.bf16.mxu0 0
    %10523 = vmatpush1.bf16.msra.mxu0 %v9901
    %10524 = vmatprep.subr.bf16.mxu0 0
    %10525 = vmatpush1.bf16.msra.mxu0 %v9902
    %10526 = vmatprep.subr.bf16.mxu0 0
    %10527 = vmatpush1.bf16.msra.mxu0 %v9903
    %10528 = vmatprep.mubr.bf16.mxu0 %v10369
    %10529 = vmatmul.mubr.bf16.gmra.mrb[0].mxu0 %v10368
    %v10530 = vpop.f32.mrb[0].mxu0
    %v10531 = vadd.f32 %v10019, %v10530
    %v10532 = vpop.f32.mrb[0].mxu0
    %v10533 = vpop.f32.mrb[0].mxu0
    %v10534 = vadd.f32 %v10024, %v10533
    %v10535 = vpop.f32.mrb[0].mxu0
    %10536 = vmatprep.mubr.bf16.mxu0 %v10373
    %10537 = vmatmul.mubr.bf16.gmra.mrb[0].mxu0 %v10372
    %v10538 = vpop.f32.mrb[0].mxu0
    %v10539 = vadd.f32 %v10029, %v10538
    %v10540 = vpop.f32.mrb[0].mxu0
    %v10541 = vpop.f32.mrb[0].mxu0
    %v10542 = vadd.f32 %v10034, %v10541
    %v10543 = vpop.f32.mrb[0].mxu0
    %10544 = vmatprep.mubr.bf16.mxu0 %v10377
    %10545 = vmatmul.mubr.bf16.gmra.mrb[0].mxu0 %v10376
    %v10546 = vpop.f32.mrb[0].mxu0
    %v10547 = vadd.f32 %v10039, %v10546
    %v10548 = vpop.f32.mrb[0].mxu0
    %v10549 = vpop.f32.mrb[0].mxu0
    %v10550 = vadd.f32 %v10044, %v10549
    %v10551 = vpop.f32.mrb[0].mxu0
    %10552 = vmatprep.mubr.bf16.mxu0 %v10381
    %10553 = vmatmul.mubr.bf16.gmra.mrb[0].mxu0 %v10380
    %v10554 = vpop.f32.mrb[0].mxu0
    %v10555 = vadd.f32 %v10049, %v10554
    %v10556 = vpop.f32.mrb[0].mxu0
    %v10557 = vpop.f32.mrb[0].mxu0
    %v10558 = vadd.f32 %v10054, %v10557
    %v10559 = vpop.f32.mrb[0].mxu0
    %10560 = vmatprep.mubr.bf16.mxu0 %v10385
    %10561 = vmatmul.mubr.bf16.gmra.mrb[0].mxu0 %v10384
    %v10562 = vpop.f32.mrb[0].mxu0
    %v10563 = vadd.f32 %v10059, %v10562
    %v10564 = vpop.f32.mrb[0].mxu0
    %v10565 = vpop.f32.mrb[0].mxu0
    %v10566 = vadd.f32 %v10064, %v10565
    %v10567 = vpop.f32.mrb[0].mxu0
    %10568 = vmatprep.mubr.bf16.mxu0 %v10389
    %10569 = vmatmul.mubr.bf16.gmra.mrb[0].mxu0 %v10388
    %v10570 = vpop.f32.mrb[0].mxu0
    %v10571 = vadd.f32 %v10069, %v10570
    %v10572 = vpop.f32.mrb[0].mxu0
    %v10573 = vpop.f32.mrb[0].mxu0
    %v10574 = vadd.f32 %v10074, %v10573
    %v10575 = vpop.f32.mrb[0].mxu0
    %10576 = vmatprep.mubr.bf16.mxu0 %v10393
    %10577 = vmatmul.mubr.bf16.gmra.mrb[0].mxu0 %v10392
    %v10578 = vpop.f32.mrb[0].mxu0
    %v10579 = vadd.f32 %v10079, %v10578
    %v10580 = vpop.f32.mrb[0].mxu0
    %v10581 = vpop.f32.mrb[0].mxu0
    %v10582 = vadd.f32 %v10084, %v10581
    %v10583 = vpop.f32.mrb[0].mxu0
    %10584 = vmatprep.mubr.bf16.mxu0 %v10397
    %10585 = vmatmul.mubr.bf16.gmra.mrb[0].mxu0 %v10396
    %v10586 = vpop.f32.mrb[0].mxu0
    %v10587 = vadd.f32 %v10089, %v10586
    %v10588 = vpop.f32.mrb[0].mxu0
    %v10589 = vpop.f32.mrb[0].mxu0
    %v10590 = vadd.f32 %v10094, %v10589
    %v10591 = vpop.f32.mrb[0].mxu0
    %10592 = vmatprep.mubr.bf16.mxu0 %v10401
    %10593 = vmatmul.mubr.bf16.gmra.mrb[0].mxu0 %v10400
    %v10594 = vpop.f32.mrb[0].mxu0
    %v10595 = vadd.f32 %v10099, %v10594
    %v10596 = vpop.f32.mrb[0].mxu0
    %v10597 = vpop.f32.mrb[0].mxu0
    %v10598 = vadd.f32 %v10104, %v10597
    %v10599 = vpop.f32.mrb[0].mxu0
    %10600 = vmatprep.mubr.bf16.mxu0 %v10405
    %10601 = vmatmul.mubr.bf16.gmra.mrb[0].mxu0 %v10404
    %v10602 = vpop.f32.mrb[0].mxu0
    %v10603 = vadd.f32 %v10109, %v10602
    %v10604 = vpop.f32.mrb[0].mxu0
    %v10605 = vpop.f32.mrb[0].mxu0
    %v10606 = vadd.f32 %v10114, %v10605
    %v10607 = vpop.f32.mrb[0].mxu0
    %10608 = vmatprep.mubr.bf16.mxu0 %v10409
    %10609 = vmatmul.mubr.bf16.gmra.mrb[0].mxu0 %v10408
    %v10610 = vpop.f32.mrb[0].mxu0
    %v10611 = vadd.f32 %v10119, %v10610
    %v10612 = vpop.f32.mrb[0].mxu0
    %v10613 = vpop.f32.mrb[0].mxu0
    %v10614 = vadd.f32 %v10124, %v10613
    %v10615 = vpop.f32.mrb[0].mxu0
    %10616 = vmatprep.mubr.bf16.mxu0 %v10413
    %10617 = vmatmul.mubr.bf16.gmra.mrb[0].mxu0 %v10412
    %v10618 = vpop.f32.mrb[0].mxu0
    %v10619 = vadd.f32 %v10129, %v10618
    %v10620 = vpop.f32.mrb[0].mxu0
    %v10621 = vpop.f32.mrb[0].mxu0
    %v10622 = vadd.f32 %v10134, %v10621
    %v10623 = vpop.f32.mrb[0].mxu0
    %10624 = vmatprep.mubr.bf16.mxu0 %v10417
    %10625 = vmatmul.mubr.bf16.gmra.mrb[0].mxu0 %v10416
    %v10626 = vpop.f32.mrb[0].mxu0
    %v10627 = vadd.f32 %v10139, %v10626
    %v10628 = vpop.f32.mrb[0].mxu0
    %v10629 = vpop.f32.mrb[0].mxu0
    %v10630 = vadd.f32 %v10144, %v10629
    %v10631 = vpop.f32.mrb[0].mxu0
    %10632 = vmatprep.mubr.bf16.mxu0 %v10421
    %10633 = vmatmul.mubr.bf16.gmra.mrb[0].mxu0 %v10420
    %v10634 = vpop.f32.mrb[0].mxu0
    %v10635 = vadd.f32 %v10149, %v10634
    %v10636 = vpop.f32.mrb[0].mxu0
    %v10637 = vpop.f32.mrb[0].mxu0
    %v10638 = vadd.f32 %v10154, %v10637
    %v10639 = vpop.f32.mrb[0].mxu0
    %10640 = vmatprep.mubr.bf16.mxu0 %v10425
    %10641 = vmatmul.mubr.bf16.gmra.mrb[0].mxu0 %v10424
    %v10642 = vpop.f32.mrb[0].mxu0
    %v10643 = vadd.f32 %v10159, %v10642
    %v10644 = vpop.f32.mrb[0].mxu0
    %v10645 = vpop.f32.mrb[0].mxu0
    %v10646 = vadd.f32 %v10164, %v10645
    %v10647 = vpop.f32.mrb[0].mxu0
    %10648 = vmatprep.mubr.bf16.mxu0 %v10429
    %10649 = vmatmul.mubr.bf16.gmra.mrb[0].mxu0 %v10428
    %v10650 = vpop.f32.mrb[0].mxu0
    %v10651 = vadd.f32 %v10169, %v10650
    %v10652 = vpop.f32.mrb[0].mxu0
    %v10653 = vpop.f32.mrb[0].mxu0
    %v10654 = vadd.f32 %v10174, %v10653
    %v10655 = vpop.f32.mrb[0].mxu0
    %10656 = vdwg.mxu0
    %10657 = vmatprep.subr.bf16.mxu0 0
    %10658 = vmatpush1.bf16.msra.mxu0 %v9904
    %10659 = vmatprep.subr.bf16.mxu0 0
    %10660 = vmatpush1.bf16.msra.mxu0 %v9905
    %10661 = vmatprep.subr.bf16.mxu0 0
    %10662 = vmatpush1.bf16.msra.mxu0 %v9906
    %10663 = vmatprep.subr.bf16.mxu0 0
    %10664 = vmatpush1.bf16.msra.mxu0 %v9907
    %10665 = vmatprep.subr.bf16.mxu0 0
    %10666 = vmatpush1.bf16.msra.mxu0 %v9908
    %10667 = vmatprep.subr.bf16.mxu0 0
    %10668 = vmatpush1.bf16.msra.mxu0 %v9909
    %10669 = vmatprep.subr.bf16.mxu0 0
    %10670 = vmatpush1.bf16.msra.mxu0 %v9910
    %10671 = vmatprep.subr.bf16.mxu0 0
    %10672 = vmatpush1.bf16.msra.mxu0 %v9911
    %10673 = vmatprep.subr.bf16.mxu0 0
    %10674 = vmatpush1.bf16.msra.mxu0 %v9912
    %10675 = vmatprep.subr.bf16.mxu0 0
    %10676 = vmatpush1.bf16.msra.mxu0 %v9913
    %10677 = vmatprep.subr.bf16.mxu0 0
    %10678 = vmatpush1.bf16.msra.mxu0 %v9914
    %10679 = vmatprep.subr.bf16.mxu0 0
    %10680 = vmatpush1.bf16.msra.mxu0 %v9915
    %10681 = vmatprep.subr.bf16.mxu0 0
    %10682 = vmatpush1.bf16.msra.mxu0 %v9916
    %10683 = vmatprep.subr.bf16.mxu0 0
    %10684 = vmatpush1.bf16.msra.mxu0 %v9917
    %10685 = vmatprep.subr.bf16.mxu0 0
    %10686 = vmatpush1.bf16.msra.mxu0 %v9918
    %10687 = vmatprep.subr.bf16.mxu0 0
    %10688 = vmatpush1.bf16.msra.mxu0 %v9919
    %10689 = vmatprep.mubr.bf16.mxu0 %v10371
    %10690 = vmatmul.mubr.bf16.gmra.mrb[0].mxu0 %v10370
    %v10691 = vpop.f32.mrb[0].mxu0
    %v10692 = vadd.f32 %v10531, %v10691
    %v10693 = vpop.f32.mrb[0].mxu0
    %v10694 = vpop.f32.mrb[0].mxu0
    %v10695 = vadd.f32 %v10534, %v10694
    %v10696 = vpop.f32.mrb[0].mxu0
    %10697 = vmatprep.mubr.bf16.mxu0 %v10375
    %10698 = vmatmul.mubr.bf16.gmra.mrb[0].mxu0 %v10374
    %v10699 = vpop.f32.mrb[0].mxu0
    %v10700 = vadd.f32 %v10539, %v10699
    %v10701 = vpop.f32.mrb[0].mxu0
    %v10702 = vpop.f32.mrb[0].mxu0
    %v10703 = vadd.f32 %v10542, %v10702
    %v10704 = vpop.f32.mrb[0].mxu0
    %10705 = vmatprep.mubr.bf16.mxu0 %v10379
    %10706 = vmatmul.mubr.bf16.gmra.mrb[0].mxu0 %v10378
    %v10707 = vpop.f32.mrb[0].mxu0
    %v10708 = vadd.f32 %v10547, %v10707
    %v10709 = vpop.f32.mrb[0].mxu0
    %v10710 = vpop.f32.mrb[0].mxu0
    %v10711 = vadd.f32 %v10550, %v10710
    %v10712 = vpop.f32.mrb[0].mxu0
    %10713 = vmatprep.mubr.bf16.mxu0 %v10383
    %10714 = vmatmul.mubr.bf16.gmra.mrb[0].mxu0 %v10382
    %v10715 = vpop.f32.mrb[0].mxu0
    %v10716 = vadd.f32 %v10555, %v10715
    %v10717 = vpop.f32.mrb[0].mxu0
    %v10718 = vpop.f32.mrb[0].mxu0
    %v10719 = vadd.f32 %v10558, %v10718
    %v10720 = vpop.f32.mrb[0].mxu0
    %10721 = vmatprep.mubr.bf16.mxu0 %v10387
    %10722 = vmatmul.mubr.bf16.gmra.mrb[0].mxu0 %v10386
    %v10723 = vpop.f32.mrb[0].mxu0
    %v10724 = vadd.f32 %v10563, %v10723
    %v10725 = vpop.f32.mrb[0].mxu0
    %v10726 = vpop.f32.mrb[0].mxu0
    %v10727 = vadd.f32 %v10566, %v10726
    %v10728 = vpop.f32.mrb[0].mxu0
    %10729 = vmatprep.mubr.bf16.mxu0 %v10391
    %10730 = vmatmul.mubr.bf16.gmra.mrb[0].mxu0 %v10390
    %v10731 = vpop.f32.mrb[0].mxu0
    %v10732 = vadd.f32 %v10571, %v10731
    %v10733 = vpop.f32.mrb[0].mxu0
    %v10734 = vpop.f32.mrb[0].mxu0
    %v10735 = vadd.f32 %v10574, %v10734
    %v10736 = vpop.f32.mrb[0].mxu0
    %10737 = vmatprep.mubr.bf16.mxu0 %v10395
    %10738 = vmatmul.mubr.bf16.gmra.mrb[0].mxu0 %v10394
    %v10739 = vpop.f32.mrb[0].mxu0
    %v10740 = vadd.f32 %v10579, %v10739
    %v10741 = vpop.f32.mrb[0].mxu0
    %v10742 = vpop.f32.mrb[0].mxu0
    %v10743 = vadd.f32 %v10582, %v10742
    %v10744 = vpop.f32.mrb[0].mxu0
    %10745 = vmatprep.mubr.bf16.mxu0 %v10399
    %10746 = vmatmul.mubr.bf16.gmra.mrb[0].mxu0 %v10398
    %v10747 = vpop.f32.mrb[0].mxu0
    %v10748 = vadd.f32 %v10587, %v10747
    %v10749 = vpop.f32.mrb[0].mxu0
    %v10750 = vpop.f32.mrb[0].mxu0
    %v10751 = vadd.f32 %v10590, %v10750
    %v10752 = vpop.f32.mrb[0].mxu0
    %10753 = vmatprep.mubr.bf16.mxu0 %v10403
    %10754 = vmatmul.mubr.bf16.gmra.mrb[0].mxu0 %v10402
    %v10755 = vpop.f32.mrb[0].mxu0
    %v10756 = vadd.f32 %v10595, %v10755
    %v10757 = vpop.f32.mrb[0].mxu0
    %v10758 = vpop.f32.mrb[0].mxu0
    %v10759 = vadd.f32 %v10598, %v10758
    %v10760 = vpop.f32.mrb[0].mxu0
    %10761 = vmatprep.mubr.bf16.mxu0 %v10407
    %10762 = vmatmul.mubr.bf16.gmra.mrb[0].mxu0 %v10406
    %v10763 = vpop.f32.mrb[0].mxu0
    %v10764 = vadd.f32 %v10603, %v10763
    %v10765 = vpop.f32.mrb[0].mxu0
    %v10766 = vpop.f32.mrb[0].mxu0
    %v10767 = vadd.f32 %v10606, %v10766
    %v10768 = vpop.f32.mrb[0].mxu0
    %10769 = vmatprep.mubr.bf16.mxu0 %v10411
    %10770 = vmatmul.mubr.bf16.gmra.mrb[0].mxu0 %v10410
    %v10771 = vpop.f32.mrb[0].mxu0
    %v10772 = vadd.f32 %v10611, %v10771
    %v10773 = vpop.f32.mrb[0].mxu0
    %v10774 = vpop.f32.mrb[0].mxu0
    %v10775 = vadd.f32 %v10614, %v10774
    %v10776 = vpop.f32.mrb[0].mxu0
    %10777 = vmatprep.mubr.bf16.mxu0 %v10415
    %10778 = vmatmul.mubr.bf16.gmra.mrb[0].mxu0 %v10414
    %v10779 = vpop.f32.mrb[0].mxu0
    %v10780 = vadd.f32 %v10619, %v10779
    %v10781 = vpop.f32.mrb[0].mxu0
    %v10782 = vpop.f32.mrb[0].mxu0
    %v10783 = vadd.f32 %v10622, %v10782
    %v10784 = vpop.f32.mrb[0].mxu0
    %10785 = vmatprep.mubr.bf16.mxu0 %v10419
    %10786 = vmatmul.mubr.bf16.gmra.mrb[0].mxu0 %v10418
    %v10787 = vpop.f32.mrb[0].mxu0
    %v10788 = vadd.f32 %v10627, %v10787
    %v10789 = vpop.f32.mrb[0].mxu0
    %v10790 = vpop.f32.mrb[0].mxu0
    %v10791 = vadd.f32 %v10630, %v10790
    %v10792 = vpop.f32.mrb[0].mxu0
    %10793 = vmatprep.mubr.bf16.mxu0 %v10423
    %10794 = vmatmul.mubr.bf16.gmra.mrb[0].mxu0 %v10422
    %v10795 = vpop.f32.mrb[0].mxu0
    %v10796 = vadd.f32 %v10635, %v10795
    %v10797 = vpop.f32.mrb[0].mxu0
    %v10798 = vpop.f32.mrb[0].mxu0
    %v10799 = vadd.f32 %v10638, %v10798
    %v10800 = vpop.f32.mrb[0].mxu0
    %10801 = vmatprep.mubr.bf16.mxu0 %v10427
    %10802 = vmatmul.mubr.bf16.gmra.mrb[0].mxu0 %v10426
    %v10803 = vpop.f32.mrb[0].mxu0
    %v10804 = vadd.f32 %v10643, %v10803
    %v10805 = vpop.f32.mrb[0].mxu0
    %v10806 = vpop.f32.mrb[0].mxu0
    %v10807 = vadd.f32 %v10646, %v10806
    %v10808 = vpop.f32.mrb[0].mxu0
    %10809 = vmatprep.mubr.bf16.mxu0 %v10431
    %10810 = vmatmul.mubr.bf16.gmra.mrb[0].mxu0 %v10430
    %v10811 = vpop.f32.mrb[0].mxu0
    %v10812 = vadd.f32 %v10651, %v10811
    %v10813 = vpop.f32.mrb[0].mxu0
    %v10814 = vpop.f32.mrb[0].mxu0
    %v10815 = vadd.f32 %v10654, %v10814
    %v10816 = vpop.f32.mrb[0].mxu0
    %10817 = vdwg.mxu0
    %v10818 = vmul.f32 %v10692, 0.1
    %v10819 = vmul.f32 %v10695, 0.1
    %v10820 = vmul.f32 %v10700, 0.1
    %v10821 = vmul.f32 %v10703, 0.1
    %v10822 = vmul.f32 %v10708, 0.1
    %v10823 = vmul.f32 %v10711, 0.1
    %v10824 = vmul.f32 %v10716, 0.1
    %v10825 = vmul.f32 %v10719, 0.1
    %v10826 = vmul.f32 %v10724, 0.1
    %v10827 = vmul.f32 %v10727, 0.1
    %v10828 = vmul.f32 %v10732, 0.1
    %v10829 = vmul.f32 %v10735, 0.1
    %v10830 = vmul.f32 %v10740, 0.1
    %v10831 = vmul.f32 %v10743, 0.1
    %v10832 = vmul.f32 %v10748, 0.1
    %v10833 = vmul.f32 %v10751, 0.1
    %v10834 = vmul.f32 %v10756, 0.1
    %v10835 = vmul.f32 %v10759, 0.1
    %v10836 = vmul.f32 %v10764, 0.1
    %v10837 = vmul.f32 %v10767, 0.1
    %v10838 = vmul.f32 %v10772, 0.1
    %v10839 = vmul.f32 %v10775, 0.1
    %v10840 = vmul.f32 %v10780, 0.1
    %v10841 = vmul.f32 %v10783, 0.1
    %v10842 = vmul.f32 %v10788, 0.1
    %v10843 = vmul.f32 %v10791, 0.1
    %v10844 = vmul.f32 %v10796, 0.1
    %v10845 = vmul.f32 %v10799, 0.1
    %v10846 = vmul.f32 %v10804, 0.1
    %v10847 = vmul.f32 %v10807, 0.1
    %v10848 = vmul.f32 %v10812, 0.1
    %v10849 = vmul.f32 %v10815, 0.1
    %v10850 = vmax.f32 %v10692, %v10818
    %v10851 = vmax.f32 %v10695, %v10819
    %v10852 = vmax.f32 %v10700, %v10820
    %v10853 = vmax.f32 %v10703, %v10821
    %v10854 = vmax.f32 %v10708, %v10822
    %v10855 = vmax.f32 %v10711, %v10823
    %v10856 = vmax.f32 %v10716, %v10824
    %v10857 = vmax.f32 %v10719, %v10825
    %v10858 = vmax.f32 %v10724, %v10826
    %v10859 = vmax.f32 %v10727, %v10827
    %v10860 = vmax.f32 %v10732, %v10828
    %v10861 = vmax.f32 %v10735, %v10829
    %v10862 = vmax.f32 %v10740, %v10830
    %v10863 = vmax.f32 %v10743, %v10831
    %v10864 = vmax.f32 %v10748, %v10832
    %v10865 = vmax.f32 %v10751, %v10833
    %v10866 = vmax.f32 %v10756, %v10834
    %v10867 = vmax.f32 %v10759, %v10835
    %v10868 = vmax.f32 %v10764, %v10836
    %v10869 = vmax.f32 %v10767, %v10837
    %v10870 = vmax.f32 %v10772, %v10838
    %v10871 = vmax.f32 %v10775, %v10839
    %v10872 = vmax.f32 %v10780, %v10840
    %v10873 = vmax.f32 %v10783, %v10841
    %v10874 = vmax.f32 %v10788, %v10842
    %v10875 = vmax.f32 %v10791, %v10843
    %v10876 = vmax.f32 %v10796, %v10844
    %v10877 = vmax.f32 %v10799, %v10845
    %v10878 = vmax.f32 %v10804, %v10846
    %v10879 = vmax.f32 %v10807, %v10847
    %v10880 = vmax.f32 %v10812, %v10848
    %v10881 = vmax.f32 %v10815, %v10849
    %v10882 = vpack.c.bf16 %v10851, %v10850
    %v10883 = vpack.c.bf16 %v10853, %v10852
    %v10884 = vpack.c.bf16 %v10855, %v10854
    %v10885 = vpack.c.bf16 %v10857, %v10856
    %v10886 = vpack.c.bf16 %v10859, %v10858
    %v10887 = vpack.c.bf16 %v10861, %v10860
    %v10888 = vpack.c.bf16 %v10863, %v10862
    %v10889 = vpack.c.bf16 %v10865, %v10864
    %v10890 = vpack.c.bf16 %v10867, %v10866
    %v10891 = vpack.c.bf16 %v10869, %v10868
    %v10892 = vpack.c.bf16 %v10871, %v10870
    %v10893 = vpack.c.bf16 %v10873, %v10872
    %v10894 = vpack.c.bf16 %v10875, %v10874
    %v10895 = vpack.c.bf16 %v10877, %v10876
    %v10896 = vpack.c.bf16 %v10879, %v10878
    %v10897 = vpack.c.bf16 %v10881, %v10880
    %v10898 = vld [vmem:[#allocation11] sm:$0xff]
    %v10899 = vld [vmem:[%s12] sm:$0xff]
    %10901 = vset.pattern.permute.xlu0 0
    %10902 = vperm.xlu0 %10901, %v10899
    %v10903 = vpop.permute.xlu0 %10902
    %v10906 = vunpack.c.l.b16 %v10898
    %v10907 = vunpack.c.h.b16 %v10898
    %v10908 = vpack.c.b16 %v10906, %v10906
    %v10909 = vpack.c.b16 %v10907, %v10907
    %10912 = vmatprep.subr.bf16.mxu0 0
    %10913 = vmatpush1.bf16.msra.mxu0 %v10882
    %10914 = vmatprep.subr.bf16.mxu0 0
    %10915 = vmatpush1.bf16.msra.mxu0 %v10883
    %10916 = vmatprep.subr.bf16.mxu0 0
    %10917 = vmatpush1.bf16.msra.mxu0 %v10884
    %10918 = vmatprep.subr.bf16.mxu0 0
    %10919 = vmatpush1.bf16.msra.mxu0 %v10885
    %10920 = vmatprep.subr.bf16.mxu0 0
    %10921 = vmatpush1.bf16.msra.mxu0 %v10886
    %10922 = vmatprep.subr.bf16.mxu0 0
    %10923 = vmatpush1.bf16.msra.mxu0 %v10887
    %10924 = vmatprep.subr.bf16.mxu0 0
    %10925 = vmatpush1.bf16.msra.mxu0 %v10888
    %10926 = vmatprep.subr.bf16.mxu0 0
    %10927 = vmatpush1.bf16.msra.mxu0 %v10889
    %10928 = vmatprep.subr.bf16.mxu0 0
    %10929 = vmatpush1.bf16.msra.mxu0 %v10890
    %10930 = vmatprep.subr.bf16.mxu0 0
    %10931 = vmatpush1.bf16.msra.mxu0 %v10891
    %10932 = vmatprep.subr.bf16.mxu0 0
    %10933 = vmatpush1.bf16.msra.mxu0 %v10892
    %10934 = vmatprep.subr.bf16.mxu0 0
    %10935 = vmatpush1.bf16.msra.mxu0 %v10893
    %10936 = vmatprep.subr.bf16.mxu0 0
    %10937 = vmatpush1.bf16.msra.mxu0 %v10894
    %10938 = vmatprep.subr.bf16.mxu0 0
    %10939 = vmatpush1.bf16.msra.mxu0 %v10895
    %10940 = vmatprep.subr.bf16.mxu0 0
    %10941 = vmatpush1.bf16.msra.mxu0 %v10896
    %10942 = vmatprep.subr.bf16.mxu0 0
    %10943 = vmatpush1.bf16.msra.mxu0 %v10897
    %10944 = vmatprep.mubr.bf16.mxu0 %v10909
    %10945 = vmatmul.mubr.bf16.gmra.mrb[0].mxu0 %v10908
    %v10946 = vpop.f32.mrb[0].mxu0
    %v10947 = vadd.f32 %v10903, %v10946
    %v10948 = vpop.f32.mrb[0].mxu0
    %v10949 = vpop.f32.mrb[0].mxu0
    %v10950 = vpop.f32.mrb[0].mxu0
    %10951 = vdwg.mxu0
    %vm10952 = vcmask 64512
    %10953 = vst.msk [vmem:[#allocation13] sm:$0xff] %vm10952, %v10947
    // Predicated region
    $region78: #{tpu_custom_call.1} parent=1 // pred_check
      _
    $region79: #{tpu_custom_call.1} parent=1 // pred_check_branch
      %10955 = sbr.rel (0) target = $region81
    $region80: #{tpu_custom_call.1} parent=1 // pred_region
      %s10957 = ssub.s32 128, 128
      %10958 = vsyncadd [#allocation4], %s10957
      %s10960 = sshll.u32 [#allocation13], 4
      %s10961 = int_to_ptr.vmem [resolvable:$true] %s10960
      %10963 = dma.vmem_to_hbm [thread:$0]  %s10961, 128, %s13, [#allocation4]
    $region81: #{tpu_custom_call.1} parent=1 // pred_fallthru
      _
    // Predicated region
    $region82: #{tpu_custom_call.1} parent=1 // pred_check
      _
    $region83: #{tpu_custom_call.1} parent=1 // pred_check_branch
      %10965 = sbr.rel (0) target = $region85
    $region84: #{tpu_custom_call.1} parent=1 // pred_region
      %10966 = dma.done [#allocation4], 128
    $region85: #{tpu_custom_call.1} parent=1 // pred_fallthru
      _
    %10967 = vsyncpa [#allocation3], 1
    %10968 = vsyncpa [#allocation6], 1
    %10969 = vsyncpa [#allocation9], 1
    %10970 = vsyncpa [#allocation12], 1
    %10971 = vsyncpa [#allocation4], 1

</llo_original>
